<compile_context>
chip_gen: v5e
topology: v5e:2x2
jax: 0.10.0
libtpu: 0.0.40
codegen_flags: <defaults>
</compile_context>

<pallas_src>
import jax
import jax.numpy as jnp
from jax import lax
from jax.experimental import pallas as pl
from jax.experimental.pallas import tpu as pltpu

_VMEM_LIMIT = 48 * 1024 * 1024  # below v7x's 64 MiB physical VMEM


# ----------------------------------------------------------------------------
# Pallas kernels
# ----------------------------------------------------------------------------
def _head_kernel(x_ref, w_ref, b_ref, o_ref):
    # x: (BP, Cin), w: (Cin, 2f), b: (1, 2f) -> o: (BP, 2f)
    o_ref[...] = (
        jnp.dot(x_ref[...], w_ref[...], preferred_element_type=jnp.float32)
        + b_ref[...]
    ).astype(o_ref.dtype)


def head_matmul(x2d, w, b, block_rows=512):
    """Pixel-tiled y = x2d @ w + b (fused conv1 || conv_f)."""
    P, Cin = x2d.shape
    Cout = w.shape[1]
    bp = min(block_rows, P)
    return pl.pallas_call(
        _head_kernel,
        out_shape=jax.ShapeDtypeStruct((P, Cout), jnp.float32),
        grid=(pl.cdiv(P, bp),),
        in_specs=[
            pl.BlockSpec((bp, Cin), lambda i: (i, 0)),
            pl.BlockSpec((Cin, Cout), lambda i: (0, 0)),
            pl.BlockSpec((1, Cout), lambda i: (0, 0)),
        ],
        out_specs=pl.BlockSpec((bp, Cout), lambda i: (i, 0)),
        compiler_params=pltpu.CompilerParams(
            dimension_semantics=("parallel",),
            vmem_limit_bytes=_VMEM_LIMIT),
    )(x2d, w, b)


def conv3x3_flat(x_flat, w9, b, row_stride, p_out):
    """'valid' 3x3 conv on a row-flattened image, one batch per grid step.

    x_flat: (N, Pin, f) flattened (rows*cols, channels) image with at least
            2*row_stride + 2 rows of slack at the bottom (zero padded).
    w9    : (9*f, f) where tap t = 3*dy + dx occupies rows [t*f, (t+1)*f).
    out[n, r] = b + sum_t x_flat[n, r + dy*row_stride + dx] @ w9[t]
    Rows whose column index wraps around are garbage and dropped by the caller.
    """
    N, Pin, f = x_flat.shape
    offs = [dy * row_stride + dx for dy in range(3) for dx in range(3)]
    assert offs[-1] + p_out <= Pin, "insufficient bottom padding"

    def kernel(x_ref, w_ref, b_ref, o_ref):
        x = x_ref[0]                                    # (Pin, f)
        w = w_ref[...]                                  # (9f, f)
        acc = jnp.dot(x[offs[0]:offs[0] + p_out, :], w[0:f, :],
                      preferred_element_type=jnp.float32)
        for t in range(1, 9):
            acc = acc + jnp.dot(x[offs[t]:offs[t] + p_out, :],
                                w[t * f:(t + 1) * f, :],
                                preferred_element_type=jnp.float32)
        o_ref[0] = acc + b_ref[...]

    return pl.pallas_call(
        kernel,
        out_shape=jax.ShapeDtypeStruct((N, p_out, f), jnp.float32),
        grid=(N,),
        in_specs=[
            pl.BlockSpec((1, Pin, f), lambda n: (n, 0, 0)),
            pl.BlockSpec((9 * f, f), lambda n: (0, 0)),
            pl.BlockSpec((1, f), lambda n: (0, 0)),
        ],
        out_specs=pl.BlockSpec((1, p_out, f), lambda n: (n, 0, 0)),
        compiler_params=pltpu.CompilerParams(
            dimension_semantics=("parallel",),
            vmem_limit_bytes=_VMEM_LIMIT),
    )(x_flat, w9, b)


def maxpool_dense(x_nhwc, k):
    """Separable dense k x k windowed max (stride 1, 'valid').
    The caller applies the pooling stride with a cheap XLA slice."""
    N, H, W, C = x_nhwc.shape
    sh, sw = H - k + 1, W - k + 1

    def kernel(x_ref, o_ref):
        x = x_ref[0]                                    # (H, W, C)
        cm = x[:, 0:sw, :]
        for dx in range(1, k):                          # column pass (k-1 maxes)
            cm = jnp.maximum(cm, x[:, dx:dx + sw, :])
        rm = cm[0:sh]
        for dy in range(1, k):                          # row pass (k-1 maxes)
            rm = jnp.maximum(rm, cm[dy:dy + sh])
        o_ref[0] = rm

    return pl.pallas_call(
        kernel,
        out_shape=jax.ShapeDtypeStruct((N, sh, sw, C), x_nhwc.dtype),
        grid=(N,),
        in_specs=[pl.BlockSpec((1, H, W, C), lambda n: (n, 0, 0, 0))],
        out_specs=pl.BlockSpec((1, sh, sw, C), lambda n: (n, 0, 0, 0)),
        compiler_params=pltpu.CompilerParams(
            dimension_semantics=("parallel",)),
    )(x_nhwc)


def bmm_shared_lhs(a, x):
    """out[n] = a @ x[n];  a: (M, K) shared, x: (N, K, L)."""
    M, K = a.shape
    N, _, L = x.shape

    def kernel(a_ref, x_ref, o_ref):
        o_ref[0] = jnp.dot(a_ref[...], x_ref[0],
                           preferred_element_type=jnp.float32)

    return pl.pallas_call(
        kernel,
        out_shape=jax.ShapeDtypeStruct((N, M, L), jnp.float32),
        grid=(N,),
        in_specs=[
            pl.BlockSpec((M, K), lambda n: (0, 0)),
            pl.BlockSpec((1, K, L), lambda n: (n, 0, 0)),
        ],
        out_specs=pl.BlockSpec((1, M, L), lambda n: (n, 0, 0)),
        compiler_params=pltpu.CompilerParams(
            dimension_semantics=("parallel",)),
    )(a, x)


def _tail_kernel(x_ref, cf_ref, u_ref, w4_ref, b4_ref, o_ref):
    c4 = jnp.dot(u_ref[...] + cf_ref[...], w4_ref[...],
                 preferred_element_type=jnp.float32) + b4_ref[...]
    o_ref[...] = (x_ref[...] * jax.nn.sigmoid(c4)).astype(o_ref.dtype)


def tail_gate(x_flat, cf_flat, u_flat, w4, b4, block_rows=512):
    """out = x * sigmoid((u + cf) @ W4 + b4), pixel-tiled."""
    P, Cn = x_flat.shape
    f = cf_flat.shape[1]
    bp = min(block_rows, P)
    return pl.pallas_call(
        _tail_kernel,
        out_shape=jax.ShapeDtypeStruct((P, Cn), jnp.float32),
        grid=(pl.cdiv(P, bp),),
        in_specs=[
            pl.BlockSpec((bp, Cn), lambda i: (i, 0)),
            pl.BlockSpec((bp, f), lambda i: (i, 0)),
            pl.BlockSpec((bp, f), lambda i: (i, 0)),
            pl.BlockSpec((f, Cn), lambda i: (0, 0)),
            pl.BlockSpec((1, Cn), lambda i: (0, 0)),
        ],
        out_specs=pl.BlockSpec((bp, Cn), lambda i: (i, 0)),
        compiler_params=pltpu.CompilerParams(
            dimension_semantics=("parallel",),
            vmem_limit_bytes=_VMEM_LIMIT),
    )(x_flat, cf_flat, u_flat, w4, b4)


# ----------------------------------------------------------------------------
# Plain-JAX glue
# ----------------------------------------------------------------------------
def bilinear_matrix(out_size, in_size):
    """PyTorch F.interpolate(mode='bilinear', align_corners=False) 1-D weights."""
    i = jnp.arange(out_size, dtype=jnp.float32)
    src = jnp.maximum((i + 0.5) * (in_size / out_size) - 0.5, 0.0)
    i0 = jnp.clip(jnp.floor(src), 0, in_size - 1).astype(jnp.int32)
    i1 = jnp.minimum(i0 + 1, in_size - 1)
    l1 = src - i0.astype(jnp.float32)
    l0 = 1.0 - l1
    M = jnp.zeros((out_size, in_size), jnp.float32)
    M = M.at[jnp.arange(out_size), i0].add(l0)
    M = M.at[jnp.arange(out_size), i1].add(l1)
    return M


@jax.jit
def esa_pallas(x_nchw, p):
    N, Cn, H, W = x_nchw.shape
    f = p['w1'].shape[0]
    x = jnp.transpose(x_nchw, (0, 2, 3, 1)).astype(jnp.float32)     # NHWC
    x_flat = x.reshape(N * H * W, Cn)

    # Repack PyTorch OIHW conv weights into matmul form (constant-folded under jit).
    w1m = p['w1'][:, :, 0, 0].T                                     # (Cn, f)
    wfm = p['wf'][:, :, 0, 0].T                                     # (f, f)
    w2m = jnp.transpose(p['w2'], (2, 3, 1, 0)).reshape(9 * f, f)    # tap-major
    w3m = jnp.transpose(p['w3'], (2, 3, 1, 0)).reshape(9 * f, f)
    w4m = p['w4'][:, :, 0, 0].T                                     # (f, Cn)
    wcat = jnp.concatenate([w1m, w1m @ wfm], axis=1)                # (Cn, 2f)
    bcat = jnp.concatenate([p['b1'], p['b1'] @ wfm + p['bf']]).reshape(1, 2 * f)

    # 1. fused conv1 (1x1) + conv_f (1x1 of conv1) in one pixel-tiled matmul
    y = head_matmul(x_flat, wcat, bcat)                             # (P, 2f)
    c1_flat = y[:, :f]                                              # c1_
    cf_flat = y[:, f:]                                              # conv_f(c1_)

    # 2. conv2 (3x3, stride 2, pad 0): flat 9-tap kernel + XLA stride-2 pick
    c1_img = c1_flat.reshape(N, H, W, f)
    c1_pad = jnp.pad(c1_img, ((0, 0), (0, 2), (0, 0), (0, 0)))
    d2 = conv3x3_flat(c1_pad.reshape(N, (H + 2) * W, f), w2m,
                      p['b2'].reshape(1, f), W, (H - 2) * W)
    c1s = d2.reshape(N, H - 2, W, f)[:, ::2, 0:W - 2:2, :]          # (N,H2,W2,f)

    # 3. max_pool2d(kernel_size=7, stride=3): separable dense max + XLA pick
    dmax = maxpool_dense(c1s, 7)
    vmax = dmax[:, ::3, ::3, :]                                     # (N,OH,OW,f)
    OH, OW = vmax.shape[1], vmax.shape[2]

    # 4. conv3 (3x3, pad 1): pad in XLA, flat 9-tap kernel
    Wp = OW + 2
    v_pad = jnp.pad(vmax, ((0, 0), (1, 3), (1, 1), (0, 0)))
    d3 = conv3x3_flat(v_pad.reshape(N, (OH + 4) * Wp, f), w3m,
                      p['b3'].reshape(1, f), Wp, OH * Wp)
    c3 = d3.reshape(N, OH, Wp, f)[:, :, 0:OW, :]                    # (N,OH,OW,f)

    # 5. bilinear upsample (align_corners=False) as two separable matmuls
    R = bilinear_matrix(H, OH)                                      # (H, OH)
    Cm = bilinear_matrix(W, OW)                                     # (W, OW)
    c3_t = jnp.transpose(c3, (0, 2, 1, 3)).reshape(N, OW, OH * f)
    dmat = bmm_shared_lhs(Cm, c3_t)                                 # (N, W, OH*f)
    dr = jnp.transpose(dmat.reshape(N, W, OH, f),
                       (0, 2, 1, 3)).reshape(N, OH, W * f)
    umat = bmm_shared_lhs(R, dr)                                    # (N, H, W*f)
    u_flat = umat.reshape(N * H * W, f)

    # 6. conv4 (1x1) + sigmoid + gating, pixel-tiled
    out_flat = tail_gate(x_flat, cf_flat, u_flat, w4m, p['b4'].reshape(1, Cn))
    return jnp.transpose(out_flat.reshape(N, H, W, Cn), (0, 3, 1, 2))  # NCHW


# ----------------------------------------------------------------------------
# Pure-JAX reference (mirrors the PyTorch forward) for a correctness check
# ----------------------------------------------------------------------------
def esa_reference(x, p):
    dn = ('NCHW', 'OIHW', 'NCHW')
    hp = lax.Precision.HIGHEST

    def conv(h, w, b, stride=1, pad=0):
        y = lax.conv_general_dilated(
            h, w, (stride, stride), [(pad, pad), (pad, pad)],
            dimension_numbers=dn, precision=hp)
        return y + b.reshape(1, -1, 1, 1)

    c1_ = conv(x, p['w1'], p['b1'])
    c1 = conv(c1_, p['w2'], p['b2'], stride=2, pad=0)
    vmax = lax.reduce_window(c1, -jnp.inf, lax.max, (1, 1, 7, 7), (1, 1, 3, 3), 'VALID')
    c3 = conv(vmax, p['w3'], p['b3'], pad=1)
    R = bilinear_matrix(x.shape[2], c3.shape[2])
    Cm = bilinear_matrix(x.shape[3], c3.shape[3])
    c3u = jnp.einsum('Hh,Ww,nchw->ncHW', R, Cm, c3, precision=hp)
    cf = conv(c1_, p['wf'], p['bf'])
    c4 = conv(c3u + cf, p['w4'], p['b4'])
    return x * jax.nn.sigmoid(c4)


# ----------------------------------------------------------------------------
if __name__ == "__main__":
    key = jax.random.PRNGKey(0)
    N, n_feats, H, W = 2, 16, 32, 32
    f = 8  # esa_channels

    ks = jax.random.split(key, 11)
    x = jax.random.normal(ks[0], (N, n_feats, H, W), jnp.float32)
    params = {
        'w1': 0.1 * jax.random.normal(ks[1], (f, n_feats, 1, 1), jnp.float32),
        'b1': 0.1 * jax.random.normal(ks[2], (f,), jnp.float32),
        'wf': 0.1 * jax.random.normal(ks[3], (f, f, 1, 1), jnp.float32),
        'bf': 0.1 * jax.random.normal(ks[4], (f,), jnp.float32),
        'w2': 0.1 * jax.random.normal(ks[5], (f, f, 3, 3), jnp.float32),
        'b2': 0.1 * jax.random.normal(ks[6], (f,), jnp.float32),
        'w3': 0.1 * jax.random.normal(ks[7], (f, f, 3, 3), jnp.float32),
        'b3': 0.1 * jax.random.normal(ks[8], (f,), jnp.float32),
        'w4': 0.1 * jax.random.normal(ks[9], (n_feats, f, 1, 1), jnp.float32),
        'b4': 0.1 * jax.random.normal(ks[10], (n_feats,), jnp.float32),
    }

    out = jax.block_until_ready(esa_pallas(x, params))
    ref = jax.block_until_ready(esa_reference(x, params))

    assert out.shape == x.shape and out.dtype == jnp.float32
    err = float(jnp.max(jnp.abs(out - ref)))
    assert err < 2e-3, f"max abs error too large: {err}"
    print("KERNEL_OK")
</pallas_src>

<mosaic_0001>
module attributes {stable_mosaic.version = 11 : i64} {
  func.func @_head_kernel(%arg0: i32, %arg1: memref<512x16xf32, #tpu.memory_space<vmem>>, %arg2: memref<16x16xf32, #tpu.memory_space<vmem>>, %arg3: memref<1x16xf32, #tpu.memory_space<vmem>>, %arg4: memref<512x16xf32, #tpu.memory_space<vmem>>) attributes {dimension_semantics = [#tpu.dimension_semantics<parallel>], iteration_bounds = array<i64: 4>, scalar_prefetch = 0 : i64, scratch_operands = 0 : i64, tpu.core_type = #tpu.core_type<tc>, window_params = [{transform_indices = @transform_0, window_bounds = array<i64: 512, 16>}, {pipeline_mode = #tpu.pipeline_mode<synchronous>, transform_indices = @transform_1, window_bounds = array<i64: 16, 16>}, {pipeline_mode = #tpu.pipeline_mode<synchronous>, transform_indices = @transform_2, window_bounds = array<i64: 1, 16>}, {transform_indices = @transform_3, window_bounds = array<i64: 512, 16>}]} {
    %c0 = arith.constant 0 : index
    %c0_0 = arith.constant 0 : index
    %0 = vector.load %arg1[%c0, %c0_0] : memref<512x16xf32, #tpu.memory_space<vmem>>, vector<512x16xf32>
    %c0_1 = arith.constant 0 : index
    %c0_2 = arith.constant 0 : index
    %1 = vector.load %arg2[%c0_1, %c0_2] : memref<16x16xf32, #tpu.memory_space<vmem>>, vector<16x16xf32>
    %cst = arith.constant dense<0.000000e+00> : vector<512x16xf32>
    %2 = tpu.matmul %0, %1, %cst {dimension_numbers = #tpu.dot_dimension_numbers<[1], [0], [0], [1], [0, 0, 1, 1], [], []>} : vector<512x16xf32>, vector<16x16xf32>, vector<512x16xf32> -> vector<512x16xf32>
    %c0_3 = arith.constant 0 : index
    %c0_4 = arith.constant 0 : index
    %3 = vector.load %arg3[%c0_3, %c0_4] : memref<1x16xf32, #tpu.memory_space<vmem>>, vector<1x16xf32>
    %4 = vector.broadcast %3 : vector<1x16xf32> to vector<512x16xf32>
    %5 = arith.addf %2, %4 : vector<512x16xf32>
    %c0_5 = arith.constant 0 : index
    %c0_6 = arith.constant 0 : index
    %6 = vector.load %arg4[%c0_5, %c0_6] : memref<512x16xf32, #tpu.memory_space<vmem>>, vector<512x16xf32>
    tpu.vector_store %arg4[%c0_5, %c0_6], %5 {strides = array<i32>} : memref<512x16xf32, #tpu.memory_space<vmem>>, vector<512x16xf32>,
    return
  }
  func.func @transform_0(%arg0: i32) -> (i32, i32) {
    %c0_i32 = arith.constant 0 : i32
    %c0_i32_0 = arith.constant 0 : i32
    return %arg0, %c0_i32 : i32, i32
  }
  func.func @transform_1(%arg0: i32) -> (i32, i32) {
    %c0_i32 = arith.constant 0 : i32
    %c0_i32_0 = arith.constant 0 : i32
    %c0_i32_1 = arith.constant 0 : i32
    return %c0_i32, %c0_i32_0 : i32, i32
  }
  func.func @transform_2(%arg0: i32) -> (i32, i32) {
    %c0_i32 = arith.constant 0 : i32
    %c0_i32_0 = arith.constant 0 : i32
    %c0_i32_1 = arith.constant 0 : i32
    return %c0_i32, %c0_i32_0 : i32, i32
  }
  func.func @transform_3(%arg0: i32) -> (i32, i32) {
    %c0_i32 = arith.constant 0 : i32
    %c0_i32_0 = arith.constant 0 : i32
    return %arg0, %c0_i32 : i32, i32
  }
}

module attributes {stable_mosaic.version = 11 : i64} {
  func.func @kernel(%arg0: i32, %arg1: memref<1x1088x8xf32, #tpu.memory_space<vmem>>, %arg2: memref<72x8xf32, #tpu.memory_space<vmem>>, %arg3: memref<1x8xf32, #tpu.memory_space<vmem>>, %arg4: memref<1x960x8xf32, #tpu.memory_space<vmem>>) attributes {dimension_semantics = [#tpu.dimension_semantics<parallel>], iteration_bounds = array<i64: 2>, scalar_prefetch = 0 : i64, scratch_operands = 0 : i64, tpu.core_type = #tpu.core_type<tc>, window_params = [{transform_indices = @transform_0, window_bounds = array<i64: 1, 1088, 8>}, {pipeline_mode = #tpu.pipeline_mode<synchronous>, transform_indices = @transform_1, window_bounds = array<i64: 72, 8>}, {pipeline_mode = #tpu.pipeline_mode<synchronous>, transform_indices = @transform_2, window_bounds = array<i64: 1, 8>}, {transform_indices = @transform_3, window_bounds = array<i64: 1, 960, 8>}]} {
    %c0 = arith.constant 0 : index
    %c0_0 = arith.constant 0 : index
    %c0_1 = arith.constant 0 : index
    %0 = vector.load %arg1[%c0, %c0_0, %c0_1] : memref<1x1088x8xf32, #tpu.memory_space<vmem>>, vector<1x1088x8xf32>
    %1 = vector.shape_cast %0 : vector<1x1088x8xf32> to vector<1088x8xf32>
    %c0_2 = arith.constant 0 : index
    %c0_3 = arith.constant 0 : index
    %2 = vector.load %arg2[%c0_2, %c0_3] : memref<72x8xf32, #tpu.memory_space<vmem>>, vector<72x8xf32>
    %3 = vector.extract_strided_slice %1 {offsets = [0, 0], sizes = [960, 8], strides = [1, 1]} : vector<1088x8xf32> to vector<960x8xf32>
    %4 = vector.extract_strided_slice %2 {offsets = [0, 0], sizes = [8, 8], strides = [1, 1]} : vector<72x8xf32> to vector<8x8xf32>
    %cst = arith.constant dense<0.000000e+00> : vector<960x8xf32>
    %5 = tpu.matmul %3, %4, %cst {dimension_numbers = #tpu.dot_dimension_numbers<[1], [0], [0], [1], [0, 0, 1, 1], [], []>} : vector<960x8xf32>, vector<8x8xf32>, vector<960x8xf32> -> vector<960x8xf32>
    %6 = vector.extract_strided_slice %1 {offsets = [1, 0], sizes = [960, 8], strides = [1, 1]} : vector<1088x8xf32> to vector<960x8xf32>
    %7 = vector.extract_strided_slice %2 {offsets = [8, 0], sizes = [8, 8], strides = [1, 1]} : vector<72x8xf32> to vector<8x8xf32>
    %cst_4 = arith.constant dense<0.000000e+00> : vector<960x8xf32>
    %8 = tpu.matmul %6, %7, %cst_4 {dimension_numbers = #tpu.dot_dimension_numbers<[1], [0], [0], [1], [0, 0, 1, 1], [], []>} : vector<960x8xf32>, vector<8x8xf32>, vector<960x8xf32> -> vector<960x8xf32>
    %9 = arith.addf %5, %8 : vector<960x8xf32>
    %10 = vector.extract_strided_slice %1 {offsets = [2, 0], sizes = [960, 8], strides = [1, 1]} : vector<1088x8xf32> to vector<960x8xf32>
    %11 = vector.extract_strided_slice %2 {offsets = [16, 0], sizes = [8, 8], strides = [1, 1]} : vector<72x8xf32> to vector<8x8xf32>
    %cst_5 = arith.constant dense<0.000000e+00> : vector<960x8xf32>
    %12 = tpu.matmul %10, %11, %cst_5 {dimension_numbers = #tpu.dot_dimension_numbers<[1], [0], [0], [1], [0, 0, 1, 1], [], []>} : vector<960x8xf32>, vector<8x8xf32>, vector<960x8xf32> -> vector<960x8xf32>
    %13 = arith.addf %9, %12 : vector<960x8xf32>
    %14 = vector.extract_strided_slice %1 {offsets = [32, 0], sizes = [960, 8], strides = [1, 1]} : vector<1088x8xf32> to vector<960x8xf32>
    %15 = vector.extract_strided_slice %2 {offsets = [24, 0], sizes = [8, 8], strides = [1, 1]} : vector<72x8xf32> to vector<8x8xf32>
    %cst_6 = arith.constant dense<0.000000e+00> : vector<960x8xf32>
    %16 = tpu.matmul %14, %15, %cst_6 {dimension_numbers = #tpu.dot_dimension_numbers<[1], [0], [0], [1], [0, 0, 1, 1], [], []>} : vector<960x8xf32>, vector<8x8xf32>, vector<960x8xf32> -> vector<960x8xf32>
    %17 = arith.addf %13, %16 : vector<960x8xf32>
    %18 = vector.extract_strided_slice %1 {offsets = [33, 0], sizes = [960, 8], strides = [1, 1]} : vector<1088x8xf32> to vector<960x8xf32>
    %19 = vector.extract_strided_slice %2 {offsets = [32, 0], sizes = [8, 8], strides = [1, 1]} : vector<72x8xf32> to vector<8x8xf32>
    %cst_7 = arith.constant dense<0.000000e+00> : vector<960x8xf32>
    %20 = tpu.matmul %18, %19, %cst_7 {dimension_numbers = #tpu.dot_dimension_numbers<[1], [0], [0], [1], [0, 0, 1, 1], [], []>} : vector<960x8xf32>, vector<8x8xf32>, vector<960x8xf32> -> vector<960x8xf32>
    %21 = arith.addf %17, %20 : vector<960x8xf32>
    %22 = vector.extract_strided_slice %1 {offsets = [34, 0], sizes = [960, 8], strides = [1, 1]} : vector<1088x8xf32> to vector<960x8xf32>
    %23 = vector.extract_strided_slice %2 {offsets = [40, 0], sizes = [8, 8], strides = [1, 1]} : vector<72x8xf32> to vector<8x8xf32>
    %cst_8 = arith.constant dense<0.000000e+00> : vector<960x8xf32>
    %24 = tpu.matmul %22, %23, %cst_8 {dimension_numbers = #tpu.dot_dimension_numbers<[1], [0], [0], [1], [0, 0, 1, 1], [], []>} : vector<960x8xf32>, vector<8x8xf32>, vector<960x8xf32> -> vector<960x8xf32>
    %25 = arith.addf %21, %24 : vector<960x8xf32>
    %26 = vector.extract_strided_slice %1 {offsets = [64, 0], sizes = [960, 8], strides = [1, 1]} : vector<1088x8xf32> to vector<960x8xf32>
    %27 = vector.extract_strided_slice %2 {offsets = [48, 0], sizes = [8, 8], strides = [1, 1]} : vector<72x8xf32> to vector<8x8xf32>
    %cst_9 = arith.constant dense<0.000000e+00> : vector<960x8xf32>
    %28 = tpu.matmul %26, %27, %cst_9 {dimension_numbers = #tpu.dot_dimension_numbers<[1], [0], [0], [1], [0, 0, 1, 1], [], []>} : vector<960x8xf32>, vector<8x8xf32>, vector<960x8xf32> -> vector<960x8xf32>
    %29 = arith.addf %25, %28 : vector<960x8xf32>
    %30 = vector.extract_strided_slice %1 {offsets = [65, 0], sizes = [960, 8], strides = [1, 1]} : vector<1088x8xf32> to vector<960x8xf32>
    %31 = vector.extract_strided_slice %2 {offsets = [56, 0], sizes = [8, 8], strides = [1, 1]} : vector<72x8xf32> to vector<8x8xf32>
    %cst_10 = arith.constant dense<0.000000e+00> : vector<960x8xf32>
    %32 = tpu.matmul %30, %31, %cst_10 {dimension_numbers = #tpu.dot_dimension_numbers<[1], [0], [0], [1], [0, 0, 1, 1], [], []>} : vector<960x8xf32>, vector<8x8xf32>, vector<960x8xf32> -> vector<960x8xf32>
    %33 = arith.addf %29, %32 : vector<960x8xf32>
    %34 = vector.extract_strided_slice %1 {offsets = [66, 0], sizes = [960, 8], strides = [1, 1]} : vector<1088x8xf32> to vector<960x8xf32>
    %35 = vector.extract_strided_slice %2 {offsets = [64, 0], sizes = [8, 8], strides = [1, 1]} : vector<72x8xf32> to vector<8x8xf32>
    %cst_11 = arith.constant dense<0.000000e+00> : vector<960x8xf32>
    %36 = tpu.matmul %34, %35, %cst_11 {dimension_numbers = #tpu.dot_dimension_numbers<[1], [0], [0], [1], [0, 0, 1, 1], [], []>} : vector<960x8xf32>, vector<8x8xf32>, vector<960x8xf32> -> vector<960x8xf32>
    %37 = arith.addf %33, %36 : vector<960x8xf32>
    %c0_12 = arith.constant 0 : index
    %c0_13 = arith.constant 0 : index
    %38 = vector.load %arg3[%c0_12, %c0_13] : memref<1x8xf32, #tpu.memory_space<vmem>>, vector<1x8xf32>
    %39 = vector.broadcast %38 : vector<1x8xf32> to vector<960x8xf32>
    %40 = arith.addf %37, %39 : vector<960x8xf32>
    %c0_14 = arith.constant 0 : index
    %c0_15 = arith.constant 0 : index
    %c0_16 = arith.constant 0 : index
    %41 = vector.load %arg4[%c0_14, %c0_15, %c0_16] : memref<1x960x8xf32, #tpu.memory_space<vmem>>, vector<1x960x8xf32>
    %42 = vector.shape_cast %41 : vector<1x960x8xf32> to vector<960x8xf32>
    %43 = vector.shape_cast %40 : vector<960x8xf32> to vector<1x960x8xf32>
    tpu.vector_store %arg4[%c0_14, %c0_15, %c0_16], %43 {strides = array<i32>} : memref<1x960x8xf32, #tpu.memory_space<vmem>>, vector<1x960x8xf32>,
    return
  }
  func.func @transform_0(%arg0: i32) -> (i32, i32, i32) {
    %c0_i32 = arith.constant 0 : i32
    %c0_i32_0 = arith.constant 0 : i32
    %c0_i32_1 = arith.constant 0 : i32
    return %arg0, %c0_i32, %c0_i32_0 : i32, i32, i32
  }
  func.func @transform_1(%arg0: i32) -> (i32, i32) {
    %c0_i32 = arith.constant 0 : i32
    %c0_i32_0 = arith.constant 0 : i32
    %c0_i32_1 = arith.constant 0 : i32
    return %c0_i32, %c0_i32_0 : i32, i32
  }
  func.func @transform_2(%arg0: i32) -> (i32, i32) {
    %c0_i32 = arith.constant 0 : i32
    %c0_i32_0 = arith.constant 0 : i32
    %c0_i32_1 = arith.constant 0 : i32
    return %c0_i32, %c0_i32_0 : i32, i32
  }
  func.func @transform_3(%arg0: i32) -> (i32, i32, i32) {
    %c0_i32 = arith.constant 0 : i32
    %c0_i32_0 = arith.constant 0 : i32
    %c0_i32_1 = arith.constant 0 : i32
    return %arg0, %c0_i32, %c0_i32_0 : i32, i32, i32
  }
}

module attributes {stable_mosaic.version = 11 : i64} {
  func.func @kernel(%arg0: i32, %arg1: memref<1x15x15x8xf32, #tpu.memory_space<vmem>>, %arg2: memref<1x9x9x8xf32, #tpu.memory_space<vmem>>) attributes {dimension_semantics = [#tpu.dimension_semantics<parallel>], iteration_bounds = array<i64: 2>, scalar_prefetch = 0 : i64, scratch_operands = 0 : i64, tpu.core_type = #tpu.core_type<tc>, window_params = [{transform_indices = @transform_0, window_bounds = array<i64: 1, 15, 15, 8>}, {transform_indices = @transform_1, window_bounds = array<i64: 1, 9, 9, 8>}]} {
    %c0 = arith.constant 0 : index
    %c0_0 = arith.constant 0 : index
    %c0_1 = arith.constant 0 : index
    %c0_2 = arith.constant 0 : index
    %0 = vector.load %arg1[%c0, %c0_0, %c0_1, %c0_2] : memref<1x15x15x8xf32, #tpu.memory_space<vmem>>, vector<1x15x15x8xf32>
    %1 = vector.shape_cast %0 : vector<1x15x15x8xf32> to vector<15x15x8xf32>
    %2 = vector.extract_strided_slice %1 {offsets = [0, 0, 0], sizes = [15, 9, 8], strides = [1, 1, 1]} : vector<15x15x8xf32> to vector<15x9x8xf32>
    %3 = vector.extract_strided_slice %1 {offsets = [0, 1, 0], sizes = [15, 9, 8], strides = [1, 1, 1]} : vector<15x15x8xf32> to vector<15x9x8xf32>
    %4 = arith.maximumf %2, %3 : vector<15x9x8xf32>
    %5 = vector.extract_strided_slice %1 {offsets = [0, 2, 0], sizes = [15, 9, 8], strides = [1, 1, 1]} : vector<15x15x8xf32> to vector<15x9x8xf32>
    %6 = arith.maximumf %4, %5 : vector<15x9x8xf32>
    %7 = vector.extract_strided_slice %1 {offsets = [0, 3, 0], sizes = [15, 9, 8], strides = [1, 1, 1]} : vector<15x15x8xf32> to vector<15x9x8xf32>
    %8 = arith.maximumf %6, %7 : vector<15x9x8xf32>
    %9 = vector.extract_strided_slice %1 {offsets = [0, 4, 0], sizes = [15, 9, 8], strides = [1, 1, 1]} : vector<15x15x8xf32> to vector<15x9x8xf32>
    %10 = arith.maximumf %8, %9 : vector<15x9x8xf32>
    %11 = vector.extract_strided_slice %1 {offsets = [0, 5, 0], sizes = [15, 9, 8], strides = [1, 1, 1]} : vector<15x15x8xf32> to vector<15x9x8xf32>
    %12 = arith.maximumf %10, %11 : vector<15x9x8xf32>
    %13 = vector.extract_strided_slice %1 {offsets = [0, 6, 0], sizes = [15, 9, 8], strides = [1, 1, 1]} : vector<15x15x8xf32> to vector<15x9x8xf32>
    %14 = arith.maximumf %12, %13 : vector<15x9x8xf32>
    %15 = vector.extract_strided_slice %14 {offsets = [0, 0, 0], sizes = [9, 9, 8], strides = [1, 1, 1]} : vector<15x9x8xf32> to vector<9x9x8xf32>
    %16 = vector.extract_strided_slice %14 {offsets = [1, 0, 0], sizes = [9, 9, 8], strides = [1, 1, 1]} : vector<15x9x8xf32> to vector<9x9x8xf32>
    %17 = arith.maximumf %15, %16 : vector<9x9x8xf32>
    %18 = vector.extract_strided_slice %14 {offsets = [2, 0, 0], sizes = [9, 9, 8], strides = [1, 1, 1]} : vector<15x9x8xf32> to vector<9x9x8xf32>
    %19 = arith.maximumf %17, %18 : vector<9x9x8xf32>
    %20 = vector.extract_strided_slice %14 {offsets = [3, 0, 0], sizes = [9, 9, 8], strides = [1, 1, 1]} : vector<15x9x8xf32> to vector<9x9x8xf32>
    %21 = arith.maximumf %19, %20 : vector<9x9x8xf32>
    %22 = vector.extract_strided_slice %14 {offsets = [4, 0, 0], sizes = [9, 9, 8], strides = [1, 1, 1]} : vector<15x9x8xf32> to vector<9x9x8xf32>
    %23 = arith.maximumf %21, %22 : vector<9x9x8xf32>
    %24 = vector.extract_strided_slice %14 {offsets = [5, 0, 0], sizes = [9, 9, 8], strides = [1, 1, 1]} : vector<15x9x8xf32> to vector<9x9x8xf32>
    %25 = arith.maximumf %23, %24 : vector<9x9x8xf32>
    %26 = vector.extract_strided_slice %14 {offsets = [6, 0, 0], sizes = [9, 9, 8], strides = [1, 1, 1]} : vector<15x9x8xf32> to vector<9x9x8xf32>
    %27 = arith.maximumf %25, %26 : vector<9x9x8xf32>
    %c0_3 = arith.constant 0 : index
    %c0_4 = arith.constant 0 : index
    %c0_5 = arith.constant 0 : index
    %c0_6 = arith.constant 0 : index
    %28 = vector.load %arg2[%c0_3, %c0_4, %c0_5, %c0_6] : memref<1x9x9x8xf32, #tpu.memory_space<vmem>>, vector<1x9x9x8xf32>
    %29 = vector.shape_cast %28 : vector<1x9x9x8xf32> to vector<9x9x8xf32>
    %30 = vector.shape_cast %27 : vector<9x9x8xf32> to vector<1x9x9x8xf32>
    tpu.vector_store %arg2[%c0_3, %c0_4, %c0_5, %c0_6], %30 {strides = array<i32>} : memref<1x9x9x8xf32, #tpu.memory_space<vmem>>, vector<1x9x9x8xf32>,
    return
  }
  func.func @transform_0(%arg0: i32) -> (i32, i32, i32, i32) {
    %c0_i32 = arith.constant 0 : i32
    %c0_i32_0 = arith.constant 0 : i32
    %c0_i32_1 = arith.constant 0 : i32
    %c0_i32_2 = arith.constant 0 : i32
    return %arg0, %c0_i32, %c0_i32_0, %c0_i32_1 : i32, i32, i32, i32
  }
  func.func @transform_1(%arg0: i32) -> (i32, i32, i32, i32) {
    %c0_i32 = arith.constant 0 : i32
    %c0_i32_0 = arith.constant 0 : i32
    %c0_i32_1 = arith.constant 0 : i32
    %c0_i32_2 = arith.constant 0 : i32
    return %arg0, %c0_i32, %c0_i32_0, %c0_i32_1 : i32, i32, i32, i32
  }
}

module attributes {stable_mosaic.version = 11 : i64} {
  func.func @kernel(%arg0: i32, %arg1: memref<1x35x8xf32, #tpu.memory_space<vmem>>, %arg2: memref<72x8xf32, #tpu.memory_space<vmem>>, %arg3: memref<1x8xf32, #tpu.memory_space<vmem>>, %arg4: memref<1x15x8xf32, #tpu.memory_space<vmem>>) attributes {dimension_semantics = [#tpu.dimension_semantics<parallel>], iteration_bounds = array<i64: 2>, scalar_prefetch = 0 : i64, scratch_operands = 0 : i64, tpu.core_type = #tpu.core_type<tc>, window_params = [{transform_indices = @transform_0, window_bounds = array<i64: 1, 35, 8>}, {pipeline_mode = #tpu.pipeline_mode<synchronous>, transform_indices = @transform_1, window_bounds = array<i64: 72, 8>}, {pipeline_mode = #tpu.pipeline_mode<synchronous>, transform_indices = @transform_2, window_bounds = array<i64: 1, 8>}, {transform_indices = @transform_3, window_bounds = array<i64: 1, 15, 8>}]} {
    %c0 = arith.constant 0 : index
    %c0_0 = arith.constant 0 : index
    %c0_1 = arith.constant 0 : index
    %0 = vector.load %arg1[%c0, %c0_0, %c0_1] : memref<1x35x8xf32, #tpu.memory_space<vmem>>, vector<1x35x8xf32>
    %1 = vector.shape_cast %0 : vector<1x35x8xf32> to vector<35x8xf32>
    %c0_2 = arith.constant 0 : index
    %c0_3 = arith.constant 0 : index
    %2 = vector.load %arg2[%c0_2, %c0_3] : memref<72x8xf32, #tpu.memory_space<vmem>>, vector<72x8xf32>
    %3 = vector.extract_strided_slice %1 {offsets = [0, 0], sizes = [15, 8], strides = [1, 1]} : vector<35x8xf32> to vector<15x8xf32>
    %4 = vector.extract_strided_slice %2 {offsets = [0, 0], sizes = [8, 8], strides = [1, 1]} : vector<72x8xf32> to vector<8x8xf32>
    %cst = arith.constant dense<0.000000e+00> : vector<15x8xf32>
    %5 = tpu.matmul %3, %4, %cst {dimension_numbers = #tpu.dot_dimension_numbers<[1], [0], [0], [1], [0, 0, 1, 1], [], []>} : vector<15x8xf32>, vector<8x8xf32>, vector<15x8xf32> -> vector<15x8xf32>
    %6 = vector.extract_strided_slice %1 {offsets = [1, 0], sizes = [15, 8], strides = [1, 1]} : vector<35x8xf32> to vector<15x8xf32>
    %7 = vector.extract_strided_slice %2 {offsets = [8, 0], sizes = [8, 8], strides = [1, 1]} : vector<72x8xf32> to vector<8x8xf32>
    %cst_4 = arith.constant dense<0.000000e+00> : vector<15x8xf32>
    %8 = tpu.matmul %6, %7, %cst_4 {dimension_numbers = #tpu.dot_dimension_numbers<[1], [0], [0], [1], [0, 0, 1, 1], [], []>} : vector<15x8xf32>, vector<8x8xf32>, vector<15x8xf32> -> vector<15x8xf32>
    %9 = arith.addf %5, %8 : vector<15x8xf32>
    %10 = vector.extract_strided_slice %1 {offsets = [2, 0], sizes = [15, 8], strides = [1, 1]} : vector<35x8xf32> to vector<15x8xf32>
    %11 = vector.extract_strided_slice %2 {offsets = [16, 0], sizes = [8, 8], strides = [1, 1]} : vector<72x8xf32> to vector<8x8xf32>
    %cst_5 = arith.constant dense<0.000000e+00> : vector<15x8xf32>
    %12 = tpu.matmul %10, %11, %cst_5 {dimension_numbers = #tpu.dot_dimension_numbers<[1], [0], [0], [1], [0, 0, 1, 1], [], []>} : vector<15x8xf32>, vector<8x8xf32>, vector<15x8xf32> -> vector<15x8xf32>
    %13 = arith.addf %9, %12 : vector<15x8xf32>
    %14 = vector.extract_strided_slice %1 {offsets = [5, 0], sizes = [15, 8], strides = [1, 1]} : vector<35x8xf32> to vector<15x8xf32>
    %15 = vector.extract_strided_slice %2 {offsets = [24, 0], sizes = [8, 8], strides = [1, 1]} : vector<72x8xf32> to vector<8x8xf32>
    %cst_6 = arith.constant dense<0.000000e+00> : vector<15x8xf32>
    %16 = tpu.matmul %14, %15, %cst_6 {dimension_numbers = #tpu.dot_dimension_numbers<[1], [0], [0], [1], [0, 0, 1, 1], [], []>} : vector<15x8xf32>, vector<8x8xf32>, vector<15x8xf32> -> vector<15x8xf32>
    %17 = arith.addf %13, %16 : vector<15x8xf32>
    %18 = vector.extract_strided_slice %1 {offsets = [6, 0], sizes = [15, 8], strides = [1, 1]} : vector<35x8xf32> to vector<15x8xf32>
    %19 = vector.extract_strided_slice %2 {offsets = [32, 0], sizes = [8, 8], strides = [1, 1]} : vector<72x8xf32> to vector<8x8xf32>
    %cst_7 = arith.constant dense<0.000000e+00> : vector<15x8xf32>
    %20 = tpu.matmul %18, %19, %cst_7 {dimension_numbers = #tpu.dot_dimension_numbers<[1], [0], [0], [1], [0, 0, 1, 1], [], []>} : vector<15x8xf32>, vector<8x8xf32>, vector<15x8xf32> -> vector<15x8xf32>
    %21 = arith.addf %17, %20 : vector<15x8xf32>
    %22 = vector.extract_strided_slice %1 {offsets = [7, 0], sizes = [15, 8], strides = [1, 1]} : vector<35x8xf32> to vector<15x8xf32>
    %23 = vector.extract_strided_slice %2 {offsets = [40, 0], sizes = [8, 8], strides = [1, 1]} : vector<72x8xf32> to vector<8x8xf32>
    %cst_8 = arith.constant dense<0.000000e+00> : vector<15x8xf32>
    %24 = tpu.matmul %22, %23, %cst_8 {dimension_numbers = #tpu.dot_dimension_numbers<[1], [0], [0], [1], [0, 0, 1, 1], [], []>} : vector<15x8xf32>, vector<8x8xf32>, vector<15x8xf32> -> vector<15x8xf32>
    %25 = arith.addf %21, %24 : vector<15x8xf32>
    %26 = vector.extract_strided_slice %1 {offsets = [10, 0], sizes = [15, 8], strides = [1, 1]} : vector<35x8xf32> to vector<15x8xf32>
    %27 = vector.extract_strided_slice %2 {offsets = [48, 0], sizes = [8, 8], strides = [1, 1]} : vector<72x8xf32> to vector<8x8xf32>
    %cst_9 = arith.constant dense<0.000000e+00> : vector<15x8xf32>
    %28 = tpu.matmul %26, %27, %cst_9 {dimension_numbers = #tpu.dot_dimension_numbers<[1], [0], [0], [1], [0, 0, 1, 1], [], []>} : vector<15x8xf32>, vector<8x8xf32>, vector<15x8xf32> -> vector<15x8xf32>
    %29 = arith.addf %25, %28 : vector<15x8xf32>
    %30 = vector.extract_strided_slice %1 {offsets = [11, 0], sizes = [15, 8], strides = [1, 1]} : vector<35x8xf32> to vector<15x8xf32>
    %31 = vector.extract_strided_slice %2 {offsets = [56, 0], sizes = [8, 8], strides = [1, 1]} : vector<72x8xf32> to vector<8x8xf32>
    %cst_10 = arith.constant dense<0.000000e+00> : vector<15x8xf32>
    %32 = tpu.matmul %30, %31, %cst_10 {dimension_numbers = #tpu.dot_dimension_numbers<[1], [0], [0], [1], [0, 0, 1, 1], [], []>} : vector<15x8xf32>, vector<8x8xf32>, vector<15x8xf32> -> vector<15x8xf32>
    %33 = arith.addf %29, %32 : vector<15x8xf32>
    %34 = vector.extract_strided_slice %1 {offsets = [12, 0], sizes = [15, 8], strides = [1, 1]} : vector<35x8xf32> to vector<15x8xf32>
    %35 = vector.extract_strided_slice %2 {offsets = [64, 0], sizes = [8, 8], strides = [1, 1]} : vector<72x8xf32> to vector<8x8xf32>
    %cst_11 = arith.constant dense<0.000000e+00> : vector<15x8xf32>
    %36 = tpu.matmul %34, %35, %cst_11 {dimension_numbers = #tpu.dot_dimension_numbers<[1], [0], [0], [1], [0, 0, 1, 1], [], []>} : vector<15x8xf32>, vector<8x8xf32>, vector<15x8xf32> -> vector<15x8xf32>
    %37 = arith.addf %33, %36 : vector<15x8xf32>
    %c0_12 = arith.constant 0 : index
    %c0_13 = arith.constant 0 : index
    %38 = vector.load %arg3[%c0_12, %c0_13] : memref<1x8xf32, #tpu.memory_space<vmem>>, vector<1x8xf32>
    %39 = vector.broadcast %38 : vector<1x8xf32> to vector<15x8xf32>
    %40 = arith.addf %37, %39 : vector<15x8xf32>
    %c0_14 = arith.constant 0 : index
    %c0_15 = arith.constant 0 : index
    %c0_16 = arith.constant 0 : index
    %41 = vector.load %arg4[%c0_14, %c0_15, %c0_16] : memref<1x15x8xf32, #tpu.memory_space<vmem>>, vector<1x15x8xf32>
    %42 = vector.shape_cast %41 : vector<1x15x8xf32> to vector<15x8xf32>
    %43 = vector.shape_cast %40 : vector<15x8xf32> to vector<1x15x8xf32>
    tpu.vector_store %arg4[%c0_14, %c0_15, %c0_16], %43 {strides = array<i32>} : memref<1x15x8xf32, #tpu.memory_space<vmem>>, vector<1x15x8xf32>,
    return
  }
  func.func @transform_0(%arg0: i32) -> (i32, i32, i32) {
    %c0_i32 = arith.constant 0 : i32
    %c0_i32_0 = arith.constant 0 : i32
    %c0_i32_1 = arith.constant 0 : i32
    return %arg0, %c0_i32, %c0_i32_0 : i32, i32, i32
  }
  func.func @transform_1(%arg0: i32) -> (i32, i32) {
    %c0_i32 = arith.constant 0 : i32
    %c0_i32_0 = arith.constant 0 : i32
    %c0_i32_1 = arith.constant 0 : i32
    return %c0_i32, %c0_i32_0 : i32, i32
  }
  func.func @transform_2(%arg0: i32) -> (i32, i32) {
    %c0_i32 = arith.constant 0 : i32
    %c0_i32_0 = arith.constant 0 : i32
    %c0_i32_1 = arith.constant 0 : i32
    return %c0_i32, %c0_i32_0 : i32, i32
  }
  func.func @transform_3(%arg0: i32) -> (i32, i32, i32) {
    %c0_i32 = arith.constant 0 : i32
    %c0_i32_0 = arith.constant 0 : i32
    %c0_i32_1 = arith.constant 0 : i32
    return %arg0, %c0_i32, %c0_i32_0 : i32, i32, i32
  }
}

module attributes {stable_mosaic.version = 11 : i64} {
  func.func @kernel(%arg0: i32, %arg1: memref<32x3xf32, #tpu.memory_space<vmem>>, %arg2: memref<1x3x24xf32, #tpu.memory_space<vmem>>, %arg3: memref<1x32x24xf32, #tpu.memory_space<vmem>>) attributes {dimension_semantics = [#tpu.dimension_semantics<parallel>], iteration_bounds = array<i64: 2>, scalar_prefetch = 0 : i64, scratch_operands = 0 : i64, tpu.core_type = #tpu.core_type<tc>, window_params = [{pipeline_mode = #tpu.pipeline_mode<synchronous>, transform_indices = @transform_0, window_bounds = array<i64: 32, 3>}, {transform_indices = @transform_1, window_bounds = array<i64: 1, 3, 24>}, {transform_indices = @transform_2, window_bounds = array<i64: 1, 32, 24>}]} {
    %c0 = arith.constant 0 : index
    %c0_0 = arith.constant 0 : index
    %0 = vector.load %arg1[%c0, %c0_0] : memref<32x3xf32, #tpu.memory_space<vmem>>, vector<32x3xf32>
    %c0_1 = arith.constant 0 : index
    %c0_2 = arith.constant 0 : index
    %c0_3 = arith.constant 0 : index
    %1 = vector.load %arg2[%c0_1, %c0_2, %c0_3] : memref<1x3x24xf32, #tpu.memory_space<vmem>>, vector<1x3x24xf32>
    %2 = vector.shape_cast %1 : vector<1x3x24xf32> to vector<3x24xf32>
    %cst = arith.constant dense<0.000000e+00> : vector<32x24xf32>
    %3 = tpu.matmul %0, %2, %cst {dimension_numbers = #tpu.dot_dimension_numbers<[1], [0], [0], [1], [0, 0, 1, 1], [], []>} : vector<32x3xf32>, vector<3x24xf32>, vector<32x24xf32> -> vector<32x24xf32>
    %c0_4 = arith.constant 0 : index
    %c0_5 = arith.constant 0 : index
    %c0_6 = arith.constant 0 : index
    %4 = vector.load %arg3[%c0_4, %c0_5, %c0_6] : memref<1x32x24xf32, #tpu.memory_space<vmem>>, vector<1x32x24xf32>
    %5 = vector.shape_cast %4 : vector<1x32x24xf32> to vector<32x24xf32>
    %6 = vector.shape_cast %3 : vector<32x24xf32> to vector<1x32x24xf32>
    tpu.vector_store %arg3[%c0_4, %c0_5, %c0_6], %6 {strides = array<i32>} : memref<1x32x24xf32, #tpu.memory_space<vmem>>, vector<1x32x24xf32>,
    return
  }
  func.func @transform_0(%arg0: i32) -> (i32, i32) {
    %c0_i32 = arith.constant 0 : i32
    %c0_i32_0 = arith.constant 0 : i32
    %c0_i32_1 = arith.constant 0 : i32
    return %c0_i32, %c0_i32_0 : i32, i32
  }
  func.func @transform_1(%arg0: i32) -> (i32, i32, i32) {
    %c0_i32 = arith.constant 0 : i32
    %c0_i32_0 = arith.constant 0 : i32
    %c0_i32_1 = arith.constant 0 : i32
    return %arg0, %c0_i32, %c0_i32_0 : i32, i32, i32
  }
  func.func @transform_2(%arg0: i32) -> (i32, i32, i32) {
    %c0_i32 = arith.constant 0 : i32
    %c0_i32_0 = arith.constant 0 : i32
    %c0_i32_1 = arith.constant 0 : i32
    return %arg0, %c0_i32, %c0_i32_0 : i32, i32, i32
  }
}

module attributes {stable_mosaic.version = 11 : i64} {
  func.func @kernel(%arg0: i32, %arg1: memref<32x3xf32, #tpu.memory_space<vmem>>, %arg2: memref<1x3x256xf32, #tpu.memory_space<vmem>>, %arg3: memref<1x32x256xf32, #tpu.memory_space<vmem>>) attributes {dimension_semantics = [#tpu.dimension_semantics<parallel>], iteration_bounds = array<i64: 2>, scalar_prefetch = 0 : i64, scratch_operands = 0 : i64, tpu.core_type = #tpu.core_type<tc>, window_params = [{pipeline_mode = #tpu.pipeline_mode<synchronous>, transform_indices = @transform_0, window_bounds = array<i64: 32, 3>}, {transform_indices = @transform_1, window_bounds = array<i64: 1, 3, 256>}, {transform_indices = @transform_2, window_bounds = array<i64: 1, 32, 256>}]} {
    %c0 = arith.constant 0 : index
    %c0_0 = arith.constant 0 : index
    %0 = vector.load %arg1[%c0, %c0_0] : memref<32x3xf32, #tpu.memory_space<vmem>>, vector<32x3xf32>
    %c0_1 = arith.constant 0 : index
    %c0_2 = arith.constant 0 : index
    %c0_3 = arith.constant 0 : index
    %1 = vector.load %arg2[%c0_1, %c0_2, %c0_3] : memref<1x3x256xf32, #tpu.memory_space<vmem>>, vector<1x3x256xf32>
    %2 = vector.shape_cast %1 : vector<1x3x256xf32> to vector<3x256xf32>
    %cst = arith.constant dense<0.000000e+00> : vector<32x256xf32>
    %3 = tpu.matmul %0, %2, %cst {dimension_numbers = #tpu.dot_dimension_numbers<[1], [0], [0], [1], [0, 0, 1, 1], [], []>} : vector<32x3xf32>, vector<3x256xf32>, vector<32x256xf32> -> vector<32x256xf32>
    %c0_4 = arith.constant 0 : index
    %c0_5 = arith.constant 0 : index
    %c0_6 = arith.constant 0 : index
    %4 = vector.load %arg3[%c0_4, %c0_5, %c0_6] : memref<1x32x256xf32, #tpu.memory_space<vmem>>, vector<1x32x256xf32>
    %5 = vector.shape_cast %4 : vector<1x32x256xf32> to vector<32x256xf32>
    %6 = vector.shape_cast %3 : vector<32x256xf32> to vector<1x32x256xf32>
    tpu.vector_store %arg3[%c0_4, %c0_5, %c0_6], %6 {strides = array<i32>} : memref<1x32x256xf32, #tpu.memory_space<vmem>>, vector<1x32x256xf32>,
    return
  }
  func.func @transform_0(%arg0: i32) -> (i32, i32) {
    %c0_i32 = arith.constant 0 : i32
    %c0_i32_0 = arith.constant 0 : i32
    %c0_i32_1 = arith.constant 0 : i32
    return %c0_i32, %c0_i32_0 : i32, i32
  }
  func.func @transform_1(%arg0: i32) -> (i32, i32, i32) {
    %c0_i32 = arith.constant 0 : i32
    %c0_i32_0 = arith.constant 0 : i32
    %c0_i32_1 = arith.constant 0 : i32
    return %arg0, %c0_i32, %c0_i32_0 : i32, i32, i32
  }
  func.func @transform_2(%arg0: i32) -> (i32, i32, i32) {
    %c0_i32 = arith.constant 0 : i32
    %c0_i32_0 = arith.constant 0 : i32
    %c0_i32_1 = arith.constant 0 : i32
    return %arg0, %c0_i32, %c0_i32_0 : i32, i32, i32
  }
}

module attributes {stable_mosaic.version = 11 : i64} {
  func.func @_tail_kernel(%arg0: i32, %arg1: memref<512x16xf32, #tpu.memory_space<vmem>>, %arg2: memref<512x8xf32, #tpu.memory_space<vmem>>, %arg3: memref<512x8xf32, #tpu.memory_space<vmem>>, %arg4: memref<8x16xf32, #tpu.memory_space<vmem>>, %arg5: memref<1x16xf32, #tpu.memory_space<vmem>>, %arg6: memref<512x16xf32, #tpu.memory_space<vmem>>) attributes {dimension_semantics = [#tpu.dimension_semantics<parallel>], iteration_bounds = array<i64: 4>, scalar_prefetch = 0 : i64, scratch_operands = 0 : i64, tpu.core_type = #tpu.core_type<tc>, window_params = [{transform_indices = @transform_0, window_bounds = array<i64: 512, 16>}, {transform_indices = @transform_1, window_bounds = array<i64: 512, 8>}, {transform_indices = @transform_2, window_bounds = array<i64: 512, 8>}, {pipeline_mode = #tpu.pipeline_mode<synchronous>, transform_indices = @transform_3, window_bounds = array<i64: 8, 16>}, {pipeline_mode = #tpu.pipeline_mode<synchronous>, transform_indices = @transform_4, window_bounds = array<i64: 1, 16>}, {transform_indices = @transform_5, window_bounds = array<i64: 512, 16>}]} {
    %c0 = arith.constant 0 : index
    %c0_0 = arith.constant 0 : index
    %0 = vector.load %arg3[%c0, %c0_0] : memref<512x8xf32, #tpu.memory_space<vmem>>, vector<512x8xf32>
    %c0_1 = arith.constant 0 : index
    %c0_2 = arith.constant 0 : index
    %1 = vector.load %arg2[%c0_1, %c0_2] : memref<512x8xf32, #tpu.memory_space<vmem>>, vector<512x8xf32>
    %2 = arith.addf %0, %1 : vector<512x8xf32>
    %c0_3 = arith.constant 0 : index
    %c0_4 = arith.constant 0 : index
    %3 = vector.load %arg4[%c0_3, %c0_4] : memref<8x16xf32, #tpu.memory_space<vmem>>, vector<8x16xf32>
    %cst = arith.constant dense<0.000000e+00> : vector<512x16xf32>
    %4 = tpu.matmul %2, %3, %cst {dimension_numbers = #tpu.dot_dimension_numbers<[1], [0], [0], [1], [0, 0, 1, 1], [], []>} : vector<512x8xf32>, vector<8x16xf32>, vector<512x16xf32> -> vector<512x16xf32>
    %c0_5 = arith.constant 0 : index
    %c0_6 = arith.constant 0 : index
    %5 = vector.load %arg5[%c0_5, %c0_6] : memref<1x16xf32, #tpu.memory_space<vmem>>, vector<1x16xf32>
    %6 = vector.broadcast %5 : vector<1x16xf32> to vector<512x16xf32>
    %7 = arith.addf %4, %6 : vector<512x16xf32>
    %c0_7 = arith.constant 0 : index
    %c0_8 = arith.constant 0 : index
    %8 = vector.load %arg1[%c0_7, %c0_8] : memref<512x16xf32, #tpu.memory_space<vmem>>, vector<512x16xf32>
    %9 = arith.negf %7 : vector<512x16xf32>
    %10 = math.exp %9 : vector<512x16xf32>
    %cst_9 = arith.constant 1.000000e+00 : f32
    %11 = vector.broadcast %cst_9 : f32 to vector<512x16xf32>
    %12 = arith.addf %11, %10 : vector<512x16xf32>
    %13 = arith.divf %11, %12 : vector<512x16xf32>
    %14 = arith.mulf %8, %13 : vector<512x16xf32>
    %c0_10 = arith.constant 0 : index
    %c0_11 = arith.constant 0 : index
    %15 = vector.load %arg6[%c0_10, %c0_11] : memref<512x16xf32, #tpu.memory_space<vmem>>, vector<512x16xf32>
    tpu.vector_store %arg6[%c0_10, %c0_11], %14 {strides = array<i32>} : memref<512x16xf32, #tpu.memory_space<vmem>>, vector<512x16xf32>,
    return
  }
  func.func @transform_0(%arg0: i32) -> (i32, i32) {
    %c0_i32 = arith.constant 0 : i32
    %c0_i32_0 = arith.constant 0 : i32
    return %arg0, %c0_i32 : i32, i32
  }
  func.func @transform_1(%arg0: i32) -> (i32, i32) {
    %c0_i32 = arith.constant 0 : i32
    %c0_i32_0 = arith.constant 0 : i32
    return %arg0, %c0_i32 : i32, i32
  }
  func.func @transform_2(%arg0: i32) -> (i32, i32) {
    %c0_i32 = arith.constant 0 : i32
    %c0_i32_0 = arith.constant 0 : i32
    return %arg0, %c0_i32 : i32, i32
  }
  func.func @transform_3(%arg0: i32) -> (i32, i32) {
    %c0_i32 = arith.constant 0 : i32
    %c0_i32_0 = arith.constant 0 : i32
    %c0_i32_1 = arith.constant 0 : i32
    return %c0_i32, %c0_i32_0 : i32, i32
  }
  func.func @transform_4(%arg0: i32) -> (i32, i32) {
    %c0_i32 = arith.constant 0 : i32
    %c0_i32_0 = arith.constant 0 : i32
    %c0_i32_1 = arith.constant 0 : i32
    return %c0_i32, %c0_i32_0 : i32, i32
  }
  func.func @transform_5(%arg0: i32) -> (i32, i32) {
    %c0_i32 = arith.constant 0 : i32
    %c0_i32_0 = arith.constant 0 : i32
    return %arg0, %c0_i32 : i32, i32
  }
}

</mosaic_0001>

<llo_original>
// kernel: esa_pallas.7
$region0: #{esa_pallas.7}
  #allocation0 [shape = 'u32[]', space=smem, size = 0x4, offset = 0x4, fixed_abs, tag = 'smem constant byte address 0x4 - core index']
  #allocation1 [shape = 'u32[72,128]{1,0:T(1,128)}', space=vmem, size = 0x9000, scoped, tag = 'internal scratch']
  %s0 = inlined_call_operand.vmem [shape: f32[2048,16], index: 0, kind: input, shape index: {}]
  %s1 = inlined_call_operand.vmem [shape: f32[16,16], index: 1, kind: input, shape index: {}]
  %s2 = inlined_call_operand.vmem [shape: f32[1,16], index: 2, kind: input, shape index: {}]
  %s3 = inlined_call_operand.vmem [shape: f32[2048,16], index: 3, kind: output, shape index: {}]
  %s4 = sld [smem:[#allocation0]]
  $region45: #{esa_pallas.7} parent=0
    _
  %s6 = ssub.s32 1, %s4
  %s7 = scalar_select 0, %s6, %s4
  loop: start=0, step=1, limit=6
  $region2: #{esa_pallas.7} parent=0 // loop_pre_header
    _
  $region3: #{esa_pallas.7} parent=0 // loop_header
    %s9 = sphi 0, %s13
    %p10 = scmp.ge.s32.totalorder %s9, 6
    %s19 = sphi 0, %s21
    %s22 = sphi 0, %s19
    %s23 = sphi 0, %s22
    %s39 = sphi 0, %s23
    %s43 = sphi 0, %s43
    %s45 = sphi 0, %s43
    %s46 = sphi 0, %s45
    %s60 = sphi 0, %s46
    %s64 = sphi 0, %s64
    %s66 = sphi 0, %s64
    %s67 = sphi 0, %s66
    %s81 = sphi 0, %s67
    %s87 = sphi 0, %s89
    %s90 = sphi 0, %s87
    %s91 = sphi 0, %s90
    %s107 = sphi 0, %s91
  $region4: #{esa_pallas.7} parent=0 // loop_header_branch
    %12 = sbr.rel (%p10) target = $region8
  $region5: #{esa_pallas.7} parent=0 // loop_body
    %s14 = ssub.s32 %s9, 1
    %s15 = ssub.s32 %s9, 2
    %s16 = sadd.s32 %s9, 1
    %s17 = ssub.s32 %s9, %s16
    %p18 = scmp.eq.s32.totalorder %s17, 0
    %s20 = sadd.s32 %s19, 1
    %s21 = scalar_select %p18, %s19, %s20
    %p24 = pneg %p18
    %p25 = scmp.eq.s32.totalorder %s9, 3
    %p26 = por %p24, %p25
    %p27 = scmp.ne.s32.totalorder %s19, %s22
    %p28 = scmp.eq.s32.totalorder %s9, 0
    %p29 = por %p27, %p28
    %p30 = scmp.ne.s32.totalorder %s19, %s22
    %p31 = scmp.eq.s32.totalorder %s14, 3
    %p32 = por %p30, %p31
    %p33 = scmp.ne.s32.totalorder %s22, %s23
    %p34 = scmp.eq.s32.totalorder %s14, 0
    %p35 = por %p33, %p34
    %p36 = scmp.ne.s32.totalorder %s22, %s23
    %p37 = scmp.eq.s32.totalorder %s15, 3
    %p38 = por %p36, %p37
    %p40 = scmp.ne.s32.totalorder %s23, %s39
    %p41 = scmp.eq.s32.totalorder %s15, 0
    %p42 = por %p40, %p41
    %s44 = sadd.s32 %s43, 1
    %p47 = scmp.eq.s32.totalorder %s9, 3
    %p48 = scmp.ne.s32.totalorder %s43, %s45
    %p49 = scmp.eq.s32.totalorder %s9, 0
    %p50 = por %p48, %p49
    %p51 = scmp.ne.s32.totalorder %s43, %s45
    %p52 = scmp.eq.s32.totalorder %s14, 3
    %p53 = por %p51, %p52
    %p54 = scmp.ne.s32.totalorder %s45, %s46
    %p55 = scmp.eq.s32.totalorder %s14, 0
    %p56 = por %p54, %p55
    %p57 = scmp.ne.s32.totalorder %s45, %s46
    %p58 = scmp.eq.s32.totalorder %s15, 3
    %p59 = por %p57, %p58
    %p61 = scmp.ne.s32.totalorder %s46, %s60
    %p62 = scmp.eq.s32.totalorder %s15, 0
    %p63 = por %p61, %p62
    %s65 = sadd.s32 %s64, 1
    %p68 = scmp.eq.s32.totalorder %s9, 3
    %p69 = scmp.ne.s32.totalorder %s64, %s66
    %p70 = scmp.eq.s32.totalorder %s9, 0
    %p71 = por %p69, %p70
    %p72 = scmp.ne.s32.totalorder %s64, %s66
    %p73 = scmp.eq.s32.totalorder %s14, 3
    %p74 = por %p72, %p73
    %p75 = scmp.ne.s32.totalorder %s66, %s67
    %p76 = scmp.eq.s32.totalorder %s14, 0
    %p77 = por %p75, %p76
    %p78 = scmp.ne.s32.totalorder %s66, %s67
    %p79 = scmp.eq.s32.totalorder %s15, 3
    %p80 = por %p78, %p79
    %p82 = scmp.ne.s32.totalorder %s67, %s81
    %p83 = scmp.eq.s32.totalorder %s15, 0
    %p84 = por %p82, %p83
    %s85 = ssub.s32 %s9, %s16
    %p86 = scmp.eq.s32.totalorder %s85, 0
    %s88 = sadd.s32 %s87, 1
    %s89 = scalar_select %p86, %s87, %s88
    %p92 = pneg %p86
    %p93 = scmp.eq.s32.totalorder %s9, 3
    %p94 = por %p92, %p93
    %p95 = scmp.ne.s32.totalorder %s87, %s90
    %p96 = scmp.eq.s32.totalorder %s9, 0
    %p97 = por %p95, %p96
    %p98 = scmp.ne.s32.totalorder %s87, %s90
    %p99 = scmp.eq.s32.totalorder %s14, 3
    %p100 = por %p98, %p99
    %p101 = scmp.ne.s32.totalorder %s90, %s91
    %p102 = scmp.eq.s32.totalorder %s14, 0
    %p103 = por %p101, %p102
    %p104 = scmp.ne.s32.totalorder %s90, %s91
    %p105 = scmp.eq.s32.totalorder %s15, 3
    %p106 = por %p104, %p105
    %p108 = scmp.ne.s32.totalorder %s91, %s107
    %p109 = scmp.eq.s32.totalorder %s15, 0
    %p110 = por %p108, %p109
    %p111 = scmp.le.s32.totalorder 1, %s9
    %p112 = scmp.lt.s32.totalorder %s9, 5
    %p113 = pnand %p111, %p112
    %p114 = pneg %p113
    // Predicated region
    $region9: #{esa_pallas.7} parent=5 // pred_check
      _
    $region10: #{esa_pallas.7} parent=5 // pred_check_branch
      %116 = sbr.rel (%p113) target = $region12
    $region11: #{esa_pallas.7} parent=5 // pred_region
      %s117 = ssub.s32 %s9, 1
      // Predicated region
      $region13: #{esa_pallas.7} parent=11 // pred_check
        %p118 = pneg %p56
      $region14: #{esa_pallas.7} parent=11 // pred_check_branch
        %120 = sbr.rel (%p118) target = $region16
      $region15: #{esa_pallas.7} parent=11 // pred_region
        _
      $region16: #{esa_pallas.7} parent=11 // pred_fallthru
        _
      // Predicated region
      $region17: #{esa_pallas.7} parent=11 // pred_check
        %p121 = pneg %p77
      $region18: #{esa_pallas.7} parent=11 // pred_check_branch
        %123 = sbr.rel (%p121) target = $region20
      $region19: #{esa_pallas.7} parent=11 // pred_region
        _
      $region20: #{esa_pallas.7} parent=11 // pred_fallthru
        _
    $region12: #{esa_pallas.7} parent=5 // pred_fallthru
      _
    %p124 = scmp.lt.s32.totalorder %s9, 4
    // Predicated region
    $region21: #{esa_pallas.7} parent=5 // pred_check
      %p125 = pneg %p124
    $region22: #{esa_pallas.7} parent=5 // pred_check_branch
      %127 = sbr.rel (%p125) target = $region24
    $region23: #{esa_pallas.7} parent=5 // pred_region
      // Predicated region
      $region25: #{esa_pallas.7} parent=23 // pred_check
        %p128 = pneg %p29
      $region26: #{esa_pallas.7} parent=23 // pred_check_branch
        %130 = sbr.rel (%p128) target = $region28
      $region27: #{esa_pallas.7} parent=23 // pred_region
        %s131 = smul.u32 64, %s9
        %p132 = scmp.lt.s32.totalorder %s131, 255
        %s133 = scalar_select %p132, %s131, 255
        %s134 = smul.addr %s133, 8
        %s135 = scalar_lea.vmem %s0, %s134
        %s136 = smul.u32 64, %s9
      $region28: #{esa_pallas.7} parent=23 // pred_fallthru
        _
    $region24: #{esa_pallas.7} parent=5 // pred_fallthru
      _
    %p137 = scmp.le.s32.totalorder 1, %s9
    %p138 = scmp.lt.s32.totalorder %s9, 5
    %p139 = pnand %p137, %p138
    %p140 = pneg %p139
    // Predicated region
    $region29: #{esa_pallas.7} parent=5 // pred_check
      _
    $region30: #{esa_pallas.7} parent=5 // pred_check_branch
      %142 = sbr.rel (%p139) target = $region32
    $region31: #{esa_pallas.7} parent=5 // pred_region
      %s143 = ssub.s32 %s9, 1
      %s144 = smul.u32 64, %s14
      %p145 = scmp.lt.s32.totalorder %s144, 255
      %s146 = scalar_select %p145, %s144, 255
      %s147 = smul.addr %s146, 8
      %s148 = scalar_lea.vmem %s0, %s147
      %p149 = pneg %p35
      %p150 = pneg %p32
      %p151 = pneg %p56
      %p152 = pneg %p53
      %p153 = pneg %p77
      %p154 = pneg %p74
      %p155 = pneg %p103
      %p156 = pneg %p100
      %s157 = smul.u32 64, %s14
      %p158 = scmp.lt.s32.totalorder %s157, 255
      %s159 = scalar_select %p158, %s157, 255
      %s160 = smul.addr %s159, 8
      %s161 = scalar_lea.vmem %s3, %s160
      %s162 = smul.u32 64, %s14
      %p163 = scmp.lt.s32.totalorder %s162, 255
      %s164 = scalar_select %p163, %s162, 255
      %s165 = smul.addr %s164, 8
      %s166 = scalar_lea.vmem %s0, %s165
      %s167 = smul.u32 64, %s14
      %s168 = smul.u32 64, %s14
      %p169 = scmp.lt.s32.totalorder %s168, 255
      %s170 = scalar_select %p169, %s168, 255
      %s171 = smul.addr %s170, 8
      %s172 = scalar_lea.vmem %s3, %s171
      %s173 = smul.u32 64, %s14
      %v174 = vld [vmem:[%s166] sm:$0xff]
      %v175 = vld [vmem:[%s166 + $0x8] sm:$0xff]
      %v176 = vld [vmem:[%s166 + $0x10] sm:$0xff]
      %v177 = vld [vmem:[%s166 + $0x18] sm:$0xff]
      %v178 = vld [vmem:[%s166 + $0x20] sm:$0xff]
      %v179 = vld [vmem:[%s166 + $0x28] sm:$0xff]
      %v180 = vld [vmem:[%s166 + $0x30] sm:$0xff]
      %v181 = vld [vmem:[%s166 + $0x38] sm:$0xff]
      %v182 = vld [vmem:[%s166 + $0x40] sm:$0xff]
      %v183 = vld [vmem:[%s166 + $0x48] sm:$0xff]
      %v184 = vld [vmem:[%s166 + $0x50] sm:$0xff]
      %v185 = vld [vmem:[%s166 + $0x58] sm:$0xff]
      %v186 = vld [vmem:[%s166 + $0x60] sm:$0xff]
      %v187 = vld [vmem:[%s166 + $0x68] sm:$0xff]
      %v188 = vld [vmem:[%s166 + $0x70] sm:$0xff]
      %v189 = vld [vmem:[%s166 + $0x78] sm:$0xff]
      %v190 = vld [vmem:[%s166 + $0x80] sm:$0xff]
      %v191 = vld [vmem:[%s166 + $0x88] sm:$0xff]
      %v192 = vld [vmem:[%s166 + $0x90] sm:$0xff]
      %v193 = vld [vmem:[%s166 + $0x98] sm:$0xff]
      %v194 = vld [vmem:[%s166 + $0xa0] sm:$0xff]
      %v195 = vld [vmem:[%s166 + $0xa8] sm:$0xff]
      %v196 = vld [vmem:[%s166 + $0xb0] sm:$0xff]
      %v197 = vld [vmem:[%s166 + $0xb8] sm:$0xff]
      %v198 = vld [vmem:[%s166 + $0xc0] sm:$0xff]
      %v199 = vld [vmem:[%s166 + $0xc8] sm:$0xff]
      %v200 = vld [vmem:[%s166 + $0xd0] sm:$0xff]
      %v201 = vld [vmem:[%s166 + $0xd8] sm:$0xff]
      %v202 = vld [vmem:[%s166 + $0xe0] sm:$0xff]
      %v203 = vld [vmem:[%s166 + $0xe8] sm:$0xff]
      %v204 = vld [vmem:[%s166 + $0xf0] sm:$0xff]
      %v205 = vld [vmem:[%s166 + $0xf8] sm:$0xff]
      %v206 = vld [vmem:[%s166 + $0x100] sm:$0xff]
      %v207 = vld [vmem:[%s166 + $0x108] sm:$0xff]
      %v208 = vld [vmem:[%s166 + $0x110] sm:$0xff]
      %v209 = vld [vmem:[%s166 + $0x118] sm:$0xff]
      %v210 = vld [vmem:[%s166 + $0x120] sm:$0xff]
      %v211 = vld [vmem:[%s166 + $0x128] sm:$0xff]
      %v212 = vld [vmem:[%s166 + $0x130] sm:$0xff]
      %v213 = vld [vmem:[%s166 + $0x138] sm:$0xff]
      %v214 = vld [vmem:[%s166 + $0x140] sm:$0xff]
      %v215 = vld [vmem:[%s166 + $0x148] sm:$0xff]
      %v216 = vld [vmem:[%s166 + $0x150] sm:$0xff]
      %v217 = vld [vmem:[%s166 + $0x158] sm:$0xff]
      %v218 = vld [vmem:[%s166 + $0x160] sm:$0xff]
      %v219 = vld [vmem:[%s166 + $0x168] sm:$0xff]
      %v220 = vld [vmem:[%s166 + $0x170] sm:$0xff]
      %v221 = vld [vmem:[%s166 + $0x178] sm:$0xff]
      %v222 = vld [vmem:[%s166 + $0x180] sm:$0xff]
      %v223 = vld [vmem:[%s166 + $0x188] sm:$0xff]
      %v224 = vld [vmem:[%s166 + $0x190] sm:$0xff]
      %v225 = vld [vmem:[%s166 + $0x198] sm:$0xff]
      %v226 = vld [vmem:[%s166 + $0x1a0] sm:$0xff]
      %v227 = vld [vmem:[%s166 + $0x1a8] sm:$0xff]
      %v228 = vld [vmem:[%s166 + $0x1b0] sm:$0xff]
      %v229 = vld [vmem:[%s166 + $0x1b8] sm:$0xff]
      %v230 = vld [vmem:[%s166 + $0x1c0] sm:$0xff]
      %v231 = vld [vmem:[%s166 + $0x1c8] sm:$0xff]
      %v232 = vld [vmem:[%s166 + $0x1d0] sm:$0xff]
      %v233 = vld [vmem:[%s166 + $0x1d8] sm:$0xff]
      %v234 = vld [vmem:[%s166 + $0x1e0] sm:$0xff]
      %v235 = vld [vmem:[%s166 + $0x1e8] sm:$0xff]
      %v236 = vld [vmem:[%s166 + $0x1f0] sm:$0xff]
      %v237 = vld [vmem:[%s166 + $0x1f8] sm:$0xff]
      %v238 = vld [vmem:[%s1] sm:$0xff]
      %v239 = vld [vmem:[%s1 + $0x8] sm:$0xff]
      %v240 = vld [vmem:[%s2] sm:$0x1]
      %v242 = vperm.slane %v240, 0
      %vm244 = vcmask 130048
      %v246 = vsel %vm244, %v174, 0
      %v249 = vsel %vm244, %v175, 0
      %v252 = vsel %vm244, %v176, 0
      %v255 = vsel %vm244, %v177, 0
      %v258 = vsel %vm244, %v178, 0
      %v261 = vsel %vm244, %v179, 0
      %v264 = vsel %vm244, %v180, 0
      %v267 = vsel %vm244, %v181, 0
      %v270 = vsel %vm244, %v182, 0
      %v273 = vsel %vm244, %v183, 0
      %v276 = vsel %vm244, %v184, 0
      %v279 = vsel %vm244, %v185, 0
      %v282 = vsel %vm244, %v186, 0
      %v285 = vsel %vm244, %v187, 0
      %v288 = vsel %vm244, %v188, 0
      %v291 = vsel %vm244, %v189, 0
      %v294 = vsel %vm244, %v190, 0
      %v297 = vsel %vm244, %v191, 0
      %v300 = vsel %vm244, %v192, 0
      %v303 = vsel %vm244, %v193, 0
      %v306 = vsel %vm244, %v194, 0
      %v309 = vsel %vm244, %v195, 0
      %v312 = vsel %vm244, %v196, 0
      %v315 = vsel %vm244, %v197, 0
      %v318 = vsel %vm244, %v198, 0
      %v321 = vsel %vm244, %v199, 0
      %v324 = vsel %vm244, %v200, 0
      %v327 = vsel %vm244, %v201, 0
      %v330 = vsel %vm244, %v202, 0
      %v333 = vsel %vm244, %v203, 0
      %v336 = vsel %vm244, %v204, 0
      %v339 = vsel %vm244, %v205, 0
      %v342 = vsel %vm244, %v206, 0
      %v345 = vsel %vm244, %v207, 0
      %v348 = vsel %vm244, %v208, 0
      %v351 = vsel %vm244, %v209, 0
      %v354 = vsel %vm244, %v210, 0
      %v357 = vsel %vm244, %v211, 0
      %v360 = vsel %vm244, %v212, 0
      %v363 = vsel %vm244, %v213, 0
      %v366 = vsel %vm244, %v214, 0
      %v369 = vsel %vm244, %v215, 0
      %v372 = vsel %vm244, %v216, 0
      %v375 = vsel %vm244, %v217, 0
      %v378 = vsel %vm244, %v218, 0
      %v381 = vsel %vm244, %v219, 0
      %v384 = vsel %vm244, %v220, 0
      %v387 = vsel %vm244, %v221, 0
      %v390 = vsel %vm244, %v222, 0
      %v393 = vsel %vm244, %v223, 0
      %v396 = vsel %vm244, %v224, 0
      %v399 = vsel %vm244, %v225, 0
      %v402 = vsel %vm244, %v226, 0
      %v405 = vsel %vm244, %v227, 0
      %v408 = vsel %vm244, %v228, 0
      %v411 = vsel %vm244, %v229, 0
      %v414 = vsel %vm244, %v230, 0
      %v417 = vsel %vm244, %v231, 0
      %v420 = vsel %vm244, %v232, 0
      %v423 = vsel %vm244, %v233, 0
      %v426 = vsel %vm244, %v234, 0
      %v429 = vsel %vm244, %v235, 0
      %v432 = vsel %vm244, %v236, 0
      %v435 = vsel %vm244, %v237, 0
      %437 = vmatpush.msra.mxu0 0.0
      %438 = vmatpush.msra.mxu0 0.0
      %439 = vmatpush.msra.mxu0 0.0
      %440 = vmatpush.msra.mxu0 0.0
      %441 = vmatpush.msra.mxu0 0.0
      %442 = vmatpush.msra.mxu0 0.0
      %443 = vmatpush.msra.mxu0 0.0
      %444 = vmatpush.msra.mxu0 0.0
      %445 = vmatpush.msra.mxu0 0.0
      %446 = vmatpush.msra.mxu0 0.0
      %447 = vmatpush.msra.mxu0 0.0
      %448 = vmatpush.msra.mxu0 0.0
      %449 = vmatpush.msra.mxu0 0.0
      %450 = vmatpush.msra.mxu0 0.0
      %451 = vmatpush.msra.mxu0 %v239
      %452 = vmatpush.msra.mxu0 %v238
      %453 = vmatmul.f32.gmra.mxu0 %v246
      %v454 = vpop.f32.mrf.mxu0
      %v455 = vadd.f32 %v242, %v454
      %456 = vmatmul.f32.gmra.mxu0 %v249
      %v457 = vpop.f32.mrf.mxu0
      %v458 = vadd.f32 %v242, %v457
      %459 = vmatmul.f32.gmra.mxu0 %v252
      %v460 = vpop.f32.mrf.mxu0
      %v461 = vadd.f32 %v242, %v460
      %462 = vmatmul.f32.gmra.mxu0 %v255
      %v463 = vpop.f32.mrf.mxu0
      %v464 = vadd.f32 %v242, %v463
      %465 = vmatmul.f32.gmra.mxu0 %v258
      %v466 = vpop.f32.mrf.mxu0
      %v467 = vadd.f32 %v242, %v466
      %468 = vmatmul.f32.gmra.mxu0 %v261
      %v469 = vpop.f32.mrf.mxu0
      %v470 = vadd.f32 %v242, %v469
      %471 = vmatmul.f32.gmra.mxu0 %v264
      %v472 = vpop.f32.mrf.mxu0
      %v473 = vadd.f32 %v242, %v472
      %474 = vmatmul.f32.gmra.mxu0 %v267
      %v475 = vpop.f32.mrf.mxu0
      %v476 = vadd.f32 %v242, %v475
      %477 = vmatmul.f32.gmra.mxu0 %v270
      %v478 = vpop.f32.mrf.mxu0
      %v479 = vadd.f32 %v242, %v478
      %480 = vmatmul.f32.gmra.mxu0 %v273
      %v481 = vpop.f32.mrf.mxu0
      %v482 = vadd.f32 %v242, %v481
      %483 = vmatmul.f32.gmra.mxu0 %v276
      %v484 = vpop.f32.mrf.mxu0
      %v485 = vadd.f32 %v242, %v484
      %486 = vmatmul.f32.gmra.mxu0 %v279
      %v487 = vpop.f32.mrf.mxu0
      %v488 = vadd.f32 %v242, %v487
      %489 = vmatmul.f32.gmra.mxu0 %v282
      %v490 = vpop.f32.mrf.mxu0
      %v491 = vadd.f32 %v242, %v490
      %492 = vmatmul.f32.gmra.mxu0 %v285
      %v493 = vpop.f32.mrf.mxu0
      %v494 = vadd.f32 %v242, %v493
      %495 = vmatmul.f32.gmra.mxu0 %v288
      %v496 = vpop.f32.mrf.mxu0
      %v497 = vadd.f32 %v242, %v496
      %498 = vmatmul.f32.gmra.mxu0 %v291
      %v499 = vpop.f32.mrf.mxu0
      %v500 = vadd.f32 %v242, %v499
      %501 = vmatmul.f32.gmra.mxu0 %v294
      %v502 = vpop.f32.mrf.mxu0
      %v503 = vadd.f32 %v242, %v502
      %504 = vmatmul.f32.gmra.mxu0 %v297
      %v505 = vpop.f32.mrf.mxu0
      %v506 = vadd.f32 %v242, %v505
      %507 = vmatmul.f32.gmra.mxu0 %v300
      %v508 = vpop.f32.mrf.mxu0
      %v509 = vadd.f32 %v242, %v508
      %510 = vmatmul.f32.gmra.mxu0 %v303
      %v511 = vpop.f32.mrf.mxu0
      %v512 = vadd.f32 %v242, %v511
      %513 = vmatmul.f32.gmra.mxu0 %v306
      %v514 = vpop.f32.mrf.mxu0
      %v515 = vadd.f32 %v242, %v514
      %516 = vmatmul.f32.gmra.mxu0 %v309
      %v517 = vpop.f32.mrf.mxu0
      %v518 = vadd.f32 %v242, %v517
      %519 = vmatmul.f32.gmra.mxu0 %v312
      %v520 = vpop.f32.mrf.mxu0
      %v521 = vadd.f32 %v242, %v520
      %522 = vmatmul.f32.gmra.mxu0 %v315
      %v523 = vpop.f32.mrf.mxu0
      %v524 = vadd.f32 %v242, %v523
      %525 = vmatmul.f32.gmra.mxu0 %v318
      %v526 = vpop.f32.mrf.mxu0
      %v527 = vadd.f32 %v242, %v526
      %528 = vmatmul.f32.gmra.mxu0 %v321
      %v529 = vpop.f32.mrf.mxu0
      %v530 = vadd.f32 %v242, %v529
      %531 = vmatmul.f32.gmra.mxu0 %v324
      %v532 = vpop.f32.mrf.mxu0
      %v533 = vadd.f32 %v242, %v532
      %534 = vmatmul.f32.gmra.mxu0 %v327
      %v535 = vpop.f32.mrf.mxu0
      %v536 = vadd.f32 %v242, %v535
      %537 = vmatmul.f32.gmra.mxu0 %v330
      %v538 = vpop.f32.mrf.mxu0
      %v539 = vadd.f32 %v242, %v538
      %540 = vmatmul.f32.gmra.mxu0 %v333
      %v541 = vpop.f32.mrf.mxu0
      %v542 = vadd.f32 %v242, %v541
      %543 = vmatmul.f32.gmra.mxu0 %v336
      %v544 = vpop.f32.mrf.mxu0
      %v545 = vadd.f32 %v242, %v544
      %546 = vmatmul.f32.gmra.mxu0 %v339
      %v547 = vpop.f32.mrf.mxu0
      %v548 = vadd.f32 %v242, %v547
      %549 = vmatmul.f32.gmra.mxu0 %v342
      %v550 = vpop.f32.mrf.mxu0
      %v551 = vadd.f32 %v242, %v550
      %552 = vmatmul.f32.gmra.mxu0 %v345
      %v553 = vpop.f32.mrf.mxu0
      %v554 = vadd.f32 %v242, %v553
      %555 = vmatmul.f32.gmra.mxu0 %v348
      %v556 = vpop.f32.mrf.mxu0
      %v557 = vadd.f32 %v242, %v556
      %558 = vmatmul.f32.gmra.mxu0 %v351
      %v559 = vpop.f32.mrf.mxu0
      %v560 = vadd.f32 %v242, %v559
      %561 = vmatmul.f32.gmra.mxu0 %v354
      %v562 = vpop.f32.mrf.mxu0
      %v563 = vadd.f32 %v242, %v562
      %564 = vmatmul.f32.gmra.mxu0 %v357
      %v565 = vpop.f32.mrf.mxu0
      %v566 = vadd.f32 %v242, %v565
      %567 = vmatmul.f32.gmra.mxu0 %v360
      %v568 = vpop.f32.mrf.mxu0
      %v569 = vadd.f32 %v242, %v568
      %570 = vmatmul.f32.gmra.mxu0 %v363
      %v571 = vpop.f32.mrf.mxu0
      %v572 = vadd.f32 %v242, %v571
      %573 = vmatmul.f32.gmra.mxu0 %v366
      %v574 = vpop.f32.mrf.mxu0
      %v575 = vadd.f32 %v242, %v574
      %576 = vmatmul.f32.gmra.mxu0 %v369
      %v577 = vpop.f32.mrf.mxu0
      %v578 = vadd.f32 %v242, %v577
      %579 = vmatmul.f32.gmra.mxu0 %v372
      %v580 = vpop.f32.mrf.mxu0
      %v581 = vadd.f32 %v242, %v580
      %582 = vmatmul.f32.gmra.mxu0 %v375
      %v583 = vpop.f32.mrf.mxu0
      %v584 = vadd.f32 %v242, %v583
      %585 = vmatmul.f32.gmra.mxu0 %v378
      %v586 = vpop.f32.mrf.mxu0
      %v587 = vadd.f32 %v242, %v586
      %588 = vmatmul.f32.gmra.mxu0 %v381
      %v589 = vpop.f32.mrf.mxu0
      %v590 = vadd.f32 %v242, %v589
      %591 = vmatmul.f32.gmra.mxu0 %v384
      %v592 = vpop.f32.mrf.mxu0
      %v593 = vadd.f32 %v242, %v592
      %594 = vmatmul.f32.gmra.mxu0 %v387
      %v595 = vpop.f32.mrf.mxu0
      %v596 = vadd.f32 %v242, %v595
      %597 = vmatmul.f32.gmra.mxu0 %v390
      %v598 = vpop.f32.mrf.mxu0
      %v599 = vadd.f32 %v242, %v598
      %600 = vmatmul.f32.gmra.mxu0 %v393
      %v601 = vpop.f32.mrf.mxu0
      %v602 = vadd.f32 %v242, %v601
      %603 = vmatmul.f32.gmra.mxu0 %v396
      %v604 = vpop.f32.mrf.mxu0
      %v605 = vadd.f32 %v242, %v604
      %606 = vmatmul.f32.gmra.mxu0 %v399
      %v607 = vpop.f32.mrf.mxu0
      %v608 = vadd.f32 %v242, %v607
      %609 = vmatmul.f32.gmra.mxu0 %v402
      %v610 = vpop.f32.mrf.mxu0
      %v611 = vadd.f32 %v242, %v610
      %612 = vmatmul.f32.gmra.mxu0 %v405
      %v613 = vpop.f32.mrf.mxu0
      %v614 = vadd.f32 %v242, %v613
      %615 = vmatmul.f32.gmra.mxu0 %v408
      %v616 = vpop.f32.mrf.mxu0
      %v617 = vadd.f32 %v242, %v616
      %618 = vmatmul.f32.gmra.mxu0 %v411
      %v619 = vpop.f32.mrf.mxu0
      %v620 = vadd.f32 %v242, %v619
      %621 = vmatmul.f32.gmra.mxu0 %v414
      %v622 = vpop.f32.mrf.mxu0
      %v623 = vadd.f32 %v242, %v622
      %624 = vmatmul.f32.gmra.mxu0 %v417
      %v625 = vpop.f32.mrf.mxu0
      %v626 = vadd.f32 %v242, %v625
      %627 = vmatmul.f32.gmra.mxu0 %v420
      %v628 = vpop.f32.mrf.mxu0
      %v629 = vadd.f32 %v242, %v628
      %630 = vmatmul.f32.gmra.mxu0 %v423
      %v631 = vpop.f32.mrf.mxu0
      %v632 = vadd.f32 %v242, %v631
      %633 = vmatmul.f32.gmra.mxu0 %v426
      %v634 = vpop.f32.mrf.mxu0
      %v635 = vadd.f32 %v242, %v634
      %636 = vmatmul.f32.gmra.mxu0 %v429
      %v637 = vpop.f32.mrf.mxu0
      %v638 = vadd.f32 %v242, %v637
      %639 = vmatmul.f32.gmra.mxu0 %v432
      %v640 = vpop.f32.mrf.mxu0
      %v641 = vadd.f32 %v242, %v640
      %642 = vmatmul.f32.gmra.mxu0 %v435
      %v643 = vpop.f32.mrf.mxu0
      %v644 = vadd.f32 %v242, %v643
      %645 = vdwg.mxu0
      %646 = vst.msk [vmem:[%s172] sm:$0xff] %vm244, %v455
      %647 = vst.msk [vmem:[%s172 + $0x8] sm:$0xff] %vm244, %v458
      %648 = vst.msk [vmem:[%s172 + $0x10] sm:$0xff] %vm244, %v461
      %649 = vst.msk [vmem:[%s172 + $0x18] sm:$0xff] %vm244, %v464
      %650 = vst.msk [vmem:[%s172 + $0x20] sm:$0xff] %vm244, %v467
      %651 = vst.msk [vmem:[%s172 + $0x28] sm:$0xff] %vm244, %v470
      %652 = vst.msk [vmem:[%s172 + $0x30] sm:$0xff] %vm244, %v473
      %653 = vst.msk [vmem:[%s172 + $0x38] sm:$0xff] %vm244, %v476
      %654 = vst.msk [vmem:[%s172 + $0x40] sm:$0xff] %vm244, %v479
      %655 = vst.msk [vmem:[%s172 + $0x48] sm:$0xff] %vm244, %v482
      %656 = vst.msk [vmem:[%s172 + $0x50] sm:$0xff] %vm244, %v485
      %657 = vst.msk [vmem:[%s172 + $0x58] sm:$0xff] %vm244, %v488
      %658 = vst.msk [vmem:[%s172 + $0x60] sm:$0xff] %vm244, %v491
      %659 = vst.msk [vmem:[%s172 + $0x68] sm:$0xff] %vm244, %v494
      %660 = vst.msk [vmem:[%s172 + $0x70] sm:$0xff] %vm244, %v497
      %661 = vst.msk [vmem:[%s172 + $0x78] sm:$0xff] %vm244, %v500
      %662 = vst.msk [vmem:[%s172 + $0x80] sm:$0xff] %vm244, %v503
      %663 = vst.msk [vmem:[%s172 + $0x88] sm:$0xff] %vm244, %v506
      %664 = vst.msk [vmem:[%s172 + $0x90] sm:$0xff] %vm244, %v509
      %665 = vst.msk [vmem:[%s172 + $0x98] sm:$0xff] %vm244, %v512
      %666 = vst.msk [vmem:[%s172 + $0xa0] sm:$0xff] %vm244, %v515
      %667 = vst.msk [vmem:[%s172 + $0xa8] sm:$0xff] %vm244, %v518
      %668 = vst.msk [vmem:[%s172 + $0xb0] sm:$0xff] %vm244, %v521
      %669 = vst.msk [vmem:[%s172 + $0xb8] sm:$0xff] %vm244, %v524
      %670 = vst.msk [vmem:[%s172 + $0xc0] sm:$0xff] %vm244, %v527
      %671 = vst.msk [vmem:[%s172 + $0xc8] sm:$0xff] %vm244, %v530
      %672 = vst.msk [vmem:[%s172 + $0xd0] sm:$0xff] %vm244, %v533
      %673 = vst.msk [vmem:[%s172 + $0xd8] sm:$0xff] %vm244, %v536
      %674 = vst.msk [vmem:[%s172 + $0xe0] sm:$0xff] %vm244, %v539
      %675 = vst.msk [vmem:[%s172 + $0xe8] sm:$0xff] %vm244, %v542
      %676 = vst.msk [vmem:[%s172 + $0xf0] sm:$0xff] %vm244, %v545
      %677 = vst.msk [vmem:[%s172 + $0xf8] sm:$0xff] %vm244, %v548
      %678 = vst.msk [vmem:[%s172 + $0x100] sm:$0xff] %vm244, %v551
      %679 = vst.msk [vmem:[%s172 + $0x108] sm:$0xff] %vm244, %v554
      %680 = vst.msk [vmem:[%s172 + $0x110] sm:$0xff] %vm244, %v557
      %681 = vst.msk [vmem:[%s172 + $0x118] sm:$0xff] %vm244, %v560
      %682 = vst.msk [vmem:[%s172 + $0x120] sm:$0xff] %vm244, %v563
      %683 = vst.msk [vmem:[%s172 + $0x128] sm:$0xff] %vm244, %v566
      %684 = vst.msk [vmem:[%s172 + $0x130] sm:$0xff] %vm244, %v569
      %685 = vst.msk [vmem:[%s172 + $0x138] sm:$0xff] %vm244, %v572
      %686 = vst.msk [vmem:[%s172 + $0x140] sm:$0xff] %vm244, %v575
      %687 = vst.msk [vmem:[%s172 + $0x148] sm:$0xff] %vm244, %v578
      %688 = vst.msk [vmem:[%s172 + $0x150] sm:$0xff] %vm244, %v581
      %689 = vst.msk [vmem:[%s172 + $0x158] sm:$0xff] %vm244, %v584
      %690 = vst.msk [vmem:[%s172 + $0x160] sm:$0xff] %vm244, %v587
      %691 = vst.msk [vmem:[%s172 + $0x168] sm:$0xff] %vm244, %v590
      %692 = vst.msk [vmem:[%s172 + $0x170] sm:$0xff] %vm244, %v593
      %693 = vst.msk [vmem:[%s172 + $0x178] sm:$0xff] %vm244, %v596
      %694 = vst.msk [vmem:[%s172 + $0x180] sm:$0xff] %vm244, %v599
      %695 = vst.msk [vmem:[%s172 + $0x188] sm:$0xff] %vm244, %v602
      %696 = vst.msk [vmem:[%s172 + $0x190] sm:$0xff] %vm244, %v605
      %697 = vst.msk [vmem:[%s172 + $0x198] sm:$0xff] %vm244, %v608
      %698 = vst.msk [vmem:[%s172 + $0x1a0] sm:$0xff] %vm244, %v611
      %699 = vst.msk [vmem:[%s172 + $0x1a8] sm:$0xff] %vm244, %v614
      %700 = vst.msk [vmem:[%s172 + $0x1b0] sm:$0xff] %vm244, %v617
      %701 = vst.msk [vmem:[%s172 + $0x1b8] sm:$0xff] %vm244, %v620
      %702 = vst.msk [vmem:[%s172 + $0x1c0] sm:$0xff] %vm244, %v623
      %703 = vst.msk [vmem:[%s172 + $0x1c8] sm:$0xff] %vm244, %v626
      %704 = vst.msk [vmem:[%s172 + $0x1d0] sm:$0xff] %vm244, %v629
      %705 = vst.msk [vmem:[%s172 + $0x1d8] sm:$0xff] %vm244, %v632
      %706 = vst.msk [vmem:[%s172 + $0x1e0] sm:$0xff] %vm244, %v635
      %707 = vst.msk [vmem:[%s172 + $0x1e8] sm:$0xff] %vm244, %v638
      %708 = vst.msk [vmem:[%s172 + $0x1f0] sm:$0xff] %vm244, %v641
      %709 = vst.msk [vmem:[%s172 + $0x1f8] sm:$0xff] %vm244, %v644
      %s710 = smul.u32 64, %s14
      %p711 = scmp.lt.s32.totalorder %s710, 255
      %s712 = scalar_select %p711, %s710, 255
      %s713 = smul.addr %s712, 8
      %s714 = scalar_lea.vmem %s3, %s713
      // Predicated region
      $region33: #{esa_pallas.7} parent=31 // pred_check
        %p715 = pneg %p100
      $region34: #{esa_pallas.7} parent=31 // pred_check_branch
        %717 = sbr.rel (%p715) target = $region36
      $region35: #{esa_pallas.7} parent=31 // pred_region
        %s718 = smul.u32 64, %s14
      $region36: #{esa_pallas.7} parent=31 // pred_fallthru
        _
    $region32: #{esa_pallas.7} parent=5 // pred_fallthru
      _
    %p719 = scmp.le.s32.totalorder 2, %s9
    // Predicated region
    $region37: #{esa_pallas.7} parent=5 // pred_check
      %p720 = pneg %p719
    $region38: #{esa_pallas.7} parent=5 // pred_check_branch
      %722 = sbr.rel (%p720) target = $region40
    $region39: #{esa_pallas.7} parent=5 // pred_region
      %s723 = ssub.s32 %s9, 2
      // Predicated region
      $region41: #{esa_pallas.7} parent=39 // pred_check
        %p724 = pneg %p106
      $region42: #{esa_pallas.7} parent=39 // pred_check_branch
        %726 = sbr.rel (%p724) target = $region44
      $region43: #{esa_pallas.7} parent=39 // pred_region
        %s727 = smul.u32 64, %s15
        %p728 = scmp.lt.s32.totalorder %s727, 255
        %s729 = scalar_select %p728, %s727, 255
        %s730 = smul.addr %s729, 8
        %s731 = scalar_lea.vmem %s3, %s730
      $region44: #{esa_pallas.7} parent=39 // pred_fallthru
        _
    $region40: #{esa_pallas.7} parent=5 // pred_fallthru
      _
  $region6: #{esa_pallas.7} parent=0 // loop_footer
    %s13 = sadd.s32 1, %s9
  $region7: #{esa_pallas.7} parent=0 // loop_footer_branch
    %8 = sbr.rel target = $region3
  $region8: #{esa_pallas.7} parent=0 // loop_exit
    _

// kernel: esa_pallas.10
$region0: #{esa_pallas.10}
  #allocation0 [shape = 'u32[]', space=smem, size = 0x4, offset = 0x4, fixed_abs, tag = 'smem constant byte address 0x4 - core index']
  #allocation1 [shape = 'u32[72,128]{1,0:T(1,128)}', space=vmem, size = 0x9000, scoped, tag = 'internal scratch']
  %s0 = inlined_call_operand.vmem [shape: f32[2,35,8], index: 0, kind: input, shape index: {}]
  %s1 = inlined_call_operand.vmem [shape: f32[72,8], index: 1, kind: input, shape index: {}]
  %s2 = inlined_call_operand.vmem [shape: f32[1,8], index: 2, kind: input, shape index: {}]
  %s3 = inlined_call_operand.vmem [shape: f32[2,15,8], index: 3, kind: output, shape index: {}]
  %s4 = sld [smem:[#allocation0]]
  $region45: #{esa_pallas.10} parent=0
    _
  %s6 = ssub.s32 1, %s4
  %s7 = scalar_select 0, %s6, %s4
  loop: start=0, step=1, limit=4
  $region2: #{esa_pallas.10} parent=0 // loop_pre_header
    _
  $region3: #{esa_pallas.10} parent=0 // loop_header
    %s9 = sphi 0, %s13
    %p10 = scmp.ge.s32.totalorder %s9, 4
    %s19 = sphi 0, %s21
    %s22 = sphi 0, %s19
    %s23 = sphi 0, %s22
    %s39 = sphi 0, %s23
    %s43 = sphi 0, %s43
    %s45 = sphi 0, %s43
    %s46 = sphi 0, %s45
    %s60 = sphi 0, %s46
    %s64 = sphi 0, %s64
    %s66 = sphi 0, %s64
    %s67 = sphi 0, %s66
    %s81 = sphi 0, %s67
    %s87 = sphi 0, %s89
    %s90 = sphi 0, %s87
    %s91 = sphi 0, %s90
    %s107 = sphi 0, %s91
  $region4: #{esa_pallas.10} parent=0 // loop_header_branch
    %12 = sbr.rel (%p10) target = $region8
  $region5: #{esa_pallas.10} parent=0 // loop_body
    %s14 = ssub.s32 %s9, 1
    %s15 = ssub.s32 %s9, 2
    %s16 = sadd.s32 %s9, 1
    %s17 = ssub.s32 %s9, %s16
    %p18 = scmp.eq.s32.totalorder %s17, 0
    %s20 = sadd.s32 %s19, 1
    %s21 = scalar_select %p18, %s19, %s20
    %p24 = pneg %p18
    %p25 = scmp.eq.s32.totalorder %s9, 1
    %p26 = por %p24, %p25
    %p27 = scmp.ne.s32.totalorder %s19, %s22
    %p28 = scmp.eq.s32.totalorder %s9, 0
    %p29 = por %p27, %p28
    %p30 = scmp.ne.s32.totalorder %s19, %s22
    %p31 = scmp.eq.s32.totalorder %s14, 1
    %p32 = por %p30, %p31
    %p33 = scmp.ne.s32.totalorder %s22, %s23
    %p34 = scmp.eq.s32.totalorder %s14, 0
    %p35 = por %p33, %p34
    %p36 = scmp.ne.s32.totalorder %s22, %s23
    %p37 = scmp.eq.s32.totalorder %s15, 1
    %p38 = por %p36, %p37
    %p40 = scmp.ne.s32.totalorder %s23, %s39
    %p41 = scmp.eq.s32.totalorder %s15, 0
    %p42 = por %p40, %p41
    %s44 = sadd.s32 %s43, 1
    %p47 = scmp.eq.s32.totalorder %s9, 1
    %p48 = scmp.ne.s32.totalorder %s43, %s45
    %p49 = scmp.eq.s32.totalorder %s9, 0
    %p50 = por %p48, %p49
    %p51 = scmp.ne.s32.totalorder %s43, %s45
    %p52 = scmp.eq.s32.totalorder %s14, 1
    %p53 = por %p51, %p52
    %p54 = scmp.ne.s32.totalorder %s45, %s46
    %p55 = scmp.eq.s32.totalorder %s14, 0
    %p56 = por %p54, %p55
    %p57 = scmp.ne.s32.totalorder %s45, %s46
    %p58 = scmp.eq.s32.totalorder %s15, 1
    %p59 = por %p57, %p58
    %p61 = scmp.ne.s32.totalorder %s46, %s60
    %p62 = scmp.eq.s32.totalorder %s15, 0
    %p63 = por %p61, %p62
    %s65 = sadd.s32 %s64, 1
    %p68 = scmp.eq.s32.totalorder %s9, 1
    %p69 = scmp.ne.s32.totalorder %s64, %s66
    %p70 = scmp.eq.s32.totalorder %s9, 0
    %p71 = por %p69, %p70
    %p72 = scmp.ne.s32.totalorder %s64, %s66
    %p73 = scmp.eq.s32.totalorder %s14, 1
    %p74 = por %p72, %p73
    %p75 = scmp.ne.s32.totalorder %s66, %s67
    %p76 = scmp.eq.s32.totalorder %s14, 0
    %p77 = por %p75, %p76
    %p78 = scmp.ne.s32.totalorder %s66, %s67
    %p79 = scmp.eq.s32.totalorder %s15, 1
    %p80 = por %p78, %p79
    %p82 = scmp.ne.s32.totalorder %s67, %s81
    %p83 = scmp.eq.s32.totalorder %s15, 0
    %p84 = por %p82, %p83
    %s85 = ssub.s32 %s9, %s16
    %p86 = scmp.eq.s32.totalorder %s85, 0
    %s88 = sadd.s32 %s87, 1
    %s89 = scalar_select %p86, %s87, %s88
    %p92 = pneg %p86
    %p93 = scmp.eq.s32.totalorder %s9, 1
    %p94 = por %p92, %p93
    %p95 = scmp.ne.s32.totalorder %s87, %s90
    %p96 = scmp.eq.s32.totalorder %s9, 0
    %p97 = por %p95, %p96
    %p98 = scmp.ne.s32.totalorder %s87, %s90
    %p99 = scmp.eq.s32.totalorder %s14, 1
    %p100 = por %p98, %p99
    %p101 = scmp.ne.s32.totalorder %s90, %s91
    %p102 = scmp.eq.s32.totalorder %s14, 0
    %p103 = por %p101, %p102
    %p104 = scmp.ne.s32.totalorder %s90, %s91
    %p105 = scmp.eq.s32.totalorder %s15, 1
    %p106 = por %p104, %p105
    %p108 = scmp.ne.s32.totalorder %s91, %s107
    %p109 = scmp.eq.s32.totalorder %s15, 0
    %p110 = por %p108, %p109
    %p111 = scmp.le.s32.totalorder 1, %s9
    %p112 = scmp.lt.s32.totalorder %s9, 3
    %p113 = pnand %p111, %p112
    %p114 = pneg %p113
    // Predicated region
    $region9: #{esa_pallas.10} parent=5 // pred_check
      _
    $region10: #{esa_pallas.10} parent=5 // pred_check_branch
      %116 = sbr.rel (%p113) target = $region12
    $region11: #{esa_pallas.10} parent=5 // pred_region
      %s117 = ssub.s32 %s9, 1
      // Predicated region
      $region13: #{esa_pallas.10} parent=11 // pred_check
        %p118 = pneg %p56
      $region14: #{esa_pallas.10} parent=11 // pred_check_branch
        %120 = sbr.rel (%p118) target = $region16
      $region15: #{esa_pallas.10} parent=11 // pred_region
        _
      $region16: #{esa_pallas.10} parent=11 // pred_fallthru
        _
      // Predicated region
      $region17: #{esa_pallas.10} parent=11 // pred_check
        %p121 = pneg %p77
      $region18: #{esa_pallas.10} parent=11 // pred_check_branch
        %123 = sbr.rel (%p121) target = $region20
      $region19: #{esa_pallas.10} parent=11 // pred_region
        _
      $region20: #{esa_pallas.10} parent=11 // pred_fallthru
        _
    $region12: #{esa_pallas.10} parent=5 // pred_fallthru
      _
    %p124 = scmp.lt.s32.totalorder %s9, 2
    // Predicated region
    $region21: #{esa_pallas.10} parent=5 // pred_check
      %p125 = pneg %p124
    $region22: #{esa_pallas.10} parent=5 // pred_check_branch
      %127 = sbr.rel (%p125) target = $region24
    $region23: #{esa_pallas.10} parent=5 // pred_region
      // Predicated region
      $region25: #{esa_pallas.10} parent=23 // pred_check
        %p128 = pneg %p29
      $region26: #{esa_pallas.10} parent=23 // pred_check_branch
        %130 = sbr.rel (%p128) target = $region28
      $region27: #{esa_pallas.10} parent=23 // pred_region
        %p131 = scmp.lt.s32.totalorder %s9, 1
        %s132 = scalar_select %p131, %s9, 1
        %s133 = smul.addr %s132, 5
        %s134 = smul.addr %s133, 8
        %s135 = scalar_lea.vmem %s0, %s134
      $region28: #{esa_pallas.10} parent=23 // pred_fallthru
        _
    $region24: #{esa_pallas.10} parent=5 // pred_fallthru
      _
    %p136 = scmp.le.s32.totalorder 1, %s9
    %p137 = scmp.lt.s32.totalorder %s9, 3
    %p138 = pnand %p136, %p137
    %p139 = pneg %p138
    // Predicated region
    $region29: #{esa_pallas.10} parent=5 // pred_check
      _
    $region30: #{esa_pallas.10} parent=5 // pred_check_branch
      %141 = sbr.rel (%p138) target = $region32
    $region31: #{esa_pallas.10} parent=5 // pred_region
      %s142 = ssub.s32 %s9, 1
      %p143 = scmp.lt.s32.totalorder %s14, 1
      %s144 = scalar_select %p143, %s14, 1
      %s145 = smul.addr %s144, 5
      %s146 = smul.addr %s145, 8
      %s147 = scalar_lea.vmem %s0, %s146
      %p148 = pneg %p35
      %p149 = pneg %p32
      %p150 = pneg %p56
      %p151 = pneg %p53
      %p152 = pneg %p77
      %p153 = pneg %p74
      %p154 = pneg %p103
      %p155 = pneg %p100
      %p156 = scmp.lt.s32.totalorder %s14, 1
      %s157 = scalar_select %p156, %s14, 1
      %s158 = smul.addr %s157, 2
      %s159 = smul.addr %s158, 8
      %s160 = scalar_lea.vmem %s3, %s159
      %p161 = scmp.lt.s32.totalorder %s14, 1
      %s162 = scalar_select %p161, %s14, 1
      %s163 = smul.addr %s162, 5
      %s164 = smul.addr %s163, 8
      %s165 = scalar_lea.vmem %s0, %s164
      %p166 = scmp.lt.s32.totalorder %s14, 1
      %s167 = scalar_select %p166, %s14, 1
      %s168 = smul.addr %s167, 2
      %s169 = smul.addr %s168, 8
      %s170 = scalar_lea.vmem %s3, %s169
      %v171 = vld [vmem:[%s165] sm:$0xff]
      %v172 = vld [vmem:[%s165 + $0x8] sm:$0xff]
      %v173 = vld [vmem:[%s165 + $0x10] sm:$0xff]
      %v174 = vld [vmem:[%s165 + $0x18] sm:$0xff]
      %v175 = vld [vmem:[%s1] sm:$0xff]
      %v176 = vld [vmem:[%s1 + $0x8] sm:$0xff]
      %v177 = vld [vmem:[%s1 + $0x10] sm:$0xff]
      %v178 = vld [vmem:[%s1 + $0x18] sm:$0xff]
      %v179 = vld [vmem:[%s1 + $0x20] sm:$0xff]
      %v180 = vld [vmem:[%s1 + $0x28] sm:$0xff]
      %v181 = vld [vmem:[%s1 + $0x30] sm:$0xff]
      %v182 = vld [vmem:[%s1 + $0x38] sm:$0xff]
      %v183 = vld [vmem:[%s1 + $0x40] sm:$0xff]
      %vm186 = vcmask 1046528
      %v187 = vrot.slane %v171, 1
      %v188 = vrot.slane %v172, 1
      %v189 = vsel %vm186, %v187, %v188
      %vm190 = vcmask 64512
      %v191 = vsel %vm190, %v189, 0
      %v193 = vsel %vm190, %v188, 0
      %195 = vmatpush.msra.mxu0 0.0
      %196 = vmatpush.msra.mxu0 0.0
      %197 = vmatpush.msra.mxu0 0.0
      %198 = vmatpush.msra.mxu0 0.0
      %199 = vmatpush.msra.mxu0 0.0
      %200 = vmatpush.msra.mxu0 0.0
      %201 = vmatpush.msra.mxu0 0.0
      %202 = vmatpush.msra.mxu0 0.0
      %203 = vmatpush.msra.mxu0 0.0
      %204 = vmatpush.msra.mxu0 0.0
      %205 = vmatpush.msra.mxu0 0.0
      %206 = vmatpush.msra.mxu0 0.0
      %207 = vmatpush.msra.mxu0 0.0
      %208 = vmatpush.msra.mxu0 0.0
      %209 = vmatpush.msra.mxu0 0.0
      %210 = vmatpush.msra.mxu0 %v176
      %211 = vmatmul.f32.gmra.mxu0 %v191
      %v212 = vpop.f32.mrf.mxu0
      %v213 = vadd.f32 0.0, %v212
      %214 = vmatmul.f32.gmra.mxu0 %v193
      %v215 = vpop.f32.mrf.mxu0
      %v216 = vadd.f32 0.0, %v215
      %217 = vdwg.mxu0
      %v218 = vsel %vm190, %v171, 0
      %v220 = vsel %vm190, %v172, 0
      %222 = vmatpush.msra.mxu0 0.0
      %223 = vmatpush.msra.mxu0 0.0
      %224 = vmatpush.msra.mxu0 0.0
      %225 = vmatpush.msra.mxu0 0.0
      %226 = vmatpush.msra.mxu0 0.0
      %227 = vmatpush.msra.mxu0 0.0
      %228 = vmatpush.msra.mxu0 0.0
      %229 = vmatpush.msra.mxu0 0.0
      %230 = vmatpush.msra.mxu0 0.0
      %231 = vmatpush.msra.mxu0 0.0
      %232 = vmatpush.msra.mxu0 0.0
      %233 = vmatpush.msra.mxu0 0.0
      %234 = vmatpush.msra.mxu0 0.0
      %235 = vmatpush.msra.mxu0 0.0
      %236 = vmatpush.msra.mxu0 0.0
      %237 = vmatpush.msra.mxu0 %v175
      %238 = vmatmul.f32.gmra.mxu0 %v218
      %v239 = vpop.f32.mrf.mxu0
      %v240 = vadd.f32 %v213, %v239
      %241 = vmatmul.f32.gmra.mxu0 %v220
      %v242 = vpop.f32.mrf.mxu0
      %v243 = vadd.f32 %v216, %v242
      %244 = vdwg.mxu0
      %vm246 = vcmask 1045504
      %v247 = vrot.slane %v171, 2
      %v248 = vrot.slane %v172, 2
      %v249 = vsel %vm246, %v247, %v248
      %v250 = vrot.slane %v173, 2
      %v251 = vsel %vm246, %v248, %v250
      %v252 = vsel %vm190, %v249, 0
      %v254 = vsel %vm190, %v251, 0
      %256 = vmatpush.msra.mxu0 0.0
      %257 = vmatpush.msra.mxu0 0.0
      %258 = vmatpush.msra.mxu0 0.0
      %259 = vmatpush.msra.mxu0 0.0
      %260 = vmatpush.msra.mxu0 0.0
      %261 = vmatpush.msra.mxu0 0.0
      %262 = vmatpush.msra.mxu0 0.0
      %263 = vmatpush.msra.mxu0 0.0
      %264 = vmatpush.msra.mxu0 0.0
      %265 = vmatpush.msra.mxu0 0.0
      %266 = vmatpush.msra.mxu0 0.0
      %267 = vmatpush.msra.mxu0 0.0
      %268 = vmatpush.msra.mxu0 0.0
      %269 = vmatpush.msra.mxu0 0.0
      %270 = vmatpush.msra.mxu0 0.0
      %271 = vmatpush.msra.mxu0 %v177
      %272 = vmatmul.f32.gmra.mxu0 %v252
      %v273 = vpop.f32.mrf.mxu0
      %v274 = vadd.f32 0.0, %v273
      %275 = vmatmul.f32.gmra.mxu0 %v254
      %v276 = vpop.f32.mrf.mxu0
      %v277 = vadd.f32 0.0, %v276
      %278 = vdwg.mxu0
      %v279 = vadd.f32 %v240, %v274
      %v280 = vadd.f32 %v243, %v277
      %vm281 = vcmask 1042432
      %v282 = vrot.slane %v171, 5
      %v283 = vrot.slane %v172, 5
      %v284 = vsel %vm281, %v282, %v283
      %v285 = vrot.slane %v173, 5
      %v286 = vsel %vm281, %v283, %v285
      %v287 = vsel %vm190, %v284, 0
      %v289 = vsel %vm190, %v286, 0
      %291 = vmatpush.msra.mxu0 0.0
      %292 = vmatpush.msra.mxu0 0.0
      %293 = vmatpush.msra.mxu0 0.0
      %294 = vmatpush.msra.mxu0 0.0
      %295 = vmatpush.msra.mxu0 0.0
      %296 = vmatpush.msra.mxu0 0.0
      %297 = vmatpush.msra.mxu0 0.0
      %298 = vmatpush.msra.mxu0 0.0
      %299 = vmatpush.msra.mxu0 0.0
      %300 = vmatpush.msra.mxu0 0.0
      %301 = vmatpush.msra.mxu0 0.0
      %302 = vmatpush.msra.mxu0 0.0
      %303 = vmatpush.msra.mxu0 0.0
      %304 = vmatpush.msra.mxu0 0.0
      %305 = vmatpush.msra.mxu0 0.0
      %306 = vmatpush.msra.mxu0 %v178
      %307 = vmatmul.f32.gmra.mxu0 %v287
      %v308 = vpop.f32.mrf.mxu0
      %v309 = vadd.f32 0.0, %v308
      %310 = vmatmul.f32.gmra.mxu0 %v289
      %v311 = vpop.f32.mrf.mxu0
      %v312 = vadd.f32 0.0, %v311
      %313 = vdwg.mxu0
      %v314 = vadd.f32 %v279, %v309
      %v315 = vadd.f32 %v280, %v312
      %vm316 = vcmask 1041408
      %v317 = vrot.slane %v171, 6
      %v318 = vrot.slane %v172, 6
      %v319 = vsel %vm316, %v317, %v318
      %v320 = vrot.slane %v173, 6
      %v321 = vsel %vm316, %v318, %v320
      %v322 = vsel %vm190, %v319, 0
      %v324 = vsel %vm190, %v321, 0
      %326 = vmatpush.msra.mxu0 0.0
      %327 = vmatpush.msra.mxu0 0.0
      %328 = vmatpush.msra.mxu0 0.0
      %329 = vmatpush.msra.mxu0 0.0
      %330 = vmatpush.msra.mxu0 0.0
      %331 = vmatpush.msra.mxu0 0.0
      %332 = vmatpush.msra.mxu0 0.0
      %333 = vmatpush.msra.mxu0 0.0
      %334 = vmatpush.msra.mxu0 0.0
      %335 = vmatpush.msra.mxu0 0.0
      %336 = vmatpush.msra.mxu0 0.0
      %337 = vmatpush.msra.mxu0 0.0
      %338 = vmatpush.msra.mxu0 0.0
      %339 = vmatpush.msra.mxu0 0.0
      %340 = vmatpush.msra.mxu0 0.0
      %341 = vmatpush.msra.mxu0 %v179
      %342 = vmatmul.f32.gmra.mxu0 %v322
      %v343 = vpop.f32.mrf.mxu0
      %v344 = vadd.f32 0.0, %v343
      %345 = vmatmul.f32.gmra.mxu0 %v324
      %v346 = vpop.f32.mrf.mxu0
      %v347 = vadd.f32 0.0, %v346
      %348 = vdwg.mxu0
      %v349 = vadd.f32 %v314, %v344
      %v350 = vadd.f32 %v315, %v347
      %vm351 = vcmask 1040384
      %v352 = vrot.slane %v171, 7
      %v353 = vrot.slane %v172, 7
      %v354 = vsel %vm351, %v352, %v353
      %v355 = vrot.slane %v173, 7
      %v356 = vsel %vm351, %v353, %v355
      %v357 = vsel %vm190, %v354, 0
      %v359 = vsel %vm190, %v356, 0
      %361 = vmatpush.msra.mxu0 0.0
      %362 = vmatpush.msra.mxu0 0.0
      %363 = vmatpush.msra.mxu0 0.0
      %364 = vmatpush.msra.mxu0 0.0
      %365 = vmatpush.msra.mxu0 0.0
      %366 = vmatpush.msra.mxu0 0.0
      %367 = vmatpush.msra.mxu0 0.0
      %368 = vmatpush.msra.mxu0 0.0
      %369 = vmatpush.msra.mxu0 0.0
      %370 = vmatpush.msra.mxu0 0.0
      %371 = vmatpush.msra.mxu0 0.0
      %372 = vmatpush.msra.mxu0 0.0
      %373 = vmatpush.msra.mxu0 0.0
      %374 = vmatpush.msra.mxu0 0.0
      %375 = vmatpush.msra.mxu0 0.0
      %376 = vmatpush.msra.mxu0 %v180
      %377 = vmatmul.f32.gmra.mxu0 %v357
      %v378 = vpop.f32.mrf.mxu0
      %v379 = vadd.f32 0.0, %v378
      %380 = vmatmul.f32.gmra.mxu0 %v359
      %v381 = vpop.f32.mrf.mxu0
      %v382 = vadd.f32 0.0, %v381
      %383 = vdwg.mxu0
      %v384 = vadd.f32 %v349, %v379
      %v385 = vadd.f32 %v350, %v382
      %v387 = vrot.slane %v174, 2
      %v388 = vsel %vm246, %v250, %v387
      %v389 = vsel %vm190, %v388, 0
      %391 = vmatpush.msra.mxu0 0.0
      %392 = vmatpush.msra.mxu0 0.0
      %393 = vmatpush.msra.mxu0 0.0
      %394 = vmatpush.msra.mxu0 0.0
      %395 = vmatpush.msra.mxu0 0.0
      %396 = vmatpush.msra.mxu0 0.0
      %397 = vmatpush.msra.mxu0 0.0
      %398 = vmatpush.msra.mxu0 0.0
      %399 = vmatpush.msra.mxu0 0.0
      %400 = vmatpush.msra.mxu0 0.0
      %401 = vmatpush.msra.mxu0 0.0
      %402 = vmatpush.msra.mxu0 0.0
      %403 = vmatpush.msra.mxu0 0.0
      %404 = vmatpush.msra.mxu0 0.0
      %405 = vmatpush.msra.mxu0 0.0
      %406 = vmatpush.msra.mxu0 %v181
      %407 = vmatmul.f32.gmra.mxu0 %v254
      %v408 = vpop.f32.mrf.mxu0
      %v409 = vadd.f32 0.0, %v408
      %410 = vmatmul.f32.gmra.mxu0 %v389
      %v411 = vpop.f32.mrf.mxu0
      %v412 = vadd.f32 0.0, %v411
      %413 = vdwg.mxu0
      %v414 = vadd.f32 %v384, %v409
      %v415 = vadd.f32 %v385, %v412
      %vm416 = vcmask 1044480
      %v417 = vrot.slane %v172, 3
      %v418 = vrot.slane %v173, 3
      %v419 = vsel %vm416, %v417, %v418
      %v420 = vrot.slane %v174, 3
      %v421 = vsel %vm416, %v418, %v420
      %v422 = vsel %vm190, %v419, 0
      %v424 = vsel %vm190, %v421, 0
      %426 = vmatpush.msra.mxu0 0.0
      %427 = vmatpush.msra.mxu0 0.0
      %428 = vmatpush.msra.mxu0 0.0
      %429 = vmatpush.msra.mxu0 0.0
      %430 = vmatpush.msra.mxu0 0.0
      %431 = vmatpush.msra.mxu0 0.0
      %432 = vmatpush.msra.mxu0 0.0
      %433 = vmatpush.msra.mxu0 0.0
      %434 = vmatpush.msra.mxu0 0.0
      %435 = vmatpush.msra.mxu0 0.0
      %436 = vmatpush.msra.mxu0 0.0
      %437 = vmatpush.msra.mxu0 0.0
      %438 = vmatpush.msra.mxu0 0.0
      %439 = vmatpush.msra.mxu0 0.0
      %440 = vmatpush.msra.mxu0 0.0
      %441 = vmatpush.msra.mxu0 %v182
      %442 = vmatmul.f32.gmra.mxu0 %v422
      %v443 = vpop.f32.mrf.mxu0
      %v444 = vadd.f32 0.0, %v443
      %445 = vmatmul.f32.gmra.mxu0 %v424
      %v446 = vpop.f32.mrf.mxu0
      %v447 = vadd.f32 0.0, %v446
      %448 = vdwg.mxu0
      %v449 = vadd.f32 %v414, %v444
      %v450 = vadd.f32 %v415, %v447
      %vm451 = vcmask 1043456
      %v452 = vrot.slane %v172, 4
      %v453 = vrot.slane %v173, 4
      %v454 = vsel %vm451, %v452, %v453
      %v455 = vrot.slane %v174, 4
      %v456 = vsel %vm451, %v453, %v455
      %v457 = vsel %vm190, %v454, 0
      %v459 = vsel %vm190, %v456, 0
      %461 = vmatpush.msra.mxu0 0.0
      %462 = vmatpush.msra.mxu0 0.0
      %463 = vmatpush.msra.mxu0 0.0
      %464 = vmatpush.msra.mxu0 0.0
      %465 = vmatpush.msra.mxu0 0.0
      %466 = vmatpush.msra.mxu0 0.0
      %467 = vmatpush.msra.mxu0 0.0
      %468 = vmatpush.msra.mxu0 0.0
      %469 = vmatpush.msra.mxu0 0.0
      %470 = vmatpush.msra.mxu0 0.0
      %471 = vmatpush.msra.mxu0 0.0
      %472 = vmatpush.msra.mxu0 0.0
      %473 = vmatpush.msra.mxu0 0.0
      %474 = vmatpush.msra.mxu0 0.0
      %475 = vmatpush.msra.mxu0 0.0
      %476 = vmatpush.msra.mxu0 %v183
      %477 = vmatmul.f32.gmra.mxu0 %v457
      %v478 = vpop.f32.mrf.mxu0
      %v479 = vadd.f32 0.0, %v478
      %480 = vmatmul.f32.gmra.mxu0 %v459
      %v481 = vpop.f32.mrf.mxu0
      %v482 = vadd.f32 0.0, %v481
      %483 = vdwg.mxu0
      %v484 = vadd.f32 %v449, %v479
      %v485 = vadd.f32 %v450, %v482
      %v486 = vld [vmem:[%s2] sm:$0x1]
      %v488 = vperm.slane %v486, 0
      %v490 = vadd.f32 %v484, %v488
      %v491 = vadd.f32 %v485, %v488
      %492 = vst.msk [vmem:[%s170] sm:$0xff] %vm190, %v490
      %vm493 = vcmask 63488
      %494 = vst.msk [vmem:[%s170 + $0x8] sm:$0x7f] %vm493, %v491
      %p495 = scmp.lt.s32.totalorder %s14, 1
      %s496 = scalar_select %p495, %s14, 1
      %s497 = smul.addr %s496, 2
      %s498 = smul.addr %s497, 8
      %s499 = scalar_lea.vmem %s3, %s498
      // Predicated region
      $region33: #{esa_pallas.10} parent=31 // pred_check
        %p500 = pneg %p100
      $region34: #{esa_pallas.10} parent=31 // pred_check_branch
        %502 = sbr.rel (%p500) target = $region36
      $region35: #{esa_pallas.10} parent=31 // pred_region
        _
      $region36: #{esa_pallas.10} parent=31 // pred_fallthru
        _
    $region32: #{esa_pallas.10} parent=5 // pred_fallthru
      _
    %p503 = scmp.le.s32.totalorder 2, %s9
    // Predicated region
    $region37: #{esa_pallas.10} parent=5 // pred_check
      %p504 = pneg %p503
    $region38: #{esa_pallas.10} parent=5 // pred_check_branch
      %506 = sbr.rel (%p504) target = $region40
    $region39: #{esa_pallas.10} parent=5 // pred_region
      %s507 = ssub.s32 %s9, 2
      // Predicated region
      $region41: #{esa_pallas.10} parent=39 // pred_check
        %p508 = pneg %p106
      $region42: #{esa_pallas.10} parent=39 // pred_check_branch
        %510 = sbr.rel (%p508) target = $region44
      $region43: #{esa_pallas.10} parent=39 // pred_region
        %p511 = scmp.lt.s32.totalorder %s15, 1
        %s512 = scalar_select %p511, %s15, 1
        %s513 = smul.addr %s512, 2
        %s514 = smul.addr %s513, 8
        %s515 = scalar_lea.vmem %s3, %s514
      $region44: #{esa_pallas.10} parent=39 // pred_fallthru
        _
    $region40: #{esa_pallas.10} parent=5 // pred_fallthru
      _
  $region6: #{esa_pallas.10} parent=0 // loop_footer
    %s13 = sadd.s32 1, %s9
  $region7: #{esa_pallas.10} parent=0 // loop_footer_branch
    %8 = sbr.rel target = $region3
  $region8: #{esa_pallas.10} parent=0 // loop_exit
    _

// kernel: esa_pallas.9
$region0: #{esa_pallas.9}
  #allocation0 [shape = 'u32[]', space=smem, size = 0x4, offset = 0x4, fixed_abs, tag = 'smem constant byte address 0x4 - core index']
  #allocation1 [shape = 'u32[72,128]{1,0:T(1,128)}', space=vmem, size = 0x9000, scoped, tag = 'internal scratch']
  %s0 = inlined_call_operand.vmem [shape: f32[2,15,15,8], index: 0, kind: input, shape index: {}]
  %s1 = inlined_call_operand.vmem [shape: f32[2,9,9,8], index: 1, kind: output, shape index: {}]
  %s2 = sld [smem:[#allocation0]]
  $region37: #{esa_pallas.9} parent=0
    _
  %s4 = ssub.s32 1, %s2
  %s5 = scalar_select 0, %s4, %s2
  loop: start=0, step=1, limit=4
  $region2: #{esa_pallas.9} parent=0 // loop_pre_header
    _
  $region3: #{esa_pallas.9} parent=0 // loop_header
    %s7 = sphi 0, %s11
    %p8 = scmp.ge.s32.totalorder %s7, 4
    %s17 = sphi 0, %s19
    %s20 = sphi 0, %s17
    %s21 = sphi 0, %s20
    %s37 = sphi 0, %s21
    %s43 = sphi 0, %s45
    %s46 = sphi 0, %s43
    %s47 = sphi 0, %s46
    %s63 = sphi 0, %s47
  $region4: #{esa_pallas.9} parent=0 // loop_header_branch
    %10 = sbr.rel (%p8) target = $region8
  $region5: #{esa_pallas.9} parent=0 // loop_body
    %s12 = ssub.s32 %s7, 1
    %s13 = ssub.s32 %s7, 2
    %s14 = sadd.s32 %s7, 1
    %s15 = ssub.s32 %s7, %s14
    %p16 = scmp.eq.s32.totalorder %s15, 0
    %s18 = sadd.s32 %s17, 1
    %s19 = scalar_select %p16, %s17, %s18
    %p22 = pneg %p16
    %p23 = scmp.eq.s32.totalorder %s7, 1
    %p24 = por %p22, %p23
    %p25 = scmp.ne.s32.totalorder %s17, %s20
    %p26 = scmp.eq.s32.totalorder %s7, 0
    %p27 = por %p25, %p26
    %p28 = scmp.ne.s32.totalorder %s17, %s20
    %p29 = scmp.eq.s32.totalorder %s12, 1
    %p30 = por %p28, %p29
    %p31 = scmp.ne.s32.totalorder %s20, %s21
    %p32 = scmp.eq.s32.totalorder %s12, 0
    %p33 = por %p31, %p32
    %p34 = scmp.ne.s32.totalorder %s20, %s21
    %p35 = scmp.eq.s32.totalorder %s13, 1
    %p36 = por %p34, %p35
    %p38 = scmp.ne.s32.totalorder %s21, %s37
    %p39 = scmp.eq.s32.totalorder %s13, 0
    %p40 = por %p38, %p39
    %s41 = ssub.s32 %s7, %s14
    %p42 = scmp.eq.s32.totalorder %s41, 0
    %s44 = sadd.s32 %s43, 1
    %s45 = scalar_select %p42, %s43, %s44
    %p48 = pneg %p42
    %p49 = scmp.eq.s32.totalorder %s7, 1
    %p50 = por %p48, %p49
    %p51 = scmp.ne.s32.totalorder %s43, %s46
    %p52 = scmp.eq.s32.totalorder %s7, 0
    %p53 = por %p51, %p52
    %p54 = scmp.ne.s32.totalorder %s43, %s46
    %p55 = scmp.eq.s32.totalorder %s12, 1
    %p56 = por %p54, %p55
    %p57 = scmp.ne.s32.totalorder %s46, %s47
    %p58 = scmp.eq.s32.totalorder %s12, 0
    %p59 = por %p57, %p58
    %p60 = scmp.ne.s32.totalorder %s46, %s47
    %p61 = scmp.eq.s32.totalorder %s13, 1
    %p62 = por %p60, %p61
    %p64 = scmp.ne.s32.totalorder %s47, %s63
    %p65 = scmp.eq.s32.totalorder %s13, 0
    %p66 = por %p64, %p65
    %p67 = scmp.le.s32.totalorder 1, %s7
    %p68 = scmp.lt.s32.totalorder %s7, 3
    %p69 = pnand %p67, %p68
    %p70 = pneg %p69
    // Predicated region
    $region9: #{esa_pallas.9} parent=5 // pred_check
      _
    $region10: #{esa_pallas.9} parent=5 // pred_check_branch
      %72 = sbr.rel (%p69) target = $region12
    $region11: #{esa_pallas.9} parent=5 // pred_region
      %s73 = ssub.s32 %s7, 1
    $region12: #{esa_pallas.9} parent=5 // pred_fallthru
      _
    %p74 = scmp.lt.s32.totalorder %s7, 2
    // Predicated region
    $region13: #{esa_pallas.9} parent=5 // pred_check
      %p75 = pneg %p74
    $region14: #{esa_pallas.9} parent=5 // pred_check_branch
      %77 = sbr.rel (%p75) target = $region16
    $region15: #{esa_pallas.9} parent=5 // pred_region
      // Predicated region
      $region17: #{esa_pallas.9} parent=15 // pred_check
        %p78 = pneg %p27
      $region18: #{esa_pallas.9} parent=15 // pred_check_branch
        %80 = sbr.rel (%p78) target = $region20
      $region19: #{esa_pallas.9} parent=15 // pred_region
        %p81 = scmp.lt.s32.totalorder %s7, 1
        %s82 = scalar_select %p81, %s7, 1
        %s83 = smul.addr %s82, 30
        %s84 = smul.addr %s83, 8
        %s85 = scalar_lea.vmem %s0, %s84
      $region20: #{esa_pallas.9} parent=15 // pred_fallthru
        _
    $region16: #{esa_pallas.9} parent=5 // pred_fallthru
      _
    %p86 = scmp.le.s32.totalorder 1, %s7
    %p87 = scmp.lt.s32.totalorder %s7, 3
    %p88 = pnand %p86, %p87
    %p89 = pneg %p88
    // Predicated region
    $region21: #{esa_pallas.9} parent=5 // pred_check
      _
    $region22: #{esa_pallas.9} parent=5 // pred_check_branch
      %91 = sbr.rel (%p88) target = $region24
    $region23: #{esa_pallas.9} parent=5 // pred_region
      %s92 = ssub.s32 %s7, 1
      %p93 = scmp.lt.s32.totalorder %s12, 1
      %s94 = scalar_select %p93, %s12, 1
      %s95 = smul.addr %s94, 30
      %s96 = smul.addr %s95, 8
      %s97 = scalar_lea.vmem %s0, %s96
      %p98 = pneg %p33
      %p99 = pneg %p30
      %p100 = pneg %p59
      %p101 = pneg %p56
      %p102 = scmp.lt.s32.totalorder %s12, 1
      %s103 = scalar_select %p102, %s12, 1
      %s104 = smul.addr %s103, 18
      %s105 = smul.addr %s104, 8
      %s106 = scalar_lea.vmem %s1, %s105
      %p107 = scmp.lt.s32.totalorder %s12, 1
      %s108 = scalar_select %p107, %s12, 1
      %s109 = smul.addr %s108, 30
      %s110 = smul.addr %s109, 8
      %s111 = scalar_lea.vmem %s0, %s110
      %p112 = scmp.lt.s32.totalorder %s12, 1
      %s113 = scalar_select %p112, %s12, 1
      %s114 = smul.addr %s113, 18
      %s115 = smul.addr %s114, 8
      %s116 = scalar_lea.vmem %s1, %s115
      %v117 = vld [vmem:[%s111] sm:$0xff]
      %v118 = vld [vmem:[%s111 + $0x8] sm:$0x7f]
      %v119 = vld [vmem:[%s111 + $0x10] sm:$0xff]
      %v120 = vld [vmem:[%s111 + $0x18] sm:$0x7f]
      %v121 = vld [vmem:[%s111 + $0x20] sm:$0xff]
      %v122 = vld [vmem:[%s111 + $0x28] sm:$0x7f]
      %v123 = vld [vmem:[%s111 + $0x30] sm:$0xff]
      %v124 = vld [vmem:[%s111 + $0x38] sm:$0x7f]
      %v125 = vld [vmem:[%s111 + $0x40] sm:$0xff]
      %v126 = vld [vmem:[%s111 + $0x48] sm:$0x7f]
      %v127 = vld [vmem:[%s111 + $0x50] sm:$0xff]
      %v128 = vld [vmem:[%s111 + $0x58] sm:$0x7f]
      %v129 = vld [vmem:[%s111 + $0x60] sm:$0xff]
      %v130 = vld [vmem:[%s111 + $0x68] sm:$0x7f]
      %v131 = vld [vmem:[%s111 + $0x70] sm:$0xff]
      %v132 = vld [vmem:[%s111 + $0x78] sm:$0x7f]
      %v133 = vld [vmem:[%s111 + $0x80] sm:$0xff]
      %v134 = vld [vmem:[%s111 + $0x88] sm:$0x7f]
      %v135 = vld [vmem:[%s111 + $0x90] sm:$0xff]
      %v136 = vld [vmem:[%s111 + $0x98] sm:$0x7f]
      %v137 = vld [vmem:[%s111 + $0xa0] sm:$0xff]
      %v138 = vld [vmem:[%s111 + $0xa8] sm:$0x7f]
      %v139 = vld [vmem:[%s111 + $0xb0] sm:$0xff]
      %v140 = vld [vmem:[%s111 + $0xb8] sm:$0x7f]
      %v141 = vld [vmem:[%s111 + $0xc0] sm:$0xff]
      %v142 = vld [vmem:[%s111 + $0xc8] sm:$0x7f]
      %v143 = vld [vmem:[%s111 + $0xd0] sm:$0xff]
      %v144 = vld [vmem:[%s111 + $0xd8] sm:$0x7f]
      %v145 = vld [vmem:[%s111 + $0xe0] sm:$0xff]
      %v146 = vld [vmem:[%s111 + $0xe8] sm:$0x7f]
      %vm177 = vcmask 1046528
      %v178 = vrot.slane %v117, 1
      %v179 = vrot.slane %v118, 1
      %v180 = vsel %vm177, %v178, %v179
      %v181 = vrot.slane %v119, 1
      %v182 = vrot.slane %v120, 1
      %v183 = vsel %vm177, %v181, %v182
      %v184 = vrot.slane %v121, 1
      %v185 = vrot.slane %v122, 1
      %v186 = vsel %vm177, %v184, %v185
      %v187 = vrot.slane %v123, 1
      %v188 = vrot.slane %v124, 1
      %v189 = vsel %vm177, %v187, %v188
      %v190 = vrot.slane %v125, 1
      %v191 = vrot.slane %v126, 1
      %v192 = vsel %vm177, %v190, %v191
      %v193 = vrot.slane %v127, 1
      %v194 = vrot.slane %v128, 1
      %v195 = vsel %vm177, %v193, %v194
      %v196 = vrot.slane %v129, 1
      %v197 = vrot.slane %v130, 1
      %v198 = vsel %vm177, %v196, %v197
      %v199 = vrot.slane %v131, 1
      %v200 = vrot.slane %v132, 1
      %v201 = vsel %vm177, %v199, %v200
      %v202 = vrot.slane %v133, 1
      %v203 = vrot.slane %v134, 1
      %v204 = vsel %vm177, %v202, %v203
      %v205 = vrot.slane %v135, 1
      %v206 = vrot.slane %v136, 1
      %v207 = vsel %vm177, %v205, %v206
      %v208 = vrot.slane %v137, 1
      %v209 = vrot.slane %v138, 1
      %v210 = vsel %vm177, %v208, %v209
      %v211 = vrot.slane %v139, 1
      %v212 = vrot.slane %v140, 1
      %v213 = vsel %vm177, %v211, %v212
      %v214 = vrot.slane %v141, 1
      %v215 = vrot.slane %v142, 1
      %v216 = vsel %vm177, %v214, %v215
      %v217 = vrot.slane %v143, 1
      %v218 = vrot.slane %v144, 1
      %v219 = vsel %vm177, %v217, %v218
      %v220 = vrot.slane %v145, 1
      %v221 = vrot.slane %v146, 1
      %v222 = vsel %vm177, %v220, %v221
      %v253 = vmax.f32 %v117, %v180
      %v254 = vmax.f32 %v118, %v179
      %v255 = vmax.f32 %v119, %v183
      %v256 = vmax.f32 %v120, %v182
      %v257 = vmax.f32 %v121, %v186
      %v258 = vmax.f32 %v122, %v185
      %v259 = vmax.f32 %v123, %v189
      %v260 = vmax.f32 %v124, %v188
      %v261 = vmax.f32 %v125, %v192
      %v262 = vmax.f32 %v126, %v191
      %v263 = vmax.f32 %v127, %v195
      %v264 = vmax.f32 %v128, %v194
      %v265 = vmax.f32 %v129, %v198
      %v266 = vmax.f32 %v130, %v197
      %v267 = vmax.f32 %v131, %v201
      %v268 = vmax.f32 %v132, %v200
      %v269 = vmax.f32 %v133, %v204
      %v270 = vmax.f32 %v134, %v203
      %v271 = vmax.f32 %v135, %v207
      %v272 = vmax.f32 %v136, %v206
      %v273 = vmax.f32 %v137, %v210
      %v274 = vmax.f32 %v138, %v209
      %v275 = vmax.f32 %v139, %v213
      %v276 = vmax.f32 %v140, %v212
      %v277 = vmax.f32 %v141, %v216
      %v278 = vmax.f32 %v142, %v215
      %v279 = vmax.f32 %v143, %v219
      %v280 = vmax.f32 %v144, %v218
      %v281 = vmax.f32 %v145, %v222
      %v282 = vmax.f32 %v146, %v221
      %vm283 = vcmask 1045504
      %v284 = vrot.slane %v117, 2
      %v285 = vrot.slane %v118, 2
      %v286 = vsel %vm283, %v284, %v285
      %v287 = vrot.slane %v119, 2
      %v288 = vrot.slane %v120, 2
      %v289 = vsel %vm283, %v287, %v288
      %v290 = vrot.slane %v121, 2
      %v291 = vrot.slane %v122, 2
      %v292 = vsel %vm283, %v290, %v291
      %v293 = vrot.slane %v123, 2
      %v294 = vrot.slane %v124, 2
      %v295 = vsel %vm283, %v293, %v294
      %v296 = vrot.slane %v125, 2
      %v297 = vrot.slane %v126, 2
      %v298 = vsel %vm283, %v296, %v297
      %v299 = vrot.slane %v127, 2
      %v300 = vrot.slane %v128, 2
      %v301 = vsel %vm283, %v299, %v300
      %v302 = vrot.slane %v129, 2
      %v303 = vrot.slane %v130, 2
      %v304 = vsel %vm283, %v302, %v303
      %v305 = vrot.slane %v131, 2
      %v306 = vrot.slane %v132, 2
      %v307 = vsel %vm283, %v305, %v306
      %v308 = vrot.slane %v133, 2
      %v309 = vrot.slane %v134, 2
      %v310 = vsel %vm283, %v308, %v309
      %v311 = vrot.slane %v135, 2
      %v312 = vrot.slane %v136, 2
      %v313 = vsel %vm283, %v311, %v312
      %v314 = vrot.slane %v137, 2
      %v315 = vrot.slane %v138, 2
      %v316 = vsel %vm283, %v314, %v315
      %v317 = vrot.slane %v139, 2
      %v318 = vrot.slane %v140, 2
      %v319 = vsel %vm283, %v317, %v318
      %v320 = vrot.slane %v141, 2
      %v321 = vrot.slane %v142, 2
      %v322 = vsel %vm283, %v320, %v321
      %v323 = vrot.slane %v143, 2
      %v324 = vrot.slane %v144, 2
      %v325 = vsel %vm283, %v323, %v324
      %v326 = vrot.slane %v145, 2
      %v327 = vrot.slane %v146, 2
      %v328 = vsel %vm283, %v326, %v327
      %v359 = vmax.f32 %v253, %v286
      %v360 = vmax.f32 %v254, %v285
      %v361 = vmax.f32 %v255, %v289
      %v362 = vmax.f32 %v256, %v288
      %v363 = vmax.f32 %v257, %v292
      %v364 = vmax.f32 %v258, %v291
      %v365 = vmax.f32 %v259, %v295
      %v366 = vmax.f32 %v260, %v294
      %v367 = vmax.f32 %v261, %v298
      %v368 = vmax.f32 %v262, %v297
      %v369 = vmax.f32 %v263, %v301
      %v370 = vmax.f32 %v264, %v300
      %v371 = vmax.f32 %v265, %v304
      %v372 = vmax.f32 %v266, %v303
      %v373 = vmax.f32 %v267, %v307
      %v374 = vmax.f32 %v268, %v306
      %v375 = vmax.f32 %v269, %v310
      %v376 = vmax.f32 %v270, %v309
      %v377 = vmax.f32 %v271, %v313
      %v378 = vmax.f32 %v272, %v312
      %v379 = vmax.f32 %v273, %v316
      %v380 = vmax.f32 %v274, %v315
      %v381 = vmax.f32 %v275, %v319
      %v382 = vmax.f32 %v276, %v318
      %v383 = vmax.f32 %v277, %v322
      %v384 = vmax.f32 %v278, %v321
      %v385 = vmax.f32 %v279, %v325
      %v386 = vmax.f32 %v280, %v324
      %v387 = vmax.f32 %v281, %v328
      %v388 = vmax.f32 %v282, %v327
      %vm389 = vcmask 1044480
      %v390 = vrot.slane %v117, 3
      %v391 = vrot.slane %v118, 3
      %v392 = vsel %vm389, %v390, %v391
      %v393 = vrot.slane %v119, 3
      %v394 = vrot.slane %v120, 3
      %v395 = vsel %vm389, %v393, %v394
      %v396 = vrot.slane %v121, 3
      %v397 = vrot.slane %v122, 3
      %v398 = vsel %vm389, %v396, %v397
      %v399 = vrot.slane %v123, 3
      %v400 = vrot.slane %v124, 3
      %v401 = vsel %vm389, %v399, %v400
      %v402 = vrot.slane %v125, 3
      %v403 = vrot.slane %v126, 3
      %v404 = vsel %vm389, %v402, %v403
      %v405 = vrot.slane %v127, 3
      %v406 = vrot.slane %v128, 3
      %v407 = vsel %vm389, %v405, %v406
      %v408 = vrot.slane %v129, 3
      %v409 = vrot.slane %v130, 3
      %v410 = vsel %vm389, %v408, %v409
      %v411 = vrot.slane %v131, 3
      %v412 = vrot.slane %v132, 3
      %v413 = vsel %vm389, %v411, %v412
      %v414 = vrot.slane %v133, 3
      %v415 = vrot.slane %v134, 3
      %v416 = vsel %vm389, %v414, %v415
      %v417 = vrot.slane %v135, 3
      %v418 = vrot.slane %v136, 3
      %v419 = vsel %vm389, %v417, %v418
      %v420 = vrot.slane %v137, 3
      %v421 = vrot.slane %v138, 3
      %v422 = vsel %vm389, %v420, %v421
      %v423 = vrot.slane %v139, 3
      %v424 = vrot.slane %v140, 3
      %v425 = vsel %vm389, %v423, %v424
      %v426 = vrot.slane %v141, 3
      %v427 = vrot.slane %v142, 3
      %v428 = vsel %vm389, %v426, %v427
      %v429 = vrot.slane %v143, 3
      %v430 = vrot.slane %v144, 3
      %v431 = vsel %vm389, %v429, %v430
      %v432 = vrot.slane %v145, 3
      %v433 = vrot.slane %v146, 3
      %v434 = vsel %vm389, %v432, %v433
      %v465 = vmax.f32 %v359, %v392
      %v466 = vmax.f32 %v360, %v391
      %v467 = vmax.f32 %v361, %v395
      %v468 = vmax.f32 %v362, %v394
      %v469 = vmax.f32 %v363, %v398
      %v470 = vmax.f32 %v364, %v397
      %v471 = vmax.f32 %v365, %v401
      %v472 = vmax.f32 %v366, %v400
      %v473 = vmax.f32 %v367, %v404
      %v474 = vmax.f32 %v368, %v403
      %v475 = vmax.f32 %v369, %v407
      %v476 = vmax.f32 %v370, %v406
      %v477 = vmax.f32 %v371, %v410
      %v478 = vmax.f32 %v372, %v409
      %v479 = vmax.f32 %v373, %v413
      %v480 = vmax.f32 %v374, %v412
      %v481 = vmax.f32 %v375, %v416
      %v482 = vmax.f32 %v376, %v415
      %v483 = vmax.f32 %v377, %v419
      %v484 = vmax.f32 %v378, %v418
      %v485 = vmax.f32 %v379, %v422
      %v486 = vmax.f32 %v380, %v421
      %v487 = vmax.f32 %v381, %v425
      %v488 = vmax.f32 %v382, %v424
      %v489 = vmax.f32 %v383, %v428
      %v490 = vmax.f32 %v384, %v427
      %v491 = vmax.f32 %v385, %v431
      %v492 = vmax.f32 %v386, %v430
      %v493 = vmax.f32 %v387, %v434
      %v494 = vmax.f32 %v388, %v433
      %vm495 = vcmask 1043456
      %v496 = vrot.slane %v117, 4
      %v497 = vrot.slane %v118, 4
      %v498 = vsel %vm495, %v496, %v497
      %v499 = vrot.slane %v119, 4
      %v500 = vrot.slane %v120, 4
      %v501 = vsel %vm495, %v499, %v500
      %v502 = vrot.slane %v121, 4
      %v503 = vrot.slane %v122, 4
      %v504 = vsel %vm495, %v502, %v503
      %v505 = vrot.slane %v123, 4
      %v506 = vrot.slane %v124, 4
      %v507 = vsel %vm495, %v505, %v506
      %v508 = vrot.slane %v125, 4
      %v509 = vrot.slane %v126, 4
      %v510 = vsel %vm495, %v508, %v509
      %v511 = vrot.slane %v127, 4
      %v512 = vrot.slane %v128, 4
      %v513 = vsel %vm495, %v511, %v512
      %v514 = vrot.slane %v129, 4
      %v515 = vrot.slane %v130, 4
      %v516 = vsel %vm495, %v514, %v515
      %v517 = vrot.slane %v131, 4
      %v518 = vrot.slane %v132, 4
      %v519 = vsel %vm495, %v517, %v518
      %v520 = vrot.slane %v133, 4
      %v521 = vrot.slane %v134, 4
      %v522 = vsel %vm495, %v520, %v521
      %v523 = vrot.slane %v135, 4
      %v524 = vrot.slane %v136, 4
      %v525 = vsel %vm495, %v523, %v524
      %v526 = vrot.slane %v137, 4
      %v527 = vrot.slane %v138, 4
      %v528 = vsel %vm495, %v526, %v527
      %v529 = vrot.slane %v139, 4
      %v530 = vrot.slane %v140, 4
      %v531 = vsel %vm495, %v529, %v530
      %v532 = vrot.slane %v141, 4
      %v533 = vrot.slane %v142, 4
      %v534 = vsel %vm495, %v532, %v533
      %v535 = vrot.slane %v143, 4
      %v536 = vrot.slane %v144, 4
      %v537 = vsel %vm495, %v535, %v536
      %v538 = vrot.slane %v145, 4
      %v539 = vrot.slane %v146, 4
      %v540 = vsel %vm495, %v538, %v539
      %v571 = vmax.f32 %v465, %v498
      %v572 = vmax.f32 %v466, %v497
      %v573 = vmax.f32 %v467, %v501
      %v574 = vmax.f32 %v468, %v500
      %v575 = vmax.f32 %v469, %v504
      %v576 = vmax.f32 %v470, %v503
      %v577 = vmax.f32 %v471, %v507
      %v578 = vmax.f32 %v472, %v506
      %v579 = vmax.f32 %v473, %v510
      %v580 = vmax.f32 %v474, %v509
      %v581 = vmax.f32 %v475, %v513
      %v582 = vmax.f32 %v476, %v512
      %v583 = vmax.f32 %v477, %v516
      %v584 = vmax.f32 %v478, %v515
      %v585 = vmax.f32 %v479, %v519
      %v586 = vmax.f32 %v480, %v518
      %v587 = vmax.f32 %v481, %v522
      %v588 = vmax.f32 %v482, %v521
      %v589 = vmax.f32 %v483, %v525
      %v590 = vmax.f32 %v484, %v524
      %v591 = vmax.f32 %v485, %v528
      %v592 = vmax.f32 %v486, %v527
      %v593 = vmax.f32 %v487, %v531
      %v594 = vmax.f32 %v488, %v530
      %v595 = vmax.f32 %v489, %v534
      %v596 = vmax.f32 %v490, %v533
      %v597 = vmax.f32 %v491, %v537
      %v598 = vmax.f32 %v492, %v536
      %v599 = vmax.f32 %v493, %v540
      %v600 = vmax.f32 %v494, %v539
      %vm601 = vcmask 1042432
      %v602 = vrot.slane %v117, 5
      %v603 = vrot.slane %v118, 5
      %v604 = vsel %vm601, %v602, %v603
      %v605 = vrot.slane %v119, 5
      %v606 = vrot.slane %v120, 5
      %v607 = vsel %vm601, %v605, %v606
      %v608 = vrot.slane %v121, 5
      %v609 = vrot.slane %v122, 5
      %v610 = vsel %vm601, %v608, %v609
      %v611 = vrot.slane %v123, 5
      %v612 = vrot.slane %v124, 5
      %v613 = vsel %vm601, %v611, %v612
      %v614 = vrot.slane %v125, 5
      %v615 = vrot.slane %v126, 5
      %v616 = vsel %vm601, %v614, %v615
      %v617 = vrot.slane %v127, 5
      %v618 = vrot.slane %v128, 5
      %v619 = vsel %vm601, %v617, %v618
      %v620 = vrot.slane %v129, 5
      %v621 = vrot.slane %v130, 5
      %v622 = vsel %vm601, %v620, %v621
      %v623 = vrot.slane %v131, 5
      %v624 = vrot.slane %v132, 5
      %v625 = vsel %vm601, %v623, %v624
      %v626 = vrot.slane %v133, 5
      %v627 = vrot.slane %v134, 5
      %v628 = vsel %vm601, %v626, %v627
      %v629 = vrot.slane %v135, 5
      %v630 = vrot.slane %v136, 5
      %v631 = vsel %vm601, %v629, %v630
      %v632 = vrot.slane %v137, 5
      %v633 = vrot.slane %v138, 5
      %v634 = vsel %vm601, %v632, %v633
      %v635 = vrot.slane %v139, 5
      %v636 = vrot.slane %v140, 5
      %v637 = vsel %vm601, %v635, %v636
      %v638 = vrot.slane %v141, 5
      %v639 = vrot.slane %v142, 5
      %v640 = vsel %vm601, %v638, %v639
      %v641 = vrot.slane %v143, 5
      %v642 = vrot.slane %v144, 5
      %v643 = vsel %vm601, %v641, %v642
      %v644 = vrot.slane %v145, 5
      %v645 = vrot.slane %v146, 5
      %v646 = vsel %vm601, %v644, %v645
      %v677 = vmax.f32 %v571, %v604
      %v678 = vmax.f32 %v572, %v603
      %v679 = vmax.f32 %v573, %v607
      %v680 = vmax.f32 %v574, %v606
      %v681 = vmax.f32 %v575, %v610
      %v682 = vmax.f32 %v576, %v609
      %v683 = vmax.f32 %v577, %v613
      %v684 = vmax.f32 %v578, %v612
      %v685 = vmax.f32 %v579, %v616
      %v686 = vmax.f32 %v580, %v615
      %v687 = vmax.f32 %v581, %v619
      %v688 = vmax.f32 %v582, %v618
      %v689 = vmax.f32 %v583, %v622
      %v690 = vmax.f32 %v584, %v621
      %v691 = vmax.f32 %v585, %v625
      %v692 = vmax.f32 %v586, %v624
      %v693 = vmax.f32 %v587, %v628
      %v694 = vmax.f32 %v588, %v627
      %v695 = vmax.f32 %v589, %v631
      %v696 = vmax.f32 %v590, %v630
      %v697 = vmax.f32 %v591, %v634
      %v698 = vmax.f32 %v592, %v633
      %v699 = vmax.f32 %v593, %v637
      %v700 = vmax.f32 %v594, %v636
      %v701 = vmax.f32 %v595, %v640
      %v702 = vmax.f32 %v596, %v639
      %v703 = vmax.f32 %v597, %v643
      %v704 = vmax.f32 %v598, %v642
      %v705 = vmax.f32 %v599, %v646
      %v706 = vmax.f32 %v600, %v645
      %vm707 = vcmask 1041408
      %v708 = vrot.slane %v117, 6
      %v709 = vrot.slane %v118, 6
      %v710 = vsel %vm707, %v708, %v709
      %v711 = vrot.slane %v119, 6
      %v712 = vrot.slane %v120, 6
      %v713 = vsel %vm707, %v711, %v712
      %v714 = vrot.slane %v121, 6
      %v715 = vrot.slane %v122, 6
      %v716 = vsel %vm707, %v714, %v715
      %v717 = vrot.slane %v123, 6
      %v718 = vrot.slane %v124, 6
      %v719 = vsel %vm707, %v717, %v718
      %v720 = vrot.slane %v125, 6
      %v721 = vrot.slane %v126, 6
      %v722 = vsel %vm707, %v720, %v721
      %v723 = vrot.slane %v127, 6
      %v724 = vrot.slane %v128, 6
      %v725 = vsel %vm707, %v723, %v724
      %v726 = vrot.slane %v129, 6
      %v727 = vrot.slane %v130, 6
      %v728 = vsel %vm707, %v726, %v727
      %v729 = vrot.slane %v131, 6
      %v730 = vrot.slane %v132, 6
      %v731 = vsel %vm707, %v729, %v730
      %v732 = vrot.slane %v133, 6
      %v733 = vrot.slane %v134, 6
      %v734 = vsel %vm707, %v732, %v733
      %v735 = vrot.slane %v135, 6
      %v736 = vrot.slane %v136, 6
      %v737 = vsel %vm707, %v735, %v736
      %v738 = vrot.slane %v137, 6
      %v739 = vrot.slane %v138, 6
      %v740 = vsel %vm707, %v738, %v739
      %v741 = vrot.slane %v139, 6
      %v742 = vrot.slane %v140, 6
      %v743 = vsel %vm707, %v741, %v742
      %v744 = vrot.slane %v141, 6
      %v745 = vrot.slane %v142, 6
      %v746 = vsel %vm707, %v744, %v745
      %v747 = vrot.slane %v143, 6
      %v748 = vrot.slane %v144, 6
      %v749 = vsel %vm707, %v747, %v748
      %v750 = vrot.slane %v145, 6
      %v751 = vrot.slane %v146, 6
      %v752 = vsel %vm707, %v750, %v751
      %v783 = vmax.f32 %v677, %v710
      %v784 = vmax.f32 %v678, %v709
      %v785 = vmax.f32 %v679, %v713
      %v786 = vmax.f32 %v680, %v712
      %v787 = vmax.f32 %v681, %v716
      %v788 = vmax.f32 %v682, %v715
      %v789 = vmax.f32 %v683, %v719
      %v790 = vmax.f32 %v684, %v718
      %v791 = vmax.f32 %v685, %v722
      %v792 = vmax.f32 %v686, %v721
      %v793 = vmax.f32 %v687, %v725
      %v794 = vmax.f32 %v688, %v724
      %v795 = vmax.f32 %v689, %v728
      %v796 = vmax.f32 %v690, %v727
      %v797 = vmax.f32 %v691, %v731
      %v798 = vmax.f32 %v692, %v730
      %v799 = vmax.f32 %v693, %v734
      %v800 = vmax.f32 %v694, %v733
      %v801 = vmax.f32 %v695, %v737
      %v802 = vmax.f32 %v696, %v736
      %v803 = vmax.f32 %v697, %v740
      %v804 = vmax.f32 %v698, %v739
      %v805 = vmax.f32 %v699, %v743
      %v806 = vmax.f32 %v700, %v742
      %v807 = vmax.f32 %v701, %v746
      %v808 = vmax.f32 %v702, %v745
      %v809 = vmax.f32 %v703, %v749
      %v810 = vmax.f32 %v704, %v748
      %v811 = vmax.f32 %v705, %v752
      %v812 = vmax.f32 %v706, %v751
      %v813 = vmax.f32 %v783, %v785
      %v814 = vmax.f32 %v784, %v786
      %v815 = vmax.f32 %v785, %v787
      %v816 = vmax.f32 %v786, %v788
      %v817 = vmax.f32 %v787, %v789
      %v818 = vmax.f32 %v788, %v790
      %v819 = vmax.f32 %v789, %v791
      %v820 = vmax.f32 %v790, %v792
      %v821 = vmax.f32 %v791, %v793
      %v822 = vmax.f32 %v792, %v794
      %v823 = vmax.f32 %v793, %v795
      %v824 = vmax.f32 %v794, %v796
      %v825 = vmax.f32 %v795, %v797
      %v826 = vmax.f32 %v796, %v798
      %v827 = vmax.f32 %v797, %v799
      %v828 = vmax.f32 %v798, %v800
      %v829 = vmax.f32 %v799, %v801
      %v830 = vmax.f32 %v800, %v802
      %v831 = vmax.f32 %v813, %v787
      %v832 = vmax.f32 %v814, %v788
      %v833 = vmax.f32 %v815, %v789
      %v834 = vmax.f32 %v816, %v790
      %v835 = vmax.f32 %v817, %v791
      %v836 = vmax.f32 %v818, %v792
      %v837 = vmax.f32 %v819, %v793
      %v838 = vmax.f32 %v820, %v794
      %v839 = vmax.f32 %v821, %v795
      %v840 = vmax.f32 %v822, %v796
      %v841 = vmax.f32 %v823, %v797
      %v842 = vmax.f32 %v824, %v798
      %v843 = vmax.f32 %v825, %v799
      %v844 = vmax.f32 %v826, %v800
      %v845 = vmax.f32 %v827, %v801
      %v846 = vmax.f32 %v828, %v802
      %v847 = vmax.f32 %v829, %v803
      %v848 = vmax.f32 %v830, %v804
      %v849 = vmax.f32 %v831, %v789
      %v850 = vmax.f32 %v832, %v790
      %v851 = vmax.f32 %v833, %v791
      %v852 = vmax.f32 %v834, %v792
      %v853 = vmax.f32 %v835, %v793
      %v854 = vmax.f32 %v836, %v794
      %v855 = vmax.f32 %v837, %v795
      %v856 = vmax.f32 %v838, %v796
      %v857 = vmax.f32 %v839, %v797
      %v858 = vmax.f32 %v840, %v798
      %v859 = vmax.f32 %v841, %v799
      %v860 = vmax.f32 %v842, %v800
      %v861 = vmax.f32 %v843, %v801
      %v862 = vmax.f32 %v844, %v802
      %v863 = vmax.f32 %v845, %v803
      %v864 = vmax.f32 %v846, %v804
      %v865 = vmax.f32 %v847, %v805
      %v866 = vmax.f32 %v848, %v806
      %v867 = vmax.f32 %v849, %v791
      %v868 = vmax.f32 %v850, %v792
      %v869 = vmax.f32 %v851, %v793
      %v870 = vmax.f32 %v852, %v794
      %v871 = vmax.f32 %v853, %v795
      %v872 = vmax.f32 %v854, %v796
      %v873 = vmax.f32 %v855, %v797
      %v874 = vmax.f32 %v856, %v798
      %v875 = vmax.f32 %v857, %v799
      %v876 = vmax.f32 %v858, %v800
      %v877 = vmax.f32 %v859, %v801
      %v878 = vmax.f32 %v860, %v802
      %v879 = vmax.f32 %v861, %v803
      %v880 = vmax.f32 %v862, %v804
      %v881 = vmax.f32 %v863, %v805
      %v882 = vmax.f32 %v864, %v806
      %v883 = vmax.f32 %v865, %v807
      %v884 = vmax.f32 %v866, %v808
      %v885 = vmax.f32 %v867, %v793
      %v886 = vmax.f32 %v868, %v794
      %v887 = vmax.f32 %v869, %v795
      %v888 = vmax.f32 %v870, %v796
      %v889 = vmax.f32 %v871, %v797
      %v890 = vmax.f32 %v872, %v798
      %v891 = vmax.f32 %v873, %v799
      %v892 = vmax.f32 %v874, %v800
      %v893 = vmax.f32 %v875, %v801
      %v894 = vmax.f32 %v876, %v802
      %v895 = vmax.f32 %v877, %v803
      %v896 = vmax.f32 %v878, %v804
      %v897 = vmax.f32 %v879, %v805
      %v898 = vmax.f32 %v880, %v806
      %v899 = vmax.f32 %v881, %v807
      %v900 = vmax.f32 %v882, %v808
      %v901 = vmax.f32 %v883, %v809
      %v902 = vmax.f32 %v884, %v810
      %v903 = vmax.f32 %v885, %v795
      %v904 = vmax.f32 %v886, %v796
      %v905 = vmax.f32 %v887, %v797
      %v906 = vmax.f32 %v888, %v798
      %v907 = vmax.f32 %v889, %v799
      %v908 = vmax.f32 %v890, %v800
      %v909 = vmax.f32 %v891, %v801
      %v910 = vmax.f32 %v892, %v802
      %v911 = vmax.f32 %v893, %v803
      %v912 = vmax.f32 %v894, %v804
      %v913 = vmax.f32 %v895, %v805
      %v914 = vmax.f32 %v896, %v806
      %v915 = vmax.f32 %v897, %v807
      %v916 = vmax.f32 %v898, %v808
      %v917 = vmax.f32 %v899, %v809
      %v918 = vmax.f32 %v900, %v810
      %v919 = vmax.f32 %v901, %v811
      %v920 = vmax.f32 %v902, %v812
      %vm921 = vcmask 64512
      %922 = vst.msk [vmem:[%s116] sm:$0xff] %vm921, %v903
      %vm923 = vcmask 57344
      %924 = vst.msk [vmem:[%s116 + $0x8] sm:$0x1] %vm923, %v904
      %925 = vst.msk [vmem:[%s116 + $0x10] sm:$0xff] %vm921, %v905
      %926 = vst.msk [vmem:[%s116 + $0x18] sm:$0x1] %vm923, %v906
      %927 = vst.msk [vmem:[%s116 + $0x20] sm:$0xff] %vm921, %v907
      %928 = vst.msk [vmem:[%s116 + $0x28] sm:$0x1] %vm923, %v908
      %929 = vst.msk [vmem:[%s116 + $0x30] sm:$0xff] %vm921, %v909
      %930 = vst.msk [vmem:[%s116 + $0x38] sm:$0x1] %vm923, %v910
      %931 = vst.msk [vmem:[%s116 + $0x40] sm:$0xff] %vm921, %v911
      %932 = vst.msk [vmem:[%s116 + $0x48] sm:$0x1] %vm923, %v912
      %933 = vst.msk [vmem:[%s116 + $0x50] sm:$0xff] %vm921, %v913
      %934 = vst.msk [vmem:[%s116 + $0x58] sm:$0x1] %vm923, %v914
      %935 = vst.msk [vmem:[%s116 + $0x60] sm:$0xff] %vm921, %v915
      %936 = vst.msk [vmem:[%s116 + $0x68] sm:$0x1] %vm923, %v916
      %937 = vst.msk [vmem:[%s116 + $0x70] sm:$0xff] %vm921, %v917
      %938 = vst.msk [vmem:[%s116 + $0x78] sm:$0x1] %vm923, %v918
      %939 = vst.msk [vmem:[%s116 + $0x80] sm:$0xff] %vm921, %v919
      %940 = vst.msk [vmem:[%s116 + $0x88] sm:$0x1] %vm923, %v920
      %p941 = scmp.lt.s32.totalorder %s12, 1
      %s942 = scalar_select %p941, %s12, 1
      %s943 = smul.addr %s942, 18
      %s944 = smul.addr %s943, 8
      %s945 = scalar_lea.vmem %s1, %s944
      // Predicated region
      $region25: #{esa_pallas.9} parent=23 // pred_check
        %p946 = pneg %p56
      $region26: #{esa_pallas.9} parent=23 // pred_check_branch
        %948 = sbr.rel (%p946) target = $region28
      $region27: #{esa_pallas.9} parent=23 // pred_region
        _
      $region28: #{esa_pallas.9} parent=23 // pred_fallthru
        _
    $region24: #{esa_pallas.9} parent=5 // pred_fallthru
      _
    %p949 = scmp.le.s32.totalorder 2, %s7
    // Predicated region
    $region29: #{esa_pallas.9} parent=5 // pred_check
      %p950 = pneg %p949
    $region30: #{esa_pallas.9} parent=5 // pred_check_branch
      %952 = sbr.rel (%p950) target = $region32
    $region31: #{esa_pallas.9} parent=5 // pred_region
      %s953 = ssub.s32 %s7, 2
      // Predicated region
      $region33: #{esa_pallas.9} parent=31 // pred_check
        %p954 = pneg %p62
      $region34: #{esa_pallas.9} parent=31 // pred_check_branch
        %956 = sbr.rel (%p954) target = $region36
      $region35: #{esa_pallas.9} parent=31 // pred_region
        %p957 = scmp.lt.s32.totalorder %s13, 1
        %s958 = scalar_select %p957, %s13, 1
        %s959 = smul.addr %s958, 18
        %s960 = smul.addr %s959, 8
        %s961 = scalar_lea.vmem %s1, %s960
      $region36: #{esa_pallas.9} parent=31 // pred_fallthru
        _
    $region32: #{esa_pallas.9} parent=5 // pred_fallthru
      _
  $region6: #{esa_pallas.9} parent=0 // loop_footer
    %s11 = sadd.s32 1, %s7
  $region7: #{esa_pallas.9} parent=0 // loop_footer_branch
    %6 = sbr.rel target = $region3
  $region8: #{esa_pallas.9} parent=0 // loop_exit
    _

// kernel: esa_pallas.11
$region0: #{esa_pallas.11}
  #allocation0 [shape = 'u32[]', space=smem, size = 0x4, offset = 0x4, fixed_abs, tag = 'smem constant byte address 0x4 - core index']
  #allocation1 [shape = 'u32[72,128]{1,0:T(1,128)}', space=vmem, size = 0x9000, scoped, tag = 'internal scratch']
  %s0 = inlined_call_operand.vmem [shape: f32[32,3], index: 0, kind: input, shape index: {}]
  %s1 = inlined_call_operand.vmem [shape: f32[2,3,24], index: 1, kind: input, shape index: {}]
  %s2 = inlined_call_operand.vmem [shape: f32[2,32,24], index: 2, kind: output, shape index: {}]
  %s3 = sld [smem:[#allocation0]]
  $region41: #{esa_pallas.11} parent=0
    _
  %s5 = ssub.s32 1, %s3
  %s6 = scalar_select 0, %s5, %s3
  loop: start=0, step=1, limit=4
  $region2: #{esa_pallas.11} parent=0 // loop_pre_header
    _
  $region3: #{esa_pallas.11} parent=0 // loop_header
    %s8 = sphi 0, %s12
    %p9 = scmp.ge.s32.totalorder %s8, 4
    %s16 = sphi 0, %s16
    %s18 = sphi 0, %s16
    %s19 = sphi 0, %s18
    %s33 = sphi 0, %s19
    %s39 = sphi 0, %s41
    %s42 = sphi 0, %s39
    %s43 = sphi 0, %s42
    %s59 = sphi 0, %s43
    %s65 = sphi 0, %s67
    %s68 = sphi 0, %s65
    %s69 = sphi 0, %s68
    %s85 = sphi 0, %s69
  $region4: #{esa_pallas.11} parent=0 // loop_header_branch
    %11 = sbr.rel (%p9) target = $region8
  $region5: #{esa_pallas.11} parent=0 // loop_body
    %s13 = ssub.s32 %s8, 1
    %s14 = ssub.s32 %s8, 2
    %s15 = sadd.s32 %s8, 1
    %s17 = sadd.s32 %s16, 1
    %p20 = scmp.eq.s32.totalorder %s8, 1
    %p21 = scmp.ne.s32.totalorder %s16, %s18
    %p22 = scmp.eq.s32.totalorder %s8, 0
    %p23 = por %p21, %p22
    %p24 = scmp.ne.s32.totalorder %s16, %s18
    %p25 = scmp.eq.s32.totalorder %s13, 1
    %p26 = por %p24, %p25
    %p27 = scmp.ne.s32.totalorder %s18, %s19
    %p28 = scmp.eq.s32.totalorder %s13, 0
    %p29 = por %p27, %p28
    %p30 = scmp.ne.s32.totalorder %s18, %s19
    %p31 = scmp.eq.s32.totalorder %s14, 1
    %p32 = por %p30, %p31
    %p34 = scmp.ne.s32.totalorder %s19, %s33
    %p35 = scmp.eq.s32.totalorder %s14, 0
    %p36 = por %p34, %p35
    %s37 = ssub.s32 %s8, %s15
    %p38 = scmp.eq.s32.totalorder %s37, 0
    %s40 = sadd.s32 %s39, 1
    %s41 = scalar_select %p38, %s39, %s40
    %p44 = pneg %p38
    %p45 = scmp.eq.s32.totalorder %s8, 1
    %p46 = por %p44, %p45
    %p47 = scmp.ne.s32.totalorder %s39, %s42
    %p48 = scmp.eq.s32.totalorder %s8, 0
    %p49 = por %p47, %p48
    %p50 = scmp.ne.s32.totalorder %s39, %s42
    %p51 = scmp.eq.s32.totalorder %s13, 1
    %p52 = por %p50, %p51
    %p53 = scmp.ne.s32.totalorder %s42, %s43
    %p54 = scmp.eq.s32.totalorder %s13, 0
    %p55 = por %p53, %p54
    %p56 = scmp.ne.s32.totalorder %s42, %s43
    %p57 = scmp.eq.s32.totalorder %s14, 1
    %p58 = por %p56, %p57
    %p60 = scmp.ne.s32.totalorder %s43, %s59
    %p61 = scmp.eq.s32.totalorder %s14, 0
    %p62 = por %p60, %p61
    %s63 = ssub.s32 %s8, %s15
    %p64 = scmp.eq.s32.totalorder %s63, 0
    %s66 = sadd.s32 %s65, 1
    %s67 = scalar_select %p64, %s65, %s66
    %p70 = pneg %p64
    %p71 = scmp.eq.s32.totalorder %s8, 1
    %p72 = por %p70, %p71
    %p73 = scmp.ne.s32.totalorder %s65, %s68
    %p74 = scmp.eq.s32.totalorder %s8, 0
    %p75 = por %p73, %p74
    %p76 = scmp.ne.s32.totalorder %s65, %s68
    %p77 = scmp.eq.s32.totalorder %s13, 1
    %p78 = por %p76, %p77
    %p79 = scmp.ne.s32.totalorder %s68, %s69
    %p80 = scmp.eq.s32.totalorder %s13, 0
    %p81 = por %p79, %p80
    %p82 = scmp.ne.s32.totalorder %s68, %s69
    %p83 = scmp.eq.s32.totalorder %s14, 1
    %p84 = por %p82, %p83
    %p86 = scmp.ne.s32.totalorder %s69, %s85
    %p87 = scmp.eq.s32.totalorder %s14, 0
    %p88 = por %p86, %p87
    %p89 = scmp.le.s32.totalorder 1, %s8
    %p90 = scmp.lt.s32.totalorder %s8, 3
    %p91 = pnand %p89, %p90
    %p92 = pneg %p91
    // Predicated region
    $region9: #{esa_pallas.11} parent=5 // pred_check
      _
    $region10: #{esa_pallas.11} parent=5 // pred_check_branch
      %94 = sbr.rel (%p91) target = $region12
    $region11: #{esa_pallas.11} parent=5 // pred_region
      %s95 = ssub.s32 %s8, 1
      // Predicated region
      $region13: #{esa_pallas.11} parent=11 // pred_check
        %p96 = pneg %p29
      $region14: #{esa_pallas.11} parent=11 // pred_check_branch
        %98 = sbr.rel (%p96) target = $region16
      $region15: #{esa_pallas.11} parent=11 // pred_region
        _
      $region16: #{esa_pallas.11} parent=11 // pred_fallthru
        _
    $region12: #{esa_pallas.11} parent=5 // pred_fallthru
      _
    %p99 = scmp.lt.s32.totalorder %s8, 2
    // Predicated region
    $region17: #{esa_pallas.11} parent=5 // pred_check
      %p100 = pneg %p99
    $region18: #{esa_pallas.11} parent=5 // pred_check_branch
      %102 = sbr.rel (%p100) target = $region20
    $region19: #{esa_pallas.11} parent=5 // pred_region
      // Predicated region
      $region21: #{esa_pallas.11} parent=19 // pred_check
        %p103 = pneg %p49
      $region22: #{esa_pallas.11} parent=19 // pred_check_branch
        %105 = sbr.rel (%p103) target = $region24
      $region23: #{esa_pallas.11} parent=19 // pred_region
        %p106 = scmp.lt.s32.totalorder %s8, 1
        %s107 = scalar_select %p106, %s8, 1
        %s108 = smul.addr %s107, 4
        %s109 = scalar_lea.vmem %s1, %s108
      $region24: #{esa_pallas.11} parent=19 // pred_fallthru
        _
    $region20: #{esa_pallas.11} parent=5 // pred_fallthru
      _
    %p110 = scmp.le.s32.totalorder 1, %s8
    %p111 = scmp.lt.s32.totalorder %s8, 3
    %p112 = pnand %p110, %p111
    %p113 = pneg %p112
    // Predicated region
    $region25: #{esa_pallas.11} parent=5 // pred_check
      _
    $region26: #{esa_pallas.11} parent=5 // pred_check_branch
      %115 = sbr.rel (%p112) target = $region28
    $region27: #{esa_pallas.11} parent=5 // pred_region
      %s116 = ssub.s32 %s8, 1
      %p117 = pneg %p29
      %p118 = pneg %p26
      %p119 = scmp.lt.s32.totalorder %s13, 1
      %s120 = scalar_select %p119, %s13, 1
      %s121 = smul.addr %s120, 4
      %s122 = scalar_lea.vmem %s1, %s121
      %p123 = pneg %p55
      %p124 = pneg %p52
      %p125 = pneg %p81
      %p126 = pneg %p78
      %p127 = scmp.lt.s32.totalorder %s13, 1
      %s128 = scalar_select %p127, %s13, 1
      %s129 = smul.addr %s128, 4
      %s130 = smul.addr %s129, 8
      %s131 = scalar_lea.vmem %s2, %s130
      %p132 = scmp.lt.s32.totalorder %s13, 1
      %s133 = scalar_select %p132, %s13, 1
      %s134 = smul.addr %s133, 4
      %s135 = scalar_lea.vmem %s1, %s134
      %p136 = scmp.lt.s32.totalorder %s13, 1
      %s137 = scalar_select %p136, %s13, 1
      %s138 = smul.addr %s137, 4
      %s139 = smul.addr %s138, 8
      %s140 = scalar_lea.vmem %s2, %s139
      %v141 = vld [vmem:[%s0] sm:$0xff]
      %v142 = vld [vmem:[%s0 + $0x8] sm:$0xff]
      %v143 = vld [vmem:[%s0 + $0x10] sm:$0xff]
      %v144 = vld [vmem:[%s0 + $0x18] sm:$0xff]
      %v145 = vld [vmem:[%s135] sm:$0x7]
      %vm146 = vcmask 23552
      %v148 = vsel %vm146, %v141, 0
      %v151 = vsel %vm146, %v142, 0
      %v154 = vsel %vm146, %v143, 0
      %v157 = vsel %vm146, %v144, 0
      %vm159 = vcmask 1042432
      %v161 = vsel %vm159, %v145, 0
      %163 = vmatpush.msra.mxu0 0.0
      %164 = vmatpush.msra.mxu0 0.0
      %165 = vmatpush.msra.mxu0 0.0
      %166 = vmatpush.msra.mxu0 0.0
      %167 = vmatpush.msra.mxu0 0.0
      %168 = vmatpush.msra.mxu0 0.0
      %169 = vmatpush.msra.mxu0 0.0
      %170 = vmatpush.msra.mxu0 0.0
      %171 = vmatpush.msra.mxu0 0.0
      %172 = vmatpush.msra.mxu0 0.0
      %173 = vmatpush.msra.mxu0 0.0
      %174 = vmatpush.msra.mxu0 0.0
      %175 = vmatpush.msra.mxu0 0.0
      %176 = vmatpush.msra.mxu0 0.0
      %177 = vmatpush.msra.mxu0 0.0
      %178 = vmatpush.msra.mxu0 %v161
      %179 = vmatmul.f32.gmra.mxu0 %v148
      %v180 = vpop.f32.mrf.mxu0
      %v181 = vadd.f32 0.0, %v180
      %182 = vmatmul.f32.gmra.mxu0 %v151
      %v183 = vpop.f32.mrf.mxu0
      %v184 = vadd.f32 0.0, %v183
      %185 = vmatmul.f32.gmra.mxu0 %v154
      %v186 = vpop.f32.mrf.mxu0
      %v187 = vadd.f32 0.0, %v186
      %188 = vmatmul.f32.gmra.mxu0 %v157
      %v189 = vpop.f32.mrf.mxu0
      %v190 = vadd.f32 0.0, %v189
      %191 = vdwg.mxu0
      %vm192 = vcmask 195584
      %193 = vst.msk [vmem:[%s140] sm:$0xff] %vm192, %v181
      %194 = vst.msk [vmem:[%s140 + $0x8] sm:$0xff] %vm192, %v184
      %195 = vst.msk [vmem:[%s140 + $0x10] sm:$0xff] %vm192, %v187
      %196 = vst.msk [vmem:[%s140 + $0x18] sm:$0xff] %vm192, %v190
      %p197 = scmp.lt.s32.totalorder %s13, 1
      %s198 = scalar_select %p197, %s13, 1
      %s199 = smul.addr %s198, 4
      %s200 = smul.addr %s199, 8
      %s201 = scalar_lea.vmem %s2, %s200
      // Predicated region
      $region29: #{esa_pallas.11} parent=27 // pred_check
        %p202 = pneg %p78
      $region30: #{esa_pallas.11} parent=27 // pred_check_branch
        %204 = sbr.rel (%p202) target = $region32
      $region31: #{esa_pallas.11} parent=27 // pred_region
        _
      $region32: #{esa_pallas.11} parent=27 // pred_fallthru
        _
    $region28: #{esa_pallas.11} parent=5 // pred_fallthru
      _
    %p205 = scmp.le.s32.totalorder 2, %s8
    // Predicated region
    $region33: #{esa_pallas.11} parent=5 // pred_check
      %p206 = pneg %p205
    $region34: #{esa_pallas.11} parent=5 // pred_check_branch
      %208 = sbr.rel (%p206) target = $region36
    $region35: #{esa_pallas.11} parent=5 // pred_region
      %s209 = ssub.s32 %s8, 2
      // Predicated region
      $region37: #{esa_pallas.11} parent=35 // pred_check
        %p210 = pneg %p84
      $region38: #{esa_pallas.11} parent=35 // pred_check_branch
        %212 = sbr.rel (%p210) target = $region40
      $region39: #{esa_pallas.11} parent=35 // pred_region
        %p213 = scmp.lt.s32.totalorder %s14, 1
        %s214 = scalar_select %p213, %s14, 1
        %s215 = smul.addr %s214, 4
        %s216 = smul.addr %s215, 8
        %s217 = scalar_lea.vmem %s2, %s216
      $region40: #{esa_pallas.11} parent=35 // pred_fallthru
        _
    $region36: #{esa_pallas.11} parent=5 // pred_fallthru
      _
  $region6: #{esa_pallas.11} parent=0 // loop_footer
    %s12 = sadd.s32 1, %s8
  $region7: #{esa_pallas.11} parent=0 // loop_footer_branch
    %7 = sbr.rel target = $region3
  $region8: #{esa_pallas.11} parent=0 // loop_exit
    _

// kernel: esa_pallas.12
$region0: #{esa_pallas.12}
  #allocation0 [shape = 'u32[]', space=smem, size = 0x4, offset = 0x4, fixed_abs, tag = 'smem constant byte address 0x4 - core index']
  #allocation1 [shape = 'u32[72,128]{1,0:T(1,128)}', space=vmem, size = 0x9000, scoped, tag = 'internal scratch']
  %s0 = inlined_call_operand.vmem [shape: f32[32,3], index: 0, kind: input, shape index: {}]
  %s1 = inlined_call_operand.vmem [shape: f32[2,3,256], index: 1, kind: input, shape index: {}]
  %s2 = inlined_call_operand.vmem [shape: f32[2,32,256], index: 2, kind: output, shape index: {}]
  %s3 = sld [smem:[#allocation0]]
  $region41: #{esa_pallas.12} parent=0
    _
  %s5 = ssub.s32 1, %s3
  %s6 = scalar_select 0, %s5, %s3
  loop: start=0, step=1, limit=4
  $region2: #{esa_pallas.12} parent=0 // loop_pre_header
    _
  $region3: #{esa_pallas.12} parent=0 // loop_header
    %s8 = sphi 0, %s12
    %p9 = scmp.ge.s32.totalorder %s8, 4
    %s16 = sphi 0, %s16
    %s18 = sphi 0, %s16
    %s19 = sphi 0, %s18
    %s33 = sphi 0, %s19
    %s39 = sphi 0, %s41
    %s42 = sphi 0, %s39
    %s43 = sphi 0, %s42
    %s59 = sphi 0, %s43
    %s65 = sphi 0, %s67
    %s68 = sphi 0, %s65
    %s69 = sphi 0, %s68
    %s85 = sphi 0, %s69
  $region4: #{esa_pallas.12} parent=0 // loop_header_branch
    %11 = sbr.rel (%p9) target = $region8
  $region5: #{esa_pallas.12} parent=0 // loop_body
    %s13 = ssub.s32 %s8, 1
    %s14 = ssub.s32 %s8, 2
    %s15 = sadd.s32 %s8, 1
    %s17 = sadd.s32 %s16, 1
    %p20 = scmp.eq.s32.totalorder %s8, 1
    %p21 = scmp.ne.s32.totalorder %s16, %s18
    %p22 = scmp.eq.s32.totalorder %s8, 0
    %p23 = por %p21, %p22
    %p24 = scmp.ne.s32.totalorder %s16, %s18
    %p25 = scmp.eq.s32.totalorder %s13, 1
    %p26 = por %p24, %p25
    %p27 = scmp.ne.s32.totalorder %s18, %s19
    %p28 = scmp.eq.s32.totalorder %s13, 0
    %p29 = por %p27, %p28
    %p30 = scmp.ne.s32.totalorder %s18, %s19
    %p31 = scmp.eq.s32.totalorder %s14, 1
    %p32 = por %p30, %p31
    %p34 = scmp.ne.s32.totalorder %s19, %s33
    %p35 = scmp.eq.s32.totalorder %s14, 0
    %p36 = por %p34, %p35
    %s37 = ssub.s32 %s8, %s15
    %p38 = scmp.eq.s32.totalorder %s37, 0
    %s40 = sadd.s32 %s39, 1
    %s41 = scalar_select %p38, %s39, %s40
    %p44 = pneg %p38
    %p45 = scmp.eq.s32.totalorder %s8, 1
    %p46 = por %p44, %p45
    %p47 = scmp.ne.s32.totalorder %s39, %s42
    %p48 = scmp.eq.s32.totalorder %s8, 0
    %p49 = por %p47, %p48
    %p50 = scmp.ne.s32.totalorder %s39, %s42
    %p51 = scmp.eq.s32.totalorder %s13, 1
    %p52 = por %p50, %p51
    %p53 = scmp.ne.s32.totalorder %s42, %s43
    %p54 = scmp.eq.s32.totalorder %s13, 0
    %p55 = por %p53, %p54
    %p56 = scmp.ne.s32.totalorder %s42, %s43
    %p57 = scmp.eq.s32.totalorder %s14, 1
    %p58 = por %p56, %p57
    %p60 = scmp.ne.s32.totalorder %s43, %s59
    %p61 = scmp.eq.s32.totalorder %s14, 0
    %p62 = por %p60, %p61
    %s63 = ssub.s32 %s8, %s15
    %p64 = scmp.eq.s32.totalorder %s63, 0
    %s66 = sadd.s32 %s65, 1
    %s67 = scalar_select %p64, %s65, %s66
    %p70 = pneg %p64
    %p71 = scmp.eq.s32.totalorder %s8, 1
    %p72 = por %p70, %p71
    %p73 = scmp.ne.s32.totalorder %s65, %s68
    %p74 = scmp.eq.s32.totalorder %s8, 0
    %p75 = por %p73, %p74
    %p76 = scmp.ne.s32.totalorder %s65, %s68
    %p77 = scmp.eq.s32.totalorder %s13, 1
    %p78 = por %p76, %p77
    %p79 = scmp.ne.s32.totalorder %s68, %s69
    %p80 = scmp.eq.s32.totalorder %s13, 0
    %p81 = por %p79, %p80
    %p82 = scmp.ne.s32.totalorder %s68, %s69
    %p83 = scmp.eq.s32.totalorder %s14, 1
    %p84 = por %p82, %p83
    %p86 = scmp.ne.s32.totalorder %s69, %s85
    %p87 = scmp.eq.s32.totalorder %s14, 0
    %p88 = por %p86, %p87
    %p89 = scmp.le.s32.totalorder 1, %s8
    %p90 = scmp.lt.s32.totalorder %s8, 3
    %p91 = pnand %p89, %p90
    %p92 = pneg %p91
    // Predicated region
    $region9: #{esa_pallas.12} parent=5 // pred_check
      _
    $region10: #{esa_pallas.12} parent=5 // pred_check_branch
      %94 = sbr.rel (%p91) target = $region12
    $region11: #{esa_pallas.12} parent=5 // pred_region
      %s95 = ssub.s32 %s8, 1
      // Predicated region
      $region13: #{esa_pallas.12} parent=11 // pred_check
        %p96 = pneg %p29
      $region14: #{esa_pallas.12} parent=11 // pred_check_branch
        %98 = sbr.rel (%p96) target = $region16
      $region15: #{esa_pallas.12} parent=11 // pred_region
        _
      $region16: #{esa_pallas.12} parent=11 // pred_fallthru
        _
    $region12: #{esa_pallas.12} parent=5 // pred_fallthru
      _
    %p99 = scmp.lt.s32.totalorder %s8, 2
    // Predicated region
    $region17: #{esa_pallas.12} parent=5 // pred_check
      %p100 = pneg %p99
    $region18: #{esa_pallas.12} parent=5 // pred_check_branch
      %102 = sbr.rel (%p100) target = $region20
    $region19: #{esa_pallas.12} parent=5 // pred_region
      // Predicated region
      $region21: #{esa_pallas.12} parent=19 // pred_check
        %p103 = pneg %p49
      $region22: #{esa_pallas.12} parent=19 // pred_check_branch
        %105 = sbr.rel (%p103) target = $region24
      $region23: #{esa_pallas.12} parent=19 // pred_region
        %p106 = scmp.lt.s32.totalorder %s8, 1
        %s107 = scalar_select %p106, %s8, 1
        %s108 = smul.addr %s107, 2
        %s109 = smul.addr %s108, 4
        %s110 = scalar_lea.vmem %s1, %s109
      $region24: #{esa_pallas.12} parent=19 // pred_fallthru
        _
    $region20: #{esa_pallas.12} parent=5 // pred_fallthru
      _
    %p111 = scmp.le.s32.totalorder 1, %s8
    %p112 = scmp.lt.s32.totalorder %s8, 3
    %p113 = pnand %p111, %p112
    %p114 = pneg %p113
    // Predicated region
    $region25: #{esa_pallas.12} parent=5 // pred_check
      _
    $region26: #{esa_pallas.12} parent=5 // pred_check_branch
      %116 = sbr.rel (%p113) target = $region28
    $region27: #{esa_pallas.12} parent=5 // pred_region
      %s117 = ssub.s32 %s8, 1
      %p118 = pneg %p29
      %p119 = pneg %p26
      %p120 = scmp.lt.s32.totalorder %s13, 1
      %s121 = scalar_select %p120, %s13, 1
      %s122 = smul.addr %s121, 2
      %s123 = smul.addr %s122, 4
      %s124 = scalar_lea.vmem %s1, %s123
      %p125 = pneg %p55
      %p126 = pneg %p52
      %p127 = pneg %p81
      %p128 = pneg %p78
      %p129 = scmp.lt.s32.totalorder %s13, 1
      %s130 = scalar_select %p129, %s13, 1
      %s131 = smul.addr %s130, 8
      %s132 = smul.addr %s131, 8
      %s133 = scalar_lea.vmem %s2, %s132
      %p134 = scmp.lt.s32.totalorder %s13, 1
      %s135 = scalar_select %p134, %s13, 1
      %s136 = smul.addr %s135, 2
      %s137 = smul.addr %s136, 4
      %s138 = scalar_lea.vmem %s1, %s137
      %p139 = scmp.lt.s32.totalorder %s13, 1
      %s140 = scalar_select %p139, %s13, 1
      %s141 = smul.addr %s140, 8
      %s142 = smul.addr %s141, 8
      %s143 = scalar_lea.vmem %s2, %s142
      %v144 = vld [vmem:[%s0] sm:$0xff]
      %v145 = vld [vmem:[%s0 + $0x8] sm:$0xff]
      %v146 = vld [vmem:[%s0 + $0x10] sm:$0xff]
      %v147 = vld [vmem:[%s0 + $0x18] sm:$0xff]
      %v148 = vld [vmem:[%s138] sm:$0x77]
      %150 = vst [vmem:[#allocation1] ss:$2 sm:$0xff] %v148
      %v151 = vld.sshfl [vmem:[#allocation1] sm:$0xff pattern:$0x75316420]
      %v152 = vld.sshfl [vmem:[#allocation1 + $0x8] sm:$0xff pattern:$0x75316420]
      %vm153 = vcmask 23552
      %v155 = vsel %vm153, %v144, 0
      %v158 = vsel %vm153, %v145, 0
      %v161 = vsel %vm153, %v146, 0
      %v164 = vsel %vm153, %v147, 0
      %vm166 = vcmask 1042432
      %v167 = vsel %vm166, %v151, 0
      %v169 = vsel %vm166, %v152, 0
      %171 = vmatpush.msra.mxu0 0.0
      %172 = vmatpush.msra.mxu0 0.0
      %173 = vmatpush.msra.mxu0 0.0
      %174 = vmatpush.msra.mxu0 0.0
      %175 = vmatpush.msra.mxu0 0.0
      %176 = vmatpush.msra.mxu0 0.0
      %177 = vmatpush.msra.mxu0 0.0
      %178 = vmatpush.msra.mxu0 0.0
      %179 = vmatpush.msra.mxu0 0.0
      %180 = vmatpush.msra.mxu0 0.0
      %181 = vmatpush.msra.mxu0 0.0
      %182 = vmatpush.msra.mxu0 0.0
      %183 = vmatpush.msra.mxu0 0.0
      %184 = vmatpush.msra.mxu0 0.0
      %185 = vmatpush.msra.mxu0 0.0
      %186 = vmatpush.msra.mxu0 %v167
      %187 = vmatmul.f32.gmra.mxu0 %v155
      %v188 = vpop.f32.mrf.mxu0
      %v189 = vadd.f32 0.0, %v188
      %190 = vmatmul.f32.gmra.mxu0 %v158
      %v191 = vpop.f32.mrf.mxu0
      %v192 = vadd.f32 0.0, %v191
      %193 = vmatmul.f32.gmra.mxu0 %v161
      %v194 = vpop.f32.mrf.mxu0
      %v195 = vadd.f32 0.0, %v194
      %196 = vmatmul.f32.gmra.mxu0 %v164
      %v197 = vpop.f32.mrf.mxu0
      %v198 = vadd.f32 0.0, %v197
      %199 = vdwg.mxu0
      %200 = vmatpush.msra.mxu0 0.0
      %201 = vmatpush.msra.mxu0 0.0
      %202 = vmatpush.msra.mxu0 0.0
      %203 = vmatpush.msra.mxu0 0.0
      %204 = vmatpush.msra.mxu0 0.0
      %205 = vmatpush.msra.mxu0 0.0
      %206 = vmatpush.msra.mxu0 0.0
      %207 = vmatpush.msra.mxu0 0.0
      %208 = vmatpush.msra.mxu0 0.0
      %209 = vmatpush.msra.mxu0 0.0
      %210 = vmatpush.msra.mxu0 0.0
      %211 = vmatpush.msra.mxu0 0.0
      %212 = vmatpush.msra.mxu0 0.0
      %213 = vmatpush.msra.mxu0 0.0
      %214 = vmatpush.msra.mxu0 0.0
      %215 = vmatpush.msra.mxu0 %v169
      %216 = vmatmul.f32.gmra.mxu0 %v155
      %v217 = vpop.f32.mrf.mxu0
      %v218 = vadd.f32 0.0, %v217
      %219 = vmatmul.f32.gmra.mxu0 %v158
      %v220 = vpop.f32.mrf.mxu0
      %v221 = vadd.f32 0.0, %v220
      %222 = vmatmul.f32.gmra.mxu0 %v161
      %v223 = vpop.f32.mrf.mxu0
      %v224 = vadd.f32 0.0, %v223
      %225 = vmatmul.f32.gmra.mxu0 %v164
      %v226 = vpop.f32.mrf.mxu0
      %v227 = vadd.f32 0.0, %v226
      %228 = vdwg.mxu0
      %229 = vst [vmem:[%s143] sm:$0xff] %v189
      %230 = vst [vmem:[%s143 + $0x8] sm:$0xff] %v218
      %231 = vst [vmem:[%s143 + $0x10] sm:$0xff] %v192
      %232 = vst [vmem:[%s143 + $0x18] sm:$0xff] %v221
      %233 = vst [vmem:[%s143 + $0x20] sm:$0xff] %v195
      %234 = vst [vmem:[%s143 + $0x28] sm:$0xff] %v224
      %235 = vst [vmem:[%s143 + $0x30] sm:$0xff] %v198
      %236 = vst [vmem:[%s143 + $0x38] sm:$0xff] %v227
      %p237 = scmp.lt.s32.totalorder %s13, 1
      %s238 = scalar_select %p237, %s13, 1
      %s239 = smul.addr %s238, 8
      %s240 = smul.addr %s239, 8
      %s241 = scalar_lea.vmem %s2, %s240
      // Predicated region
      $region29: #{esa_pallas.12} parent=27 // pred_check
        %p242 = pneg %p78
      $region30: #{esa_pallas.12} parent=27 // pred_check_branch
        %244 = sbr.rel (%p242) target = $region32
      $region31: #{esa_pallas.12} parent=27 // pred_region
        _
      $region32: #{esa_pallas.12} parent=27 // pred_fallthru
        _
    $region28: #{esa_pallas.12} parent=5 // pred_fallthru
      _
    %p245 = scmp.le.s32.totalorder 2, %s8
    // Predicated region
    $region33: #{esa_pallas.12} parent=5 // pred_check
      %p246 = pneg %p245
    $region34: #{esa_pallas.12} parent=5 // pred_check_branch
      %248 = sbr.rel (%p246) target = $region36
    $region35: #{esa_pallas.12} parent=5 // pred_region
      %s249 = ssub.s32 %s8, 2
      // Predicated region
      $region37: #{esa_pallas.12} parent=35 // pred_check
        %p250 = pneg %p84
      $region38: #{esa_pallas.12} parent=35 // pred_check_branch
        %252 = sbr.rel (%p250) target = $region40
      $region39: #{esa_pallas.12} parent=35 // pred_region
        %p253 = scmp.lt.s32.totalorder %s14, 1
        %s254 = scalar_select %p253, %s14, 1
        %s255 = smul.addr %s254, 8
        %s256 = smul.addr %s255, 8
        %s257 = scalar_lea.vmem %s2, %s256
      $region40: #{esa_pallas.12} parent=35 // pred_fallthru
        _
    $region36: #{esa_pallas.12} parent=5 // pred_fallthru
      _
  $region6: #{esa_pallas.12} parent=0 // loop_footer
    %s12 = sadd.s32 1, %s8
  $region7: #{esa_pallas.12} parent=0 // loop_footer_branch
    %7 = sbr.rel target = $region3
  $region8: #{esa_pallas.12} parent=0 // loop_exit
    _

// kernel: esa_pallas.8
$region0: #{esa_pallas.8}
  #allocation0 [shape = 'u32[]', space=smem, size = 0x4, offset = 0x4, fixed_abs, tag = 'smem constant byte address 0x4 - core index']
  #allocation1 [shape = 'u32[72,128]{1,0:T(1,128)}', space=vmem, size = 0x9000, scoped, tag = 'internal scratch']
  %s0 = inlined_call_operand.vmem [shape: f32[2,1088,8], index: 0, kind: input, shape index: {}]
  %s1 = inlined_call_operand.vmem [shape: f32[72,8], index: 1, kind: input, shape index: {}]
  %s2 = inlined_call_operand.vmem [shape: f32[1,8], index: 2, kind: input, shape index: {}]
  %s3 = inlined_call_operand.vmem [shape: f32[2,960,8], index: 3, kind: output, shape index: {}]
  %s4 = sld [smem:[#allocation0]]
  $region45: #{esa_pallas.8} parent=0
    _
  %s6 = ssub.s32 1, %s4
  %s7 = scalar_select 0, %s6, %s4
  loop: start=0, step=1, limit=4
  $region2: #{esa_pallas.8} parent=0 // loop_pre_header
    _
  $region3: #{esa_pallas.8} parent=0 // loop_header
    %s9 = sphi 0, %s13
    %p10 = scmp.ge.s32.totalorder %s9, 4
    %s19 = sphi 0, %s21
    %s22 = sphi 0, %s19
    %s23 = sphi 0, %s22
    %s39 = sphi 0, %s23
    %s43 = sphi 0, %s43
    %s45 = sphi 0, %s43
    %s46 = sphi 0, %s45
    %s60 = sphi 0, %s46
    %s64 = sphi 0, %s64
    %s66 = sphi 0, %s64
    %s67 = sphi 0, %s66
    %s81 = sphi 0, %s67
    %s87 = sphi 0, %s89
    %s90 = sphi 0, %s87
    %s91 = sphi 0, %s90
    %s107 = sphi 0, %s91
  $region4: #{esa_pallas.8} parent=0 // loop_header_branch
    %12 = sbr.rel (%p10) target = $region8
  $region5: #{esa_pallas.8} parent=0 // loop_body
    %s14 = ssub.s32 %s9, 1
    %s15 = ssub.s32 %s9, 2
    %s16 = sadd.s32 %s9, 1
    %s17 = ssub.s32 %s9, %s16
    %p18 = scmp.eq.s32.totalorder %s17, 0
    %s20 = sadd.s32 %s19, 1
    %s21 = scalar_select %p18, %s19, %s20
    %p24 = pneg %p18
    %p25 = scmp.eq.s32.totalorder %s9, 1
    %p26 = por %p24, %p25
    %p27 = scmp.ne.s32.totalorder %s19, %s22
    %p28 = scmp.eq.s32.totalorder %s9, 0
    %p29 = por %p27, %p28
    %p30 = scmp.ne.s32.totalorder %s19, %s22
    %p31 = scmp.eq.s32.totalorder %s14, 1
    %p32 = por %p30, %p31
    %p33 = scmp.ne.s32.totalorder %s22, %s23
    %p34 = scmp.eq.s32.totalorder %s14, 0
    %p35 = por %p33, %p34
    %p36 = scmp.ne.s32.totalorder %s22, %s23
    %p37 = scmp.eq.s32.totalorder %s15, 1
    %p38 = por %p36, %p37
    %p40 = scmp.ne.s32.totalorder %s23, %s39
    %p41 = scmp.eq.s32.totalorder %s15, 0
    %p42 = por %p40, %p41
    %s44 = sadd.s32 %s43, 1
    %p47 = scmp.eq.s32.totalorder %s9, 1
    %p48 = scmp.ne.s32.totalorder %s43, %s45
    %p49 = scmp.eq.s32.totalorder %s9, 0
    %p50 = por %p48, %p49
    %p51 = scmp.ne.s32.totalorder %s43, %s45
    %p52 = scmp.eq.s32.totalorder %s14, 1
    %p53 = por %p51, %p52
    %p54 = scmp.ne.s32.totalorder %s45, %s46
    %p55 = scmp.eq.s32.totalorder %s14, 0
    %p56 = por %p54, %p55
    %p57 = scmp.ne.s32.totalorder %s45, %s46
    %p58 = scmp.eq.s32.totalorder %s15, 1
    %p59 = por %p57, %p58
    %p61 = scmp.ne.s32.totalorder %s46, %s60
    %p62 = scmp.eq.s32.totalorder %s15, 0
    %p63 = por %p61, %p62
    %s65 = sadd.s32 %s64, 1
    %p68 = scmp.eq.s32.totalorder %s9, 1
    %p69 = scmp.ne.s32.totalorder %s64, %s66
    %p70 = scmp.eq.s32.totalorder %s9, 0
    %p71 = por %p69, %p70
    %p72 = scmp.ne.s32.totalorder %s64, %s66
    %p73 = scmp.eq.s32.totalorder %s14, 1
    %p74 = por %p72, %p73
    %p75 = scmp.ne.s32.totalorder %s66, %s67
    %p76 = scmp.eq.s32.totalorder %s14, 0
    %p77 = por %p75, %p76
    %p78 = scmp.ne.s32.totalorder %s66, %s67
    %p79 = scmp.eq.s32.totalorder %s15, 1
    %p80 = por %p78, %p79
    %p82 = scmp.ne.s32.totalorder %s67, %s81
    %p83 = scmp.eq.s32.totalorder %s15, 0
    %p84 = por %p82, %p83
    %s85 = ssub.s32 %s9, %s16
    %p86 = scmp.eq.s32.totalorder %s85, 0
    %s88 = sadd.s32 %s87, 1
    %s89 = scalar_select %p86, %s87, %s88
    %p92 = pneg %p86
    %p93 = scmp.eq.s32.totalorder %s9, 1
    %p94 = por %p92, %p93
    %p95 = scmp.ne.s32.totalorder %s87, %s90
    %p96 = scmp.eq.s32.totalorder %s9, 0
    %p97 = por %p95, %p96
    %p98 = scmp.ne.s32.totalorder %s87, %s90
    %p99 = scmp.eq.s32.totalorder %s14, 1
    %p100 = por %p98, %p99
    %p101 = scmp.ne.s32.totalorder %s90, %s91
    %p102 = scmp.eq.s32.totalorder %s14, 0
    %p103 = por %p101, %p102
    %p104 = scmp.ne.s32.totalorder %s90, %s91
    %p105 = scmp.eq.s32.totalorder %s15, 1
    %p106 = por %p104, %p105
    %p108 = scmp.ne.s32.totalorder %s91, %s107
    %p109 = scmp.eq.s32.totalorder %s15, 0
    %p110 = por %p108, %p109
    %p111 = scmp.le.s32.totalorder 1, %s9
    %p112 = scmp.lt.s32.totalorder %s9, 3
    %p113 = pnand %p111, %p112
    %p114 = pneg %p113
    // Predicated region
    $region9: #{esa_pallas.8} parent=5 // pred_check
      _
    $region10: #{esa_pallas.8} parent=5 // pred_check_branch
      %116 = sbr.rel (%p113) target = $region12
    $region11: #{esa_pallas.8} parent=5 // pred_region
      %s117 = ssub.s32 %s9, 1
      // Predicated region
      $region13: #{esa_pallas.8} parent=11 // pred_check
        %p118 = pneg %p56
      $region14: #{esa_pallas.8} parent=11 // pred_check_branch
        %120 = sbr.rel (%p118) target = $region16
      $region15: #{esa_pallas.8} parent=11 // pred_region
        _
      $region16: #{esa_pallas.8} parent=11 // pred_fallthru
        _
      // Predicated region
      $region17: #{esa_pallas.8} parent=11 // pred_check
        %p121 = pneg %p77
      $region18: #{esa_pallas.8} parent=11 // pred_check_branch
        %123 = sbr.rel (%p121) target = $region20
      $region19: #{esa_pallas.8} parent=11 // pred_region
        _
      $region20: #{esa_pallas.8} parent=11 // pred_fallthru
        _
    $region12: #{esa_pallas.8} parent=5 // pred_fallthru
      _
    %p124 = scmp.lt.s32.totalorder %s9, 2
    // Predicated region
    $region21: #{esa_pallas.8} parent=5 // pred_check
      %p125 = pneg %p124
    $region22: #{esa_pallas.8} parent=5 // pred_check_branch
      %127 = sbr.rel (%p125) target = $region24
    $region23: #{esa_pallas.8} parent=5 // pred_region
      // Predicated region
      $region25: #{esa_pallas.8} parent=23 // pred_check
        %p128 = pneg %p29
      $region26: #{esa_pallas.8} parent=23 // pred_check_branch
        %130 = sbr.rel (%p128) target = $region28
      $region27: #{esa_pallas.8} parent=23 // pred_region
        %p131 = scmp.lt.s32.totalorder %s9, 1
        %s132 = scalar_select %p131, %s9, 1
        %s133 = smul.addr %s132, 136
        %s134 = smul.addr %s133, 8
        %s135 = scalar_lea.vmem %s0, %s134
      $region28: #{esa_pallas.8} parent=23 // pred_fallthru
        _
    $region24: #{esa_pallas.8} parent=5 // pred_fallthru
      _
    %p136 = scmp.le.s32.totalorder 1, %s9
    %p137 = scmp.lt.s32.totalorder %s9, 3
    %p138 = pnand %p136, %p137
    %p139 = pneg %p138
    // Predicated region
    $region29: #{esa_pallas.8} parent=5 // pred_check
      _
    $region30: #{esa_pallas.8} parent=5 // pred_check_branch
      %141 = sbr.rel (%p138) target = $region32
    $region31: #{esa_pallas.8} parent=5 // pred_region
      %s142 = ssub.s32 %s9, 1
      %p143 = scmp.lt.s32.totalorder %s14, 1
      %s144 = scalar_select %p143, %s14, 1
      %s145 = smul.addr %s144, 136
      %s146 = smul.addr %s145, 8
      %s147 = scalar_lea.vmem %s0, %s146
      %p148 = pneg %p35
      %p149 = pneg %p32
      %p150 = pneg %p56
      %p151 = pneg %p53
      %p152 = pneg %p77
      %p153 = pneg %p74
      %p154 = pneg %p103
      %p155 = pneg %p100
      %p156 = scmp.lt.s32.totalorder %s14, 1
      %s157 = scalar_select %p156, %s14, 1
      %s158 = smul.addr %s157, 120
      %s159 = smul.addr %s158, 8
      %s160 = scalar_lea.vmem %s3, %s159
      %p161 = scmp.lt.s32.totalorder %s14, 1
      %s162 = scalar_select %p161, %s14, 1
      %s163 = smul.addr %s162, 136
      %s164 = smul.addr %s163, 8
      %s165 = scalar_lea.vmem %s0, %s164
      %p166 = scmp.lt.s32.totalorder %s14, 1
      %s167 = scalar_select %p166, %s14, 1
      %s168 = smul.addr %s167, 120
      %s169 = smul.addr %s168, 8
      %s170 = scalar_lea.vmem %s3, %s169
      %v171 = vld [vmem:[%s165] sm:$0xff]
      %v172 = vld [vmem:[%s165 + $0x8] sm:$0xff]
      %v173 = vld [vmem:[%s165 + $0x10] sm:$0xff]
      %v174 = vld [vmem:[%s165 + $0x18] sm:$0xff]
      %v175 = vld [vmem:[%s165 + $0x20] sm:$0xff]
      %v176 = vld [vmem:[%s165 + $0x28] sm:$0xff]
      %v177 = vld [vmem:[%s165 + $0x30] sm:$0xff]
      %v178 = vld [vmem:[%s165 + $0x38] sm:$0xff]
      %v179 = vld [vmem:[%s165 + $0x40] sm:$0xff]
      %v180 = vld [vmem:[%s165 + $0x48] sm:$0xff]
      %v181 = vld [vmem:[%s165 + $0x50] sm:$0xff]
      %v182 = vld [vmem:[%s165 + $0x58] sm:$0xff]
      %v183 = vld [vmem:[%s165 + $0x60] sm:$0xff]
      %v184 = vld [vmem:[%s165 + $0x68] sm:$0xff]
      %v185 = vld [vmem:[%s165 + $0x70] sm:$0xff]
      %v186 = vld [vmem:[%s165 + $0x78] sm:$0xff]
      %v187 = vld [vmem:[%s165 + $0x80] sm:$0xff]
      %v188 = vld [vmem:[%s165 + $0x88] sm:$0xff]
      %v189 = vld [vmem:[%s165 + $0x90] sm:$0xff]
      %v190 = vld [vmem:[%s165 + $0x98] sm:$0xff]
      %v191 = vld [vmem:[%s165 + $0xa0] sm:$0xff]
      %v192 = vld [vmem:[%s165 + $0xa8] sm:$0xff]
      %v193 = vld [vmem:[%s165 + $0xb0] sm:$0xff]
      %v194 = vld [vmem:[%s165 + $0xb8] sm:$0xff]
      %v195 = vld [vmem:[%s165 + $0xc0] sm:$0xff]
      %v196 = vld [vmem:[%s165 + $0xc8] sm:$0xff]
      %v197 = vld [vmem:[%s165 + $0xd0] sm:$0xff]
      %v198 = vld [vmem:[%s165 + $0xd8] sm:$0xff]
      %v199 = vld [vmem:[%s165 + $0xe0] sm:$0xff]
      %v200 = vld [vmem:[%s165 + $0xe8] sm:$0xff]
      %v201 = vld [vmem:[%s165 + $0xf0] sm:$0xff]
      %v202 = vld [vmem:[%s165 + $0xf8] sm:$0xff]
      %v203 = vld [vmem:[%s165 + $0x100] sm:$0xff]
      %v204 = vld [vmem:[%s165 + $0x108] sm:$0xff]
      %v205 = vld [vmem:[%s165 + $0x110] sm:$0xff]
      %v206 = vld [vmem:[%s165 + $0x118] sm:$0xff]
      %v207 = vld [vmem:[%s165 + $0x120] sm:$0xff]
      %v208 = vld [vmem:[%s165 + $0x128] sm:$0xff]
      %v209 = vld [vmem:[%s165 + $0x130] sm:$0xff]
      %v210 = vld [vmem:[%s165 + $0x138] sm:$0xff]
      %v211 = vld [vmem:[%s165 + $0x140] sm:$0xff]
      %v212 = vld [vmem:[%s165 + $0x148] sm:$0xff]
      %v213 = vld [vmem:[%s165 + $0x150] sm:$0xff]
      %v214 = vld [vmem:[%s165 + $0x158] sm:$0xff]
      %v215 = vld [vmem:[%s165 + $0x160] sm:$0xff]
      %v216 = vld [vmem:[%s165 + $0x168] sm:$0xff]
      %v217 = vld [vmem:[%s165 + $0x170] sm:$0xff]
      %v218 = vld [vmem:[%s165 + $0x178] sm:$0xff]
      %v219 = vld [vmem:[%s165 + $0x180] sm:$0xff]
      %v220 = vld [vmem:[%s165 + $0x188] sm:$0xff]
      %v221 = vld [vmem:[%s165 + $0x190] sm:$0xff]
      %v222 = vld [vmem:[%s165 + $0x198] sm:$0xff]
      %v223 = vld [vmem:[%s165 + $0x1a0] sm:$0xff]
      %v224 = vld [vmem:[%s165 + $0x1a8] sm:$0xff]
      %v225 = vld [vmem:[%s165 + $0x1b0] sm:$0xff]
      %v226 = vld [vmem:[%s165 + $0x1b8] sm:$0xff]
      %v227 = vld [vmem:[%s165 + $0x1c0] sm:$0xff]
      %v228 = vld [vmem:[%s165 + $0x1c8] sm:$0xff]
      %v229 = vld [vmem:[%s165 + $0x1d0] sm:$0xff]
      %v230 = vld [vmem:[%s165 + $0x1d8] sm:$0xff]
      %v231 = vld [vmem:[%s165 + $0x1e0] sm:$0xff]
      %v232 = vld [vmem:[%s165 + $0x1e8] sm:$0xff]
      %v233 = vld [vmem:[%s165 + $0x1f0] sm:$0xff]
      %v234 = vld [vmem:[%s165 + $0x1f8] sm:$0xff]
      %v235 = vld [vmem:[%s165 + $0x200] sm:$0xff]
      %v236 = vld [vmem:[%s165 + $0x208] sm:$0xff]
      %v237 = vld [vmem:[%s165 + $0x210] sm:$0xff]
      %v238 = vld [vmem:[%s165 + $0x218] sm:$0xff]
      %v239 = vld [vmem:[%s165 + $0x220] sm:$0xff]
      %v240 = vld [vmem:[%s165 + $0x228] sm:$0xff]
      %v241 = vld [vmem:[%s165 + $0x230] sm:$0xff]
      %v242 = vld [vmem:[%s165 + $0x238] sm:$0xff]
      %v243 = vld [vmem:[%s165 + $0x240] sm:$0xff]
      %v244 = vld [vmem:[%s165 + $0x248] sm:$0xff]
      %v245 = vld [vmem:[%s165 + $0x250] sm:$0xff]
      %v246 = vld [vmem:[%s165 + $0x258] sm:$0xff]
      %v247 = vld [vmem:[%s165 + $0x260] sm:$0xff]
      %v248 = vld [vmem:[%s165 + $0x268] sm:$0xff]
      %v249 = vld [vmem:[%s165 + $0x270] sm:$0xff]
      %v250 = vld [vmem:[%s165 + $0x278] sm:$0xff]
      %v251 = vld [vmem:[%s165 + $0x280] sm:$0xff]
      %v252 = vld [vmem:[%s165 + $0x288] sm:$0xff]
      %v253 = vld [vmem:[%s165 + $0x290] sm:$0xff]
      %v254 = vld [vmem:[%s165 + $0x298] sm:$0xff]
      %v255 = vld [vmem:[%s165 + $0x2a0] sm:$0xff]
      %v256 = vld [vmem:[%s165 + $0x2a8] sm:$0xff]
      %v257 = vld [vmem:[%s165 + $0x2b0] sm:$0xff]
      %v258 = vld [vmem:[%s165 + $0x2b8] sm:$0xff]
      %v259 = vld [vmem:[%s165 + $0x2c0] sm:$0xff]
      %v260 = vld [vmem:[%s165 + $0x2c8] sm:$0xff]
      %v261 = vld [vmem:[%s165 + $0x2d0] sm:$0xff]
      %v262 = vld [vmem:[%s165 + $0x2d8] sm:$0xff]
      %v263 = vld [vmem:[%s165 + $0x2e0] sm:$0xff]
      %v264 = vld [vmem:[%s165 + $0x2e8] sm:$0xff]
      %v265 = vld [vmem:[%s165 + $0x2f0] sm:$0xff]
      %v266 = vld [vmem:[%s165 + $0x2f8] sm:$0xff]
      %v267 = vld [vmem:[%s165 + $0x300] sm:$0xff]
      %v268 = vld [vmem:[%s165 + $0x308] sm:$0xff]
      %v269 = vld [vmem:[%s165 + $0x310] sm:$0xff]
      %v270 = vld [vmem:[%s165 + $0x318] sm:$0xff]
      %v271 = vld [vmem:[%s165 + $0x320] sm:$0xff]
      %v272 = vld [vmem:[%s165 + $0x328] sm:$0xff]
      %v273 = vld [vmem:[%s165 + $0x330] sm:$0xff]
      %v274 = vld [vmem:[%s165 + $0x338] sm:$0xff]
      %v275 = vld [vmem:[%s165 + $0x340] sm:$0xff]
      %v276 = vld [vmem:[%s165 + $0x348] sm:$0xff]
      %v277 = vld [vmem:[%s165 + $0x350] sm:$0xff]
      %v278 = vld [vmem:[%s165 + $0x358] sm:$0xff]
      %v279 = vld [vmem:[%s165 + $0x360] sm:$0xff]
      %v280 = vld [vmem:[%s165 + $0x368] sm:$0xff]
      %v281 = vld [vmem:[%s165 + $0x370] sm:$0xff]
      %v282 = vld [vmem:[%s165 + $0x378] sm:$0xff]
      %v283 = vld [vmem:[%s165 + $0x380] sm:$0xff]
      %v284 = vld [vmem:[%s165 + $0x388] sm:$0xff]
      %v285 = vld [vmem:[%s165 + $0x390] sm:$0xff]
      %v286 = vld [vmem:[%s165 + $0x398] sm:$0xff]
      %v287 = vld [vmem:[%s165 + $0x3a0] sm:$0xff]
      %v288 = vld [vmem:[%s165 + $0x3a8] sm:$0xff]
      %v289 = vld [vmem:[%s165 + $0x3b0] sm:$0xff]
      %v290 = vld [vmem:[%s165 + $0x3b8] sm:$0xff]
      %v291 = vld [vmem:[%s165 + $0x3c0] sm:$0xff]
      %v292 = vld [vmem:[%s165 + $0x3c8] sm:$0xff]
      %v293 = vld [vmem:[%s165 + $0x3d0] sm:$0xff]
      %v294 = vld [vmem:[%s165 + $0x3d8] sm:$0xff]
      %v295 = vld [vmem:[%s165 + $0x3e0] sm:$0xff]
      %v296 = vld [vmem:[%s165 + $0x3e8] sm:$0xff]
      %v297 = vld [vmem:[%s165 + $0x3f0] sm:$0xff]
      %v298 = vld [vmem:[%s165 + $0x3f8] sm:$0xff]
      %v299 = vld [vmem:[%s165 + $0x400] sm:$0xff]
      %v300 = vld [vmem:[%s1] sm:$0xff]
      %v301 = vld [vmem:[%s1 + $0x8] sm:$0xff]
      %v302 = vld [vmem:[%s1 + $0x10] sm:$0xff]
      %v303 = vld [vmem:[%s1 + $0x18] sm:$0xff]
      %v304 = vld [vmem:[%s1 + $0x20] sm:$0xff]
      %v305 = vld [vmem:[%s1 + $0x28] sm:$0xff]
      %v306 = vld [vmem:[%s1 + $0x30] sm:$0xff]
      %v307 = vld [vmem:[%s1 + $0x38] sm:$0xff]
      %v308 = vld [vmem:[%s1 + $0x40] sm:$0xff]
      %vm430 = vcmask 1046528
      %v431 = vrot.slane %v171, 1
      %v432 = vrot.slane %v172, 1
      %v433 = vsel %vm430, %v431, %v432
      %v434 = vrot.slane %v173, 1
      %v435 = vsel %vm430, %v432, %v434
      %v436 = vrot.slane %v174, 1
      %v437 = vsel %vm430, %v434, %v436
      %v438 = vrot.slane %v175, 1
      %v439 = vsel %vm430, %v436, %v438
      %v440 = vrot.slane %v176, 1
      %v441 = vsel %vm430, %v438, %v440
      %v442 = vrot.slane %v177, 1
      %v443 = vsel %vm430, %v440, %v442
      %v444 = vrot.slane %v178, 1
      %v445 = vsel %vm430, %v442, %v444
      %v446 = vrot.slane %v179, 1
      %v447 = vsel %vm430, %v444, %v446
      %v448 = vrot.slane %v180, 1
      %v449 = vsel %vm430, %v446, %v448
      %v450 = vrot.slane %v181, 1
      %v451 = vsel %vm430, %v448, %v450
      %v452 = vrot.slane %v182, 1
      %v453 = vsel %vm430, %v450, %v452
      %v454 = vrot.slane %v183, 1
      %v455 = vsel %vm430, %v452, %v454
      %v456 = vrot.slane %v184, 1
      %v457 = vsel %vm430, %v454, %v456
      %v458 = vrot.slane %v185, 1
      %v459 = vsel %vm430, %v456, %v458
      %v460 = vrot.slane %v186, 1
      %v461 = vsel %vm430, %v458, %v460
      %v462 = vrot.slane %v187, 1
      %v463 = vsel %vm430, %v460, %v462
      %v464 = vrot.slane %v188, 1
      %v465 = vsel %vm430, %v462, %v464
      %v466 = vrot.slane %v189, 1
      %v467 = vsel %vm430, %v464, %v466
      %v468 = vrot.slane %v190, 1
      %v469 = vsel %vm430, %v466, %v468
      %v470 = vrot.slane %v191, 1
      %v471 = vsel %vm430, %v468, %v470
      %v472 = vrot.slane %v192, 1
      %v473 = vsel %vm430, %v470, %v472
      %v474 = vrot.slane %v193, 1
      %v475 = vsel %vm430, %v472, %v474
      %v476 = vrot.slane %v194, 1
      %v477 = vsel %vm430, %v474, %v476
      %v478 = vrot.slane %v195, 1
      %v479 = vsel %vm430, %v476, %v478
      %v480 = vrot.slane %v196, 1
      %v481 = vsel %vm430, %v478, %v480
      %v482 = vrot.slane %v197, 1
      %v483 = vsel %vm430, %v480, %v482
      %v484 = vrot.slane %v198, 1
      %v485 = vsel %vm430, %v482, %v484
      %v486 = vrot.slane %v199, 1
      %v487 = vsel %vm430, %v484, %v486
      %v488 = vrot.slane %v200, 1
      %v489 = vsel %vm430, %v486, %v488
      %v490 = vrot.slane %v201, 1
      %v491 = vsel %vm430, %v488, %v490
      %v492 = vrot.slane %v202, 1
      %v493 = vsel %vm430, %v490, %v492
      %v494 = vrot.slane %v203, 1
      %v495 = vsel %vm430, %v492, %v494
      %v496 = vrot.slane %v204, 1
      %v497 = vsel %vm430, %v494, %v496
      %v498 = vrot.slane %v205, 1
      %v499 = vsel %vm430, %v496, %v498
      %v500 = vrot.slane %v206, 1
      %v501 = vsel %vm430, %v498, %v500
      %v502 = vrot.slane %v207, 1
      %v503 = vsel %vm430, %v500, %v502
      %v504 = vrot.slane %v208, 1
      %v505 = vsel %vm430, %v502, %v504
      %v506 = vrot.slane %v209, 1
      %v507 = vsel %vm430, %v504, %v506
      %v508 = vrot.slane %v210, 1
      %v509 = vsel %vm430, %v506, %v508
      %v510 = vrot.slane %v211, 1
      %v511 = vsel %vm430, %v508, %v510
      %v512 = vrot.slane %v212, 1
      %v513 = vsel %vm430, %v510, %v512
      %v514 = vrot.slane %v213, 1
      %v515 = vsel %vm430, %v512, %v514
      %v516 = vrot.slane %v214, 1
      %v517 = vsel %vm430, %v514, %v516
      %v518 = vrot.slane %v215, 1
      %v519 = vsel %vm430, %v516, %v518
      %v520 = vrot.slane %v216, 1
      %v521 = vsel %vm430, %v518, %v520
      %v522 = vrot.slane %v217, 1
      %v523 = vsel %vm430, %v520, %v522
      %v524 = vrot.slane %v218, 1
      %v525 = vsel %vm430, %v522, %v524
      %v526 = vrot.slane %v219, 1
      %v527 = vsel %vm430, %v524, %v526
      %v528 = vrot.slane %v220, 1
      %v529 = vsel %vm430, %v526, %v528
      %v530 = vrot.slane %v221, 1
      %v531 = vsel %vm430, %v528, %v530
      %v532 = vrot.slane %v222, 1
      %v533 = vsel %vm430, %v530, %v532
      %v534 = vrot.slane %v223, 1
      %v535 = vsel %vm430, %v532, %v534
      %v536 = vrot.slane %v224, 1
      %v537 = vsel %vm430, %v534, %v536
      %v538 = vrot.slane %v225, 1
      %v539 = vsel %vm430, %v536, %v538
      %v540 = vrot.slane %v226, 1
      %v541 = vsel %vm430, %v538, %v540
      %v542 = vrot.slane %v227, 1
      %v543 = vsel %vm430, %v540, %v542
      %v544 = vrot.slane %v228, 1
      %v545 = vsel %vm430, %v542, %v544
      %v546 = vrot.slane %v229, 1
      %v547 = vsel %vm430, %v544, %v546
      %v548 = vrot.slane %v230, 1
      %v549 = vsel %vm430, %v546, %v548
      %v550 = vrot.slane %v231, 1
      %v551 = vsel %vm430, %v548, %v550
      %v552 = vrot.slane %v232, 1
      %v553 = vsel %vm430, %v550, %v552
      %v554 = vrot.slane %v233, 1
      %v555 = vsel %vm430, %v552, %v554
      %v556 = vrot.slane %v234, 1
      %v557 = vsel %vm430, %v554, %v556
      %v558 = vrot.slane %v235, 1
      %v559 = vsel %vm430, %v556, %v558
      %v560 = vrot.slane %v236, 1
      %v561 = vsel %vm430, %v558, %v560
      %v562 = vrot.slane %v237, 1
      %v563 = vsel %vm430, %v560, %v562
      %v564 = vrot.slane %v238, 1
      %v565 = vsel %vm430, %v562, %v564
      %v566 = vrot.slane %v239, 1
      %v567 = vsel %vm430, %v564, %v566
      %v568 = vrot.slane %v240, 1
      %v569 = vsel %vm430, %v566, %v568
      %v570 = vrot.slane %v241, 1
      %v571 = vsel %vm430, %v568, %v570
      %v572 = vrot.slane %v242, 1
      %v573 = vsel %vm430, %v570, %v572
      %v574 = vrot.slane %v243, 1
      %v575 = vsel %vm430, %v572, %v574
      %v576 = vrot.slane %v244, 1
      %v577 = vsel %vm430, %v574, %v576
      %v578 = vrot.slane %v245, 1
      %v579 = vsel %vm430, %v576, %v578
      %v580 = vrot.slane %v246, 1
      %v581 = vsel %vm430, %v578, %v580
      %v582 = vrot.slane %v247, 1
      %v583 = vsel %vm430, %v580, %v582
      %v584 = vrot.slane %v248, 1
      %v585 = vsel %vm430, %v582, %v584
      %v586 = vrot.slane %v249, 1
      %v587 = vsel %vm430, %v584, %v586
      %v588 = vrot.slane %v250, 1
      %v589 = vsel %vm430, %v586, %v588
      %v590 = vrot.slane %v251, 1
      %v591 = vsel %vm430, %v588, %v590
      %v592 = vrot.slane %v252, 1
      %v593 = vsel %vm430, %v590, %v592
      %v594 = vrot.slane %v253, 1
      %v595 = vsel %vm430, %v592, %v594
      %v596 = vrot.slane %v254, 1
      %v597 = vsel %vm430, %v594, %v596
      %v598 = vrot.slane %v255, 1
      %v599 = vsel %vm430, %v596, %v598
      %v600 = vrot.slane %v256, 1
      %v601 = vsel %vm430, %v598, %v600
      %v602 = vrot.slane %v257, 1
      %v603 = vsel %vm430, %v600, %v602
      %v604 = vrot.slane %v258, 1
      %v605 = vsel %vm430, %v602, %v604
      %v606 = vrot.slane %v259, 1
      %v607 = vsel %vm430, %v604, %v606
      %v608 = vrot.slane %v260, 1
      %v609 = vsel %vm430, %v606, %v608
      %v610 = vrot.slane %v261, 1
      %v611 = vsel %vm430, %v608, %v610
      %v612 = vrot.slane %v262, 1
      %v613 = vsel %vm430, %v610, %v612
      %v614 = vrot.slane %v263, 1
      %v615 = vsel %vm430, %v612, %v614
      %v616 = vrot.slane %v264, 1
      %v617 = vsel %vm430, %v614, %v616
      %v618 = vrot.slane %v265, 1
      %v619 = vsel %vm430, %v616, %v618
      %v620 = vrot.slane %v266, 1
      %v621 = vsel %vm430, %v618, %v620
      %v622 = vrot.slane %v267, 1
      %v623 = vsel %vm430, %v620, %v622
      %v624 = vrot.slane %v268, 1
      %v625 = vsel %vm430, %v622, %v624
      %v626 = vrot.slane %v269, 1
      %v627 = vsel %vm430, %v624, %v626
      %v628 = vrot.slane %v270, 1
      %v629 = vsel %vm430, %v626, %v628
      %v630 = vrot.slane %v271, 1
      %v631 = vsel %vm430, %v628, %v630
      %v632 = vrot.slane %v272, 1
      %v633 = vsel %vm430, %v630, %v632
      %v634 = vrot.slane %v273, 1
      %v635 = vsel %vm430, %v632, %v634
      %v636 = vrot.slane %v274, 1
      %v637 = vsel %vm430, %v634, %v636
      %v638 = vrot.slane %v275, 1
      %v639 = vsel %vm430, %v636, %v638
      %v640 = vrot.slane %v276, 1
      %v641 = vsel %vm430, %v638, %v640
      %v642 = vrot.slane %v277, 1
      %v643 = vsel %vm430, %v640, %v642
      %v644 = vrot.slane %v278, 1
      %v645 = vsel %vm430, %v642, %v644
      %v646 = vrot.slane %v279, 1
      %v647 = vsel %vm430, %v644, %v646
      %v648 = vrot.slane %v280, 1
      %v649 = vsel %vm430, %v646, %v648
      %v650 = vrot.slane %v281, 1
      %v651 = vsel %vm430, %v648, %v650
      %v652 = vrot.slane %v282, 1
      %v653 = vsel %vm430, %v650, %v652
      %v654 = vrot.slane %v283, 1
      %v655 = vsel %vm430, %v652, %v654
      %v656 = vrot.slane %v284, 1
      %v657 = vsel %vm430, %v654, %v656
      %v658 = vrot.slane %v285, 1
      %v659 = vsel %vm430, %v656, %v658
      %v660 = vrot.slane %v286, 1
      %v661 = vsel %vm430, %v658, %v660
      %v662 = vrot.slane %v287, 1
      %v663 = vsel %vm430, %v660, %v662
      %v664 = vrot.slane %v288, 1
      %v665 = vsel %vm430, %v662, %v664
      %v666 = vrot.slane %v289, 1
      %v667 = vsel %vm430, %v664, %v666
      %v668 = vrot.slane %v290, 1
      %v669 = vsel %vm430, %v666, %v668
      %v670 = vrot.slane %v291, 1
      %v671 = vsel %vm430, %v668, %v670
      %vm672 = vcmask 64512
      %v673 = vsel %vm672, %v433, 0
      %v675 = vsel %vm672, %v435, 0
      %v677 = vsel %vm672, %v437, 0
      %v679 = vsel %vm672, %v439, 0
      %v681 = vsel %vm672, %v441, 0
      %v683 = vsel %vm672, %v443, 0
      %v685 = vsel %vm672, %v445, 0
      %v687 = vsel %vm672, %v447, 0
      %v689 = vsel %vm672, %v449, 0
      %v691 = vsel %vm672, %v451, 0
      %v693 = vsel %vm672, %v453, 0
      %v695 = vsel %vm672, %v455, 0
      %v697 = vsel %vm672, %v457, 0
      %v699 = vsel %vm672, %v459, 0
      %v701 = vsel %vm672, %v461, 0
      %v703 = vsel %vm672, %v463, 0
      %v705 = vsel %vm672, %v465, 0
      %v707 = vsel %vm672, %v467, 0
      %v709 = vsel %vm672, %v469, 0
      %v711 = vsel %vm672, %v471, 0
      %v713 = vsel %vm672, %v473, 0
      %v715 = vsel %vm672, %v475, 0
      %v717 = vsel %vm672, %v477, 0
      %v719 = vsel %vm672, %v479, 0
      %v721 = vsel %vm672, %v481, 0
      %v723 = vsel %vm672, %v483, 0
      %v725 = vsel %vm672, %v485, 0
      %v727 = vsel %vm672, %v487, 0
      %v729 = vsel %vm672, %v489, 0
      %v731 = vsel %vm672, %v491, 0
      %v733 = vsel %vm672, %v493, 0
      %v735 = vsel %vm672, %v495, 0
      %v737 = vsel %vm672, %v497, 0
      %v739 = vsel %vm672, %v499, 0
      %v741 = vsel %vm672, %v501, 0
      %v743 = vsel %vm672, %v503, 0
      %v745 = vsel %vm672, %v505, 0
      %v747 = vsel %vm672, %v507, 0
      %v749 = vsel %vm672, %v509, 0
      %v751 = vsel %vm672, %v511, 0
      %v753 = vsel %vm672, %v513, 0
      %v755 = vsel %vm672, %v515, 0
      %v757 = vsel %vm672, %v517, 0
      %v759 = vsel %vm672, %v519, 0
      %v761 = vsel %vm672, %v521, 0
      %v763 = vsel %vm672, %v523, 0
      %v765 = vsel %vm672, %v525, 0
      %v767 = vsel %vm672, %v527, 0
      %v769 = vsel %vm672, %v529, 0
      %v771 = vsel %vm672, %v531, 0
      %v773 = vsel %vm672, %v533, 0
      %v775 = vsel %vm672, %v535, 0
      %v777 = vsel %vm672, %v537, 0
      %v779 = vsel %vm672, %v539, 0
      %v781 = vsel %vm672, %v541, 0
      %v783 = vsel %vm672, %v543, 0
      %v785 = vsel %vm672, %v545, 0
      %v787 = vsel %vm672, %v547, 0
      %v789 = vsel %vm672, %v549, 0
      %v791 = vsel %vm672, %v551, 0
      %v793 = vsel %vm672, %v553, 0
      %v795 = vsel %vm672, %v555, 0
      %v797 = vsel %vm672, %v557, 0
      %v799 = vsel %vm672, %v559, 0
      %v801 = vsel %vm672, %v561, 0
      %v803 = vsel %vm672, %v563, 0
      %v805 = vsel %vm672, %v565, 0
      %v807 = vsel %vm672, %v567, 0
      %v809 = vsel %vm672, %v569, 0
      %v811 = vsel %vm672, %v571, 0
      %v813 = vsel %vm672, %v573, 0
      %v815 = vsel %vm672, %v575, 0
      %v817 = vsel %vm672, %v577, 0
      %v819 = vsel %vm672, %v579, 0
      %v821 = vsel %vm672, %v581, 0
      %v823 = vsel %vm672, %v583, 0
      %v825 = vsel %vm672, %v585, 0
      %v827 = vsel %vm672, %v587, 0
      %v829 = vsel %vm672, %v589, 0
      %v831 = vsel %vm672, %v591, 0
      %v833 = vsel %vm672, %v593, 0
      %v835 = vsel %vm672, %v595, 0
      %v837 = vsel %vm672, %v597, 0
      %v839 = vsel %vm672, %v599, 0
      %v841 = vsel %vm672, %v601, 0
      %v843 = vsel %vm672, %v603, 0
      %v845 = vsel %vm672, %v605, 0
      %v847 = vsel %vm672, %v607, 0
      %v849 = vsel %vm672, %v609, 0
      %v851 = vsel %vm672, %v611, 0
      %v853 = vsel %vm672, %v613, 0
      %v855 = vsel %vm672, %v615, 0
      %v857 = vsel %vm672, %v617, 0
      %v859 = vsel %vm672, %v619, 0
      %v861 = vsel %vm672, %v621, 0
      %v863 = vsel %vm672, %v623, 0
      %v865 = vsel %vm672, %v625, 0
      %v867 = vsel %vm672, %v627, 0
      %v869 = vsel %vm672, %v629, 0
      %v871 = vsel %vm672, %v631, 0
      %v873 = vsel %vm672, %v633, 0
      %v875 = vsel %vm672, %v635, 0
      %v877 = vsel %vm672, %v637, 0
      %v879 = vsel %vm672, %v639, 0
      %v881 = vsel %vm672, %v641, 0
      %v883 = vsel %vm672, %v643, 0
      %v885 = vsel %vm672, %v645, 0
      %v887 = vsel %vm672, %v647, 0
      %v889 = vsel %vm672, %v649, 0
      %v891 = vsel %vm672, %v651, 0
      %v893 = vsel %vm672, %v653, 0
      %v895 = vsel %vm672, %v655, 0
      %v897 = vsel %vm672, %v657, 0
      %v899 = vsel %vm672, %v659, 0
      %v901 = vsel %vm672, %v661, 0
      %v903 = vsel %vm672, %v663, 0
      %v905 = vsel %vm672, %v665, 0
      %v907 = vsel %vm672, %v667, 0
      %v909 = vsel %vm672, %v669, 0
      %v911 = vsel %vm672, %v671, 0
      %913 = vmatpush.msra.mxu0 0.0
      %914 = vmatpush.msra.mxu0 0.0
      %915 = vmatpush.msra.mxu0 0.0
      %916 = vmatpush.msra.mxu0 0.0
      %917 = vmatpush.msra.mxu0 0.0
      %918 = vmatpush.msra.mxu0 0.0
      %919 = vmatpush.msra.mxu0 0.0
      %920 = vmatpush.msra.mxu0 0.0
      %921 = vmatpush.msra.mxu0 0.0
      %922 = vmatpush.msra.mxu0 0.0
      %923 = vmatpush.msra.mxu0 0.0
      %924 = vmatpush.msra.mxu0 0.0
      %925 = vmatpush.msra.mxu0 0.0
      %926 = vmatpush.msra.mxu0 0.0
      %927 = vmatpush.msra.mxu0 0.0
      %928 = vmatpush.msra.mxu0 %v301
      %929 = vmatmul.f32.gmra.mxu0 %v673
      %v930 = vpop.f32.mrf.mxu0
      %v931 = vadd.f32 0.0, %v930
      %932 = vmatmul.f32.gmra.mxu0 %v675
      %v933 = vpop.f32.mrf.mxu0
      %v934 = vadd.f32 0.0, %v933
      %935 = vmatmul.f32.gmra.mxu0 %v677
      %v936 = vpop.f32.mrf.mxu0
      %v937 = vadd.f32 0.0, %v936
      %938 = vmatmul.f32.gmra.mxu0 %v679
      %v939 = vpop.f32.mrf.mxu0
      %v940 = vadd.f32 0.0, %v939
      %941 = vmatmul.f32.gmra.mxu0 %v681
      %v942 = vpop.f32.mrf.mxu0
      %v943 = vadd.f32 0.0, %v942
      %944 = vmatmul.f32.gmra.mxu0 %v683
      %v945 = vpop.f32.mrf.mxu0
      %v946 = vadd.f32 0.0, %v945
      %947 = vmatmul.f32.gmra.mxu0 %v685
      %v948 = vpop.f32.mrf.mxu0
      %v949 = vadd.f32 0.0, %v948
      %950 = vmatmul.f32.gmra.mxu0 %v687
      %v951 = vpop.f32.mrf.mxu0
      %v952 = vadd.f32 0.0, %v951
      %953 = vmatmul.f32.gmra.mxu0 %v689
      %v954 = vpop.f32.mrf.mxu0
      %v955 = vadd.f32 0.0, %v954
      %956 = vmatmul.f32.gmra.mxu0 %v691
      %v957 = vpop.f32.mrf.mxu0
      %v958 = vadd.f32 0.0, %v957
      %959 = vmatmul.f32.gmra.mxu0 %v693
      %v960 = vpop.f32.mrf.mxu0
      %v961 = vadd.f32 0.0, %v960
      %962 = vmatmul.f32.gmra.mxu0 %v695
      %v963 = vpop.f32.mrf.mxu0
      %v964 = vadd.f32 0.0, %v963
      %965 = vmatmul.f32.gmra.mxu0 %v697
      %v966 = vpop.f32.mrf.mxu0
      %v967 = vadd.f32 0.0, %v966
      %968 = vmatmul.f32.gmra.mxu0 %v699
      %v969 = vpop.f32.mrf.mxu0
      %v970 = vadd.f32 0.0, %v969
      %971 = vmatmul.f32.gmra.mxu0 %v701
      %v972 = vpop.f32.mrf.mxu0
      %v973 = vadd.f32 0.0, %v972
      %974 = vmatmul.f32.gmra.mxu0 %v703
      %v975 = vpop.f32.mrf.mxu0
      %v976 = vadd.f32 0.0, %v975
      %977 = vmatmul.f32.gmra.mxu0 %v705
      %v978 = vpop.f32.mrf.mxu0
      %v979 = vadd.f32 0.0, %v978
      %980 = vmatmul.f32.gmra.mxu0 %v707
      %v981 = vpop.f32.mrf.mxu0
      %v982 = vadd.f32 0.0, %v981
      %983 = vmatmul.f32.gmra.mxu0 %v709
      %v984 = vpop.f32.mrf.mxu0
      %v985 = vadd.f32 0.0, %v984
      %986 = vmatmul.f32.gmra.mxu0 %v711
      %v987 = vpop.f32.mrf.mxu0
      %v988 = vadd.f32 0.0, %v987
      %989 = vmatmul.f32.gmra.mxu0 %v713
      %v990 = vpop.f32.mrf.mxu0
      %v991 = vadd.f32 0.0, %v990
      %992 = vmatmul.f32.gmra.mxu0 %v715
      %v993 = vpop.f32.mrf.mxu0
      %v994 = vadd.f32 0.0, %v993
      %995 = vmatmul.f32.gmra.mxu0 %v717
      %v996 = vpop.f32.mrf.mxu0
      %v997 = vadd.f32 0.0, %v996
      %998 = vmatmul.f32.gmra.mxu0 %v719
      %v999 = vpop.f32.mrf.mxu0
      %v1000 = vadd.f32 0.0, %v999
      %1001 = vmatmul.f32.gmra.mxu0 %v721
      %v1002 = vpop.f32.mrf.mxu0
      %v1003 = vadd.f32 0.0, %v1002
      %1004 = vmatmul.f32.gmra.mxu0 %v723
      %v1005 = vpop.f32.mrf.mxu0
      %v1006 = vadd.f32 0.0, %v1005
      %1007 = vmatmul.f32.gmra.mxu0 %v725
      %v1008 = vpop.f32.mrf.mxu0
      %v1009 = vadd.f32 0.0, %v1008
      %1010 = vmatmul.f32.gmra.mxu0 %v727
      %v1011 = vpop.f32.mrf.mxu0
      %v1012 = vadd.f32 0.0, %v1011
      %1013 = vmatmul.f32.gmra.mxu0 %v729
      %v1014 = vpop.f32.mrf.mxu0
      %v1015 = vadd.f32 0.0, %v1014
      %1016 = vmatmul.f32.gmra.mxu0 %v731
      %v1017 = vpop.f32.mrf.mxu0
      %v1018 = vadd.f32 0.0, %v1017
      %1019 = vmatmul.f32.gmra.mxu0 %v733
      %v1020 = vpop.f32.mrf.mxu0
      %v1021 = vadd.f32 0.0, %v1020
      %1022 = vmatmul.f32.gmra.mxu0 %v735
      %v1023 = vpop.f32.mrf.mxu0
      %v1024 = vadd.f32 0.0, %v1023
      %1025 = vmatmul.f32.gmra.mxu0 %v737
      %v1026 = vpop.f32.mrf.mxu0
      %v1027 = vadd.f32 0.0, %v1026
      %1028 = vmatmul.f32.gmra.mxu0 %v739
      %v1029 = vpop.f32.mrf.mxu0
      %v1030 = vadd.f32 0.0, %v1029
      %1031 = vmatmul.f32.gmra.mxu0 %v741
      %v1032 = vpop.f32.mrf.mxu0
      %v1033 = vadd.f32 0.0, %v1032
      %1034 = vmatmul.f32.gmra.mxu0 %v743
      %v1035 = vpop.f32.mrf.mxu0
      %v1036 = vadd.f32 0.0, %v1035
      %1037 = vmatmul.f32.gmra.mxu0 %v745
      %v1038 = vpop.f32.mrf.mxu0
      %v1039 = vadd.f32 0.0, %v1038
      %1040 = vmatmul.f32.gmra.mxu0 %v747
      %v1041 = vpop.f32.mrf.mxu0
      %v1042 = vadd.f32 0.0, %v1041
      %1043 = vmatmul.f32.gmra.mxu0 %v749
      %v1044 = vpop.f32.mrf.mxu0
      %v1045 = vadd.f32 0.0, %v1044
      %1046 = vmatmul.f32.gmra.mxu0 %v751
      %v1047 = vpop.f32.mrf.mxu0
      %v1048 = vadd.f32 0.0, %v1047
      %1049 = vmatmul.f32.gmra.mxu0 %v753
      %v1050 = vpop.f32.mrf.mxu0
      %v1051 = vadd.f32 0.0, %v1050
      %1052 = vmatmul.f32.gmra.mxu0 %v755
      %v1053 = vpop.f32.mrf.mxu0
      %v1054 = vadd.f32 0.0, %v1053
      %1055 = vmatmul.f32.gmra.mxu0 %v757
      %v1056 = vpop.f32.mrf.mxu0
      %v1057 = vadd.f32 0.0, %v1056
      %1058 = vmatmul.f32.gmra.mxu0 %v759
      %v1059 = vpop.f32.mrf.mxu0
      %v1060 = vadd.f32 0.0, %v1059
      %1061 = vmatmul.f32.gmra.mxu0 %v761
      %v1062 = vpop.f32.mrf.mxu0
      %v1063 = vadd.f32 0.0, %v1062
      %1064 = vmatmul.f32.gmra.mxu0 %v763
      %v1065 = vpop.f32.mrf.mxu0
      %v1066 = vadd.f32 0.0, %v1065
      %1067 = vmatmul.f32.gmra.mxu0 %v765
      %v1068 = vpop.f32.mrf.mxu0
      %v1069 = vadd.f32 0.0, %v1068
      %1070 = vmatmul.f32.gmra.mxu0 %v767
      %v1071 = vpop.f32.mrf.mxu0
      %v1072 = vadd.f32 0.0, %v1071
      %1073 = vmatmul.f32.gmra.mxu0 %v769
      %v1074 = vpop.f32.mrf.mxu0
      %v1075 = vadd.f32 0.0, %v1074
      %1076 = vmatmul.f32.gmra.mxu0 %v771
      %v1077 = vpop.f32.mrf.mxu0
      %v1078 = vadd.f32 0.0, %v1077
      %1079 = vmatmul.f32.gmra.mxu0 %v773
      %v1080 = vpop.f32.mrf.mxu0
      %v1081 = vadd.f32 0.0, %v1080
      %1082 = vmatmul.f32.gmra.mxu0 %v775
      %v1083 = vpop.f32.mrf.mxu0
      %v1084 = vadd.f32 0.0, %v1083
      %1085 = vmatmul.f32.gmra.mxu0 %v777
      %v1086 = vpop.f32.mrf.mxu0
      %v1087 = vadd.f32 0.0, %v1086
      %1088 = vmatmul.f32.gmra.mxu0 %v779
      %v1089 = vpop.f32.mrf.mxu0
      %v1090 = vadd.f32 0.0, %v1089
      %1091 = vmatmul.f32.gmra.mxu0 %v781
      %v1092 = vpop.f32.mrf.mxu0
      %v1093 = vadd.f32 0.0, %v1092
      %1094 = vmatmul.f32.gmra.mxu0 %v783
      %v1095 = vpop.f32.mrf.mxu0
      %v1096 = vadd.f32 0.0, %v1095
      %1097 = vmatmul.f32.gmra.mxu0 %v785
      %v1098 = vpop.f32.mrf.mxu0
      %v1099 = vadd.f32 0.0, %v1098
      %1100 = vmatmul.f32.gmra.mxu0 %v787
      %v1101 = vpop.f32.mrf.mxu0
      %v1102 = vadd.f32 0.0, %v1101
      %1103 = vmatmul.f32.gmra.mxu0 %v789
      %v1104 = vpop.f32.mrf.mxu0
      %v1105 = vadd.f32 0.0, %v1104
      %1106 = vmatmul.f32.gmra.mxu0 %v791
      %v1107 = vpop.f32.mrf.mxu0
      %v1108 = vadd.f32 0.0, %v1107
      %1109 = vmatmul.f32.gmra.mxu0 %v793
      %v1110 = vpop.f32.mrf.mxu0
      %v1111 = vadd.f32 0.0, %v1110
      %1112 = vmatmul.f32.gmra.mxu0 %v795
      %v1113 = vpop.f32.mrf.mxu0
      %v1114 = vadd.f32 0.0, %v1113
      %1115 = vmatmul.f32.gmra.mxu0 %v797
      %v1116 = vpop.f32.mrf.mxu0
      %v1117 = vadd.f32 0.0, %v1116
      %1118 = vmatmul.f32.gmra.mxu0 %v799
      %v1119 = vpop.f32.mrf.mxu0
      %v1120 = vadd.f32 0.0, %v1119
      %1121 = vmatmul.f32.gmra.mxu0 %v801
      %v1122 = vpop.f32.mrf.mxu0
      %v1123 = vadd.f32 0.0, %v1122
      %1124 = vmatmul.f32.gmra.mxu0 %v803
      %v1125 = vpop.f32.mrf.mxu0
      %v1126 = vadd.f32 0.0, %v1125
      %1127 = vmatmul.f32.gmra.mxu0 %v805
      %v1128 = vpop.f32.mrf.mxu0
      %v1129 = vadd.f32 0.0, %v1128
      %1130 = vmatmul.f32.gmra.mxu0 %v807
      %v1131 = vpop.f32.mrf.mxu0
      %v1132 = vadd.f32 0.0, %v1131
      %1133 = vmatmul.f32.gmra.mxu0 %v809
      %v1134 = vpop.f32.mrf.mxu0
      %v1135 = vadd.f32 0.0, %v1134
      %1136 = vmatmul.f32.gmra.mxu0 %v811
      %v1137 = vpop.f32.mrf.mxu0
      %v1138 = vadd.f32 0.0, %v1137
      %1139 = vmatmul.f32.gmra.mxu0 %v813
      %v1140 = vpop.f32.mrf.mxu0
      %v1141 = vadd.f32 0.0, %v1140
      %1142 = vmatmul.f32.gmra.mxu0 %v815
      %v1143 = vpop.f32.mrf.mxu0
      %v1144 = vadd.f32 0.0, %v1143
      %1145 = vmatmul.f32.gmra.mxu0 %v817
      %v1146 = vpop.f32.mrf.mxu0
      %v1147 = vadd.f32 0.0, %v1146
      %1148 = vmatmul.f32.gmra.mxu0 %v819
      %v1149 = vpop.f32.mrf.mxu0
      %v1150 = vadd.f32 0.0, %v1149
      %1151 = vmatmul.f32.gmra.mxu0 %v821
      %v1152 = vpop.f32.mrf.mxu0
      %v1153 = vadd.f32 0.0, %v1152
      %1154 = vmatmul.f32.gmra.mxu0 %v823
      %v1155 = vpop.f32.mrf.mxu0
      %v1156 = vadd.f32 0.0, %v1155
      %1157 = vmatmul.f32.gmra.mxu0 %v825
      %v1158 = vpop.f32.mrf.mxu0
      %v1159 = vadd.f32 0.0, %v1158
      %1160 = vmatmul.f32.gmra.mxu0 %v827
      %v1161 = vpop.f32.mrf.mxu0
      %v1162 = vadd.f32 0.0, %v1161
      %1163 = vmatmul.f32.gmra.mxu0 %v829
      %v1164 = vpop.f32.mrf.mxu0
      %v1165 = vadd.f32 0.0, %v1164
      %1166 = vmatmul.f32.gmra.mxu0 %v831
      %v1167 = vpop.f32.mrf.mxu0
      %v1168 = vadd.f32 0.0, %v1167
      %1169 = vmatmul.f32.gmra.mxu0 %v833
      %v1170 = vpop.f32.mrf.mxu0
      %v1171 = vadd.f32 0.0, %v1170
      %1172 = vmatmul.f32.gmra.mxu0 %v835
      %v1173 = vpop.f32.mrf.mxu0
      %v1174 = vadd.f32 0.0, %v1173
      %1175 = vmatmul.f32.gmra.mxu0 %v837
      %v1176 = vpop.f32.mrf.mxu0
      %v1177 = vadd.f32 0.0, %v1176
      %1178 = vmatmul.f32.gmra.mxu0 %v839
      %v1179 = vpop.f32.mrf.mxu0
      %v1180 = vadd.f32 0.0, %v1179
      %1181 = vmatmul.f32.gmra.mxu0 %v841
      %v1182 = vpop.f32.mrf.mxu0
      %v1183 = vadd.f32 0.0, %v1182
      %1184 = vmatmul.f32.gmra.mxu0 %v843
      %v1185 = vpop.f32.mrf.mxu0
      %v1186 = vadd.f32 0.0, %v1185
      %1187 = vmatmul.f32.gmra.mxu0 %v845
      %v1188 = vpop.f32.mrf.mxu0
      %v1189 = vadd.f32 0.0, %v1188
      %1190 = vmatmul.f32.gmra.mxu0 %v847
      %v1191 = vpop.f32.mrf.mxu0
      %v1192 = vadd.f32 0.0, %v1191
      %1193 = vmatmul.f32.gmra.mxu0 %v849
      %v1194 = vpop.f32.mrf.mxu0
      %v1195 = vadd.f32 0.0, %v1194
      %1196 = vmatmul.f32.gmra.mxu0 %v851
      %v1197 = vpop.f32.mrf.mxu0
      %v1198 = vadd.f32 0.0, %v1197
      %1199 = vmatmul.f32.gmra.mxu0 %v853
      %v1200 = vpop.f32.mrf.mxu0
      %v1201 = vadd.f32 0.0, %v1200
      %1202 = vmatmul.f32.gmra.mxu0 %v855
      %v1203 = vpop.f32.mrf.mxu0
      %v1204 = vadd.f32 0.0, %v1203
      %1205 = vmatmul.f32.gmra.mxu0 %v857
      %v1206 = vpop.f32.mrf.mxu0
      %v1207 = vadd.f32 0.0, %v1206
      %1208 = vmatmul.f32.gmra.mxu0 %v859
      %v1209 = vpop.f32.mrf.mxu0
      %v1210 = vadd.f32 0.0, %v1209
      %1211 = vmatmul.f32.gmra.mxu0 %v861
      %v1212 = vpop.f32.mrf.mxu0
      %v1213 = vadd.f32 0.0, %v1212
      %1214 = vmatmul.f32.gmra.mxu0 %v863
      %v1215 = vpop.f32.mrf.mxu0
      %v1216 = vadd.f32 0.0, %v1215
      %1217 = vmatmul.f32.gmra.mxu0 %v865
      %v1218 = vpop.f32.mrf.mxu0
      %v1219 = vadd.f32 0.0, %v1218
      %1220 = vmatmul.f32.gmra.mxu0 %v867
      %v1221 = vpop.f32.mrf.mxu0
      %v1222 = vadd.f32 0.0, %v1221
      %1223 = vmatmul.f32.gmra.mxu0 %v869
      %v1224 = vpop.f32.mrf.mxu0
      %v1225 = vadd.f32 0.0, %v1224
      %1226 = vmatmul.f32.gmra.mxu0 %v871
      %v1227 = vpop.f32.mrf.mxu0
      %v1228 = vadd.f32 0.0, %v1227
      %1229 = vmatmul.f32.gmra.mxu0 %v873
      %v1230 = vpop.f32.mrf.mxu0
      %v1231 = vadd.f32 0.0, %v1230
      %1232 = vmatmul.f32.gmra.mxu0 %v875
      %v1233 = vpop.f32.mrf.mxu0
      %v1234 = vadd.f32 0.0, %v1233
      %1235 = vmatmul.f32.gmra.mxu0 %v877
      %v1236 = vpop.f32.mrf.mxu0
      %v1237 = vadd.f32 0.0, %v1236
      %1238 = vmatmul.f32.gmra.mxu0 %v879
      %v1239 = vpop.f32.mrf.mxu0
      %v1240 = vadd.f32 0.0, %v1239
      %1241 = vmatmul.f32.gmra.mxu0 %v881
      %v1242 = vpop.f32.mrf.mxu0
      %v1243 = vadd.f32 0.0, %v1242
      %1244 = vmatmul.f32.gmra.mxu0 %v883
      %v1245 = vpop.f32.mrf.mxu0
      %v1246 = vadd.f32 0.0, %v1245
      %1247 = vmatmul.f32.gmra.mxu0 %v885
      %v1248 = vpop.f32.mrf.mxu0
      %v1249 = vadd.f32 0.0, %v1248
      %1250 = vmatmul.f32.gmra.mxu0 %v887
      %v1251 = vpop.f32.mrf.mxu0
      %v1252 = vadd.f32 0.0, %v1251
      %1253 = vmatmul.f32.gmra.mxu0 %v889
      %v1254 = vpop.f32.mrf.mxu0
      %v1255 = vadd.f32 0.0, %v1254
      %1256 = vmatmul.f32.gmra.mxu0 %v891
      %v1257 = vpop.f32.mrf.mxu0
      %v1258 = vadd.f32 0.0, %v1257
      %1259 = vmatmul.f32.gmra.mxu0 %v893
      %v1260 = vpop.f32.mrf.mxu0
      %v1261 = vadd.f32 0.0, %v1260
      %1262 = vmatmul.f32.gmra.mxu0 %v895
      %v1263 = vpop.f32.mrf.mxu0
      %v1264 = vadd.f32 0.0, %v1263
      %1265 = vmatmul.f32.gmra.mxu0 %v897
      %v1266 = vpop.f32.mrf.mxu0
      %v1267 = vadd.f32 0.0, %v1266
      %1268 = vmatmul.f32.gmra.mxu0 %v899
      %v1269 = vpop.f32.mrf.mxu0
      %v1270 = vadd.f32 0.0, %v1269
      %1271 = vmatmul.f32.gmra.mxu0 %v901
      %v1272 = vpop.f32.mrf.mxu0
      %v1273 = vadd.f32 0.0, %v1272
      %1274 = vmatmul.f32.gmra.mxu0 %v903
      %v1275 = vpop.f32.mrf.mxu0
      %v1276 = vadd.f32 0.0, %v1275
      %1277 = vmatmul.f32.gmra.mxu0 %v905
      %v1278 = vpop.f32.mrf.mxu0
      %v1279 = vadd.f32 0.0, %v1278
      %1280 = vmatmul.f32.gmra.mxu0 %v907
      %v1281 = vpop.f32.mrf.mxu0
      %v1282 = vadd.f32 0.0, %v1281
      %1283 = vmatmul.f32.gmra.mxu0 %v909
      %v1284 = vpop.f32.mrf.mxu0
      %v1285 = vadd.f32 0.0, %v1284
      %1286 = vmatmul.f32.gmra.mxu0 %v911
      %v1287 = vpop.f32.mrf.mxu0
      %v1288 = vadd.f32 0.0, %v1287
      %1289 = vdwg.mxu0
      %v1290 = vsel %vm672, %v171, 0
      %v1292 = vsel %vm672, %v172, 0
      %v1294 = vsel %vm672, %v173, 0
      %v1296 = vsel %vm672, %v174, 0
      %v1298 = vsel %vm672, %v175, 0
      %v1300 = vsel %vm672, %v176, 0
      %v1302 = vsel %vm672, %v177, 0
      %v1304 = vsel %vm672, %v178, 0
      %v1306 = vsel %vm672, %v179, 0
      %v1308 = vsel %vm672, %v180, 0
      %v1310 = vsel %vm672, %v181, 0
      %v1312 = vsel %vm672, %v182, 0
      %v1314 = vsel %vm672, %v183, 0
      %v1316 = vsel %vm672, %v184, 0
      %v1318 = vsel %vm672, %v185, 0
      %v1320 = vsel %vm672, %v186, 0
      %v1322 = vsel %vm672, %v187, 0
      %v1324 = vsel %vm672, %v188, 0
      %v1326 = vsel %vm672, %v189, 0
      %v1328 = vsel %vm672, %v190, 0
      %v1330 = vsel %vm672, %v191, 0
      %v1332 = vsel %vm672, %v192, 0
      %v1334 = vsel %vm672, %v193, 0
      %v1336 = vsel %vm672, %v194, 0
      %v1338 = vsel %vm672, %v195, 0
      %v1340 = vsel %vm672, %v196, 0
      %v1342 = vsel %vm672, %v197, 0
      %v1344 = vsel %vm672, %v198, 0
      %v1346 = vsel %vm672, %v199, 0
      %v1348 = vsel %vm672, %v200, 0
      %v1350 = vsel %vm672, %v201, 0
      %v1352 = vsel %vm672, %v202, 0
      %v1354 = vsel %vm672, %v203, 0
      %v1356 = vsel %vm672, %v204, 0
      %v1358 = vsel %vm672, %v205, 0
      %v1360 = vsel %vm672, %v206, 0
      %v1362 = vsel %vm672, %v207, 0
      %v1364 = vsel %vm672, %v208, 0
      %v1366 = vsel %vm672, %v209, 0
      %v1368 = vsel %vm672, %v210, 0
      %v1370 = vsel %vm672, %v211, 0
      %v1372 = vsel %vm672, %v212, 0
      %v1374 = vsel %vm672, %v213, 0
      %v1376 = vsel %vm672, %v214, 0
      %v1378 = vsel %vm672, %v215, 0
      %v1380 = vsel %vm672, %v216, 0
      %v1382 = vsel %vm672, %v217, 0
      %v1384 = vsel %vm672, %v218, 0
      %v1386 = vsel %vm672, %v219, 0
      %v1388 = vsel %vm672, %v220, 0
      %v1390 = vsel %vm672, %v221, 0
      %v1392 = vsel %vm672, %v222, 0
      %v1394 = vsel %vm672, %v223, 0
      %v1396 = vsel %vm672, %v224, 0
      %v1398 = vsel %vm672, %v225, 0
      %v1400 = vsel %vm672, %v226, 0
      %v1402 = vsel %vm672, %v227, 0
      %v1404 = vsel %vm672, %v228, 0
      %v1406 = vsel %vm672, %v229, 0
      %v1408 = vsel %vm672, %v230, 0
      %v1410 = vsel %vm672, %v231, 0
      %v1412 = vsel %vm672, %v232, 0
      %v1414 = vsel %vm672, %v233, 0
      %v1416 = vsel %vm672, %v234, 0
      %v1418 = vsel %vm672, %v235, 0
      %v1420 = vsel %vm672, %v236, 0
      %v1422 = vsel %vm672, %v237, 0
      %v1424 = vsel %vm672, %v238, 0
      %v1426 = vsel %vm672, %v239, 0
      %v1428 = vsel %vm672, %v240, 0
      %v1430 = vsel %vm672, %v241, 0
      %v1432 = vsel %vm672, %v242, 0
      %v1434 = vsel %vm672, %v243, 0
      %v1436 = vsel %vm672, %v244, 0
      %v1438 = vsel %vm672, %v245, 0
      %v1440 = vsel %vm672, %v246, 0
      %v1442 = vsel %vm672, %v247, 0
      %v1444 = vsel %vm672, %v248, 0
      %v1446 = vsel %vm672, %v249, 0
      %v1448 = vsel %vm672, %v250, 0
      %v1450 = vsel %vm672, %v251, 0
      %v1452 = vsel %vm672, %v252, 0
      %v1454 = vsel %vm672, %v253, 0
      %v1456 = vsel %vm672, %v254, 0
      %v1458 = vsel %vm672, %v255, 0
      %v1460 = vsel %vm672, %v256, 0
      %v1462 = vsel %vm672, %v257, 0
      %v1464 = vsel %vm672, %v258, 0
      %v1466 = vsel %vm672, %v259, 0
      %v1468 = vsel %vm672, %v260, 0
      %v1470 = vsel %vm672, %v261, 0
      %v1472 = vsel %vm672, %v262, 0
      %v1474 = vsel %vm672, %v263, 0
      %v1476 = vsel %vm672, %v264, 0
      %v1478 = vsel %vm672, %v265, 0
      %v1480 = vsel %vm672, %v266, 0
      %v1482 = vsel %vm672, %v267, 0
      %v1484 = vsel %vm672, %v268, 0
      %v1486 = vsel %vm672, %v269, 0
      %v1488 = vsel %vm672, %v270, 0
      %v1490 = vsel %vm672, %v271, 0
      %v1492 = vsel %vm672, %v272, 0
      %v1494 = vsel %vm672, %v273, 0
      %v1496 = vsel %vm672, %v274, 0
      %v1498 = vsel %vm672, %v275, 0
      %v1500 = vsel %vm672, %v276, 0
      %v1502 = vsel %vm672, %v277, 0
      %v1504 = vsel %vm672, %v278, 0
      %v1506 = vsel %vm672, %v279, 0
      %v1508 = vsel %vm672, %v280, 0
      %v1510 = vsel %vm672, %v281, 0
      %v1512 = vsel %vm672, %v282, 0
      %v1514 = vsel %vm672, %v283, 0
      %v1516 = vsel %vm672, %v284, 0
      %v1518 = vsel %vm672, %v285, 0
      %v1520 = vsel %vm672, %v286, 0
      %v1522 = vsel %vm672, %v287, 0
      %v1524 = vsel %vm672, %v288, 0
      %v1526 = vsel %vm672, %v289, 0
      %v1528 = vsel %vm672, %v290, 0
      %1530 = vmatpush.msra.mxu0 0.0
      %1531 = vmatpush.msra.mxu0 0.0
      %1532 = vmatpush.msra.mxu0 0.0
      %1533 = vmatpush.msra.mxu0 0.0
      %1534 = vmatpush.msra.mxu0 0.0
      %1535 = vmatpush.msra.mxu0 0.0
      %1536 = vmatpush.msra.mxu0 0.0
      %1537 = vmatpush.msra.mxu0 0.0
      %1538 = vmatpush.msra.mxu0 0.0
      %1539 = vmatpush.msra.mxu0 0.0
      %1540 = vmatpush.msra.mxu0 0.0
      %1541 = vmatpush.msra.mxu0 0.0
      %1542 = vmatpush.msra.mxu0 0.0
      %1543 = vmatpush.msra.mxu0 0.0
      %1544 = vmatpush.msra.mxu0 0.0
      %1545 = vmatpush.msra.mxu0 %v300
      %1546 = vmatmul.f32.gmra.mxu0 %v1290
      %v1547 = vpop.f32.mrf.mxu0
      %v1548 = vadd.f32 %v931, %v1547
      %1549 = vmatmul.f32.gmra.mxu0 %v1292
      %v1550 = vpop.f32.mrf.mxu0
      %v1551 = vadd.f32 %v934, %v1550
      %1552 = vmatmul.f32.gmra.mxu0 %v1294
      %v1553 = vpop.f32.mrf.mxu0
      %v1554 = vadd.f32 %v937, %v1553
      %1555 = vmatmul.f32.gmra.mxu0 %v1296
      %v1556 = vpop.f32.mrf.mxu0
      %v1557 = vadd.f32 %v940, %v1556
      %1558 = vmatmul.f32.gmra.mxu0 %v1298
      %v1559 = vpop.f32.mrf.mxu0
      %v1560 = vadd.f32 %v943, %v1559
      %1561 = vmatmul.f32.gmra.mxu0 %v1300
      %v1562 = vpop.f32.mrf.mxu0
      %v1563 = vadd.f32 %v946, %v1562
      %1564 = vmatmul.f32.gmra.mxu0 %v1302
      %v1565 = vpop.f32.mrf.mxu0
      %v1566 = vadd.f32 %v949, %v1565
      %1567 = vmatmul.f32.gmra.mxu0 %v1304
      %v1568 = vpop.f32.mrf.mxu0
      %v1569 = vadd.f32 %v952, %v1568
      %1570 = vmatmul.f32.gmra.mxu0 %v1306
      %v1571 = vpop.f32.mrf.mxu0
      %v1572 = vadd.f32 %v955, %v1571
      %1573 = vmatmul.f32.gmra.mxu0 %v1308
      %v1574 = vpop.f32.mrf.mxu0
      %v1575 = vadd.f32 %v958, %v1574
      %1576 = vmatmul.f32.gmra.mxu0 %v1310
      %v1577 = vpop.f32.mrf.mxu0
      %v1578 = vadd.f32 %v961, %v1577
      %1579 = vmatmul.f32.gmra.mxu0 %v1312
      %v1580 = vpop.f32.mrf.mxu0
      %v1581 = vadd.f32 %v964, %v1580
      %1582 = vmatmul.f32.gmra.mxu0 %v1314
      %v1583 = vpop.f32.mrf.mxu0
      %v1584 = vadd.f32 %v967, %v1583
      %1585 = vmatmul.f32.gmra.mxu0 %v1316
      %v1586 = vpop.f32.mrf.mxu0
      %v1587 = vadd.f32 %v970, %v1586
      %1588 = vmatmul.f32.gmra.mxu0 %v1318
      %v1589 = vpop.f32.mrf.mxu0
      %v1590 = vadd.f32 %v973, %v1589
      %1591 = vmatmul.f32.gmra.mxu0 %v1320
      %v1592 = vpop.f32.mrf.mxu0
      %v1593 = vadd.f32 %v976, %v1592
      %1594 = vmatmul.f32.gmra.mxu0 %v1322
      %v1595 = vpop.f32.mrf.mxu0
      %v1596 = vadd.f32 %v979, %v1595
      %1597 = vmatmul.f32.gmra.mxu0 %v1324
      %v1598 = vpop.f32.mrf.mxu0
      %v1599 = vadd.f32 %v982, %v1598
      %1600 = vmatmul.f32.gmra.mxu0 %v1326
      %v1601 = vpop.f32.mrf.mxu0
      %v1602 = vadd.f32 %v985, %v1601
      %1603 = vmatmul.f32.gmra.mxu0 %v1328
      %v1604 = vpop.f32.mrf.mxu0
      %v1605 = vadd.f32 %v988, %v1604
      %1606 = vmatmul.f32.gmra.mxu0 %v1330
      %v1607 = vpop.f32.mrf.mxu0
      %v1608 = vadd.f32 %v991, %v1607
      %1609 = vmatmul.f32.gmra.mxu0 %v1332
      %v1610 = vpop.f32.mrf.mxu0
      %v1611 = vadd.f32 %v994, %v1610
      %1612 = vmatmul.f32.gmra.mxu0 %v1334
      %v1613 = vpop.f32.mrf.mxu0
      %v1614 = vadd.f32 %v997, %v1613
      %1615 = vmatmul.f32.gmra.mxu0 %v1336
      %v1616 = vpop.f32.mrf.mxu0
      %v1617 = vadd.f32 %v1000, %v1616
      %1618 = vmatmul.f32.gmra.mxu0 %v1338
      %v1619 = vpop.f32.mrf.mxu0
      %v1620 = vadd.f32 %v1003, %v1619
      %1621 = vmatmul.f32.gmra.mxu0 %v1340
      %v1622 = vpop.f32.mrf.mxu0
      %v1623 = vadd.f32 %v1006, %v1622
      %1624 = vmatmul.f32.gmra.mxu0 %v1342
      %v1625 = vpop.f32.mrf.mxu0
      %v1626 = vadd.f32 %v1009, %v1625
      %1627 = vmatmul.f32.gmra.mxu0 %v1344
      %v1628 = vpop.f32.mrf.mxu0
      %v1629 = vadd.f32 %v1012, %v1628
      %1630 = vmatmul.f32.gmra.mxu0 %v1346
      %v1631 = vpop.f32.mrf.mxu0
      %v1632 = vadd.f32 %v1015, %v1631
      %1633 = vmatmul.f32.gmra.mxu0 %v1348
      %v1634 = vpop.f32.mrf.mxu0
      %v1635 = vadd.f32 %v1018, %v1634
      %1636 = vmatmul.f32.gmra.mxu0 %v1350
      %v1637 = vpop.f32.mrf.mxu0
      %v1638 = vadd.f32 %v1021, %v1637
      %1639 = vmatmul.f32.gmra.mxu0 %v1352
      %v1640 = vpop.f32.mrf.mxu0
      %v1641 = vadd.f32 %v1024, %v1640
      %1642 = vmatmul.f32.gmra.mxu0 %v1354
      %v1643 = vpop.f32.mrf.mxu0
      %v1644 = vadd.f32 %v1027, %v1643
      %1645 = vmatmul.f32.gmra.mxu0 %v1356
      %v1646 = vpop.f32.mrf.mxu0
      %v1647 = vadd.f32 %v1030, %v1646
      %1648 = vmatmul.f32.gmra.mxu0 %v1358
      %v1649 = vpop.f32.mrf.mxu0
      %v1650 = vadd.f32 %v1033, %v1649
      %1651 = vmatmul.f32.gmra.mxu0 %v1360
      %v1652 = vpop.f32.mrf.mxu0
      %v1653 = vadd.f32 %v1036, %v1652
      %1654 = vmatmul.f32.gmra.mxu0 %v1362
      %v1655 = vpop.f32.mrf.mxu0
      %v1656 = vadd.f32 %v1039, %v1655
      %1657 = vmatmul.f32.gmra.mxu0 %v1364
      %v1658 = vpop.f32.mrf.mxu0
      %v1659 = vadd.f32 %v1042, %v1658
      %1660 = vmatmul.f32.gmra.mxu0 %v1366
      %v1661 = vpop.f32.mrf.mxu0
      %v1662 = vadd.f32 %v1045, %v1661
      %1663 = vmatmul.f32.gmra.mxu0 %v1368
      %v1664 = vpop.f32.mrf.mxu0
      %v1665 = vadd.f32 %v1048, %v1664
      %1666 = vmatmul.f32.gmra.mxu0 %v1370
      %v1667 = vpop.f32.mrf.mxu0
      %v1668 = vadd.f32 %v1051, %v1667
      %1669 = vmatmul.f32.gmra.mxu0 %v1372
      %v1670 = vpop.f32.mrf.mxu0
      %v1671 = vadd.f32 %v1054, %v1670
      %1672 = vmatmul.f32.gmra.mxu0 %v1374
      %v1673 = vpop.f32.mrf.mxu0
      %v1674 = vadd.f32 %v1057, %v1673
      %1675 = vmatmul.f32.gmra.mxu0 %v1376
      %v1676 = vpop.f32.mrf.mxu0
      %v1677 = vadd.f32 %v1060, %v1676
      %1678 = vmatmul.f32.gmra.mxu0 %v1378
      %v1679 = vpop.f32.mrf.mxu0
      %v1680 = vadd.f32 %v1063, %v1679
      %1681 = vmatmul.f32.gmra.mxu0 %v1380
      %v1682 = vpop.f32.mrf.mxu0
      %v1683 = vadd.f32 %v1066, %v1682
      %1684 = vmatmul.f32.gmra.mxu0 %v1382
      %v1685 = vpop.f32.mrf.mxu0
      %v1686 = vadd.f32 %v1069, %v1685
      %1687 = vmatmul.f32.gmra.mxu0 %v1384
      %v1688 = vpop.f32.mrf.mxu0
      %v1689 = vadd.f32 %v1072, %v1688
      %1690 = vmatmul.f32.gmra.mxu0 %v1386
      %v1691 = vpop.f32.mrf.mxu0
      %v1692 = vadd.f32 %v1075, %v1691
      %1693 = vmatmul.f32.gmra.mxu0 %v1388
      %v1694 = vpop.f32.mrf.mxu0
      %v1695 = vadd.f32 %v1078, %v1694
      %1696 = vmatmul.f32.gmra.mxu0 %v1390
      %v1697 = vpop.f32.mrf.mxu0
      %v1698 = vadd.f32 %v1081, %v1697
      %1699 = vmatmul.f32.gmra.mxu0 %v1392
      %v1700 = vpop.f32.mrf.mxu0
      %v1701 = vadd.f32 %v1084, %v1700
      %1702 = vmatmul.f32.gmra.mxu0 %v1394
      %v1703 = vpop.f32.mrf.mxu0
      %v1704 = vadd.f32 %v1087, %v1703
      %1705 = vmatmul.f32.gmra.mxu0 %v1396
      %v1706 = vpop.f32.mrf.mxu0
      %v1707 = vadd.f32 %v1090, %v1706
      %1708 = vmatmul.f32.gmra.mxu0 %v1398
      %v1709 = vpop.f32.mrf.mxu0
      %v1710 = vadd.f32 %v1093, %v1709
      %1711 = vmatmul.f32.gmra.mxu0 %v1400
      %v1712 = vpop.f32.mrf.mxu0
      %v1713 = vadd.f32 %v1096, %v1712
      %1714 = vmatmul.f32.gmra.mxu0 %v1402
      %v1715 = vpop.f32.mrf.mxu0
      %v1716 = vadd.f32 %v1099, %v1715
      %1717 = vmatmul.f32.gmra.mxu0 %v1404
      %v1718 = vpop.f32.mrf.mxu0
      %v1719 = vadd.f32 %v1102, %v1718
      %1720 = vmatmul.f32.gmra.mxu0 %v1406
      %v1721 = vpop.f32.mrf.mxu0
      %v1722 = vadd.f32 %v1105, %v1721
      %1723 = vmatmul.f32.gmra.mxu0 %v1408
      %v1724 = vpop.f32.mrf.mxu0
      %v1725 = vadd.f32 %v1108, %v1724
      %1726 = vmatmul.f32.gmra.mxu0 %v1410
      %v1727 = vpop.f32.mrf.mxu0
      %v1728 = vadd.f32 %v1111, %v1727
      %1729 = vmatmul.f32.gmra.mxu0 %v1412
      %v1730 = vpop.f32.mrf.mxu0
      %v1731 = vadd.f32 %v1114, %v1730
      %1732 = vmatmul.f32.gmra.mxu0 %v1414
      %v1733 = vpop.f32.mrf.mxu0
      %v1734 = vadd.f32 %v1117, %v1733
      %1735 = vmatmul.f32.gmra.mxu0 %v1416
      %v1736 = vpop.f32.mrf.mxu0
      %v1737 = vadd.f32 %v1120, %v1736
      %1738 = vmatmul.f32.gmra.mxu0 %v1418
      %v1739 = vpop.f32.mrf.mxu0
      %v1740 = vadd.f32 %v1123, %v1739
      %1741 = vmatmul.f32.gmra.mxu0 %v1420
      %v1742 = vpop.f32.mrf.mxu0
      %v1743 = vadd.f32 %v1126, %v1742
      %1744 = vmatmul.f32.gmra.mxu0 %v1422
      %v1745 = vpop.f32.mrf.mxu0
      %v1746 = vadd.f32 %v1129, %v1745
      %1747 = vmatmul.f32.gmra.mxu0 %v1424
      %v1748 = vpop.f32.mrf.mxu0
      %v1749 = vadd.f32 %v1132, %v1748
      %1750 = vmatmul.f32.gmra.mxu0 %v1426
      %v1751 = vpop.f32.mrf.mxu0
      %v1752 = vadd.f32 %v1135, %v1751
      %1753 = vmatmul.f32.gmra.mxu0 %v1428
      %v1754 = vpop.f32.mrf.mxu0
      %v1755 = vadd.f32 %v1138, %v1754
      %1756 = vmatmul.f32.gmra.mxu0 %v1430
      %v1757 = vpop.f32.mrf.mxu0
      %v1758 = vadd.f32 %v1141, %v1757
      %1759 = vmatmul.f32.gmra.mxu0 %v1432
      %v1760 = vpop.f32.mrf.mxu0
      %v1761 = vadd.f32 %v1144, %v1760
      %1762 = vmatmul.f32.gmra.mxu0 %v1434
      %v1763 = vpop.f32.mrf.mxu0
      %v1764 = vadd.f32 %v1147, %v1763
      %1765 = vmatmul.f32.gmra.mxu0 %v1436
      %v1766 = vpop.f32.mrf.mxu0
      %v1767 = vadd.f32 %v1150, %v1766
      %1768 = vmatmul.f32.gmra.mxu0 %v1438
      %v1769 = vpop.f32.mrf.mxu0
      %v1770 = vadd.f32 %v1153, %v1769
      %1771 = vmatmul.f32.gmra.mxu0 %v1440
      %v1772 = vpop.f32.mrf.mxu0
      %v1773 = vadd.f32 %v1156, %v1772
      %1774 = vmatmul.f32.gmra.mxu0 %v1442
      %v1775 = vpop.f32.mrf.mxu0
      %v1776 = vadd.f32 %v1159, %v1775
      %1777 = vmatmul.f32.gmra.mxu0 %v1444
      %v1778 = vpop.f32.mrf.mxu0
      %v1779 = vadd.f32 %v1162, %v1778
      %1780 = vmatmul.f32.gmra.mxu0 %v1446
      %v1781 = vpop.f32.mrf.mxu0
      %v1782 = vadd.f32 %v1165, %v1781
      %1783 = vmatmul.f32.gmra.mxu0 %v1448
      %v1784 = vpop.f32.mrf.mxu0
      %v1785 = vadd.f32 %v1168, %v1784
      %1786 = vmatmul.f32.gmra.mxu0 %v1450
      %v1787 = vpop.f32.mrf.mxu0
      %v1788 = vadd.f32 %v1171, %v1787
      %1789 = vmatmul.f32.gmra.mxu0 %v1452
      %v1790 = vpop.f32.mrf.mxu0
      %v1791 = vadd.f32 %v1174, %v1790
      %1792 = vmatmul.f32.gmra.mxu0 %v1454
      %v1793 = vpop.f32.mrf.mxu0
      %v1794 = vadd.f32 %v1177, %v1793
      %1795 = vmatmul.f32.gmra.mxu0 %v1456
      %v1796 = vpop.f32.mrf.mxu0
      %v1797 = vadd.f32 %v1180, %v1796
      %1798 = vmatmul.f32.gmra.mxu0 %v1458
      %v1799 = vpop.f32.mrf.mxu0
      %v1800 = vadd.f32 %v1183, %v1799
      %1801 = vmatmul.f32.gmra.mxu0 %v1460
      %v1802 = vpop.f32.mrf.mxu0
      %v1803 = vadd.f32 %v1186, %v1802
      %1804 = vmatmul.f32.gmra.mxu0 %v1462
      %v1805 = vpop.f32.mrf.mxu0
      %v1806 = vadd.f32 %v1189, %v1805
      %1807 = vmatmul.f32.gmra.mxu0 %v1464
      %v1808 = vpop.f32.mrf.mxu0
      %v1809 = vadd.f32 %v1192, %v1808
      %1810 = vmatmul.f32.gmra.mxu0 %v1466
      %v1811 = vpop.f32.mrf.mxu0
      %v1812 = vadd.f32 %v1195, %v1811
      %1813 = vmatmul.f32.gmra.mxu0 %v1468
      %v1814 = vpop.f32.mrf.mxu0
      %v1815 = vadd.f32 %v1198, %v1814
      %1816 = vmatmul.f32.gmra.mxu0 %v1470
      %v1817 = vpop.f32.mrf.mxu0
      %v1818 = vadd.f32 %v1201, %v1817
      %1819 = vmatmul.f32.gmra.mxu0 %v1472
      %v1820 = vpop.f32.mrf.mxu0
      %v1821 = vadd.f32 %v1204, %v1820
      %1822 = vmatmul.f32.gmra.mxu0 %v1474
      %v1823 = vpop.f32.mrf.mxu0
      %v1824 = vadd.f32 %v1207, %v1823
      %1825 = vmatmul.f32.gmra.mxu0 %v1476
      %v1826 = vpop.f32.mrf.mxu0
      %v1827 = vadd.f32 %v1210, %v1826
      %1828 = vmatmul.f32.gmra.mxu0 %v1478
      %v1829 = vpop.f32.mrf.mxu0
      %v1830 = vadd.f32 %v1213, %v1829
      %1831 = vmatmul.f32.gmra.mxu0 %v1480
      %v1832 = vpop.f32.mrf.mxu0
      %v1833 = vadd.f32 %v1216, %v1832
      %1834 = vmatmul.f32.gmra.mxu0 %v1482
      %v1835 = vpop.f32.mrf.mxu0
      %v1836 = vadd.f32 %v1219, %v1835
      %1837 = vmatmul.f32.gmra.mxu0 %v1484
      %v1838 = vpop.f32.mrf.mxu0
      %v1839 = vadd.f32 %v1222, %v1838
      %1840 = vmatmul.f32.gmra.mxu0 %v1486
      %v1841 = vpop.f32.mrf.mxu0
      %v1842 = vadd.f32 %v1225, %v1841
      %1843 = vmatmul.f32.gmra.mxu0 %v1488
      %v1844 = vpop.f32.mrf.mxu0
      %v1845 = vadd.f32 %v1228, %v1844
      %1846 = vmatmul.f32.gmra.mxu0 %v1490
      %v1847 = vpop.f32.mrf.mxu0
      %v1848 = vadd.f32 %v1231, %v1847
      %1849 = vmatmul.f32.gmra.mxu0 %v1492
      %v1850 = vpop.f32.mrf.mxu0
      %v1851 = vadd.f32 %v1234, %v1850
      %1852 = vmatmul.f32.gmra.mxu0 %v1494
      %v1853 = vpop.f32.mrf.mxu0
      %v1854 = vadd.f32 %v1237, %v1853
      %1855 = vmatmul.f32.gmra.mxu0 %v1496
      %v1856 = vpop.f32.mrf.mxu0
      %v1857 = vadd.f32 %v1240, %v1856
      %1858 = vmatmul.f32.gmra.mxu0 %v1498
      %v1859 = vpop.f32.mrf.mxu0
      %v1860 = vadd.f32 %v1243, %v1859
      %1861 = vmatmul.f32.gmra.mxu0 %v1500
      %v1862 = vpop.f32.mrf.mxu0
      %v1863 = vadd.f32 %v1246, %v1862
      %1864 = vmatmul.f32.gmra.mxu0 %v1502
      %v1865 = vpop.f32.mrf.mxu0
      %v1866 = vadd.f32 %v1249, %v1865
      %1867 = vmatmul.f32.gmra.mxu0 %v1504
      %v1868 = vpop.f32.mrf.mxu0
      %v1869 = vadd.f32 %v1252, %v1868
      %1870 = vmatmul.f32.gmra.mxu0 %v1506
      %v1871 = vpop.f32.mrf.mxu0
      %v1872 = vadd.f32 %v1255, %v1871
      %1873 = vmatmul.f32.gmra.mxu0 %v1508
      %v1874 = vpop.f32.mrf.mxu0
      %v1875 = vadd.f32 %v1258, %v1874
      %1876 = vmatmul.f32.gmra.mxu0 %v1510
      %v1877 = vpop.f32.mrf.mxu0
      %v1878 = vadd.f32 %v1261, %v1877
      %1879 = vmatmul.f32.gmra.mxu0 %v1512
      %v1880 = vpop.f32.mrf.mxu0
      %v1881 = vadd.f32 %v1264, %v1880
      %1882 = vmatmul.f32.gmra.mxu0 %v1514
      %v1883 = vpop.f32.mrf.mxu0
      %v1884 = vadd.f32 %v1267, %v1883
      %1885 = vmatmul.f32.gmra.mxu0 %v1516
      %v1886 = vpop.f32.mrf.mxu0
      %v1887 = vadd.f32 %v1270, %v1886
      %1888 = vmatmul.f32.gmra.mxu0 %v1518
      %v1889 = vpop.f32.mrf.mxu0
      %v1890 = vadd.f32 %v1273, %v1889
      %1891 = vmatmul.f32.gmra.mxu0 %v1520
      %v1892 = vpop.f32.mrf.mxu0
      %v1893 = vadd.f32 %v1276, %v1892
      %1894 = vmatmul.f32.gmra.mxu0 %v1522
      %v1895 = vpop.f32.mrf.mxu0
      %v1896 = vadd.f32 %v1279, %v1895
      %1897 = vmatmul.f32.gmra.mxu0 %v1524
      %v1898 = vpop.f32.mrf.mxu0
      %v1899 = vadd.f32 %v1282, %v1898
      %1900 = vmatmul.f32.gmra.mxu0 %v1526
      %v1901 = vpop.f32.mrf.mxu0
      %v1902 = vadd.f32 %v1285, %v1901
      %1903 = vmatmul.f32.gmra.mxu0 %v1528
      %v1904 = vpop.f32.mrf.mxu0
      %v1905 = vadd.f32 %v1288, %v1904
      %1906 = vdwg.mxu0
      %vm1907 = vcmask 1045504
      %v1908 = vrot.slane %v171, 2
      %v1909 = vrot.slane %v172, 2
      %v1910 = vsel %vm1907, %v1908, %v1909
      %v1911 = vrot.slane %v173, 2
      %v1912 = vsel %vm1907, %v1909, %v1911
      %v1913 = vrot.slane %v174, 2
      %v1914 = vsel %vm1907, %v1911, %v1913
      %v1915 = vrot.slane %v175, 2
      %v1916 = vsel %vm1907, %v1913, %v1915
      %v1917 = vrot.slane %v176, 2
      %v1918 = vsel %vm1907, %v1915, %v1917
      %v1919 = vrot.slane %v177, 2
      %v1920 = vsel %vm1907, %v1917, %v1919
      %v1921 = vrot.slane %v178, 2
      %v1922 = vsel %vm1907, %v1919, %v1921
      %v1923 = vrot.slane %v179, 2
      %v1924 = vsel %vm1907, %v1921, %v1923
      %v1925 = vrot.slane %v180, 2
      %v1926 = vsel %vm1907, %v1923, %v1925
      %v1927 = vrot.slane %v181, 2
      %v1928 = vsel %vm1907, %v1925, %v1927
      %v1929 = vrot.slane %v182, 2
      %v1930 = vsel %vm1907, %v1927, %v1929
      %v1931 = vrot.slane %v183, 2
      %v1932 = vsel %vm1907, %v1929, %v1931
      %v1933 = vrot.slane %v184, 2
      %v1934 = vsel %vm1907, %v1931, %v1933
      %v1935 = vrot.slane %v185, 2
      %v1936 = vsel %vm1907, %v1933, %v1935
      %v1937 = vrot.slane %v186, 2
      %v1938 = vsel %vm1907, %v1935, %v1937
      %v1939 = vrot.slane %v187, 2
      %v1940 = vsel %vm1907, %v1937, %v1939
      %v1941 = vrot.slane %v188, 2
      %v1942 = vsel %vm1907, %v1939, %v1941
      %v1943 = vrot.slane %v189, 2
      %v1944 = vsel %vm1907, %v1941, %v1943
      %v1945 = vrot.slane %v190, 2
      %v1946 = vsel %vm1907, %v1943, %v1945
      %v1947 = vrot.slane %v191, 2
      %v1948 = vsel %vm1907, %v1945, %v1947
      %v1949 = vrot.slane %v192, 2
      %v1950 = vsel %vm1907, %v1947, %v1949
      %v1951 = vrot.slane %v193, 2
      %v1952 = vsel %vm1907, %v1949, %v1951
      %v1953 = vrot.slane %v194, 2
      %v1954 = vsel %vm1907, %v1951, %v1953
      %v1955 = vrot.slane %v195, 2
      %v1956 = vsel %vm1907, %v1953, %v1955
      %v1957 = vrot.slane %v196, 2
      %v1958 = vsel %vm1907, %v1955, %v1957
      %v1959 = vrot.slane %v197, 2
      %v1960 = vsel %vm1907, %v1957, %v1959
      %v1961 = vrot.slane %v198, 2
      %v1962 = vsel %vm1907, %v1959, %v1961
      %v1963 = vrot.slane %v199, 2
      %v1964 = vsel %vm1907, %v1961, %v1963
      %v1965 = vrot.slane %v200, 2
      %v1966 = vsel %vm1907, %v1963, %v1965
      %v1967 = vrot.slane %v201, 2
      %v1968 = vsel %vm1907, %v1965, %v1967
      %v1969 = vrot.slane %v202, 2
      %v1970 = vsel %vm1907, %v1967, %v1969
      %v1971 = vrot.slane %v203, 2
      %v1972 = vsel %vm1907, %v1969, %v1971
      %v1973 = vrot.slane %v204, 2
      %v1974 = vsel %vm1907, %v1971, %v1973
      %v1975 = vrot.slane %v205, 2
      %v1976 = vsel %vm1907, %v1973, %v1975
      %v1977 = vrot.slane %v206, 2
      %v1978 = vsel %vm1907, %v1975, %v1977
      %v1979 = vrot.slane %v207, 2
      %v1980 = vsel %vm1907, %v1977, %v1979
      %v1981 = vrot.slane %v208, 2
      %v1982 = vsel %vm1907, %v1979, %v1981
      %v1983 = vrot.slane %v209, 2
      %v1984 = vsel %vm1907, %v1981, %v1983
      %v1985 = vrot.slane %v210, 2
      %v1986 = vsel %vm1907, %v1983, %v1985
      %v1987 = vrot.slane %v211, 2
      %v1988 = vsel %vm1907, %v1985, %v1987
      %v1989 = vrot.slane %v212, 2
      %v1990 = vsel %vm1907, %v1987, %v1989
      %v1991 = vrot.slane %v213, 2
      %v1992 = vsel %vm1907, %v1989, %v1991
      %v1993 = vrot.slane %v214, 2
      %v1994 = vsel %vm1907, %v1991, %v1993
      %v1995 = vrot.slane %v215, 2
      %v1996 = vsel %vm1907, %v1993, %v1995
      %v1997 = vrot.slane %v216, 2
      %v1998 = vsel %vm1907, %v1995, %v1997
      %v1999 = vrot.slane %v217, 2
      %v2000 = vsel %vm1907, %v1997, %v1999
      %v2001 = vrot.slane %v218, 2
      %v2002 = vsel %vm1907, %v1999, %v2001
      %v2003 = vrot.slane %v219, 2
      %v2004 = vsel %vm1907, %v2001, %v2003
      %v2005 = vrot.slane %v220, 2
      %v2006 = vsel %vm1907, %v2003, %v2005
      %v2007 = vrot.slane %v221, 2
      %v2008 = vsel %vm1907, %v2005, %v2007
      %v2009 = vrot.slane %v222, 2
      %v2010 = vsel %vm1907, %v2007, %v2009
      %v2011 = vrot.slane %v223, 2
      %v2012 = vsel %vm1907, %v2009, %v2011
      %v2013 = vrot.slane %v224, 2
      %v2014 = vsel %vm1907, %v2011, %v2013
      %v2015 = vrot.slane %v225, 2
      %v2016 = vsel %vm1907, %v2013, %v2015
      %v2017 = vrot.slane %v226, 2
      %v2018 = vsel %vm1907, %v2015, %v2017
      %v2019 = vrot.slane %v227, 2
      %v2020 = vsel %vm1907, %v2017, %v2019
      %v2021 = vrot.slane %v228, 2
      %v2022 = vsel %vm1907, %v2019, %v2021
      %v2023 = vrot.slane %v229, 2
      %v2024 = vsel %vm1907, %v2021, %v2023
      %v2025 = vrot.slane %v230, 2
      %v2026 = vsel %vm1907, %v2023, %v2025
      %v2027 = vrot.slane %v231, 2
      %v2028 = vsel %vm1907, %v2025, %v2027
      %v2029 = vrot.slane %v232, 2
      %v2030 = vsel %vm1907, %v2027, %v2029
      %v2031 = vrot.slane %v233, 2
      %v2032 = vsel %vm1907, %v2029, %v2031
      %v2033 = vrot.slane %v234, 2
      %v2034 = vsel %vm1907, %v2031, %v2033
      %v2035 = vrot.slane %v235, 2
      %v2036 = vsel %vm1907, %v2033, %v2035
      %v2037 = vrot.slane %v236, 2
      %v2038 = vsel %vm1907, %v2035, %v2037
      %v2039 = vrot.slane %v237, 2
      %v2040 = vsel %vm1907, %v2037, %v2039
      %v2041 = vrot.slane %v238, 2
      %v2042 = vsel %vm1907, %v2039, %v2041
      %v2043 = vrot.slane %v239, 2
      %v2044 = vsel %vm1907, %v2041, %v2043
      %v2045 = vrot.slane %v240, 2
      %v2046 = vsel %vm1907, %v2043, %v2045
      %v2047 = vrot.slane %v241, 2
      %v2048 = vsel %vm1907, %v2045, %v2047
      %v2049 = vrot.slane %v242, 2
      %v2050 = vsel %vm1907, %v2047, %v2049
      %v2051 = vrot.slane %v243, 2
      %v2052 = vsel %vm1907, %v2049, %v2051
      %v2053 = vrot.slane %v244, 2
      %v2054 = vsel %vm1907, %v2051, %v2053
      %v2055 = vrot.slane %v245, 2
      %v2056 = vsel %vm1907, %v2053, %v2055
      %v2057 = vrot.slane %v246, 2
      %v2058 = vsel %vm1907, %v2055, %v2057
      %v2059 = vrot.slane %v247, 2
      %v2060 = vsel %vm1907, %v2057, %v2059
      %v2061 = vrot.slane %v248, 2
      %v2062 = vsel %vm1907, %v2059, %v2061
      %v2063 = vrot.slane %v249, 2
      %v2064 = vsel %vm1907, %v2061, %v2063
      %v2065 = vrot.slane %v250, 2
      %v2066 = vsel %vm1907, %v2063, %v2065
      %v2067 = vrot.slane %v251, 2
      %v2068 = vsel %vm1907, %v2065, %v2067
      %v2069 = vrot.slane %v252, 2
      %v2070 = vsel %vm1907, %v2067, %v2069
      %v2071 = vrot.slane %v253, 2
      %v2072 = vsel %vm1907, %v2069, %v2071
      %v2073 = vrot.slane %v254, 2
      %v2074 = vsel %vm1907, %v2071, %v2073
      %v2075 = vrot.slane %v255, 2
      %v2076 = vsel %vm1907, %v2073, %v2075
      %v2077 = vrot.slane %v256, 2
      %v2078 = vsel %vm1907, %v2075, %v2077
      %v2079 = vrot.slane %v257, 2
      %v2080 = vsel %vm1907, %v2077, %v2079
      %v2081 = vrot.slane %v258, 2
      %v2082 = vsel %vm1907, %v2079, %v2081
      %v2083 = vrot.slane %v259, 2
      %v2084 = vsel %vm1907, %v2081, %v2083
      %v2085 = vrot.slane %v260, 2
      %v2086 = vsel %vm1907, %v2083, %v2085
      %v2087 = vrot.slane %v261, 2
      %v2088 = vsel %vm1907, %v2085, %v2087
      %v2089 = vrot.slane %v262, 2
      %v2090 = vsel %vm1907, %v2087, %v2089
      %v2091 = vrot.slane %v263, 2
      %v2092 = vsel %vm1907, %v2089, %v2091
      %v2093 = vrot.slane %v264, 2
      %v2094 = vsel %vm1907, %v2091, %v2093
      %v2095 = vrot.slane %v265, 2
      %v2096 = vsel %vm1907, %v2093, %v2095
      %v2097 = vrot.slane %v266, 2
      %v2098 = vsel %vm1907, %v2095, %v2097
      %v2099 = vrot.slane %v267, 2
      %v2100 = vsel %vm1907, %v2097, %v2099
      %v2101 = vrot.slane %v268, 2
      %v2102 = vsel %vm1907, %v2099, %v2101
      %v2103 = vrot.slane %v269, 2
      %v2104 = vsel %vm1907, %v2101, %v2103
      %v2105 = vrot.slane %v270, 2
      %v2106 = vsel %vm1907, %v2103, %v2105
      %v2107 = vrot.slane %v271, 2
      %v2108 = vsel %vm1907, %v2105, %v2107
      %v2109 = vrot.slane %v272, 2
      %v2110 = vsel %vm1907, %v2107, %v2109
      %v2111 = vrot.slane %v273, 2
      %v2112 = vsel %vm1907, %v2109, %v2111
      %v2113 = vrot.slane %v274, 2
      %v2114 = vsel %vm1907, %v2111, %v2113
      %v2115 = vrot.slane %v275, 2
      %v2116 = vsel %vm1907, %v2113, %v2115
      %v2117 = vrot.slane %v276, 2
      %v2118 = vsel %vm1907, %v2115, %v2117
      %v2119 = vrot.slane %v277, 2
      %v2120 = vsel %vm1907, %v2117, %v2119
      %v2121 = vrot.slane %v278, 2
      %v2122 = vsel %vm1907, %v2119, %v2121
      %v2123 = vrot.slane %v279, 2
      %v2124 = vsel %vm1907, %v2121, %v2123
      %v2125 = vrot.slane %v280, 2
      %v2126 = vsel %vm1907, %v2123, %v2125
      %v2127 = vrot.slane %v281, 2
      %v2128 = vsel %vm1907, %v2125, %v2127
      %v2129 = vrot.slane %v282, 2
      %v2130 = vsel %vm1907, %v2127, %v2129
      %v2131 = vrot.slane %v283, 2
      %v2132 = vsel %vm1907, %v2129, %v2131
      %v2133 = vrot.slane %v284, 2
      %v2134 = vsel %vm1907, %v2131, %v2133
      %v2135 = vrot.slane %v285, 2
      %v2136 = vsel %vm1907, %v2133, %v2135
      %v2137 = vrot.slane %v286, 2
      %v2138 = vsel %vm1907, %v2135, %v2137
      %v2139 = vrot.slane %v287, 2
      %v2140 = vsel %vm1907, %v2137, %v2139
      %v2141 = vrot.slane %v288, 2
      %v2142 = vsel %vm1907, %v2139, %v2141
      %v2143 = vrot.slane %v289, 2
      %v2144 = vsel %vm1907, %v2141, %v2143
      %v2145 = vrot.slane %v290, 2
      %v2146 = vsel %vm1907, %v2143, %v2145
      %v2147 = vrot.slane %v291, 2
      %v2148 = vsel %vm1907, %v2145, %v2147
      %v2149 = vsel %vm672, %v1910, 0
      %v2151 = vsel %vm672, %v1912, 0
      %v2153 = vsel %vm672, %v1914, 0
      %v2155 = vsel %vm672, %v1916, 0
      %v2157 = vsel %vm672, %v1918, 0
      %v2159 = vsel %vm672, %v1920, 0
      %v2161 = vsel %vm672, %v1922, 0
      %v2163 = vsel %vm672, %v1924, 0
      %v2165 = vsel %vm672, %v1926, 0
      %v2167 = vsel %vm672, %v1928, 0
      %v2169 = vsel %vm672, %v1930, 0
      %v2171 = vsel %vm672, %v1932, 0
      %v2173 = vsel %vm672, %v1934, 0
      %v2175 = vsel %vm672, %v1936, 0
      %v2177 = vsel %vm672, %v1938, 0
      %v2179 = vsel %vm672, %v1940, 0
      %v2181 = vsel %vm672, %v1942, 0
      %v2183 = vsel %vm672, %v1944, 0
      %v2185 = vsel %vm672, %v1946, 0
      %v2187 = vsel %vm672, %v1948, 0
      %v2189 = vsel %vm672, %v1950, 0
      %v2191 = vsel %vm672, %v1952, 0
      %v2193 = vsel %vm672, %v1954, 0
      %v2195 = vsel %vm672, %v1956, 0
      %v2197 = vsel %vm672, %v1958, 0
      %v2199 = vsel %vm672, %v1960, 0
      %v2201 = vsel %vm672, %v1962, 0
      %v2203 = vsel %vm672, %v1964, 0
      %v2205 = vsel %vm672, %v1966, 0
      %v2207 = vsel %vm672, %v1968, 0
      %v2209 = vsel %vm672, %v1970, 0
      %v2211 = vsel %vm672, %v1972, 0
      %v2213 = vsel %vm672, %v1974, 0
      %v2215 = vsel %vm672, %v1976, 0
      %v2217 = vsel %vm672, %v1978, 0
      %v2219 = vsel %vm672, %v1980, 0
      %v2221 = vsel %vm672, %v1982, 0
      %v2223 = vsel %vm672, %v1984, 0
      %v2225 = vsel %vm672, %v1986, 0
      %v2227 = vsel %vm672, %v1988, 0
      %v2229 = vsel %vm672, %v1990, 0
      %v2231 = vsel %vm672, %v1992, 0
      %v2233 = vsel %vm672, %v1994, 0
      %v2235 = vsel %vm672, %v1996, 0
      %v2237 = vsel %vm672, %v1998, 0
      %v2239 = vsel %vm672, %v2000, 0
      %v2241 = vsel %vm672, %v2002, 0
      %v2243 = vsel %vm672, %v2004, 0
      %v2245 = vsel %vm672, %v2006, 0
      %v2247 = vsel %vm672, %v2008, 0
      %v2249 = vsel %vm672, %v2010, 0
      %v2251 = vsel %vm672, %v2012, 0
      %v2253 = vsel %vm672, %v2014, 0
      %v2255 = vsel %vm672, %v2016, 0
      %v2257 = vsel %vm672, %v2018, 0
      %v2259 = vsel %vm672, %v2020, 0
      %v2261 = vsel %vm672, %v2022, 0
      %v2263 = vsel %vm672, %v2024, 0
      %v2265 = vsel %vm672, %v2026, 0
      %v2267 = vsel %vm672, %v2028, 0
      %v2269 = vsel %vm672, %v2030, 0
      %v2271 = vsel %vm672, %v2032, 0
      %v2273 = vsel %vm672, %v2034, 0
      %v2275 = vsel %vm672, %v2036, 0
      %v2277 = vsel %vm672, %v2038, 0
      %v2279 = vsel %vm672, %v2040, 0
      %v2281 = vsel %vm672, %v2042, 0
      %v2283 = vsel %vm672, %v2044, 0
      %v2285 = vsel %vm672, %v2046, 0
      %v2287 = vsel %vm672, %v2048, 0
      %v2289 = vsel %vm672, %v2050, 0
      %v2291 = vsel %vm672, %v2052, 0
      %v2293 = vsel %vm672, %v2054, 0
      %v2295 = vsel %vm672, %v2056, 0
      %v2297 = vsel %vm672, %v2058, 0
      %v2299 = vsel %vm672, %v2060, 0
      %v2301 = vsel %vm672, %v2062, 0
      %v2303 = vsel %vm672, %v2064, 0
      %v2305 = vsel %vm672, %v2066, 0
      %v2307 = vsel %vm672, %v2068, 0
      %v2309 = vsel %vm672, %v2070, 0
      %v2311 = vsel %vm672, %v2072, 0
      %v2313 = vsel %vm672, %v2074, 0
      %v2315 = vsel %vm672, %v2076, 0
      %v2317 = vsel %vm672, %v2078, 0
      %v2319 = vsel %vm672, %v2080, 0
      %v2321 = vsel %vm672, %v2082, 0
      %v2323 = vsel %vm672, %v2084, 0
      %v2325 = vsel %vm672, %v2086, 0
      %v2327 = vsel %vm672, %v2088, 0
      %v2329 = vsel %vm672, %v2090, 0
      %v2331 = vsel %vm672, %v2092, 0
      %v2333 = vsel %vm672, %v2094, 0
      %v2335 = vsel %vm672, %v2096, 0
      %v2337 = vsel %vm672, %v2098, 0
      %v2339 = vsel %vm672, %v2100, 0
      %v2341 = vsel %vm672, %v2102, 0
      %v2343 = vsel %vm672, %v2104, 0
      %v2345 = vsel %vm672, %v2106, 0
      %v2347 = vsel %vm672, %v2108, 0
      %v2349 = vsel %vm672, %v2110, 0
      %v2351 = vsel %vm672, %v2112, 0
      %v2353 = vsel %vm672, %v2114, 0
      %v2355 = vsel %vm672, %v2116, 0
      %v2357 = vsel %vm672, %v2118, 0
      %v2359 = vsel %vm672, %v2120, 0
      %v2361 = vsel %vm672, %v2122, 0
      %v2363 = vsel %vm672, %v2124, 0
      %v2365 = vsel %vm672, %v2126, 0
      %v2367 = vsel %vm672, %v2128, 0
      %v2369 = vsel %vm672, %v2130, 0
      %v2371 = vsel %vm672, %v2132, 0
      %v2373 = vsel %vm672, %v2134, 0
      %v2375 = vsel %vm672, %v2136, 0
      %v2377 = vsel %vm672, %v2138, 0
      %v2379 = vsel %vm672, %v2140, 0
      %v2381 = vsel %vm672, %v2142, 0
      %v2383 = vsel %vm672, %v2144, 0
      %v2385 = vsel %vm672, %v2146, 0
      %v2387 = vsel %vm672, %v2148, 0
      %2389 = vmatpush.msra.mxu0 0.0
      %2390 = vmatpush.msra.mxu0 0.0
      %2391 = vmatpush.msra.mxu0 0.0
      %2392 = vmatpush.msra.mxu0 0.0
      %2393 = vmatpush.msra.mxu0 0.0
      %2394 = vmatpush.msra.mxu0 0.0
      %2395 = vmatpush.msra.mxu0 0.0
      %2396 = vmatpush.msra.mxu0 0.0
      %2397 = vmatpush.msra.mxu0 0.0
      %2398 = vmatpush.msra.mxu0 0.0
      %2399 = vmatpush.msra.mxu0 0.0
      %2400 = vmatpush.msra.mxu0 0.0
      %2401 = vmatpush.msra.mxu0 0.0
      %2402 = vmatpush.msra.mxu0 0.0
      %2403 = vmatpush.msra.mxu0 0.0
      %2404 = vmatpush.msra.mxu0 %v302
      %2405 = vmatmul.f32.gmra.mxu0 %v2149
      %v2406 = vpop.f32.mrf.mxu0
      %v2407 = vadd.f32 0.0, %v2406
      %2408 = vmatmul.f32.gmra.mxu0 %v2151
      %v2409 = vpop.f32.mrf.mxu0
      %v2410 = vadd.f32 0.0, %v2409
      %2411 = vmatmul.f32.gmra.mxu0 %v2153
      %v2412 = vpop.f32.mrf.mxu0
      %v2413 = vadd.f32 0.0, %v2412
      %2414 = vmatmul.f32.gmra.mxu0 %v2155
      %v2415 = vpop.f32.mrf.mxu0
      %v2416 = vadd.f32 0.0, %v2415
      %2417 = vmatmul.f32.gmra.mxu0 %v2157
      %v2418 = vpop.f32.mrf.mxu0
      %v2419 = vadd.f32 0.0, %v2418
      %2420 = vmatmul.f32.gmra.mxu0 %v2159
      %v2421 = vpop.f32.mrf.mxu0
      %v2422 = vadd.f32 0.0, %v2421
      %2423 = vmatmul.f32.gmra.mxu0 %v2161
      %v2424 = vpop.f32.mrf.mxu0
      %v2425 = vadd.f32 0.0, %v2424
      %2426 = vmatmul.f32.gmra.mxu0 %v2163
      %v2427 = vpop.f32.mrf.mxu0
      %v2428 = vadd.f32 0.0, %v2427
      %2429 = vmatmul.f32.gmra.mxu0 %v2165
      %v2430 = vpop.f32.mrf.mxu0
      %v2431 = vadd.f32 0.0, %v2430
      %2432 = vmatmul.f32.gmra.mxu0 %v2167
      %v2433 = vpop.f32.mrf.mxu0
      %v2434 = vadd.f32 0.0, %v2433
      %2435 = vmatmul.f32.gmra.mxu0 %v2169
      %v2436 = vpop.f32.mrf.mxu0
      %v2437 = vadd.f32 0.0, %v2436
      %2438 = vmatmul.f32.gmra.mxu0 %v2171
      %v2439 = vpop.f32.mrf.mxu0
      %v2440 = vadd.f32 0.0, %v2439
      %2441 = vmatmul.f32.gmra.mxu0 %v2173
      %v2442 = vpop.f32.mrf.mxu0
      %v2443 = vadd.f32 0.0, %v2442
      %2444 = vmatmul.f32.gmra.mxu0 %v2175
      %v2445 = vpop.f32.mrf.mxu0
      %v2446 = vadd.f32 0.0, %v2445
      %2447 = vmatmul.f32.gmra.mxu0 %v2177
      %v2448 = vpop.f32.mrf.mxu0
      %v2449 = vadd.f32 0.0, %v2448
      %2450 = vmatmul.f32.gmra.mxu0 %v2179
      %v2451 = vpop.f32.mrf.mxu0
      %v2452 = vadd.f32 0.0, %v2451
      %2453 = vmatmul.f32.gmra.mxu0 %v2181
      %v2454 = vpop.f32.mrf.mxu0
      %v2455 = vadd.f32 0.0, %v2454
      %2456 = vmatmul.f32.gmra.mxu0 %v2183
      %v2457 = vpop.f32.mrf.mxu0
      %v2458 = vadd.f32 0.0, %v2457
      %2459 = vmatmul.f32.gmra.mxu0 %v2185
      %v2460 = vpop.f32.mrf.mxu0
      %v2461 = vadd.f32 0.0, %v2460
      %2462 = vmatmul.f32.gmra.mxu0 %v2187
      %v2463 = vpop.f32.mrf.mxu0
      %v2464 = vadd.f32 0.0, %v2463
      %2465 = vmatmul.f32.gmra.mxu0 %v2189
      %v2466 = vpop.f32.mrf.mxu0
      %v2467 = vadd.f32 0.0, %v2466
      %2468 = vmatmul.f32.gmra.mxu0 %v2191
      %v2469 = vpop.f32.mrf.mxu0
      %v2470 = vadd.f32 0.0, %v2469
      %2471 = vmatmul.f32.gmra.mxu0 %v2193
      %v2472 = vpop.f32.mrf.mxu0
      %v2473 = vadd.f32 0.0, %v2472
      %2474 = vmatmul.f32.gmra.mxu0 %v2195
      %v2475 = vpop.f32.mrf.mxu0
      %v2476 = vadd.f32 0.0, %v2475
      %2477 = vmatmul.f32.gmra.mxu0 %v2197
      %v2478 = vpop.f32.mrf.mxu0
      %v2479 = vadd.f32 0.0, %v2478
      %2480 = vmatmul.f32.gmra.mxu0 %v2199
      %v2481 = vpop.f32.mrf.mxu0
      %v2482 = vadd.f32 0.0, %v2481
      %2483 = vmatmul.f32.gmra.mxu0 %v2201
      %v2484 = vpop.f32.mrf.mxu0
      %v2485 = vadd.f32 0.0, %v2484
      %2486 = vmatmul.f32.gmra.mxu0 %v2203
      %v2487 = vpop.f32.mrf.mxu0
      %v2488 = vadd.f32 0.0, %v2487
      %2489 = vmatmul.f32.gmra.mxu0 %v2205
      %v2490 = vpop.f32.mrf.mxu0
      %v2491 = vadd.f32 0.0, %v2490
      %2492 = vmatmul.f32.gmra.mxu0 %v2207
      %v2493 = vpop.f32.mrf.mxu0
      %v2494 = vadd.f32 0.0, %v2493
      %2495 = vmatmul.f32.gmra.mxu0 %v2209
      %v2496 = vpop.f32.mrf.mxu0
      %v2497 = vadd.f32 0.0, %v2496
      %2498 = vmatmul.f32.gmra.mxu0 %v2211
      %v2499 = vpop.f32.mrf.mxu0
      %v2500 = vadd.f32 0.0, %v2499
      %2501 = vmatmul.f32.gmra.mxu0 %v2213
      %v2502 = vpop.f32.mrf.mxu0
      %v2503 = vadd.f32 0.0, %v2502
      %2504 = vmatmul.f32.gmra.mxu0 %v2215
      %v2505 = vpop.f32.mrf.mxu0
      %v2506 = vadd.f32 0.0, %v2505
      %2507 = vmatmul.f32.gmra.mxu0 %v2217
      %v2508 = vpop.f32.mrf.mxu0
      %v2509 = vadd.f32 0.0, %v2508
      %2510 = vmatmul.f32.gmra.mxu0 %v2219
      %v2511 = vpop.f32.mrf.mxu0
      %v2512 = vadd.f32 0.0, %v2511
      %2513 = vmatmul.f32.gmra.mxu0 %v2221
      %v2514 = vpop.f32.mrf.mxu0
      %v2515 = vadd.f32 0.0, %v2514
      %2516 = vmatmul.f32.gmra.mxu0 %v2223
      %v2517 = vpop.f32.mrf.mxu0
      %v2518 = vadd.f32 0.0, %v2517
      %2519 = vmatmul.f32.gmra.mxu0 %v2225
      %v2520 = vpop.f32.mrf.mxu0
      %v2521 = vadd.f32 0.0, %v2520
      %2522 = vmatmul.f32.gmra.mxu0 %v2227
      %v2523 = vpop.f32.mrf.mxu0
      %v2524 = vadd.f32 0.0, %v2523
      %2525 = vmatmul.f32.gmra.mxu0 %v2229
      %v2526 = vpop.f32.mrf.mxu0
      %v2527 = vadd.f32 0.0, %v2526
      %2528 = vmatmul.f32.gmra.mxu0 %v2231
      %v2529 = vpop.f32.mrf.mxu0
      %v2530 = vadd.f32 0.0, %v2529
      %2531 = vmatmul.f32.gmra.mxu0 %v2233
      %v2532 = vpop.f32.mrf.mxu0
      %v2533 = vadd.f32 0.0, %v2532
      %2534 = vmatmul.f32.gmra.mxu0 %v2235
      %v2535 = vpop.f32.mrf.mxu0
      %v2536 = vadd.f32 0.0, %v2535
      %2537 = vmatmul.f32.gmra.mxu0 %v2237
      %v2538 = vpop.f32.mrf.mxu0
      %v2539 = vadd.f32 0.0, %v2538
      %2540 = vmatmul.f32.gmra.mxu0 %v2239
      %v2541 = vpop.f32.mrf.mxu0
      %v2542 = vadd.f32 0.0, %v2541
      %2543 = vmatmul.f32.gmra.mxu0 %v2241
      %v2544 = vpop.f32.mrf.mxu0
      %v2545 = vadd.f32 0.0, %v2544
      %2546 = vmatmul.f32.gmra.mxu0 %v2243
      %v2547 = vpop.f32.mrf.mxu0
      %v2548 = vadd.f32 0.0, %v2547
      %2549 = vmatmul.f32.gmra.mxu0 %v2245
      %v2550 = vpop.f32.mrf.mxu0
      %v2551 = vadd.f32 0.0, %v2550
      %2552 = vmatmul.f32.gmra.mxu0 %v2247
      %v2553 = vpop.f32.mrf.mxu0
      %v2554 = vadd.f32 0.0, %v2553
      %2555 = vmatmul.f32.gmra.mxu0 %v2249
      %v2556 = vpop.f32.mrf.mxu0
      %v2557 = vadd.f32 0.0, %v2556
      %2558 = vmatmul.f32.gmra.mxu0 %v2251
      %v2559 = vpop.f32.mrf.mxu0
      %v2560 = vadd.f32 0.0, %v2559
      %2561 = vmatmul.f32.gmra.mxu0 %v2253
      %v2562 = vpop.f32.mrf.mxu0
      %v2563 = vadd.f32 0.0, %v2562
      %2564 = vmatmul.f32.gmra.mxu0 %v2255
      %v2565 = vpop.f32.mrf.mxu0
      %v2566 = vadd.f32 0.0, %v2565
      %2567 = vmatmul.f32.gmra.mxu0 %v2257
      %v2568 = vpop.f32.mrf.mxu0
      %v2569 = vadd.f32 0.0, %v2568
      %2570 = vmatmul.f32.gmra.mxu0 %v2259
      %v2571 = vpop.f32.mrf.mxu0
      %v2572 = vadd.f32 0.0, %v2571
      %2573 = vmatmul.f32.gmra.mxu0 %v2261
      %v2574 = vpop.f32.mrf.mxu0
      %v2575 = vadd.f32 0.0, %v2574
      %2576 = vmatmul.f32.gmra.mxu0 %v2263
      %v2577 = vpop.f32.mrf.mxu0
      %v2578 = vadd.f32 0.0, %v2577
      %2579 = vmatmul.f32.gmra.mxu0 %v2265
      %v2580 = vpop.f32.mrf.mxu0
      %v2581 = vadd.f32 0.0, %v2580
      %2582 = vmatmul.f32.gmra.mxu0 %v2267
      %v2583 = vpop.f32.mrf.mxu0
      %v2584 = vadd.f32 0.0, %v2583
      %2585 = vmatmul.f32.gmra.mxu0 %v2269
      %v2586 = vpop.f32.mrf.mxu0
      %v2587 = vadd.f32 0.0, %v2586
      %2588 = vmatmul.f32.gmra.mxu0 %v2271
      %v2589 = vpop.f32.mrf.mxu0
      %v2590 = vadd.f32 0.0, %v2589
      %2591 = vmatmul.f32.gmra.mxu0 %v2273
      %v2592 = vpop.f32.mrf.mxu0
      %v2593 = vadd.f32 0.0, %v2592
      %2594 = vmatmul.f32.gmra.mxu0 %v2275
      %v2595 = vpop.f32.mrf.mxu0
      %v2596 = vadd.f32 0.0, %v2595
      %2597 = vmatmul.f32.gmra.mxu0 %v2277
      %v2598 = vpop.f32.mrf.mxu0
      %v2599 = vadd.f32 0.0, %v2598
      %2600 = vmatmul.f32.gmra.mxu0 %v2279
      %v2601 = vpop.f32.mrf.mxu0
      %v2602 = vadd.f32 0.0, %v2601
      %2603 = vmatmul.f32.gmra.mxu0 %v2281
      %v2604 = vpop.f32.mrf.mxu0
      %v2605 = vadd.f32 0.0, %v2604
      %2606 = vmatmul.f32.gmra.mxu0 %v2283
      %v2607 = vpop.f32.mrf.mxu0
      %v2608 = vadd.f32 0.0, %v2607
      %2609 = vmatmul.f32.gmra.mxu0 %v2285
      %v2610 = vpop.f32.mrf.mxu0
      %v2611 = vadd.f32 0.0, %v2610
      %2612 = vmatmul.f32.gmra.mxu0 %v2287
      %v2613 = vpop.f32.mrf.mxu0
      %v2614 = vadd.f32 0.0, %v2613
      %2615 = vmatmul.f32.gmra.mxu0 %v2289
      %v2616 = vpop.f32.mrf.mxu0
      %v2617 = vadd.f32 0.0, %v2616
      %2618 = vmatmul.f32.gmra.mxu0 %v2291
      %v2619 = vpop.f32.mrf.mxu0
      %v2620 = vadd.f32 0.0, %v2619
      %2621 = vmatmul.f32.gmra.mxu0 %v2293
      %v2622 = vpop.f32.mrf.mxu0
      %v2623 = vadd.f32 0.0, %v2622
      %2624 = vmatmul.f32.gmra.mxu0 %v2295
      %v2625 = vpop.f32.mrf.mxu0
      %v2626 = vadd.f32 0.0, %v2625
      %2627 = vmatmul.f32.gmra.mxu0 %v2297
      %v2628 = vpop.f32.mrf.mxu0
      %v2629 = vadd.f32 0.0, %v2628
      %2630 = vmatmul.f32.gmra.mxu0 %v2299
      %v2631 = vpop.f32.mrf.mxu0
      %v2632 = vadd.f32 0.0, %v2631
      %2633 = vmatmul.f32.gmra.mxu0 %v2301
      %v2634 = vpop.f32.mrf.mxu0
      %v2635 = vadd.f32 0.0, %v2634
      %2636 = vmatmul.f32.gmra.mxu0 %v2303
      %v2637 = vpop.f32.mrf.mxu0
      %v2638 = vadd.f32 0.0, %v2637
      %2639 = vmatmul.f32.gmra.mxu0 %v2305
      %v2640 = vpop.f32.mrf.mxu0
      %v2641 = vadd.f32 0.0, %v2640
      %2642 = vmatmul.f32.gmra.mxu0 %v2307
      %v2643 = vpop.f32.mrf.mxu0
      %v2644 = vadd.f32 0.0, %v2643
      %2645 = vmatmul.f32.gmra.mxu0 %v2309
      %v2646 = vpop.f32.mrf.mxu0
      %v2647 = vadd.f32 0.0, %v2646
      %2648 = vmatmul.f32.gmra.mxu0 %v2311
      %v2649 = vpop.f32.mrf.mxu0
      %v2650 = vadd.f32 0.0, %v2649
      %2651 = vmatmul.f32.gmra.mxu0 %v2313
      %v2652 = vpop.f32.mrf.mxu0
      %v2653 = vadd.f32 0.0, %v2652
      %2654 = vmatmul.f32.gmra.mxu0 %v2315
      %v2655 = vpop.f32.mrf.mxu0
      %v2656 = vadd.f32 0.0, %v2655
      %2657 = vmatmul.f32.gmra.mxu0 %v2317
      %v2658 = vpop.f32.mrf.mxu0
      %v2659 = vadd.f32 0.0, %v2658
      %2660 = vmatmul.f32.gmra.mxu0 %v2319
      %v2661 = vpop.f32.mrf.mxu0
      %v2662 = vadd.f32 0.0, %v2661
      %2663 = vmatmul.f32.gmra.mxu0 %v2321
      %v2664 = vpop.f32.mrf.mxu0
      %v2665 = vadd.f32 0.0, %v2664
      %2666 = vmatmul.f32.gmra.mxu0 %v2323
      %v2667 = vpop.f32.mrf.mxu0
      %v2668 = vadd.f32 0.0, %v2667
      %2669 = vmatmul.f32.gmra.mxu0 %v2325
      %v2670 = vpop.f32.mrf.mxu0
      %v2671 = vadd.f32 0.0, %v2670
      %2672 = vmatmul.f32.gmra.mxu0 %v2327
      %v2673 = vpop.f32.mrf.mxu0
      %v2674 = vadd.f32 0.0, %v2673
      %2675 = vmatmul.f32.gmra.mxu0 %v2329
      %v2676 = vpop.f32.mrf.mxu0
      %v2677 = vadd.f32 0.0, %v2676
      %2678 = vmatmul.f32.gmra.mxu0 %v2331
      %v2679 = vpop.f32.mrf.mxu0
      %v2680 = vadd.f32 0.0, %v2679
      %2681 = vmatmul.f32.gmra.mxu0 %v2333
      %v2682 = vpop.f32.mrf.mxu0
      %v2683 = vadd.f32 0.0, %v2682
      %2684 = vmatmul.f32.gmra.mxu0 %v2335
      %v2685 = vpop.f32.mrf.mxu0
      %v2686 = vadd.f32 0.0, %v2685
      %2687 = vmatmul.f32.gmra.mxu0 %v2337
      %v2688 = vpop.f32.mrf.mxu0
      %v2689 = vadd.f32 0.0, %v2688
      %2690 = vmatmul.f32.gmra.mxu0 %v2339
      %v2691 = vpop.f32.mrf.mxu0
      %v2692 = vadd.f32 0.0, %v2691
      %2693 = vmatmul.f32.gmra.mxu0 %v2341
      %v2694 = vpop.f32.mrf.mxu0
      %v2695 = vadd.f32 0.0, %v2694
      %2696 = vmatmul.f32.gmra.mxu0 %v2343
      %v2697 = vpop.f32.mrf.mxu0
      %v2698 = vadd.f32 0.0, %v2697
      %2699 = vmatmul.f32.gmra.mxu0 %v2345
      %v2700 = vpop.f32.mrf.mxu0
      %v2701 = vadd.f32 0.0, %v2700
      %2702 = vmatmul.f32.gmra.mxu0 %v2347
      %v2703 = vpop.f32.mrf.mxu0
      %v2704 = vadd.f32 0.0, %v2703
      %2705 = vmatmul.f32.gmra.mxu0 %v2349
      %v2706 = vpop.f32.mrf.mxu0
      %v2707 = vadd.f32 0.0, %v2706
      %2708 = vmatmul.f32.gmra.mxu0 %v2351
      %v2709 = vpop.f32.mrf.mxu0
      %v2710 = vadd.f32 0.0, %v2709
      %2711 = vmatmul.f32.gmra.mxu0 %v2353
      %v2712 = vpop.f32.mrf.mxu0
      %v2713 = vadd.f32 0.0, %v2712
      %2714 = vmatmul.f32.gmra.mxu0 %v2355
      %v2715 = vpop.f32.mrf.mxu0
      %v2716 = vadd.f32 0.0, %v2715
      %2717 = vmatmul.f32.gmra.mxu0 %v2357
      %v2718 = vpop.f32.mrf.mxu0
      %v2719 = vadd.f32 0.0, %v2718
      %2720 = vmatmul.f32.gmra.mxu0 %v2359
      %v2721 = vpop.f32.mrf.mxu0
      %v2722 = vadd.f32 0.0, %v2721
      %2723 = vmatmul.f32.gmra.mxu0 %v2361
      %v2724 = vpop.f32.mrf.mxu0
      %v2725 = vadd.f32 0.0, %v2724
      %2726 = vmatmul.f32.gmra.mxu0 %v2363
      %v2727 = vpop.f32.mrf.mxu0
      %v2728 = vadd.f32 0.0, %v2727
      %2729 = vmatmul.f32.gmra.mxu0 %v2365
      %v2730 = vpop.f32.mrf.mxu0
      %v2731 = vadd.f32 0.0, %v2730
      %2732 = vmatmul.f32.gmra.mxu0 %v2367
      %v2733 = vpop.f32.mrf.mxu0
      %v2734 = vadd.f32 0.0, %v2733
      %2735 = vmatmul.f32.gmra.mxu0 %v2369
      %v2736 = vpop.f32.mrf.mxu0
      %v2737 = vadd.f32 0.0, %v2736
      %2738 = vmatmul.f32.gmra.mxu0 %v2371
      %v2739 = vpop.f32.mrf.mxu0
      %v2740 = vadd.f32 0.0, %v2739
      %2741 = vmatmul.f32.gmra.mxu0 %v2373
      %v2742 = vpop.f32.mrf.mxu0
      %v2743 = vadd.f32 0.0, %v2742
      %2744 = vmatmul.f32.gmra.mxu0 %v2375
      %v2745 = vpop.f32.mrf.mxu0
      %v2746 = vadd.f32 0.0, %v2745
      %2747 = vmatmul.f32.gmra.mxu0 %v2377
      %v2748 = vpop.f32.mrf.mxu0
      %v2749 = vadd.f32 0.0, %v2748
      %2750 = vmatmul.f32.gmra.mxu0 %v2379
      %v2751 = vpop.f32.mrf.mxu0
      %v2752 = vadd.f32 0.0, %v2751
      %2753 = vmatmul.f32.gmra.mxu0 %v2381
      %v2754 = vpop.f32.mrf.mxu0
      %v2755 = vadd.f32 0.0, %v2754
      %2756 = vmatmul.f32.gmra.mxu0 %v2383
      %v2757 = vpop.f32.mrf.mxu0
      %v2758 = vadd.f32 0.0, %v2757
      %2759 = vmatmul.f32.gmra.mxu0 %v2385
      %v2760 = vpop.f32.mrf.mxu0
      %v2761 = vadd.f32 0.0, %v2760
      %2762 = vmatmul.f32.gmra.mxu0 %v2387
      %v2763 = vpop.f32.mrf.mxu0
      %v2764 = vadd.f32 0.0, %v2763
      %2765 = vdwg.mxu0
      %v2766 = vadd.f32 %v1548, %v2407
      %v2767 = vadd.f32 %v1551, %v2410
      %v2768 = vadd.f32 %v1554, %v2413
      %v2769 = vadd.f32 %v1557, %v2416
      %v2770 = vadd.f32 %v1560, %v2419
      %v2771 = vadd.f32 %v1563, %v2422
      %v2772 = vadd.f32 %v1566, %v2425
      %v2773 = vadd.f32 %v1569, %v2428
      %v2774 = vadd.f32 %v1572, %v2431
      %v2775 = vadd.f32 %v1575, %v2434
      %v2776 = vadd.f32 %v1578, %v2437
      %v2777 = vadd.f32 %v1581, %v2440
      %v2778 = vadd.f32 %v1584, %v2443
      %v2779 = vadd.f32 %v1587, %v2446
      %v2780 = vadd.f32 %v1590, %v2449
      %v2781 = vadd.f32 %v1593, %v2452
      %v2782 = vadd.f32 %v1596, %v2455
      %v2783 = vadd.f32 %v1599, %v2458
      %v2784 = vadd.f32 %v1602, %v2461
      %v2785 = vadd.f32 %v1605, %v2464
      %v2786 = vadd.f32 %v1608, %v2467
      %v2787 = vadd.f32 %v1611, %v2470
      %v2788 = vadd.f32 %v1614, %v2473
      %v2789 = vadd.f32 %v1617, %v2476
      %v2790 = vadd.f32 %v1620, %v2479
      %v2791 = vadd.f32 %v1623, %v2482
      %v2792 = vadd.f32 %v1626, %v2485
      %v2793 = vadd.f32 %v1629, %v2488
      %v2794 = vadd.f32 %v1632, %v2491
      %v2795 = vadd.f32 %v1635, %v2494
      %v2796 = vadd.f32 %v1638, %v2497
      %v2797 = vadd.f32 %v1641, %v2500
      %v2798 = vadd.f32 %v1644, %v2503
      %v2799 = vadd.f32 %v1647, %v2506
      %v2800 = vadd.f32 %v1650, %v2509
      %v2801 = vadd.f32 %v1653, %v2512
      %v2802 = vadd.f32 %v1656, %v2515
      %v2803 = vadd.f32 %v1659, %v2518
      %v2804 = vadd.f32 %v1662, %v2521
      %v2805 = vadd.f32 %v1665, %v2524
      %v2806 = vadd.f32 %v1668, %v2527
      %v2807 = vadd.f32 %v1671, %v2530
      %v2808 = vadd.f32 %v1674, %v2533
      %v2809 = vadd.f32 %v1677, %v2536
      %v2810 = vadd.f32 %v1680, %v2539
      %v2811 = vadd.f32 %v1683, %v2542
      %v2812 = vadd.f32 %v1686, %v2545
      %v2813 = vadd.f32 %v1689, %v2548
      %v2814 = vadd.f32 %v1692, %v2551
      %v2815 = vadd.f32 %v1695, %v2554
      %v2816 = vadd.f32 %v1698, %v2557
      %v2817 = vadd.f32 %v1701, %v2560
      %v2818 = vadd.f32 %v1704, %v2563
      %v2819 = vadd.f32 %v1707, %v2566
      %v2820 = vadd.f32 %v1710, %v2569
      %v2821 = vadd.f32 %v1713, %v2572
      %v2822 = vadd.f32 %v1716, %v2575
      %v2823 = vadd.f32 %v1719, %v2578
      %v2824 = vadd.f32 %v1722, %v2581
      %v2825 = vadd.f32 %v1725, %v2584
      %v2826 = vadd.f32 %v1728, %v2587
      %v2827 = vadd.f32 %v1731, %v2590
      %v2828 = vadd.f32 %v1734, %v2593
      %v2829 = vadd.f32 %v1737, %v2596
      %v2830 = vadd.f32 %v1740, %v2599
      %v2831 = vadd.f32 %v1743, %v2602
      %v2832 = vadd.f32 %v1746, %v2605
      %v2833 = vadd.f32 %v1749, %v2608
      %v2834 = vadd.f32 %v1752, %v2611
      %v2835 = vadd.f32 %v1755, %v2614
      %v2836 = vadd.f32 %v1758, %v2617
      %v2837 = vadd.f32 %v1761, %v2620
      %v2838 = vadd.f32 %v1764, %v2623
      %v2839 = vadd.f32 %v1767, %v2626
      %v2840 = vadd.f32 %v1770, %v2629
      %v2841 = vadd.f32 %v1773, %v2632
      %v2842 = vadd.f32 %v1776, %v2635
      %v2843 = vadd.f32 %v1779, %v2638
      %v2844 = vadd.f32 %v1782, %v2641
      %v2845 = vadd.f32 %v1785, %v2644
      %v2846 = vadd.f32 %v1788, %v2647
      %v2847 = vadd.f32 %v1791, %v2650
      %v2848 = vadd.f32 %v1794, %v2653
      %v2849 = vadd.f32 %v1797, %v2656
      %v2850 = vadd.f32 %v1800, %v2659
      %v2851 = vadd.f32 %v1803, %v2662
      %v2852 = vadd.f32 %v1806, %v2665
      %v2853 = vadd.f32 %v1809, %v2668
      %v2854 = vadd.f32 %v1812, %v2671
      %v2855 = vadd.f32 %v1815, %v2674
      %v2856 = vadd.f32 %v1818, %v2677
      %v2857 = vadd.f32 %v1821, %v2680
      %v2858 = vadd.f32 %v1824, %v2683
      %v2859 = vadd.f32 %v1827, %v2686
      %v2860 = vadd.f32 %v1830, %v2689
      %v2861 = vadd.f32 %v1833, %v2692
      %v2862 = vadd.f32 %v1836, %v2695
      %v2863 = vadd.f32 %v1839, %v2698
      %v2864 = vadd.f32 %v1842, %v2701
      %v2865 = vadd.f32 %v1845, %v2704
      %v2866 = vadd.f32 %v1848, %v2707
      %v2867 = vadd.f32 %v1851, %v2710
      %v2868 = vadd.f32 %v1854, %v2713
      %v2869 = vadd.f32 %v1857, %v2716
      %v2870 = vadd.f32 %v1860, %v2719
      %v2871 = vadd.f32 %v1863, %v2722
      %v2872 = vadd.f32 %v1866, %v2725
      %v2873 = vadd.f32 %v1869, %v2728
      %v2874 = vadd.f32 %v1872, %v2731
      %v2875 = vadd.f32 %v1875, %v2734
      %v2876 = vadd.f32 %v1878, %v2737
      %v2877 = vadd.f32 %v1881, %v2740
      %v2878 = vadd.f32 %v1884, %v2743
      %v2879 = vadd.f32 %v1887, %v2746
      %v2880 = vadd.f32 %v1890, %v2749
      %v2881 = vadd.f32 %v1893, %v2752
      %v2882 = vadd.f32 %v1896, %v2755
      %v2883 = vadd.f32 %v1899, %v2758
      %v2884 = vadd.f32 %v1902, %v2761
      %v2885 = vadd.f32 %v1905, %v2764
      %v2886 = vsel %vm672, %v291, 0
      %v2889 = vsel %vm672, %v292, 0
      %v2892 = vsel %vm672, %v293, 0
      %v2895 = vsel %vm672, %v294, 0
      %2897 = vmatpush.msra.mxu0 0.0
      %2898 = vmatpush.msra.mxu0 0.0
      %2899 = vmatpush.msra.mxu0 0.0
      %2900 = vmatpush.msra.mxu0 0.0
      %2901 = vmatpush.msra.mxu0 0.0
      %2902 = vmatpush.msra.mxu0 0.0
      %2903 = vmatpush.msra.mxu0 0.0
      %2904 = vmatpush.msra.mxu0 0.0
      %2905 = vmatpush.msra.mxu0 0.0
      %2906 = vmatpush.msra.mxu0 0.0
      %2907 = vmatpush.msra.mxu0 0.0
      %2908 = vmatpush.msra.mxu0 0.0
      %2909 = vmatpush.msra.mxu0 0.0
      %2910 = vmatpush.msra.mxu0 0.0
      %2911 = vmatpush.msra.mxu0 0.0
      %2912 = vmatpush.msra.mxu0 %v303
      %2913 = vmatmul.f32.gmra.mxu0 %v1298
      %v2914 = vpop.f32.mrf.mxu0
      %v2915 = vadd.f32 0.0, %v2914
      %2916 = vmatmul.f32.gmra.mxu0 %v1300
      %v2917 = vpop.f32.mrf.mxu0
      %v2918 = vadd.f32 0.0, %v2917
      %2919 = vmatmul.f32.gmra.mxu0 %v1302
      %v2920 = vpop.f32.mrf.mxu0
      %v2921 = vadd.f32 0.0, %v2920
      %2922 = vmatmul.f32.gmra.mxu0 %v1304
      %v2923 = vpop.f32.mrf.mxu0
      %v2924 = vadd.f32 0.0, %v2923
      %2925 = vmatmul.f32.gmra.mxu0 %v1306
      %v2926 = vpop.f32.mrf.mxu0
      %v2927 = vadd.f32 0.0, %v2926
      %2928 = vmatmul.f32.gmra.mxu0 %v1308
      %v2929 = vpop.f32.mrf.mxu0
      %v2930 = vadd.f32 0.0, %v2929
      %2931 = vmatmul.f32.gmra.mxu0 %v1310
      %v2932 = vpop.f32.mrf.mxu0
      %v2933 = vadd.f32 0.0, %v2932
      %2934 = vmatmul.f32.gmra.mxu0 %v1312
      %v2935 = vpop.f32.mrf.mxu0
      %v2936 = vadd.f32 0.0, %v2935
      %2937 = vmatmul.f32.gmra.mxu0 %v1314
      %v2938 = vpop.f32.mrf.mxu0
      %v2939 = vadd.f32 0.0, %v2938
      %2940 = vmatmul.f32.gmra.mxu0 %v1316
      %v2941 = vpop.f32.mrf.mxu0
      %v2942 = vadd.f32 0.0, %v2941
      %2943 = vmatmul.f32.gmra.mxu0 %v1318
      %v2944 = vpop.f32.mrf.mxu0
      %v2945 = vadd.f32 0.0, %v2944
      %2946 = vmatmul.f32.gmra.mxu0 %v1320
      %v2947 = vpop.f32.mrf.mxu0
      %v2948 = vadd.f32 0.0, %v2947
      %2949 = vmatmul.f32.gmra.mxu0 %v1322
      %v2950 = vpop.f32.mrf.mxu0
      %v2951 = vadd.f32 0.0, %v2950
      %2952 = vmatmul.f32.gmra.mxu0 %v1324
      %v2953 = vpop.f32.mrf.mxu0
      %v2954 = vadd.f32 0.0, %v2953
      %2955 = vmatmul.f32.gmra.mxu0 %v1326
      %v2956 = vpop.f32.mrf.mxu0
      %v2957 = vadd.f32 0.0, %v2956
      %2958 = vmatmul.f32.gmra.mxu0 %v1328
      %v2959 = vpop.f32.mrf.mxu0
      %v2960 = vadd.f32 0.0, %v2959
      %2961 = vmatmul.f32.gmra.mxu0 %v1330
      %v2962 = vpop.f32.mrf.mxu0
      %v2963 = vadd.f32 0.0, %v2962
      %2964 = vmatmul.f32.gmra.mxu0 %v1332
      %v2965 = vpop.f32.mrf.mxu0
      %v2966 = vadd.f32 0.0, %v2965
      %2967 = vmatmul.f32.gmra.mxu0 %v1334
      %v2968 = vpop.f32.mrf.mxu0
      %v2969 = vadd.f32 0.0, %v2968
      %2970 = vmatmul.f32.gmra.mxu0 %v1336
      %v2971 = vpop.f32.mrf.mxu0
      %v2972 = vadd.f32 0.0, %v2971
      %2973 = vmatmul.f32.gmra.mxu0 %v1338
      %v2974 = vpop.f32.mrf.mxu0
      %v2975 = vadd.f32 0.0, %v2974
      %2976 = vmatmul.f32.gmra.mxu0 %v1340
      %v2977 = vpop.f32.mrf.mxu0
      %v2978 = vadd.f32 0.0, %v2977
      %2979 = vmatmul.f32.gmra.mxu0 %v1342
      %v2980 = vpop.f32.mrf.mxu0
      %v2981 = vadd.f32 0.0, %v2980
      %2982 = vmatmul.f32.gmra.mxu0 %v1344
      %v2983 = vpop.f32.mrf.mxu0
      %v2984 = vadd.f32 0.0, %v2983
      %2985 = vmatmul.f32.gmra.mxu0 %v1346
      %v2986 = vpop.f32.mrf.mxu0
      %v2987 = vadd.f32 0.0, %v2986
      %2988 = vmatmul.f32.gmra.mxu0 %v1348
      %v2989 = vpop.f32.mrf.mxu0
      %v2990 = vadd.f32 0.0, %v2989
      %2991 = vmatmul.f32.gmra.mxu0 %v1350
      %v2992 = vpop.f32.mrf.mxu0
      %v2993 = vadd.f32 0.0, %v2992
      %2994 = vmatmul.f32.gmra.mxu0 %v1352
      %v2995 = vpop.f32.mrf.mxu0
      %v2996 = vadd.f32 0.0, %v2995
      %2997 = vmatmul.f32.gmra.mxu0 %v1354
      %v2998 = vpop.f32.mrf.mxu0
      %v2999 = vadd.f32 0.0, %v2998
      %3000 = vmatmul.f32.gmra.mxu0 %v1356
      %v3001 = vpop.f32.mrf.mxu0
      %v3002 = vadd.f32 0.0, %v3001
      %3003 = vmatmul.f32.gmra.mxu0 %v1358
      %v3004 = vpop.f32.mrf.mxu0
      %v3005 = vadd.f32 0.0, %v3004
      %3006 = vmatmul.f32.gmra.mxu0 %v1360
      %v3007 = vpop.f32.mrf.mxu0
      %v3008 = vadd.f32 0.0, %v3007
      %3009 = vmatmul.f32.gmra.mxu0 %v1362
      %v3010 = vpop.f32.mrf.mxu0
      %v3011 = vadd.f32 0.0, %v3010
      %3012 = vmatmul.f32.gmra.mxu0 %v1364
      %v3013 = vpop.f32.mrf.mxu0
      %v3014 = vadd.f32 0.0, %v3013
      %3015 = vmatmul.f32.gmra.mxu0 %v1366
      %v3016 = vpop.f32.mrf.mxu0
      %v3017 = vadd.f32 0.0, %v3016
      %3018 = vmatmul.f32.gmra.mxu0 %v1368
      %v3019 = vpop.f32.mrf.mxu0
      %v3020 = vadd.f32 0.0, %v3019
      %3021 = vmatmul.f32.gmra.mxu0 %v1370
      %v3022 = vpop.f32.mrf.mxu0
      %v3023 = vadd.f32 0.0, %v3022
      %3024 = vmatmul.f32.gmra.mxu0 %v1372
      %v3025 = vpop.f32.mrf.mxu0
      %v3026 = vadd.f32 0.0, %v3025
      %3027 = vmatmul.f32.gmra.mxu0 %v1374
      %v3028 = vpop.f32.mrf.mxu0
      %v3029 = vadd.f32 0.0, %v3028
      %3030 = vmatmul.f32.gmra.mxu0 %v1376
      %v3031 = vpop.f32.mrf.mxu0
      %v3032 = vadd.f32 0.0, %v3031
      %3033 = vmatmul.f32.gmra.mxu0 %v1378
      %v3034 = vpop.f32.mrf.mxu0
      %v3035 = vadd.f32 0.0, %v3034
      %3036 = vmatmul.f32.gmra.mxu0 %v1380
      %v3037 = vpop.f32.mrf.mxu0
      %v3038 = vadd.f32 0.0, %v3037
      %3039 = vmatmul.f32.gmra.mxu0 %v1382
      %v3040 = vpop.f32.mrf.mxu0
      %v3041 = vadd.f32 0.0, %v3040
      %3042 = vmatmul.f32.gmra.mxu0 %v1384
      %v3043 = vpop.f32.mrf.mxu0
      %v3044 = vadd.f32 0.0, %v3043
      %3045 = vmatmul.f32.gmra.mxu0 %v1386
      %v3046 = vpop.f32.mrf.mxu0
      %v3047 = vadd.f32 0.0, %v3046
      %3048 = vmatmul.f32.gmra.mxu0 %v1388
      %v3049 = vpop.f32.mrf.mxu0
      %v3050 = vadd.f32 0.0, %v3049
      %3051 = vmatmul.f32.gmra.mxu0 %v1390
      %v3052 = vpop.f32.mrf.mxu0
      %v3053 = vadd.f32 0.0, %v3052
      %3054 = vmatmul.f32.gmra.mxu0 %v1392
      %v3055 = vpop.f32.mrf.mxu0
      %v3056 = vadd.f32 0.0, %v3055
      %3057 = vmatmul.f32.gmra.mxu0 %v1394
      %v3058 = vpop.f32.mrf.mxu0
      %v3059 = vadd.f32 0.0, %v3058
      %3060 = vmatmul.f32.gmra.mxu0 %v1396
      %v3061 = vpop.f32.mrf.mxu0
      %v3062 = vadd.f32 0.0, %v3061
      %3063 = vmatmul.f32.gmra.mxu0 %v1398
      %v3064 = vpop.f32.mrf.mxu0
      %v3065 = vadd.f32 0.0, %v3064
      %3066 = vmatmul.f32.gmra.mxu0 %v1400
      %v3067 = vpop.f32.mrf.mxu0
      %v3068 = vadd.f32 0.0, %v3067
      %3069 = vmatmul.f32.gmra.mxu0 %v1402
      %v3070 = vpop.f32.mrf.mxu0
      %v3071 = vadd.f32 0.0, %v3070
      %3072 = vmatmul.f32.gmra.mxu0 %v1404
      %v3073 = vpop.f32.mrf.mxu0
      %v3074 = vadd.f32 0.0, %v3073
      %3075 = vmatmul.f32.gmra.mxu0 %v1406
      %v3076 = vpop.f32.mrf.mxu0
      %v3077 = vadd.f32 0.0, %v3076
      %3078 = vmatmul.f32.gmra.mxu0 %v1408
      %v3079 = vpop.f32.mrf.mxu0
      %v3080 = vadd.f32 0.0, %v3079
      %3081 = vmatmul.f32.gmra.mxu0 %v1410
      %v3082 = vpop.f32.mrf.mxu0
      %v3083 = vadd.f32 0.0, %v3082
      %3084 = vmatmul.f32.gmra.mxu0 %v1412
      %v3085 = vpop.f32.mrf.mxu0
      %v3086 = vadd.f32 0.0, %v3085
      %3087 = vmatmul.f32.gmra.mxu0 %v1414
      %v3088 = vpop.f32.mrf.mxu0
      %v3089 = vadd.f32 0.0, %v3088
      %3090 = vmatmul.f32.gmra.mxu0 %v1416
      %v3091 = vpop.f32.mrf.mxu0
      %v3092 = vadd.f32 0.0, %v3091
      %3093 = vmatmul.f32.gmra.mxu0 %v1418
      %v3094 = vpop.f32.mrf.mxu0
      %v3095 = vadd.f32 0.0, %v3094
      %3096 = vmatmul.f32.gmra.mxu0 %v1420
      %v3097 = vpop.f32.mrf.mxu0
      %v3098 = vadd.f32 0.0, %v3097
      %3099 = vmatmul.f32.gmra.mxu0 %v1422
      %v3100 = vpop.f32.mrf.mxu0
      %v3101 = vadd.f32 0.0, %v3100
      %3102 = vmatmul.f32.gmra.mxu0 %v1424
      %v3103 = vpop.f32.mrf.mxu0
      %v3104 = vadd.f32 0.0, %v3103
      %3105 = vmatmul.f32.gmra.mxu0 %v1426
      %v3106 = vpop.f32.mrf.mxu0
      %v3107 = vadd.f32 0.0, %v3106
      %3108 = vmatmul.f32.gmra.mxu0 %v1428
      %v3109 = vpop.f32.mrf.mxu0
      %v3110 = vadd.f32 0.0, %v3109
      %3111 = vmatmul.f32.gmra.mxu0 %v1430
      %v3112 = vpop.f32.mrf.mxu0
      %v3113 = vadd.f32 0.0, %v3112
      %3114 = vmatmul.f32.gmra.mxu0 %v1432
      %v3115 = vpop.f32.mrf.mxu0
      %v3116 = vadd.f32 0.0, %v3115
      %3117 = vmatmul.f32.gmra.mxu0 %v1434
      %v3118 = vpop.f32.mrf.mxu0
      %v3119 = vadd.f32 0.0, %v3118
      %3120 = vmatmul.f32.gmra.mxu0 %v1436
      %v3121 = vpop.f32.mrf.mxu0
      %v3122 = vadd.f32 0.0, %v3121
      %3123 = vmatmul.f32.gmra.mxu0 %v1438
      %v3124 = vpop.f32.mrf.mxu0
      %v3125 = vadd.f32 0.0, %v3124
      %3126 = vmatmul.f32.gmra.mxu0 %v1440
      %v3127 = vpop.f32.mrf.mxu0
      %v3128 = vadd.f32 0.0, %v3127
      %3129 = vmatmul.f32.gmra.mxu0 %v1442
      %v3130 = vpop.f32.mrf.mxu0
      %v3131 = vadd.f32 0.0, %v3130
      %3132 = vmatmul.f32.gmra.mxu0 %v1444
      %v3133 = vpop.f32.mrf.mxu0
      %v3134 = vadd.f32 0.0, %v3133
      %3135 = vmatmul.f32.gmra.mxu0 %v1446
      %v3136 = vpop.f32.mrf.mxu0
      %v3137 = vadd.f32 0.0, %v3136
      %3138 = vmatmul.f32.gmra.mxu0 %v1448
      %v3139 = vpop.f32.mrf.mxu0
      %v3140 = vadd.f32 0.0, %v3139
      %3141 = vmatmul.f32.gmra.mxu0 %v1450
      %v3142 = vpop.f32.mrf.mxu0
      %v3143 = vadd.f32 0.0, %v3142
      %3144 = vmatmul.f32.gmra.mxu0 %v1452
      %v3145 = vpop.f32.mrf.mxu0
      %v3146 = vadd.f32 0.0, %v3145
      %3147 = vmatmul.f32.gmra.mxu0 %v1454
      %v3148 = vpop.f32.mrf.mxu0
      %v3149 = vadd.f32 0.0, %v3148
      %3150 = vmatmul.f32.gmra.mxu0 %v1456
      %v3151 = vpop.f32.mrf.mxu0
      %v3152 = vadd.f32 0.0, %v3151
      %3153 = vmatmul.f32.gmra.mxu0 %v1458
      %v3154 = vpop.f32.mrf.mxu0
      %v3155 = vadd.f32 0.0, %v3154
      %3156 = vmatmul.f32.gmra.mxu0 %v1460
      %v3157 = vpop.f32.mrf.mxu0
      %v3158 = vadd.f32 0.0, %v3157
      %3159 = vmatmul.f32.gmra.mxu0 %v1462
      %v3160 = vpop.f32.mrf.mxu0
      %v3161 = vadd.f32 0.0, %v3160
      %3162 = vmatmul.f32.gmra.mxu0 %v1464
      %v3163 = vpop.f32.mrf.mxu0
      %v3164 = vadd.f32 0.0, %v3163
      %3165 = vmatmul.f32.gmra.mxu0 %v1466
      %v3166 = vpop.f32.mrf.mxu0
      %v3167 = vadd.f32 0.0, %v3166
      %3168 = vmatmul.f32.gmra.mxu0 %v1468
      %v3169 = vpop.f32.mrf.mxu0
      %v3170 = vadd.f32 0.0, %v3169
      %3171 = vmatmul.f32.gmra.mxu0 %v1470
      %v3172 = vpop.f32.mrf.mxu0
      %v3173 = vadd.f32 0.0, %v3172
      %3174 = vmatmul.f32.gmra.mxu0 %v1472
      %v3175 = vpop.f32.mrf.mxu0
      %v3176 = vadd.f32 0.0, %v3175
      %3177 = vmatmul.f32.gmra.mxu0 %v1474
      %v3178 = vpop.f32.mrf.mxu0
      %v3179 = vadd.f32 0.0, %v3178
      %3180 = vmatmul.f32.gmra.mxu0 %v1476
      %v3181 = vpop.f32.mrf.mxu0
      %v3182 = vadd.f32 0.0, %v3181
      %3183 = vmatmul.f32.gmra.mxu0 %v1478
      %v3184 = vpop.f32.mrf.mxu0
      %v3185 = vadd.f32 0.0, %v3184
      %3186 = vmatmul.f32.gmra.mxu0 %v1480
      %v3187 = vpop.f32.mrf.mxu0
      %v3188 = vadd.f32 0.0, %v3187
      %3189 = vmatmul.f32.gmra.mxu0 %v1482
      %v3190 = vpop.f32.mrf.mxu0
      %v3191 = vadd.f32 0.0, %v3190
      %3192 = vmatmul.f32.gmra.mxu0 %v1484
      %v3193 = vpop.f32.mrf.mxu0
      %v3194 = vadd.f32 0.0, %v3193
      %3195 = vmatmul.f32.gmra.mxu0 %v1486
      %v3196 = vpop.f32.mrf.mxu0
      %v3197 = vadd.f32 0.0, %v3196
      %3198 = vmatmul.f32.gmra.mxu0 %v1488
      %v3199 = vpop.f32.mrf.mxu0
      %v3200 = vadd.f32 0.0, %v3199
      %3201 = vmatmul.f32.gmra.mxu0 %v1490
      %v3202 = vpop.f32.mrf.mxu0
      %v3203 = vadd.f32 0.0, %v3202
      %3204 = vmatmul.f32.gmra.mxu0 %v1492
      %v3205 = vpop.f32.mrf.mxu0
      %v3206 = vadd.f32 0.0, %v3205
      %3207 = vmatmul.f32.gmra.mxu0 %v1494
      %v3208 = vpop.f32.mrf.mxu0
      %v3209 = vadd.f32 0.0, %v3208
      %3210 = vmatmul.f32.gmra.mxu0 %v1496
      %v3211 = vpop.f32.mrf.mxu0
      %v3212 = vadd.f32 0.0, %v3211
      %3213 = vmatmul.f32.gmra.mxu0 %v1498
      %v3214 = vpop.f32.mrf.mxu0
      %v3215 = vadd.f32 0.0, %v3214
      %3216 = vmatmul.f32.gmra.mxu0 %v1500
      %v3217 = vpop.f32.mrf.mxu0
      %v3218 = vadd.f32 0.0, %v3217
      %3219 = vmatmul.f32.gmra.mxu0 %v1502
      %v3220 = vpop.f32.mrf.mxu0
      %v3221 = vadd.f32 0.0, %v3220
      %3222 = vmatmul.f32.gmra.mxu0 %v1504
      %v3223 = vpop.f32.mrf.mxu0
      %v3224 = vadd.f32 0.0, %v3223
      %3225 = vmatmul.f32.gmra.mxu0 %v1506
      %v3226 = vpop.f32.mrf.mxu0
      %v3227 = vadd.f32 0.0, %v3226
      %3228 = vmatmul.f32.gmra.mxu0 %v1508
      %v3229 = vpop.f32.mrf.mxu0
      %v3230 = vadd.f32 0.0, %v3229
      %3231 = vmatmul.f32.gmra.mxu0 %v1510
      %v3232 = vpop.f32.mrf.mxu0
      %v3233 = vadd.f32 0.0, %v3232
      %3234 = vmatmul.f32.gmra.mxu0 %v1512
      %v3235 = vpop.f32.mrf.mxu0
      %v3236 = vadd.f32 0.0, %v3235
      %3237 = vmatmul.f32.gmra.mxu0 %v1514
      %v3238 = vpop.f32.mrf.mxu0
      %v3239 = vadd.f32 0.0, %v3238
      %3240 = vmatmul.f32.gmra.mxu0 %v1516
      %v3241 = vpop.f32.mrf.mxu0
      %v3242 = vadd.f32 0.0, %v3241
      %3243 = vmatmul.f32.gmra.mxu0 %v1518
      %v3244 = vpop.f32.mrf.mxu0
      %v3245 = vadd.f32 0.0, %v3244
      %3246 = vmatmul.f32.gmra.mxu0 %v1520
      %v3247 = vpop.f32.mrf.mxu0
      %v3248 = vadd.f32 0.0, %v3247
      %3249 = vmatmul.f32.gmra.mxu0 %v1522
      %v3250 = vpop.f32.mrf.mxu0
      %v3251 = vadd.f32 0.0, %v3250
      %3252 = vmatmul.f32.gmra.mxu0 %v1524
      %v3253 = vpop.f32.mrf.mxu0
      %v3254 = vadd.f32 0.0, %v3253
      %3255 = vmatmul.f32.gmra.mxu0 %v1526
      %v3256 = vpop.f32.mrf.mxu0
      %v3257 = vadd.f32 0.0, %v3256
      %3258 = vmatmul.f32.gmra.mxu0 %v1528
      %v3259 = vpop.f32.mrf.mxu0
      %v3260 = vadd.f32 0.0, %v3259
      %3261 = vmatmul.f32.gmra.mxu0 %v2886
      %v3262 = vpop.f32.mrf.mxu0
      %v3263 = vadd.f32 0.0, %v3262
      %3264 = vmatmul.f32.gmra.mxu0 %v2889
      %v3265 = vpop.f32.mrf.mxu0
      %v3266 = vadd.f32 0.0, %v3265
      %3267 = vmatmul.f32.gmra.mxu0 %v2892
      %v3268 = vpop.f32.mrf.mxu0
      %v3269 = vadd.f32 0.0, %v3268
      %3270 = vmatmul.f32.gmra.mxu0 %v2895
      %v3271 = vpop.f32.mrf.mxu0
      %v3272 = vadd.f32 0.0, %v3271
      %3273 = vdwg.mxu0
      %v3274 = vadd.f32 %v2766, %v2915
      %v3275 = vadd.f32 %v2767, %v2918
      %v3276 = vadd.f32 %v2768, %v2921
      %v3277 = vadd.f32 %v2769, %v2924
      %v3278 = vadd.f32 %v2770, %v2927
      %v3279 = vadd.f32 %v2771, %v2930
      %v3280 = vadd.f32 %v2772, %v2933
      %v3281 = vadd.f32 %v2773, %v2936
      %v3282 = vadd.f32 %v2774, %v2939
      %v3283 = vadd.f32 %v2775, %v2942
      %v3284 = vadd.f32 %v2776, %v2945
      %v3285 = vadd.f32 %v2777, %v2948
      %v3286 = vadd.f32 %v2778, %v2951
      %v3287 = vadd.f32 %v2779, %v2954
      %v3288 = vadd.f32 %v2780, %v2957
      %v3289 = vadd.f32 %v2781, %v2960
      %v3290 = vadd.f32 %v2782, %v2963
      %v3291 = vadd.f32 %v2783, %v2966
      %v3292 = vadd.f32 %v2784, %v2969
      %v3293 = vadd.f32 %v2785, %v2972
      %v3294 = vadd.f32 %v2786, %v2975
      %v3295 = vadd.f32 %v2787, %v2978
      %v3296 = vadd.f32 %v2788, %v2981
      %v3297 = vadd.f32 %v2789, %v2984
      %v3298 = vadd.f32 %v2790, %v2987
      %v3299 = vadd.f32 %v2791, %v2990
      %v3300 = vadd.f32 %v2792, %v2993
      %v3301 = vadd.f32 %v2793, %v2996
      %v3302 = vadd.f32 %v2794, %v2999
      %v3303 = vadd.f32 %v2795, %v3002
      %v3304 = vadd.f32 %v2796, %v3005
      %v3305 = vadd.f32 %v2797, %v3008
      %v3306 = vadd.f32 %v2798, %v3011
      %v3307 = vadd.f32 %v2799, %v3014
      %v3308 = vadd.f32 %v2800, %v3017
      %v3309 = vadd.f32 %v2801, %v3020
      %v3310 = vadd.f32 %v2802, %v3023
      %v3311 = vadd.f32 %v2803, %v3026
      %v3312 = vadd.f32 %v2804, %v3029
      %v3313 = vadd.f32 %v2805, %v3032
      %v3314 = vadd.f32 %v2806, %v3035
      %v3315 = vadd.f32 %v2807, %v3038
      %v3316 = vadd.f32 %v2808, %v3041
      %v3317 = vadd.f32 %v2809, %v3044
      %v3318 = vadd.f32 %v2810, %v3047
      %v3319 = vadd.f32 %v2811, %v3050
      %v3320 = vadd.f32 %v2812, %v3053
      %v3321 = vadd.f32 %v2813, %v3056
      %v3322 = vadd.f32 %v2814, %v3059
      %v3323 = vadd.f32 %v2815, %v3062
      %v3324 = vadd.f32 %v2816, %v3065
      %v3325 = vadd.f32 %v2817, %v3068
      %v3326 = vadd.f32 %v2818, %v3071
      %v3327 = vadd.f32 %v2819, %v3074
      %v3328 = vadd.f32 %v2820, %v3077
      %v3329 = vadd.f32 %v2821, %v3080
      %v3330 = vadd.f32 %v2822, %v3083
      %v3331 = vadd.f32 %v2823, %v3086
      %v3332 = vadd.f32 %v2824, %v3089
      %v3333 = vadd.f32 %v2825, %v3092
      %v3334 = vadd.f32 %v2826, %v3095
      %v3335 = vadd.f32 %v2827, %v3098
      %v3336 = vadd.f32 %v2828, %v3101
      %v3337 = vadd.f32 %v2829, %v3104
      %v3338 = vadd.f32 %v2830, %v3107
      %v3339 = vadd.f32 %v2831, %v3110
      %v3340 = vadd.f32 %v2832, %v3113
      %v3341 = vadd.f32 %v2833, %v3116
      %v3342 = vadd.f32 %v2834, %v3119
      %v3343 = vadd.f32 %v2835, %v3122
      %v3344 = vadd.f32 %v2836, %v3125
      %v3345 = vadd.f32 %v2837, %v3128
      %v3346 = vadd.f32 %v2838, %v3131
      %v3347 = vadd.f32 %v2839, %v3134
      %v3348 = vadd.f32 %v2840, %v3137
      %v3349 = vadd.f32 %v2841, %v3140
      %v3350 = vadd.f32 %v2842, %v3143
      %v3351 = vadd.f32 %v2843, %v3146
      %v3352 = vadd.f32 %v2844, %v3149
      %v3353 = vadd.f32 %v2845, %v3152
      %v3354 = vadd.f32 %v2846, %v3155
      %v3355 = vadd.f32 %v2847, %v3158
      %v3356 = vadd.f32 %v2848, %v3161
      %v3357 = vadd.f32 %v2849, %v3164
      %v3358 = vadd.f32 %v2850, %v3167
      %v3359 = vadd.f32 %v2851, %v3170
      %v3360 = vadd.f32 %v2852, %v3173
      %v3361 = vadd.f32 %v2853, %v3176
      %v3362 = vadd.f32 %v2854, %v3179
      %v3363 = vadd.f32 %v2855, %v3182
      %v3364 = vadd.f32 %v2856, %v3185
      %v3365 = vadd.f32 %v2857, %v3188
      %v3366 = vadd.f32 %v2858, %v3191
      %v3367 = vadd.f32 %v2859, %v3194
      %v3368 = vadd.f32 %v2860, %v3197
      %v3369 = vadd.f32 %v2861, %v3200
      %v3370 = vadd.f32 %v2862, %v3203
      %v3371 = vadd.f32 %v2863, %v3206
      %v3372 = vadd.f32 %v2864, %v3209
      %v3373 = vadd.f32 %v2865, %v3212
      %v3374 = vadd.f32 %v2866, %v3215
      %v3375 = vadd.f32 %v2867, %v3218
      %v3376 = vadd.f32 %v2868, %v3221
      %v3377 = vadd.f32 %v2869, %v3224
      %v3378 = vadd.f32 %v2870, %v3227
      %v3379 = vadd.f32 %v2871, %v3230
      %v3380 = vadd.f32 %v2872, %v3233
      %v3381 = vadd.f32 %v2873, %v3236
      %v3382 = vadd.f32 %v2874, %v3239
      %v3383 = vadd.f32 %v2875, %v3242
      %v3384 = vadd.f32 %v2876, %v3245
      %v3385 = vadd.f32 %v2877, %v3248
      %v3386 = vadd.f32 %v2878, %v3251
      %v3387 = vadd.f32 %v2879, %v3254
      %v3388 = vadd.f32 %v2880, %v3257
      %v3389 = vadd.f32 %v2881, %v3260
      %v3390 = vadd.f32 %v2882, %v3263
      %v3391 = vadd.f32 %v2883, %v3266
      %v3392 = vadd.f32 %v2884, %v3269
      %v3393 = vadd.f32 %v2885, %v3272
      %v3395 = vrot.slane %v292, 1
      %v3396 = vsel %vm430, %v670, %v3395
      %v3397 = vrot.slane %v293, 1
      %v3398 = vsel %vm430, %v3395, %v3397
      %v3399 = vrot.slane %v294, 1
      %v3400 = vsel %vm430, %v3397, %v3399
      %v3401 = vrot.slane %v295, 1
      %v3402 = vsel %vm430, %v3399, %v3401
      %v3403 = vsel %vm672, %v3396, 0
      %v3405 = vsel %vm672, %v3398, 0
      %v3407 = vsel %vm672, %v3400, 0
      %v3409 = vsel %vm672, %v3402, 0
      %3411 = vmatpush.msra.mxu0 0.0
      %3412 = vmatpush.msra.mxu0 0.0
      %3413 = vmatpush.msra.mxu0 0.0
      %3414 = vmatpush.msra.mxu0 0.0
      %3415 = vmatpush.msra.mxu0 0.0
      %3416 = vmatpush.msra.mxu0 0.0
      %3417 = vmatpush.msra.mxu0 0.0
      %3418 = vmatpush.msra.mxu0 0.0
      %3419 = vmatpush.msra.mxu0 0.0
      %3420 = vmatpush.msra.mxu0 0.0
      %3421 = vmatpush.msra.mxu0 0.0
      %3422 = vmatpush.msra.mxu0 0.0
      %3423 = vmatpush.msra.mxu0 0.0
      %3424 = vmatpush.msra.mxu0 0.0
      %3425 = vmatpush.msra.mxu0 0.0
      %3426 = vmatpush.msra.mxu0 %v304
      %3427 = vmatmul.f32.gmra.mxu0 %v681
      %v3428 = vpop.f32.mrf.mxu0
      %v3429 = vadd.f32 0.0, %v3428
      %3430 = vmatmul.f32.gmra.mxu0 %v683
      %v3431 = vpop.f32.mrf.mxu0
      %v3432 = vadd.f32 0.0, %v3431
      %3433 = vmatmul.f32.gmra.mxu0 %v685
      %v3434 = vpop.f32.mrf.mxu0
      %v3435 = vadd.f32 0.0, %v3434
      %3436 = vmatmul.f32.gmra.mxu0 %v687
      %v3437 = vpop.f32.mrf.mxu0
      %v3438 = vadd.f32 0.0, %v3437
      %3439 = vmatmul.f32.gmra.mxu0 %v689
      %v3440 = vpop.f32.mrf.mxu0
      %v3441 = vadd.f32 0.0, %v3440
      %3442 = vmatmul.f32.gmra.mxu0 %v691
      %v3443 = vpop.f32.mrf.mxu0
      %v3444 = vadd.f32 0.0, %v3443
      %3445 = vmatmul.f32.gmra.mxu0 %v693
      %v3446 = vpop.f32.mrf.mxu0
      %v3447 = vadd.f32 0.0, %v3446
      %3448 = vmatmul.f32.gmra.mxu0 %v695
      %v3449 = vpop.f32.mrf.mxu0
      %v3450 = vadd.f32 0.0, %v3449
      %3451 = vmatmul.f32.gmra.mxu0 %v697
      %v3452 = vpop.f32.mrf.mxu0
      %v3453 = vadd.f32 0.0, %v3452
      %3454 = vmatmul.f32.gmra.mxu0 %v699
      %v3455 = vpop.f32.mrf.mxu0
      %v3456 = vadd.f32 0.0, %v3455
      %3457 = vmatmul.f32.gmra.mxu0 %v701
      %v3458 = vpop.f32.mrf.mxu0
      %v3459 = vadd.f32 0.0, %v3458
      %3460 = vmatmul.f32.gmra.mxu0 %v703
      %v3461 = vpop.f32.mrf.mxu0
      %v3462 = vadd.f32 0.0, %v3461
      %3463 = vmatmul.f32.gmra.mxu0 %v705
      %v3464 = vpop.f32.mrf.mxu0
      %v3465 = vadd.f32 0.0, %v3464
      %3466 = vmatmul.f32.gmra.mxu0 %v707
      %v3467 = vpop.f32.mrf.mxu0
      %v3468 = vadd.f32 0.0, %v3467
      %3469 = vmatmul.f32.gmra.mxu0 %v709
      %v3470 = vpop.f32.mrf.mxu0
      %v3471 = vadd.f32 0.0, %v3470
      %3472 = vmatmul.f32.gmra.mxu0 %v711
      %v3473 = vpop.f32.mrf.mxu0
      %v3474 = vadd.f32 0.0, %v3473
      %3475 = vmatmul.f32.gmra.mxu0 %v713
      %v3476 = vpop.f32.mrf.mxu0
      %v3477 = vadd.f32 0.0, %v3476
      %3478 = vmatmul.f32.gmra.mxu0 %v715
      %v3479 = vpop.f32.mrf.mxu0
      %v3480 = vadd.f32 0.0, %v3479
      %3481 = vmatmul.f32.gmra.mxu0 %v717
      %v3482 = vpop.f32.mrf.mxu0
      %v3483 = vadd.f32 0.0, %v3482
      %3484 = vmatmul.f32.gmra.mxu0 %v719
      %v3485 = vpop.f32.mrf.mxu0
      %v3486 = vadd.f32 0.0, %v3485
      %3487 = vmatmul.f32.gmra.mxu0 %v721
      %v3488 = vpop.f32.mrf.mxu0
      %v3489 = vadd.f32 0.0, %v3488
      %3490 = vmatmul.f32.gmra.mxu0 %v723
      %v3491 = vpop.f32.mrf.mxu0
      %v3492 = vadd.f32 0.0, %v3491
      %3493 = vmatmul.f32.gmra.mxu0 %v725
      %v3494 = vpop.f32.mrf.mxu0
      %v3495 = vadd.f32 0.0, %v3494
      %3496 = vmatmul.f32.gmra.mxu0 %v727
      %v3497 = vpop.f32.mrf.mxu0
      %v3498 = vadd.f32 0.0, %v3497
      %3499 = vmatmul.f32.gmra.mxu0 %v729
      %v3500 = vpop.f32.mrf.mxu0
      %v3501 = vadd.f32 0.0, %v3500
      %3502 = vmatmul.f32.gmra.mxu0 %v731
      %v3503 = vpop.f32.mrf.mxu0
      %v3504 = vadd.f32 0.0, %v3503
      %3505 = vmatmul.f32.gmra.mxu0 %v733
      %v3506 = vpop.f32.mrf.mxu0
      %v3507 = vadd.f32 0.0, %v3506
      %3508 = vmatmul.f32.gmra.mxu0 %v735
      %v3509 = vpop.f32.mrf.mxu0
      %v3510 = vadd.f32 0.0, %v3509
      %3511 = vmatmul.f32.gmra.mxu0 %v737
      %v3512 = vpop.f32.mrf.mxu0
      %v3513 = vadd.f32 0.0, %v3512
      %3514 = vmatmul.f32.gmra.mxu0 %v739
      %v3515 = vpop.f32.mrf.mxu0
      %v3516 = vadd.f32 0.0, %v3515
      %3517 = vmatmul.f32.gmra.mxu0 %v741
      %v3518 = vpop.f32.mrf.mxu0
      %v3519 = vadd.f32 0.0, %v3518
      %3520 = vmatmul.f32.gmra.mxu0 %v743
      %v3521 = vpop.f32.mrf.mxu0
      %v3522 = vadd.f32 0.0, %v3521
      %3523 = vmatmul.f32.gmra.mxu0 %v745
      %v3524 = vpop.f32.mrf.mxu0
      %v3525 = vadd.f32 0.0, %v3524
      %3526 = vmatmul.f32.gmra.mxu0 %v747
      %v3527 = vpop.f32.mrf.mxu0
      %v3528 = vadd.f32 0.0, %v3527
      %3529 = vmatmul.f32.gmra.mxu0 %v749
      %v3530 = vpop.f32.mrf.mxu0
      %v3531 = vadd.f32 0.0, %v3530
      %3532 = vmatmul.f32.gmra.mxu0 %v751
      %v3533 = vpop.f32.mrf.mxu0
      %v3534 = vadd.f32 0.0, %v3533
      %3535 = vmatmul.f32.gmra.mxu0 %v753
      %v3536 = vpop.f32.mrf.mxu0
      %v3537 = vadd.f32 0.0, %v3536
      %3538 = vmatmul.f32.gmra.mxu0 %v755
      %v3539 = vpop.f32.mrf.mxu0
      %v3540 = vadd.f32 0.0, %v3539
      %3541 = vmatmul.f32.gmra.mxu0 %v757
      %v3542 = vpop.f32.mrf.mxu0
      %v3543 = vadd.f32 0.0, %v3542
      %3544 = vmatmul.f32.gmra.mxu0 %v759
      %v3545 = vpop.f32.mrf.mxu0
      %v3546 = vadd.f32 0.0, %v3545
      %3547 = vmatmul.f32.gmra.mxu0 %v761
      %v3548 = vpop.f32.mrf.mxu0
      %v3549 = vadd.f32 0.0, %v3548
      %3550 = vmatmul.f32.gmra.mxu0 %v763
      %v3551 = vpop.f32.mrf.mxu0
      %v3552 = vadd.f32 0.0, %v3551
      %3553 = vmatmul.f32.gmra.mxu0 %v765
      %v3554 = vpop.f32.mrf.mxu0
      %v3555 = vadd.f32 0.0, %v3554
      %3556 = vmatmul.f32.gmra.mxu0 %v767
      %v3557 = vpop.f32.mrf.mxu0
      %v3558 = vadd.f32 0.0, %v3557
      %3559 = vmatmul.f32.gmra.mxu0 %v769
      %v3560 = vpop.f32.mrf.mxu0
      %v3561 = vadd.f32 0.0, %v3560
      %3562 = vmatmul.f32.gmra.mxu0 %v771
      %v3563 = vpop.f32.mrf.mxu0
      %v3564 = vadd.f32 0.0, %v3563
      %3565 = vmatmul.f32.gmra.mxu0 %v773
      %v3566 = vpop.f32.mrf.mxu0
      %v3567 = vadd.f32 0.0, %v3566
      %3568 = vmatmul.f32.gmra.mxu0 %v775
      %v3569 = vpop.f32.mrf.mxu0
      %v3570 = vadd.f32 0.0, %v3569
      %3571 = vmatmul.f32.gmra.mxu0 %v777
      %v3572 = vpop.f32.mrf.mxu0
      %v3573 = vadd.f32 0.0, %v3572
      %3574 = vmatmul.f32.gmra.mxu0 %v779
      %v3575 = vpop.f32.mrf.mxu0
      %v3576 = vadd.f32 0.0, %v3575
      %3577 = vmatmul.f32.gmra.mxu0 %v781
      %v3578 = vpop.f32.mrf.mxu0
      %v3579 = vadd.f32 0.0, %v3578
      %3580 = vmatmul.f32.gmra.mxu0 %v783
      %v3581 = vpop.f32.mrf.mxu0
      %v3582 = vadd.f32 0.0, %v3581
      %3583 = vmatmul.f32.gmra.mxu0 %v785
      %v3584 = vpop.f32.mrf.mxu0
      %v3585 = vadd.f32 0.0, %v3584
      %3586 = vmatmul.f32.gmra.mxu0 %v787
      %v3587 = vpop.f32.mrf.mxu0
      %v3588 = vadd.f32 0.0, %v3587
      %3589 = vmatmul.f32.gmra.mxu0 %v789
      %v3590 = vpop.f32.mrf.mxu0
      %v3591 = vadd.f32 0.0, %v3590
      %3592 = vmatmul.f32.gmra.mxu0 %v791
      %v3593 = vpop.f32.mrf.mxu0
      %v3594 = vadd.f32 0.0, %v3593
      %3595 = vmatmul.f32.gmra.mxu0 %v793
      %v3596 = vpop.f32.mrf.mxu0
      %v3597 = vadd.f32 0.0, %v3596
      %3598 = vmatmul.f32.gmra.mxu0 %v795
      %v3599 = vpop.f32.mrf.mxu0
      %v3600 = vadd.f32 0.0, %v3599
      %3601 = vmatmul.f32.gmra.mxu0 %v797
      %v3602 = vpop.f32.mrf.mxu0
      %v3603 = vadd.f32 0.0, %v3602
      %3604 = vmatmul.f32.gmra.mxu0 %v799
      %v3605 = vpop.f32.mrf.mxu0
      %v3606 = vadd.f32 0.0, %v3605
      %3607 = vmatmul.f32.gmra.mxu0 %v801
      %v3608 = vpop.f32.mrf.mxu0
      %v3609 = vadd.f32 0.0, %v3608
      %3610 = vmatmul.f32.gmra.mxu0 %v803
      %v3611 = vpop.f32.mrf.mxu0
      %v3612 = vadd.f32 0.0, %v3611
      %3613 = vmatmul.f32.gmra.mxu0 %v805
      %v3614 = vpop.f32.mrf.mxu0
      %v3615 = vadd.f32 0.0, %v3614
      %3616 = vmatmul.f32.gmra.mxu0 %v807
      %v3617 = vpop.f32.mrf.mxu0
      %v3618 = vadd.f32 0.0, %v3617
      %3619 = vmatmul.f32.gmra.mxu0 %v809
      %v3620 = vpop.f32.mrf.mxu0
      %v3621 = vadd.f32 0.0, %v3620
      %3622 = vmatmul.f32.gmra.mxu0 %v811
      %v3623 = vpop.f32.mrf.mxu0
      %v3624 = vadd.f32 0.0, %v3623
      %3625 = vmatmul.f32.gmra.mxu0 %v813
      %v3626 = vpop.f32.mrf.mxu0
      %v3627 = vadd.f32 0.0, %v3626
      %3628 = vmatmul.f32.gmra.mxu0 %v815
      %v3629 = vpop.f32.mrf.mxu0
      %v3630 = vadd.f32 0.0, %v3629
      %3631 = vmatmul.f32.gmra.mxu0 %v817
      %v3632 = vpop.f32.mrf.mxu0
      %v3633 = vadd.f32 0.0, %v3632
      %3634 = vmatmul.f32.gmra.mxu0 %v819
      %v3635 = vpop.f32.mrf.mxu0
      %v3636 = vadd.f32 0.0, %v3635
      %3637 = vmatmul.f32.gmra.mxu0 %v821
      %v3638 = vpop.f32.mrf.mxu0
      %v3639 = vadd.f32 0.0, %v3638
      %3640 = vmatmul.f32.gmra.mxu0 %v823
      %v3641 = vpop.f32.mrf.mxu0
      %v3642 = vadd.f32 0.0, %v3641
      %3643 = vmatmul.f32.gmra.mxu0 %v825
      %v3644 = vpop.f32.mrf.mxu0
      %v3645 = vadd.f32 0.0, %v3644
      %3646 = vmatmul.f32.gmra.mxu0 %v827
      %v3647 = vpop.f32.mrf.mxu0
      %v3648 = vadd.f32 0.0, %v3647
      %3649 = vmatmul.f32.gmra.mxu0 %v829
      %v3650 = vpop.f32.mrf.mxu0
      %v3651 = vadd.f32 0.0, %v3650
      %3652 = vmatmul.f32.gmra.mxu0 %v831
      %v3653 = vpop.f32.mrf.mxu0
      %v3654 = vadd.f32 0.0, %v3653
      %3655 = vmatmul.f32.gmra.mxu0 %v833
      %v3656 = vpop.f32.mrf.mxu0
      %v3657 = vadd.f32 0.0, %v3656
      %3658 = vmatmul.f32.gmra.mxu0 %v835
      %v3659 = vpop.f32.mrf.mxu0
      %v3660 = vadd.f32 0.0, %v3659
      %3661 = vmatmul.f32.gmra.mxu0 %v837
      %v3662 = vpop.f32.mrf.mxu0
      %v3663 = vadd.f32 0.0, %v3662
      %3664 = vmatmul.f32.gmra.mxu0 %v839
      %v3665 = vpop.f32.mrf.mxu0
      %v3666 = vadd.f32 0.0, %v3665
      %3667 = vmatmul.f32.gmra.mxu0 %v841
      %v3668 = vpop.f32.mrf.mxu0
      %v3669 = vadd.f32 0.0, %v3668
      %3670 = vmatmul.f32.gmra.mxu0 %v843
      %v3671 = vpop.f32.mrf.mxu0
      %v3672 = vadd.f32 0.0, %v3671
      %3673 = vmatmul.f32.gmra.mxu0 %v845
      %v3674 = vpop.f32.mrf.mxu0
      %v3675 = vadd.f32 0.0, %v3674
      %3676 = vmatmul.f32.gmra.mxu0 %v847
      %v3677 = vpop.f32.mrf.mxu0
      %v3678 = vadd.f32 0.0, %v3677
      %3679 = vmatmul.f32.gmra.mxu0 %v849
      %v3680 = vpop.f32.mrf.mxu0
      %v3681 = vadd.f32 0.0, %v3680
      %3682 = vmatmul.f32.gmra.mxu0 %v851
      %v3683 = vpop.f32.mrf.mxu0
      %v3684 = vadd.f32 0.0, %v3683
      %3685 = vmatmul.f32.gmra.mxu0 %v853
      %v3686 = vpop.f32.mrf.mxu0
      %v3687 = vadd.f32 0.0, %v3686
      %3688 = vmatmul.f32.gmra.mxu0 %v855
      %v3689 = vpop.f32.mrf.mxu0
      %v3690 = vadd.f32 0.0, %v3689
      %3691 = vmatmul.f32.gmra.mxu0 %v857
      %v3692 = vpop.f32.mrf.mxu0
      %v3693 = vadd.f32 0.0, %v3692
      %3694 = vmatmul.f32.gmra.mxu0 %v859
      %v3695 = vpop.f32.mrf.mxu0
      %v3696 = vadd.f32 0.0, %v3695
      %3697 = vmatmul.f32.gmra.mxu0 %v861
      %v3698 = vpop.f32.mrf.mxu0
      %v3699 = vadd.f32 0.0, %v3698
      %3700 = vmatmul.f32.gmra.mxu0 %v863
      %v3701 = vpop.f32.mrf.mxu0
      %v3702 = vadd.f32 0.0, %v3701
      %3703 = vmatmul.f32.gmra.mxu0 %v865
      %v3704 = vpop.f32.mrf.mxu0
      %v3705 = vadd.f32 0.0, %v3704
      %3706 = vmatmul.f32.gmra.mxu0 %v867
      %v3707 = vpop.f32.mrf.mxu0
      %v3708 = vadd.f32 0.0, %v3707
      %3709 = vmatmul.f32.gmra.mxu0 %v869
      %v3710 = vpop.f32.mrf.mxu0
      %v3711 = vadd.f32 0.0, %v3710
      %3712 = vmatmul.f32.gmra.mxu0 %v871
      %v3713 = vpop.f32.mrf.mxu0
      %v3714 = vadd.f32 0.0, %v3713
      %3715 = vmatmul.f32.gmra.mxu0 %v873
      %v3716 = vpop.f32.mrf.mxu0
      %v3717 = vadd.f32 0.0, %v3716
      %3718 = vmatmul.f32.gmra.mxu0 %v875
      %v3719 = vpop.f32.mrf.mxu0
      %v3720 = vadd.f32 0.0, %v3719
      %3721 = vmatmul.f32.gmra.mxu0 %v877
      %v3722 = vpop.f32.mrf.mxu0
      %v3723 = vadd.f32 0.0, %v3722
      %3724 = vmatmul.f32.gmra.mxu0 %v879
      %v3725 = vpop.f32.mrf.mxu0
      %v3726 = vadd.f32 0.0, %v3725
      %3727 = vmatmul.f32.gmra.mxu0 %v881
      %v3728 = vpop.f32.mrf.mxu0
      %v3729 = vadd.f32 0.0, %v3728
      %3730 = vmatmul.f32.gmra.mxu0 %v883
      %v3731 = vpop.f32.mrf.mxu0
      %v3732 = vadd.f32 0.0, %v3731
      %3733 = vmatmul.f32.gmra.mxu0 %v885
      %v3734 = vpop.f32.mrf.mxu0
      %v3735 = vadd.f32 0.0, %v3734
      %3736 = vmatmul.f32.gmra.mxu0 %v887
      %v3737 = vpop.f32.mrf.mxu0
      %v3738 = vadd.f32 0.0, %v3737
      %3739 = vmatmul.f32.gmra.mxu0 %v889
      %v3740 = vpop.f32.mrf.mxu0
      %v3741 = vadd.f32 0.0, %v3740
      %3742 = vmatmul.f32.gmra.mxu0 %v891
      %v3743 = vpop.f32.mrf.mxu0
      %v3744 = vadd.f32 0.0, %v3743
      %3745 = vmatmul.f32.gmra.mxu0 %v893
      %v3746 = vpop.f32.mrf.mxu0
      %v3747 = vadd.f32 0.0, %v3746
      %3748 = vmatmul.f32.gmra.mxu0 %v895
      %v3749 = vpop.f32.mrf.mxu0
      %v3750 = vadd.f32 0.0, %v3749
      %3751 = vmatmul.f32.gmra.mxu0 %v897
      %v3752 = vpop.f32.mrf.mxu0
      %v3753 = vadd.f32 0.0, %v3752
      %3754 = vmatmul.f32.gmra.mxu0 %v899
      %v3755 = vpop.f32.mrf.mxu0
      %v3756 = vadd.f32 0.0, %v3755
      %3757 = vmatmul.f32.gmra.mxu0 %v901
      %v3758 = vpop.f32.mrf.mxu0
      %v3759 = vadd.f32 0.0, %v3758
      %3760 = vmatmul.f32.gmra.mxu0 %v903
      %v3761 = vpop.f32.mrf.mxu0
      %v3762 = vadd.f32 0.0, %v3761
      %3763 = vmatmul.f32.gmra.mxu0 %v905
      %v3764 = vpop.f32.mrf.mxu0
      %v3765 = vadd.f32 0.0, %v3764
      %3766 = vmatmul.f32.gmra.mxu0 %v907
      %v3767 = vpop.f32.mrf.mxu0
      %v3768 = vadd.f32 0.0, %v3767
      %3769 = vmatmul.f32.gmra.mxu0 %v909
      %v3770 = vpop.f32.mrf.mxu0
      %v3771 = vadd.f32 0.0, %v3770
      %3772 = vmatmul.f32.gmra.mxu0 %v911
      %v3773 = vpop.f32.mrf.mxu0
      %v3774 = vadd.f32 0.0, %v3773
      %3775 = vmatmul.f32.gmra.mxu0 %v3403
      %v3776 = vpop.f32.mrf.mxu0
      %v3777 = vadd.f32 0.0, %v3776
      %3778 = vmatmul.f32.gmra.mxu0 %v3405
      %v3779 = vpop.f32.mrf.mxu0
      %v3780 = vadd.f32 0.0, %v3779
      %3781 = vmatmul.f32.gmra.mxu0 %v3407
      %v3782 = vpop.f32.mrf.mxu0
      %v3783 = vadd.f32 0.0, %v3782
      %3784 = vmatmul.f32.gmra.mxu0 %v3409
      %v3785 = vpop.f32.mrf.mxu0
      %v3786 = vadd.f32 0.0, %v3785
      %3787 = vdwg.mxu0
      %v3788 = vadd.f32 %v3274, %v3429
      %v3789 = vadd.f32 %v3275, %v3432
      %v3790 = vadd.f32 %v3276, %v3435
      %v3791 = vadd.f32 %v3277, %v3438
      %v3792 = vadd.f32 %v3278, %v3441
      %v3793 = vadd.f32 %v3279, %v3444
      %v3794 = vadd.f32 %v3280, %v3447
      %v3795 = vadd.f32 %v3281, %v3450
      %v3796 = vadd.f32 %v3282, %v3453
      %v3797 = vadd.f32 %v3283, %v3456
      %v3798 = vadd.f32 %v3284, %v3459
      %v3799 = vadd.f32 %v3285, %v3462
      %v3800 = vadd.f32 %v3286, %v3465
      %v3801 = vadd.f32 %v3287, %v3468
      %v3802 = vadd.f32 %v3288, %v3471
      %v3803 = vadd.f32 %v3289, %v3474
      %v3804 = vadd.f32 %v3290, %v3477
      %v3805 = vadd.f32 %v3291, %v3480
      %v3806 = vadd.f32 %v3292, %v3483
      %v3807 = vadd.f32 %v3293, %v3486
      %v3808 = vadd.f32 %v3294, %v3489
      %v3809 = vadd.f32 %v3295, %v3492
      %v3810 = vadd.f32 %v3296, %v3495
      %v3811 = vadd.f32 %v3297, %v3498
      %v3812 = vadd.f32 %v3298, %v3501
      %v3813 = vadd.f32 %v3299, %v3504
      %v3814 = vadd.f32 %v3300, %v3507
      %v3815 = vadd.f32 %v3301, %v3510
      %v3816 = vadd.f32 %v3302, %v3513
      %v3817 = vadd.f32 %v3303, %v3516
      %v3818 = vadd.f32 %v3304, %v3519
      %v3819 = vadd.f32 %v3305, %v3522
      %v3820 = vadd.f32 %v3306, %v3525
      %v3821 = vadd.f32 %v3307, %v3528
      %v3822 = vadd.f32 %v3308, %v3531
      %v3823 = vadd.f32 %v3309, %v3534
      %v3824 = vadd.f32 %v3310, %v3537
      %v3825 = vadd.f32 %v3311, %v3540
      %v3826 = vadd.f32 %v3312, %v3543
      %v3827 = vadd.f32 %v3313, %v3546
      %v3828 = vadd.f32 %v3314, %v3549
      %v3829 = vadd.f32 %v3315, %v3552
      %v3830 = vadd.f32 %v3316, %v3555
      %v3831 = vadd.f32 %v3317, %v3558
      %v3832 = vadd.f32 %v3318, %v3561
      %v3833 = vadd.f32 %v3319, %v3564
      %v3834 = vadd.f32 %v3320, %v3567
      %v3835 = vadd.f32 %v3321, %v3570
      %v3836 = vadd.f32 %v3322, %v3573
      %v3837 = vadd.f32 %v3323, %v3576
      %v3838 = vadd.f32 %v3324, %v3579
      %v3839 = vadd.f32 %v3325, %v3582
      %v3840 = vadd.f32 %v3326, %v3585
      %v3841 = vadd.f32 %v3327, %v3588
      %v3842 = vadd.f32 %v3328, %v3591
      %v3843 = vadd.f32 %v3329, %v3594
      %v3844 = vadd.f32 %v3330, %v3597
      %v3845 = vadd.f32 %v3331, %v3600
      %v3846 = vadd.f32 %v3332, %v3603
      %v3847 = vadd.f32 %v3333, %v3606
      %v3848 = vadd.f32 %v3334, %v3609
      %v3849 = vadd.f32 %v3335, %v3612
      %v3850 = vadd.f32 %v3336, %v3615
      %v3851 = vadd.f32 %v3337, %v3618
      %v3852 = vadd.f32 %v3338, %v3621
      %v3853 = vadd.f32 %v3339, %v3624
      %v3854 = vadd.f32 %v3340, %v3627
      %v3855 = vadd.f32 %v3341, %v3630
      %v3856 = vadd.f32 %v3342, %v3633
      %v3857 = vadd.f32 %v3343, %v3636
      %v3858 = vadd.f32 %v3344, %v3639
      %v3859 = vadd.f32 %v3345, %v3642
      %v3860 = vadd.f32 %v3346, %v3645
      %v3861 = vadd.f32 %v3347, %v3648
      %v3862 = vadd.f32 %v3348, %v3651
      %v3863 = vadd.f32 %v3349, %v3654
      %v3864 = vadd.f32 %v3350, %v3657
      %v3865 = vadd.f32 %v3351, %v3660
      %v3866 = vadd.f32 %v3352, %v3663
      %v3867 = vadd.f32 %v3353, %v3666
      %v3868 = vadd.f32 %v3354, %v3669
      %v3869 = vadd.f32 %v3355, %v3672
      %v3870 = vadd.f32 %v3356, %v3675
      %v3871 = vadd.f32 %v3357, %v3678
      %v3872 = vadd.f32 %v3358, %v3681
      %v3873 = vadd.f32 %v3359, %v3684
      %v3874 = vadd.f32 %v3360, %v3687
      %v3875 = vadd.f32 %v3361, %v3690
      %v3876 = vadd.f32 %v3362, %v3693
      %v3877 = vadd.f32 %v3363, %v3696
      %v3878 = vadd.f32 %v3364, %v3699
      %v3879 = vadd.f32 %v3365, %v3702
      %v3880 = vadd.f32 %v3366, %v3705
      %v3881 = vadd.f32 %v3367, %v3708
      %v3882 = vadd.f32 %v3368, %v3711
      %v3883 = vadd.f32 %v3369, %v3714
      %v3884 = vadd.f32 %v3370, %v3717
      %v3885 = vadd.f32 %v3371, %v3720
      %v3886 = vadd.f32 %v3372, %v3723
      %v3887 = vadd.f32 %v3373, %v3726
      %v3888 = vadd.f32 %v3374, %v3729
      %v3889 = vadd.f32 %v3375, %v3732
      %v3890 = vadd.f32 %v3376, %v3735
      %v3891 = vadd.f32 %v3377, %v3738
      %v3892 = vadd.f32 %v3378, %v3741
      %v3893 = vadd.f32 %v3379, %v3744
      %v3894 = vadd.f32 %v3380, %v3747
      %v3895 = vadd.f32 %v3381, %v3750
      %v3896 = vadd.f32 %v3382, %v3753
      %v3897 = vadd.f32 %v3383, %v3756
      %v3898 = vadd.f32 %v3384, %v3759
      %v3899 = vadd.f32 %v3385, %v3762
      %v3900 = vadd.f32 %v3386, %v3765
      %v3901 = vadd.f32 %v3387, %v3768
      %v3902 = vadd.f32 %v3388, %v3771
      %v3903 = vadd.f32 %v3389, %v3774
      %v3904 = vadd.f32 %v3390, %v3777
      %v3905 = vadd.f32 %v3391, %v3780
      %v3906 = vadd.f32 %v3392, %v3783
      %v3907 = vadd.f32 %v3393, %v3786
      %v3908 = vrot.slane %v292, 2
      %v3909 = vsel %vm1907, %v2147, %v3908
      %v3910 = vrot.slane %v293, 2
      %v3911 = vsel %vm1907, %v3908, %v3910
      %v3912 = vrot.slane %v294, 2
      %v3913 = vsel %vm1907, %v3910, %v3912
      %v3914 = vrot.slane %v295, 2
      %v3915 = vsel %vm1907, %v3912, %v3914
      %v3916 = vsel %vm672, %v3909, 0
      %v3918 = vsel %vm672, %v3911, 0
      %v3920 = vsel %vm672, %v3913, 0
      %v3922 = vsel %vm672, %v3915, 0
      %3924 = vmatpush.msra.mxu0 0.0
      %3925 = vmatpush.msra.mxu0 0.0
      %3926 = vmatpush.msra.mxu0 0.0
      %3927 = vmatpush.msra.mxu0 0.0
      %3928 = vmatpush.msra.mxu0 0.0
      %3929 = vmatpush.msra.mxu0 0.0
      %3930 = vmatpush.msra.mxu0 0.0
      %3931 = vmatpush.msra.mxu0 0.0
      %3932 = vmatpush.msra.mxu0 0.0
      %3933 = vmatpush.msra.mxu0 0.0
      %3934 = vmatpush.msra.mxu0 0.0
      %3935 = vmatpush.msra.mxu0 0.0
      %3936 = vmatpush.msra.mxu0 0.0
      %3937 = vmatpush.msra.mxu0 0.0
      %3938 = vmatpush.msra.mxu0 0.0
      %3939 = vmatpush.msra.mxu0 %v305
      %3940 = vmatmul.f32.gmra.mxu0 %v2157
      %v3941 = vpop.f32.mrf.mxu0
      %v3942 = vadd.f32 0.0, %v3941
      %3943 = vmatmul.f32.gmra.mxu0 %v2159
      %v3944 = vpop.f32.mrf.mxu0
      %v3945 = vadd.f32 0.0, %v3944
      %3946 = vmatmul.f32.gmra.mxu0 %v2161
      %v3947 = vpop.f32.mrf.mxu0
      %v3948 = vadd.f32 0.0, %v3947
      %3949 = vmatmul.f32.gmra.mxu0 %v2163
      %v3950 = vpop.f32.mrf.mxu0
      %v3951 = vadd.f32 0.0, %v3950
      %3952 = vmatmul.f32.gmra.mxu0 %v2165
      %v3953 = vpop.f32.mrf.mxu0
      %v3954 = vadd.f32 0.0, %v3953
      %3955 = vmatmul.f32.gmra.mxu0 %v2167
      %v3956 = vpop.f32.mrf.mxu0
      %v3957 = vadd.f32 0.0, %v3956
      %3958 = vmatmul.f32.gmra.mxu0 %v2169
      %v3959 = vpop.f32.mrf.mxu0
      %v3960 = vadd.f32 0.0, %v3959
      %3961 = vmatmul.f32.gmra.mxu0 %v2171
      %v3962 = vpop.f32.mrf.mxu0
      %v3963 = vadd.f32 0.0, %v3962
      %3964 = vmatmul.f32.gmra.mxu0 %v2173
      %v3965 = vpop.f32.mrf.mxu0
      %v3966 = vadd.f32 0.0, %v3965
      %3967 = vmatmul.f32.gmra.mxu0 %v2175
      %v3968 = vpop.f32.mrf.mxu0
      %v3969 = vadd.f32 0.0, %v3968
      %3970 = vmatmul.f32.gmra.mxu0 %v2177
      %v3971 = vpop.f32.mrf.mxu0
      %v3972 = vadd.f32 0.0, %v3971
      %3973 = vmatmul.f32.gmra.mxu0 %v2179
      %v3974 = vpop.f32.mrf.mxu0
      %v3975 = vadd.f32 0.0, %v3974
      %3976 = vmatmul.f32.gmra.mxu0 %v2181
      %v3977 = vpop.f32.mrf.mxu0
      %v3978 = vadd.f32 0.0, %v3977
      %3979 = vmatmul.f32.gmra.mxu0 %v2183
      %v3980 = vpop.f32.mrf.mxu0
      %v3981 = vadd.f32 0.0, %v3980
      %3982 = vmatmul.f32.gmra.mxu0 %v2185
      %v3983 = vpop.f32.mrf.mxu0
      %v3984 = vadd.f32 0.0, %v3983
      %3985 = vmatmul.f32.gmra.mxu0 %v2187
      %v3986 = vpop.f32.mrf.mxu0
      %v3987 = vadd.f32 0.0, %v3986
      %3988 = vmatmul.f32.gmra.mxu0 %v2189
      %v3989 = vpop.f32.mrf.mxu0
      %v3990 = vadd.f32 0.0, %v3989
      %3991 = vmatmul.f32.gmra.mxu0 %v2191
      %v3992 = vpop.f32.mrf.mxu0
      %v3993 = vadd.f32 0.0, %v3992
      %3994 = vmatmul.f32.gmra.mxu0 %v2193
      %v3995 = vpop.f32.mrf.mxu0
      %v3996 = vadd.f32 0.0, %v3995
      %3997 = vmatmul.f32.gmra.mxu0 %v2195
      %v3998 = vpop.f32.mrf.mxu0
      %v3999 = vadd.f32 0.0, %v3998
      %4000 = vmatmul.f32.gmra.mxu0 %v2197
      %v4001 = vpop.f32.mrf.mxu0
      %v4002 = vadd.f32 0.0, %v4001
      %4003 = vmatmul.f32.gmra.mxu0 %v2199
      %v4004 = vpop.f32.mrf.mxu0
      %v4005 = vadd.f32 0.0, %v4004
      %4006 = vmatmul.f32.gmra.mxu0 %v2201
      %v4007 = vpop.f32.mrf.mxu0
      %v4008 = vadd.f32 0.0, %v4007
      %4009 = vmatmul.f32.gmra.mxu0 %v2203
      %v4010 = vpop.f32.mrf.mxu0
      %v4011 = vadd.f32 0.0, %v4010
      %4012 = vmatmul.f32.gmra.mxu0 %v2205
      %v4013 = vpop.f32.mrf.mxu0
      %v4014 = vadd.f32 0.0, %v4013
      %4015 = vmatmul.f32.gmra.mxu0 %v2207
      %v4016 = vpop.f32.mrf.mxu0
      %v4017 = vadd.f32 0.0, %v4016
      %4018 = vmatmul.f32.gmra.mxu0 %v2209
      %v4019 = vpop.f32.mrf.mxu0
      %v4020 = vadd.f32 0.0, %v4019
      %4021 = vmatmul.f32.gmra.mxu0 %v2211
      %v4022 = vpop.f32.mrf.mxu0
      %v4023 = vadd.f32 0.0, %v4022
      %4024 = vmatmul.f32.gmra.mxu0 %v2213
      %v4025 = vpop.f32.mrf.mxu0
      %v4026 = vadd.f32 0.0, %v4025
      %4027 = vmatmul.f32.gmra.mxu0 %v2215
      %v4028 = vpop.f32.mrf.mxu0
      %v4029 = vadd.f32 0.0, %v4028
      %4030 = vmatmul.f32.gmra.mxu0 %v2217
      %v4031 = vpop.f32.mrf.mxu0
      %v4032 = vadd.f32 0.0, %v4031
      %4033 = vmatmul.f32.gmra.mxu0 %v2219
      %v4034 = vpop.f32.mrf.mxu0
      %v4035 = vadd.f32 0.0, %v4034
      %4036 = vmatmul.f32.gmra.mxu0 %v2221
      %v4037 = vpop.f32.mrf.mxu0
      %v4038 = vadd.f32 0.0, %v4037
      %4039 = vmatmul.f32.gmra.mxu0 %v2223
      %v4040 = vpop.f32.mrf.mxu0
      %v4041 = vadd.f32 0.0, %v4040
      %4042 = vmatmul.f32.gmra.mxu0 %v2225
      %v4043 = vpop.f32.mrf.mxu0
      %v4044 = vadd.f32 0.0, %v4043
      %4045 = vmatmul.f32.gmra.mxu0 %v2227
      %v4046 = vpop.f32.mrf.mxu0
      %v4047 = vadd.f32 0.0, %v4046
      %4048 = vmatmul.f32.gmra.mxu0 %v2229
      %v4049 = vpop.f32.mrf.mxu0
      %v4050 = vadd.f32 0.0, %v4049
      %4051 = vmatmul.f32.gmra.mxu0 %v2231
      %v4052 = vpop.f32.mrf.mxu0
      %v4053 = vadd.f32 0.0, %v4052
      %4054 = vmatmul.f32.gmra.mxu0 %v2233
      %v4055 = vpop.f32.mrf.mxu0
      %v4056 = vadd.f32 0.0, %v4055
      %4057 = vmatmul.f32.gmra.mxu0 %v2235
      %v4058 = vpop.f32.mrf.mxu0
      %v4059 = vadd.f32 0.0, %v4058
      %4060 = vmatmul.f32.gmra.mxu0 %v2237
      %v4061 = vpop.f32.mrf.mxu0
      %v4062 = vadd.f32 0.0, %v4061
      %4063 = vmatmul.f32.gmra.mxu0 %v2239
      %v4064 = vpop.f32.mrf.mxu0
      %v4065 = vadd.f32 0.0, %v4064
      %4066 = vmatmul.f32.gmra.mxu0 %v2241
      %v4067 = vpop.f32.mrf.mxu0
      %v4068 = vadd.f32 0.0, %v4067
      %4069 = vmatmul.f32.gmra.mxu0 %v2243
      %v4070 = vpop.f32.mrf.mxu0
      %v4071 = vadd.f32 0.0, %v4070
      %4072 = vmatmul.f32.gmra.mxu0 %v2245
      %v4073 = vpop.f32.mrf.mxu0
      %v4074 = vadd.f32 0.0, %v4073
      %4075 = vmatmul.f32.gmra.mxu0 %v2247
      %v4076 = vpop.f32.mrf.mxu0
      %v4077 = vadd.f32 0.0, %v4076
      %4078 = vmatmul.f32.gmra.mxu0 %v2249
      %v4079 = vpop.f32.mrf.mxu0
      %v4080 = vadd.f32 0.0, %v4079
      %4081 = vmatmul.f32.gmra.mxu0 %v2251
      %v4082 = vpop.f32.mrf.mxu0
      %v4083 = vadd.f32 0.0, %v4082
      %4084 = vmatmul.f32.gmra.mxu0 %v2253
      %v4085 = vpop.f32.mrf.mxu0
      %v4086 = vadd.f32 0.0, %v4085
      %4087 = vmatmul.f32.gmra.mxu0 %v2255
      %v4088 = vpop.f32.mrf.mxu0
      %v4089 = vadd.f32 0.0, %v4088
      %4090 = vmatmul.f32.gmra.mxu0 %v2257
      %v4091 = vpop.f32.mrf.mxu0
      %v4092 = vadd.f32 0.0, %v4091
      %4093 = vmatmul.f32.gmra.mxu0 %v2259
      %v4094 = vpop.f32.mrf.mxu0
      %v4095 = vadd.f32 0.0, %v4094
      %4096 = vmatmul.f32.gmra.mxu0 %v2261
      %v4097 = vpop.f32.mrf.mxu0
      %v4098 = vadd.f32 0.0, %v4097
      %4099 = vmatmul.f32.gmra.mxu0 %v2263
      %v4100 = vpop.f32.mrf.mxu0
      %v4101 = vadd.f32 0.0, %v4100
      %4102 = vmatmul.f32.gmra.mxu0 %v2265
      %v4103 = vpop.f32.mrf.mxu0
      %v4104 = vadd.f32 0.0, %v4103
      %4105 = vmatmul.f32.gmra.mxu0 %v2267
      %v4106 = vpop.f32.mrf.mxu0
      %v4107 = vadd.f32 0.0, %v4106
      %4108 = vmatmul.f32.gmra.mxu0 %v2269
      %v4109 = vpop.f32.mrf.mxu0
      %v4110 = vadd.f32 0.0, %v4109
      %4111 = vmatmul.f32.gmra.mxu0 %v2271
      %v4112 = vpop.f32.mrf.mxu0
      %v4113 = vadd.f32 0.0, %v4112
      %4114 = vmatmul.f32.gmra.mxu0 %v2273
      %v4115 = vpop.f32.mrf.mxu0
      %v4116 = vadd.f32 0.0, %v4115
      %4117 = vmatmul.f32.gmra.mxu0 %v2275
      %v4118 = vpop.f32.mrf.mxu0
      %v4119 = vadd.f32 0.0, %v4118
      %4120 = vmatmul.f32.gmra.mxu0 %v2277
      %v4121 = vpop.f32.mrf.mxu0
      %v4122 = vadd.f32 0.0, %v4121
      %4123 = vmatmul.f32.gmra.mxu0 %v2279
      %v4124 = vpop.f32.mrf.mxu0
      %v4125 = vadd.f32 0.0, %v4124
      %4126 = vmatmul.f32.gmra.mxu0 %v2281
      %v4127 = vpop.f32.mrf.mxu0
      %v4128 = vadd.f32 0.0, %v4127
      %4129 = vmatmul.f32.gmra.mxu0 %v2283
      %v4130 = vpop.f32.mrf.mxu0
      %v4131 = vadd.f32 0.0, %v4130
      %4132 = vmatmul.f32.gmra.mxu0 %v2285
      %v4133 = vpop.f32.mrf.mxu0
      %v4134 = vadd.f32 0.0, %v4133
      %4135 = vmatmul.f32.gmra.mxu0 %v2287
      %v4136 = vpop.f32.mrf.mxu0
      %v4137 = vadd.f32 0.0, %v4136
      %4138 = vmatmul.f32.gmra.mxu0 %v2289
      %v4139 = vpop.f32.mrf.mxu0
      %v4140 = vadd.f32 0.0, %v4139
      %4141 = vmatmul.f32.gmra.mxu0 %v2291
      %v4142 = vpop.f32.mrf.mxu0
      %v4143 = vadd.f32 0.0, %v4142
      %4144 = vmatmul.f32.gmra.mxu0 %v2293
      %v4145 = vpop.f32.mrf.mxu0
      %v4146 = vadd.f32 0.0, %v4145
      %4147 = vmatmul.f32.gmra.mxu0 %v2295
      %v4148 = vpop.f32.mrf.mxu0
      %v4149 = vadd.f32 0.0, %v4148
      %4150 = vmatmul.f32.gmra.mxu0 %v2297
      %v4151 = vpop.f32.mrf.mxu0
      %v4152 = vadd.f32 0.0, %v4151
      %4153 = vmatmul.f32.gmra.mxu0 %v2299
      %v4154 = vpop.f32.mrf.mxu0
      %v4155 = vadd.f32 0.0, %v4154
      %4156 = vmatmul.f32.gmra.mxu0 %v2301
      %v4157 = vpop.f32.mrf.mxu0
      %v4158 = vadd.f32 0.0, %v4157
      %4159 = vmatmul.f32.gmra.mxu0 %v2303
      %v4160 = vpop.f32.mrf.mxu0
      %v4161 = vadd.f32 0.0, %v4160
      %4162 = vmatmul.f32.gmra.mxu0 %v2305
      %v4163 = vpop.f32.mrf.mxu0
      %v4164 = vadd.f32 0.0, %v4163
      %4165 = vmatmul.f32.gmra.mxu0 %v2307
      %v4166 = vpop.f32.mrf.mxu0
      %v4167 = vadd.f32 0.0, %v4166
      %4168 = vmatmul.f32.gmra.mxu0 %v2309
      %v4169 = vpop.f32.mrf.mxu0
      %v4170 = vadd.f32 0.0, %v4169
      %4171 = vmatmul.f32.gmra.mxu0 %v2311
      %v4172 = vpop.f32.mrf.mxu0
      %v4173 = vadd.f32 0.0, %v4172
      %4174 = vmatmul.f32.gmra.mxu0 %v2313
      %v4175 = vpop.f32.mrf.mxu0
      %v4176 = vadd.f32 0.0, %v4175
      %4177 = vmatmul.f32.gmra.mxu0 %v2315
      %v4178 = vpop.f32.mrf.mxu0
      %v4179 = vadd.f32 0.0, %v4178
      %4180 = vmatmul.f32.gmra.mxu0 %v2317
      %v4181 = vpop.f32.mrf.mxu0
      %v4182 = vadd.f32 0.0, %v4181
      %4183 = vmatmul.f32.gmra.mxu0 %v2319
      %v4184 = vpop.f32.mrf.mxu0
      %v4185 = vadd.f32 0.0, %v4184
      %4186 = vmatmul.f32.gmra.mxu0 %v2321
      %v4187 = vpop.f32.mrf.mxu0
      %v4188 = vadd.f32 0.0, %v4187
      %4189 = vmatmul.f32.gmra.mxu0 %v2323
      %v4190 = vpop.f32.mrf.mxu0
      %v4191 = vadd.f32 0.0, %v4190
      %4192 = vmatmul.f32.gmra.mxu0 %v2325
      %v4193 = vpop.f32.mrf.mxu0
      %v4194 = vadd.f32 0.0, %v4193
      %4195 = vmatmul.f32.gmra.mxu0 %v2327
      %v4196 = vpop.f32.mrf.mxu0
      %v4197 = vadd.f32 0.0, %v4196
      %4198 = vmatmul.f32.gmra.mxu0 %v2329
      %v4199 = vpop.f32.mrf.mxu0
      %v4200 = vadd.f32 0.0, %v4199
      %4201 = vmatmul.f32.gmra.mxu0 %v2331
      %v4202 = vpop.f32.mrf.mxu0
      %v4203 = vadd.f32 0.0, %v4202
      %4204 = vmatmul.f32.gmra.mxu0 %v2333
      %v4205 = vpop.f32.mrf.mxu0
      %v4206 = vadd.f32 0.0, %v4205
      %4207 = vmatmul.f32.gmra.mxu0 %v2335
      %v4208 = vpop.f32.mrf.mxu0
      %v4209 = vadd.f32 0.0, %v4208
      %4210 = vmatmul.f32.gmra.mxu0 %v2337
      %v4211 = vpop.f32.mrf.mxu0
      %v4212 = vadd.f32 0.0, %v4211
      %4213 = vmatmul.f32.gmra.mxu0 %v2339
      %v4214 = vpop.f32.mrf.mxu0
      %v4215 = vadd.f32 0.0, %v4214
      %4216 = vmatmul.f32.gmra.mxu0 %v2341
      %v4217 = vpop.f32.mrf.mxu0
      %v4218 = vadd.f32 0.0, %v4217
      %4219 = vmatmul.f32.gmra.mxu0 %v2343
      %v4220 = vpop.f32.mrf.mxu0
      %v4221 = vadd.f32 0.0, %v4220
      %4222 = vmatmul.f32.gmra.mxu0 %v2345
      %v4223 = vpop.f32.mrf.mxu0
      %v4224 = vadd.f32 0.0, %v4223
      %4225 = vmatmul.f32.gmra.mxu0 %v2347
      %v4226 = vpop.f32.mrf.mxu0
      %v4227 = vadd.f32 0.0, %v4226
      %4228 = vmatmul.f32.gmra.mxu0 %v2349
      %v4229 = vpop.f32.mrf.mxu0
      %v4230 = vadd.f32 0.0, %v4229
      %4231 = vmatmul.f32.gmra.mxu0 %v2351
      %v4232 = vpop.f32.mrf.mxu0
      %v4233 = vadd.f32 0.0, %v4232
      %4234 = vmatmul.f32.gmra.mxu0 %v2353
      %v4235 = vpop.f32.mrf.mxu0
      %v4236 = vadd.f32 0.0, %v4235
      %4237 = vmatmul.f32.gmra.mxu0 %v2355
      %v4238 = vpop.f32.mrf.mxu0
      %v4239 = vadd.f32 0.0, %v4238
      %4240 = vmatmul.f32.gmra.mxu0 %v2357
      %v4241 = vpop.f32.mrf.mxu0
      %v4242 = vadd.f32 0.0, %v4241
      %4243 = vmatmul.f32.gmra.mxu0 %v2359
      %v4244 = vpop.f32.mrf.mxu0
      %v4245 = vadd.f32 0.0, %v4244
      %4246 = vmatmul.f32.gmra.mxu0 %v2361
      %v4247 = vpop.f32.mrf.mxu0
      %v4248 = vadd.f32 0.0, %v4247
      %4249 = vmatmul.f32.gmra.mxu0 %v2363
      %v4250 = vpop.f32.mrf.mxu0
      %v4251 = vadd.f32 0.0, %v4250
      %4252 = vmatmul.f32.gmra.mxu0 %v2365
      %v4253 = vpop.f32.mrf.mxu0
      %v4254 = vadd.f32 0.0, %v4253
      %4255 = vmatmul.f32.gmra.mxu0 %v2367
      %v4256 = vpop.f32.mrf.mxu0
      %v4257 = vadd.f32 0.0, %v4256
      %4258 = vmatmul.f32.gmra.mxu0 %v2369
      %v4259 = vpop.f32.mrf.mxu0
      %v4260 = vadd.f32 0.0, %v4259
      %4261 = vmatmul.f32.gmra.mxu0 %v2371
      %v4262 = vpop.f32.mrf.mxu0
      %v4263 = vadd.f32 0.0, %v4262
      %4264 = vmatmul.f32.gmra.mxu0 %v2373
      %v4265 = vpop.f32.mrf.mxu0
      %v4266 = vadd.f32 0.0, %v4265
      %4267 = vmatmul.f32.gmra.mxu0 %v2375
      %v4268 = vpop.f32.mrf.mxu0
      %v4269 = vadd.f32 0.0, %v4268
      %4270 = vmatmul.f32.gmra.mxu0 %v2377
      %v4271 = vpop.f32.mrf.mxu0
      %v4272 = vadd.f32 0.0, %v4271
      %4273 = vmatmul.f32.gmra.mxu0 %v2379
      %v4274 = vpop.f32.mrf.mxu0
      %v4275 = vadd.f32 0.0, %v4274
      %4276 = vmatmul.f32.gmra.mxu0 %v2381
      %v4277 = vpop.f32.mrf.mxu0
      %v4278 = vadd.f32 0.0, %v4277
      %4279 = vmatmul.f32.gmra.mxu0 %v2383
      %v4280 = vpop.f32.mrf.mxu0
      %v4281 = vadd.f32 0.0, %v4280
      %4282 = vmatmul.f32.gmra.mxu0 %v2385
      %v4283 = vpop.f32.mrf.mxu0
      %v4284 = vadd.f32 0.0, %v4283
      %4285 = vmatmul.f32.gmra.mxu0 %v2387
      %v4286 = vpop.f32.mrf.mxu0
      %v4287 = vadd.f32 0.0, %v4286
      %4288 = vmatmul.f32.gmra.mxu0 %v3916
      %v4289 = vpop.f32.mrf.mxu0
      %v4290 = vadd.f32 0.0, %v4289
      %4291 = vmatmul.f32.gmra.mxu0 %v3918
      %v4292 = vpop.f32.mrf.mxu0
      %v4293 = vadd.f32 0.0, %v4292
      %4294 = vmatmul.f32.gmra.mxu0 %v3920
      %v4295 = vpop.f32.mrf.mxu0
      %v4296 = vadd.f32 0.0, %v4295
      %4297 = vmatmul.f32.gmra.mxu0 %v3922
      %v4298 = vpop.f32.mrf.mxu0
      %v4299 = vadd.f32 0.0, %v4298
      %4300 = vdwg.mxu0
      %v4301 = vadd.f32 %v3788, %v3942
      %v4302 = vadd.f32 %v3789, %v3945
      %v4303 = vadd.f32 %v3790, %v3948
      %v4304 = vadd.f32 %v3791, %v3951
      %v4305 = vadd.f32 %v3792, %v3954
      %v4306 = vadd.f32 %v3793, %v3957
      %v4307 = vadd.f32 %v3794, %v3960
      %v4308 = vadd.f32 %v3795, %v3963
      %v4309 = vadd.f32 %v3796, %v3966
      %v4310 = vadd.f32 %v3797, %v3969
      %v4311 = vadd.f32 %v3798, %v3972
      %v4312 = vadd.f32 %v3799, %v3975
      %v4313 = vadd.f32 %v3800, %v3978
      %v4314 = vadd.f32 %v3801, %v3981
      %v4315 = vadd.f32 %v3802, %v3984
      %v4316 = vadd.f32 %v3803, %v3987
      %v4317 = vadd.f32 %v3804, %v3990
      %v4318 = vadd.f32 %v3805, %v3993
      %v4319 = vadd.f32 %v3806, %v3996
      %v4320 = vadd.f32 %v3807, %v3999
      %v4321 = vadd.f32 %v3808, %v4002
      %v4322 = vadd.f32 %v3809, %v4005
      %v4323 = vadd.f32 %v3810, %v4008
      %v4324 = vadd.f32 %v3811, %v4011
      %v4325 = vadd.f32 %v3812, %v4014
      %v4326 = vadd.f32 %v3813, %v4017
      %v4327 = vadd.f32 %v3814, %v4020
      %v4328 = vadd.f32 %v3815, %v4023
      %v4329 = vadd.f32 %v3816, %v4026
      %v4330 = vadd.f32 %v3817, %v4029
      %v4331 = vadd.f32 %v3818, %v4032
      %v4332 = vadd.f32 %v3819, %v4035
      %v4333 = vadd.f32 %v3820, %v4038
      %v4334 = vadd.f32 %v3821, %v4041
      %v4335 = vadd.f32 %v3822, %v4044
      %v4336 = vadd.f32 %v3823, %v4047
      %v4337 = vadd.f32 %v3824, %v4050
      %v4338 = vadd.f32 %v3825, %v4053
      %v4339 = vadd.f32 %v3826, %v4056
      %v4340 = vadd.f32 %v3827, %v4059
      %v4341 = vadd.f32 %v3828, %v4062
      %v4342 = vadd.f32 %v3829, %v4065
      %v4343 = vadd.f32 %v3830, %v4068
      %v4344 = vadd.f32 %v3831, %v4071
      %v4345 = vadd.f32 %v3832, %v4074
      %v4346 = vadd.f32 %v3833, %v4077
      %v4347 = vadd.f32 %v3834, %v4080
      %v4348 = vadd.f32 %v3835, %v4083
      %v4349 = vadd.f32 %v3836, %v4086
      %v4350 = vadd.f32 %v3837, %v4089
      %v4351 = vadd.f32 %v3838, %v4092
      %v4352 = vadd.f32 %v3839, %v4095
      %v4353 = vadd.f32 %v3840, %v4098
      %v4354 = vadd.f32 %v3841, %v4101
      %v4355 = vadd.f32 %v3842, %v4104
      %v4356 = vadd.f32 %v3843, %v4107
      %v4357 = vadd.f32 %v3844, %v4110
      %v4358 = vadd.f32 %v3845, %v4113
      %v4359 = vadd.f32 %v3846, %v4116
      %v4360 = vadd.f32 %v3847, %v4119
      %v4361 = vadd.f32 %v3848, %v4122
      %v4362 = vadd.f32 %v3849, %v4125
      %v4363 = vadd.f32 %v3850, %v4128
      %v4364 = vadd.f32 %v3851, %v4131
      %v4365 = vadd.f32 %v3852, %v4134
      %v4366 = vadd.f32 %v3853, %v4137
      %v4367 = vadd.f32 %v3854, %v4140
      %v4368 = vadd.f32 %v3855, %v4143
      %v4369 = vadd.f32 %v3856, %v4146
      %v4370 = vadd.f32 %v3857, %v4149
      %v4371 = vadd.f32 %v3858, %v4152
      %v4372 = vadd.f32 %v3859, %v4155
      %v4373 = vadd.f32 %v3860, %v4158
      %v4374 = vadd.f32 %v3861, %v4161
      %v4375 = vadd.f32 %v3862, %v4164
      %v4376 = vadd.f32 %v3863, %v4167
      %v4377 = vadd.f32 %v3864, %v4170
      %v4378 = vadd.f32 %v3865, %v4173
      %v4379 = vadd.f32 %v3866, %v4176
      %v4380 = vadd.f32 %v3867, %v4179
      %v4381 = vadd.f32 %v3868, %v4182
      %v4382 = vadd.f32 %v3869, %v4185
      %v4383 = vadd.f32 %v3870, %v4188
      %v4384 = vadd.f32 %v3871, %v4191
      %v4385 = vadd.f32 %v3872, %v4194
      %v4386 = vadd.f32 %v3873, %v4197
      %v4387 = vadd.f32 %v3874, %v4200
      %v4388 = vadd.f32 %v3875, %v4203
      %v4389 = vadd.f32 %v3876, %v4206
      %v4390 = vadd.f32 %v3877, %v4209
      %v4391 = vadd.f32 %v3878, %v4212
      %v4392 = vadd.f32 %v3879, %v4215
      %v4393 = vadd.f32 %v3880, %v4218
      %v4394 = vadd.f32 %v3881, %v4221
      %v4395 = vadd.f32 %v3882, %v4224
      %v4396 = vadd.f32 %v3883, %v4227
      %v4397 = vadd.f32 %v3884, %v4230
      %v4398 = vadd.f32 %v3885, %v4233
      %v4399 = vadd.f32 %v3886, %v4236
      %v4400 = vadd.f32 %v3887, %v4239
      %v4401 = vadd.f32 %v3888, %v4242
      %v4402 = vadd.f32 %v3889, %v4245
      %v4403 = vadd.f32 %v3890, %v4248
      %v4404 = vadd.f32 %v3891, %v4251
      %v4405 = vadd.f32 %v3892, %v4254
      %v4406 = vadd.f32 %v3893, %v4257
      %v4407 = vadd.f32 %v3894, %v4260
      %v4408 = vadd.f32 %v3895, %v4263
      %v4409 = vadd.f32 %v3896, %v4266
      %v4410 = vadd.f32 %v3897, %v4269
      %v4411 = vadd.f32 %v3898, %v4272
      %v4412 = vadd.f32 %v3899, %v4275
      %v4413 = vadd.f32 %v3900, %v4278
      %v4414 = vadd.f32 %v3901, %v4281
      %v4415 = vadd.f32 %v3902, %v4284
      %v4416 = vadd.f32 %v3903, %v4287
      %v4417 = vadd.f32 %v3904, %v4290
      %v4418 = vadd.f32 %v3905, %v4293
      %v4419 = vadd.f32 %v3906, %v4296
      %v4420 = vadd.f32 %v3907, %v4299
      %v4421 = vsel %vm672, %v295, 0
      %v4424 = vsel %vm672, %v296, 0
      %v4427 = vsel %vm672, %v297, 0
      %v4430 = vsel %vm672, %v298, 0
      %4432 = vmatpush.msra.mxu0 0.0
      %4433 = vmatpush.msra.mxu0 0.0
      %4434 = vmatpush.msra.mxu0 0.0
      %4435 = vmatpush.msra.mxu0 0.0
      %4436 = vmatpush.msra.mxu0 0.0
      %4437 = vmatpush.msra.mxu0 0.0
      %4438 = vmatpush.msra.mxu0 0.0
      %4439 = vmatpush.msra.mxu0 0.0
      %4440 = vmatpush.msra.mxu0 0.0
      %4441 = vmatpush.msra.mxu0 0.0
      %4442 = vmatpush.msra.mxu0 0.0
      %4443 = vmatpush.msra.mxu0 0.0
      %4444 = vmatpush.msra.mxu0 0.0
      %4445 = vmatpush.msra.mxu0 0.0
      %4446 = vmatpush.msra.mxu0 0.0
      %4447 = vmatpush.msra.mxu0 %v306
      %4448 = vmatmul.f32.gmra.mxu0 %v1306
      %v4449 = vpop.f32.mrf.mxu0
      %v4450 = vadd.f32 0.0, %v4449
      %4451 = vmatmul.f32.gmra.mxu0 %v1308
      %v4452 = vpop.f32.mrf.mxu0
      %v4453 = vadd.f32 0.0, %v4452
      %4454 = vmatmul.f32.gmra.mxu0 %v1310
      %v4455 = vpop.f32.mrf.mxu0
      %v4456 = vadd.f32 0.0, %v4455
      %4457 = vmatmul.f32.gmra.mxu0 %v1312
      %v4458 = vpop.f32.mrf.mxu0
      %v4459 = vadd.f32 0.0, %v4458
      %4460 = vmatmul.f32.gmra.mxu0 %v1314
      %v4461 = vpop.f32.mrf.mxu0
      %v4462 = vadd.f32 0.0, %v4461
      %4463 = vmatmul.f32.gmra.mxu0 %v1316
      %v4464 = vpop.f32.mrf.mxu0
      %v4465 = vadd.f32 0.0, %v4464
      %4466 = vmatmul.f32.gmra.mxu0 %v1318
      %v4467 = vpop.f32.mrf.mxu0
      %v4468 = vadd.f32 0.0, %v4467
      %4469 = vmatmul.f32.gmra.mxu0 %v1320
      %v4470 = vpop.f32.mrf.mxu0
      %v4471 = vadd.f32 0.0, %v4470
      %4472 = vmatmul.f32.gmra.mxu0 %v1322
      %v4473 = vpop.f32.mrf.mxu0
      %v4474 = vadd.f32 0.0, %v4473
      %4475 = vmatmul.f32.gmra.mxu0 %v1324
      %v4476 = vpop.f32.mrf.mxu0
      %v4477 = vadd.f32 0.0, %v4476
      %4478 = vmatmul.f32.gmra.mxu0 %v1326
      %v4479 = vpop.f32.mrf.mxu0
      %v4480 = vadd.f32 0.0, %v4479
      %4481 = vmatmul.f32.gmra.mxu0 %v1328
      %v4482 = vpop.f32.mrf.mxu0
      %v4483 = vadd.f32 0.0, %v4482
      %4484 = vmatmul.f32.gmra.mxu0 %v1330
      %v4485 = vpop.f32.mrf.mxu0
      %v4486 = vadd.f32 0.0, %v4485
      %4487 = vmatmul.f32.gmra.mxu0 %v1332
      %v4488 = vpop.f32.mrf.mxu0
      %v4489 = vadd.f32 0.0, %v4488
      %4490 = vmatmul.f32.gmra.mxu0 %v1334
      %v4491 = vpop.f32.mrf.mxu0
      %v4492 = vadd.f32 0.0, %v4491
      %4493 = vmatmul.f32.gmra.mxu0 %v1336
      %v4494 = vpop.f32.mrf.mxu0
      %v4495 = vadd.f32 0.0, %v4494
      %4496 = vmatmul.f32.gmra.mxu0 %v1338
      %v4497 = vpop.f32.mrf.mxu0
      %v4498 = vadd.f32 0.0, %v4497
      %4499 = vmatmul.f32.gmra.mxu0 %v1340
      %v4500 = vpop.f32.mrf.mxu0
      %v4501 = vadd.f32 0.0, %v4500
      %4502 = vmatmul.f32.gmra.mxu0 %v1342
      %v4503 = vpop.f32.mrf.mxu0
      %v4504 = vadd.f32 0.0, %v4503
      %4505 = vmatmul.f32.gmra.mxu0 %v1344
      %v4506 = vpop.f32.mrf.mxu0
      %v4507 = vadd.f32 0.0, %v4506
      %4508 = vmatmul.f32.gmra.mxu0 %v1346
      %v4509 = vpop.f32.mrf.mxu0
      %v4510 = vadd.f32 0.0, %v4509
      %4511 = vmatmul.f32.gmra.mxu0 %v1348
      %v4512 = vpop.f32.mrf.mxu0
      %v4513 = vadd.f32 0.0, %v4512
      %4514 = vmatmul.f32.gmra.mxu0 %v1350
      %v4515 = vpop.f32.mrf.mxu0
      %v4516 = vadd.f32 0.0, %v4515
      %4517 = vmatmul.f32.gmra.mxu0 %v1352
      %v4518 = vpop.f32.mrf.mxu0
      %v4519 = vadd.f32 0.0, %v4518
      %4520 = vmatmul.f32.gmra.mxu0 %v1354
      %v4521 = vpop.f32.mrf.mxu0
      %v4522 = vadd.f32 0.0, %v4521
      %4523 = vmatmul.f32.gmra.mxu0 %v1356
      %v4524 = vpop.f32.mrf.mxu0
      %v4525 = vadd.f32 0.0, %v4524
      %4526 = vmatmul.f32.gmra.mxu0 %v1358
      %v4527 = vpop.f32.mrf.mxu0
      %v4528 = vadd.f32 0.0, %v4527
      %4529 = vmatmul.f32.gmra.mxu0 %v1360
      %v4530 = vpop.f32.mrf.mxu0
      %v4531 = vadd.f32 0.0, %v4530
      %4532 = vmatmul.f32.gmra.mxu0 %v1362
      %v4533 = vpop.f32.mrf.mxu0
      %v4534 = vadd.f32 0.0, %v4533
      %4535 = vmatmul.f32.gmra.mxu0 %v1364
      %v4536 = vpop.f32.mrf.mxu0
      %v4537 = vadd.f32 0.0, %v4536
      %4538 = vmatmul.f32.gmra.mxu0 %v1366
      %v4539 = vpop.f32.mrf.mxu0
      %v4540 = vadd.f32 0.0, %v4539
      %4541 = vmatmul.f32.gmra.mxu0 %v1368
      %v4542 = vpop.f32.mrf.mxu0
      %v4543 = vadd.f32 0.0, %v4542
      %4544 = vmatmul.f32.gmra.mxu0 %v1370
      %v4545 = vpop.f32.mrf.mxu0
      %v4546 = vadd.f32 0.0, %v4545
      %4547 = vmatmul.f32.gmra.mxu0 %v1372
      %v4548 = vpop.f32.mrf.mxu0
      %v4549 = vadd.f32 0.0, %v4548
      %4550 = vmatmul.f32.gmra.mxu0 %v1374
      %v4551 = vpop.f32.mrf.mxu0
      %v4552 = vadd.f32 0.0, %v4551
      %4553 = vmatmul.f32.gmra.mxu0 %v1376
      %v4554 = vpop.f32.mrf.mxu0
      %v4555 = vadd.f32 0.0, %v4554
      %4556 = vmatmul.f32.gmra.mxu0 %v1378
      %v4557 = vpop.f32.mrf.mxu0
      %v4558 = vadd.f32 0.0, %v4557
      %4559 = vmatmul.f32.gmra.mxu0 %v1380
      %v4560 = vpop.f32.mrf.mxu0
      %v4561 = vadd.f32 0.0, %v4560
      %4562 = vmatmul.f32.gmra.mxu0 %v1382
      %v4563 = vpop.f32.mrf.mxu0
      %v4564 = vadd.f32 0.0, %v4563
      %4565 = vmatmul.f32.gmra.mxu0 %v1384
      %v4566 = vpop.f32.mrf.mxu0
      %v4567 = vadd.f32 0.0, %v4566
      %4568 = vmatmul.f32.gmra.mxu0 %v1386
      %v4569 = vpop.f32.mrf.mxu0
      %v4570 = vadd.f32 0.0, %v4569
      %4571 = vmatmul.f32.gmra.mxu0 %v1388
      %v4572 = vpop.f32.mrf.mxu0
      %v4573 = vadd.f32 0.0, %v4572
      %4574 = vmatmul.f32.gmra.mxu0 %v1390
      %v4575 = vpop.f32.mrf.mxu0
      %v4576 = vadd.f32 0.0, %v4575
      %4577 = vmatmul.f32.gmra.mxu0 %v1392
      %v4578 = vpop.f32.mrf.mxu0
      %v4579 = vadd.f32 0.0, %v4578
      %4580 = vmatmul.f32.gmra.mxu0 %v1394
      %v4581 = vpop.f32.mrf.mxu0
      %v4582 = vadd.f32 0.0, %v4581
      %4583 = vmatmul.f32.gmra.mxu0 %v1396
      %v4584 = vpop.f32.mrf.mxu0
      %v4585 = vadd.f32 0.0, %v4584
      %4586 = vmatmul.f32.gmra.mxu0 %v1398
      %v4587 = vpop.f32.mrf.mxu0
      %v4588 = vadd.f32 0.0, %v4587
      %4589 = vmatmul.f32.gmra.mxu0 %v1400
      %v4590 = vpop.f32.mrf.mxu0
      %v4591 = vadd.f32 0.0, %v4590
      %4592 = vmatmul.f32.gmra.mxu0 %v1402
      %v4593 = vpop.f32.mrf.mxu0
      %v4594 = vadd.f32 0.0, %v4593
      %4595 = vmatmul.f32.gmra.mxu0 %v1404
      %v4596 = vpop.f32.mrf.mxu0
      %v4597 = vadd.f32 0.0, %v4596
      %4598 = vmatmul.f32.gmra.mxu0 %v1406
      %v4599 = vpop.f32.mrf.mxu0
      %v4600 = vadd.f32 0.0, %v4599
      %4601 = vmatmul.f32.gmra.mxu0 %v1408
      %v4602 = vpop.f32.mrf.mxu0
      %v4603 = vadd.f32 0.0, %v4602
      %4604 = vmatmul.f32.gmra.mxu0 %v1410
      %v4605 = vpop.f32.mrf.mxu0
      %v4606 = vadd.f32 0.0, %v4605
      %4607 = vmatmul.f32.gmra.mxu0 %v1412
      %v4608 = vpop.f32.mrf.mxu0
      %v4609 = vadd.f32 0.0, %v4608
      %4610 = vmatmul.f32.gmra.mxu0 %v1414
      %v4611 = vpop.f32.mrf.mxu0
      %v4612 = vadd.f32 0.0, %v4611
      %4613 = vmatmul.f32.gmra.mxu0 %v1416
      %v4614 = vpop.f32.mrf.mxu0
      %v4615 = vadd.f32 0.0, %v4614
      %4616 = vmatmul.f32.gmra.mxu0 %v1418
      %v4617 = vpop.f32.mrf.mxu0
      %v4618 = vadd.f32 0.0, %v4617
      %4619 = vmatmul.f32.gmra.mxu0 %v1420
      %v4620 = vpop.f32.mrf.mxu0
      %v4621 = vadd.f32 0.0, %v4620
      %4622 = vmatmul.f32.gmra.mxu0 %v1422
      %v4623 = vpop.f32.mrf.mxu0
      %v4624 = vadd.f32 0.0, %v4623
      %4625 = vmatmul.f32.gmra.mxu0 %v1424
      %v4626 = vpop.f32.mrf.mxu0
      %v4627 = vadd.f32 0.0, %v4626
      %4628 = vmatmul.f32.gmra.mxu0 %v1426
      %v4629 = vpop.f32.mrf.mxu0
      %v4630 = vadd.f32 0.0, %v4629
      %4631 = vmatmul.f32.gmra.mxu0 %v1428
      %v4632 = vpop.f32.mrf.mxu0
      %v4633 = vadd.f32 0.0, %v4632
      %4634 = vmatmul.f32.gmra.mxu0 %v1430
      %v4635 = vpop.f32.mrf.mxu0
      %v4636 = vadd.f32 0.0, %v4635
      %4637 = vmatmul.f32.gmra.mxu0 %v1432
      %v4638 = vpop.f32.mrf.mxu0
      %v4639 = vadd.f32 0.0, %v4638
      %4640 = vmatmul.f32.gmra.mxu0 %v1434
      %v4641 = vpop.f32.mrf.mxu0
      %v4642 = vadd.f32 0.0, %v4641
      %4643 = vmatmul.f32.gmra.mxu0 %v1436
      %v4644 = vpop.f32.mrf.mxu0
      %v4645 = vadd.f32 0.0, %v4644
      %4646 = vmatmul.f32.gmra.mxu0 %v1438
      %v4647 = vpop.f32.mrf.mxu0
      %v4648 = vadd.f32 0.0, %v4647
      %4649 = vmatmul.f32.gmra.mxu0 %v1440
      %v4650 = vpop.f32.mrf.mxu0
      %v4651 = vadd.f32 0.0, %v4650
      %4652 = vmatmul.f32.gmra.mxu0 %v1442
      %v4653 = vpop.f32.mrf.mxu0
      %v4654 = vadd.f32 0.0, %v4653
      %4655 = vmatmul.f32.gmra.mxu0 %v1444
      %v4656 = vpop.f32.mrf.mxu0
      %v4657 = vadd.f32 0.0, %v4656
      %4658 = vmatmul.f32.gmra.mxu0 %v1446
      %v4659 = vpop.f32.mrf.mxu0
      %v4660 = vadd.f32 0.0, %v4659
      %4661 = vmatmul.f32.gmra.mxu0 %v1448
      %v4662 = vpop.f32.mrf.mxu0
      %v4663 = vadd.f32 0.0, %v4662
      %4664 = vmatmul.f32.gmra.mxu0 %v1450
      %v4665 = vpop.f32.mrf.mxu0
      %v4666 = vadd.f32 0.0, %v4665
      %4667 = vmatmul.f32.gmra.mxu0 %v1452
      %v4668 = vpop.f32.mrf.mxu0
      %v4669 = vadd.f32 0.0, %v4668
      %4670 = vmatmul.f32.gmra.mxu0 %v1454
      %v4671 = vpop.f32.mrf.mxu0
      %v4672 = vadd.f32 0.0, %v4671
      %4673 = vmatmul.f32.gmra.mxu0 %v1456
      %v4674 = vpop.f32.mrf.mxu0
      %v4675 = vadd.f32 0.0, %v4674
      %4676 = vmatmul.f32.gmra.mxu0 %v1458
      %v4677 = vpop.f32.mrf.mxu0
      %v4678 = vadd.f32 0.0, %v4677
      %4679 = vmatmul.f32.gmra.mxu0 %v1460
      %v4680 = vpop.f32.mrf.mxu0
      %v4681 = vadd.f32 0.0, %v4680
      %4682 = vmatmul.f32.gmra.mxu0 %v1462
      %v4683 = vpop.f32.mrf.mxu0
      %v4684 = vadd.f32 0.0, %v4683
      %4685 = vmatmul.f32.gmra.mxu0 %v1464
      %v4686 = vpop.f32.mrf.mxu0
      %v4687 = vadd.f32 0.0, %v4686
      %4688 = vmatmul.f32.gmra.mxu0 %v1466
      %v4689 = vpop.f32.mrf.mxu0
      %v4690 = vadd.f32 0.0, %v4689
      %4691 = vmatmul.f32.gmra.mxu0 %v1468
      %v4692 = vpop.f32.mrf.mxu0
      %v4693 = vadd.f32 0.0, %v4692
      %4694 = vmatmul.f32.gmra.mxu0 %v1470
      %v4695 = vpop.f32.mrf.mxu0
      %v4696 = vadd.f32 0.0, %v4695
      %4697 = vmatmul.f32.gmra.mxu0 %v1472
      %v4698 = vpop.f32.mrf.mxu0
      %v4699 = vadd.f32 0.0, %v4698
      %4700 = vmatmul.f32.gmra.mxu0 %v1474
      %v4701 = vpop.f32.mrf.mxu0
      %v4702 = vadd.f32 0.0, %v4701
      %4703 = vmatmul.f32.gmra.mxu0 %v1476
      %v4704 = vpop.f32.mrf.mxu0
      %v4705 = vadd.f32 0.0, %v4704
      %4706 = vmatmul.f32.gmra.mxu0 %v1478
      %v4707 = vpop.f32.mrf.mxu0
      %v4708 = vadd.f32 0.0, %v4707
      %4709 = vmatmul.f32.gmra.mxu0 %v1480
      %v4710 = vpop.f32.mrf.mxu0
      %v4711 = vadd.f32 0.0, %v4710
      %4712 = vmatmul.f32.gmra.mxu0 %v1482
      %v4713 = vpop.f32.mrf.mxu0
      %v4714 = vadd.f32 0.0, %v4713
      %4715 = vmatmul.f32.gmra.mxu0 %v1484
      %v4716 = vpop.f32.mrf.mxu0
      %v4717 = vadd.f32 0.0, %v4716
      %4718 = vmatmul.f32.gmra.mxu0 %v1486
      %v4719 = vpop.f32.mrf.mxu0
      %v4720 = vadd.f32 0.0, %v4719
      %4721 = vmatmul.f32.gmra.mxu0 %v1488
      %v4722 = vpop.f32.mrf.mxu0
      %v4723 = vadd.f32 0.0, %v4722
      %4724 = vmatmul.f32.gmra.mxu0 %v1490
      %v4725 = vpop.f32.mrf.mxu0
      %v4726 = vadd.f32 0.0, %v4725
      %4727 = vmatmul.f32.gmra.mxu0 %v1492
      %v4728 = vpop.f32.mrf.mxu0
      %v4729 = vadd.f32 0.0, %v4728
      %4730 = vmatmul.f32.gmra.mxu0 %v1494
      %v4731 = vpop.f32.mrf.mxu0
      %v4732 = vadd.f32 0.0, %v4731
      %4733 = vmatmul.f32.gmra.mxu0 %v1496
      %v4734 = vpop.f32.mrf.mxu0
      %v4735 = vadd.f32 0.0, %v4734
      %4736 = vmatmul.f32.gmra.mxu0 %v1498
      %v4737 = vpop.f32.mrf.mxu0
      %v4738 = vadd.f32 0.0, %v4737
      %4739 = vmatmul.f32.gmra.mxu0 %v1500
      %v4740 = vpop.f32.mrf.mxu0
      %v4741 = vadd.f32 0.0, %v4740
      %4742 = vmatmul.f32.gmra.mxu0 %v1502
      %v4743 = vpop.f32.mrf.mxu0
      %v4744 = vadd.f32 0.0, %v4743
      %4745 = vmatmul.f32.gmra.mxu0 %v1504
      %v4746 = vpop.f32.mrf.mxu0
      %v4747 = vadd.f32 0.0, %v4746
      %4748 = vmatmul.f32.gmra.mxu0 %v1506
      %v4749 = vpop.f32.mrf.mxu0
      %v4750 = vadd.f32 0.0, %v4749
      %4751 = vmatmul.f32.gmra.mxu0 %v1508
      %v4752 = vpop.f32.mrf.mxu0
      %v4753 = vadd.f32 0.0, %v4752
      %4754 = vmatmul.f32.gmra.mxu0 %v1510
      %v4755 = vpop.f32.mrf.mxu0
      %v4756 = vadd.f32 0.0, %v4755
      %4757 = vmatmul.f32.gmra.mxu0 %v1512
      %v4758 = vpop.f32.mrf.mxu0
      %v4759 = vadd.f32 0.0, %v4758
      %4760 = vmatmul.f32.gmra.mxu0 %v1514
      %v4761 = vpop.f32.mrf.mxu0
      %v4762 = vadd.f32 0.0, %v4761
      %4763 = vmatmul.f32.gmra.mxu0 %v1516
      %v4764 = vpop.f32.mrf.mxu0
      %v4765 = vadd.f32 0.0, %v4764
      %4766 = vmatmul.f32.gmra.mxu0 %v1518
      %v4767 = vpop.f32.mrf.mxu0
      %v4768 = vadd.f32 0.0, %v4767
      %4769 = vmatmul.f32.gmra.mxu0 %v1520
      %v4770 = vpop.f32.mrf.mxu0
      %v4771 = vadd.f32 0.0, %v4770
      %4772 = vmatmul.f32.gmra.mxu0 %v1522
      %v4773 = vpop.f32.mrf.mxu0
      %v4774 = vadd.f32 0.0, %v4773
      %4775 = vmatmul.f32.gmra.mxu0 %v1524
      %v4776 = vpop.f32.mrf.mxu0
      %v4777 = vadd.f32 0.0, %v4776
      %4778 = vmatmul.f32.gmra.mxu0 %v1526
      %v4779 = vpop.f32.mrf.mxu0
      %v4780 = vadd.f32 0.0, %v4779
      %4781 = vmatmul.f32.gmra.mxu0 %v1528
      %v4782 = vpop.f32.mrf.mxu0
      %v4783 = vadd.f32 0.0, %v4782
      %4784 = vmatmul.f32.gmra.mxu0 %v2886
      %v4785 = vpop.f32.mrf.mxu0
      %v4786 = vadd.f32 0.0, %v4785
      %4787 = vmatmul.f32.gmra.mxu0 %v2889
      %v4788 = vpop.f32.mrf.mxu0
      %v4789 = vadd.f32 0.0, %v4788
      %4790 = vmatmul.f32.gmra.mxu0 %v2892
      %v4791 = vpop.f32.mrf.mxu0
      %v4792 = vadd.f32 0.0, %v4791
      %4793 = vmatmul.f32.gmra.mxu0 %v2895
      %v4794 = vpop.f32.mrf.mxu0
      %v4795 = vadd.f32 0.0, %v4794
      %4796 = vmatmul.f32.gmra.mxu0 %v4421
      %v4797 = vpop.f32.mrf.mxu0
      %v4798 = vadd.f32 0.0, %v4797
      %4799 = vmatmul.f32.gmra.mxu0 %v4424
      %v4800 = vpop.f32.mrf.mxu0
      %v4801 = vadd.f32 0.0, %v4800
      %4802 = vmatmul.f32.gmra.mxu0 %v4427
      %v4803 = vpop.f32.mrf.mxu0
      %v4804 = vadd.f32 0.0, %v4803
      %4805 = vmatmul.f32.gmra.mxu0 %v4430
      %v4806 = vpop.f32.mrf.mxu0
      %v4807 = vadd.f32 0.0, %v4806
      %4808 = vdwg.mxu0
      %v4809 = vadd.f32 %v4301, %v4450
      %v4810 = vadd.f32 %v4302, %v4453
      %v4811 = vadd.f32 %v4303, %v4456
      %v4812 = vadd.f32 %v4304, %v4459
      %v4813 = vadd.f32 %v4305, %v4462
      %v4814 = vadd.f32 %v4306, %v4465
      %v4815 = vadd.f32 %v4307, %v4468
      %v4816 = vadd.f32 %v4308, %v4471
      %v4817 = vadd.f32 %v4309, %v4474
      %v4818 = vadd.f32 %v4310, %v4477
      %v4819 = vadd.f32 %v4311, %v4480
      %v4820 = vadd.f32 %v4312, %v4483
      %v4821 = vadd.f32 %v4313, %v4486
      %v4822 = vadd.f32 %v4314, %v4489
      %v4823 = vadd.f32 %v4315, %v4492
      %v4824 = vadd.f32 %v4316, %v4495
      %v4825 = vadd.f32 %v4317, %v4498
      %v4826 = vadd.f32 %v4318, %v4501
      %v4827 = vadd.f32 %v4319, %v4504
      %v4828 = vadd.f32 %v4320, %v4507
      %v4829 = vadd.f32 %v4321, %v4510
      %v4830 = vadd.f32 %v4322, %v4513
      %v4831 = vadd.f32 %v4323, %v4516
      %v4832 = vadd.f32 %v4324, %v4519
      %v4833 = vadd.f32 %v4325, %v4522
      %v4834 = vadd.f32 %v4326, %v4525
      %v4835 = vadd.f32 %v4327, %v4528
      %v4836 = vadd.f32 %v4328, %v4531
      %v4837 = vadd.f32 %v4329, %v4534
      %v4838 = vadd.f32 %v4330, %v4537
      %v4839 = vadd.f32 %v4331, %v4540
      %v4840 = vadd.f32 %v4332, %v4543
      %v4841 = vadd.f32 %v4333, %v4546
      %v4842 = vadd.f32 %v4334, %v4549
      %v4843 = vadd.f32 %v4335, %v4552
      %v4844 = vadd.f32 %v4336, %v4555
      %v4845 = vadd.f32 %v4337, %v4558
      %v4846 = vadd.f32 %v4338, %v4561
      %v4847 = vadd.f32 %v4339, %v4564
      %v4848 = vadd.f32 %v4340, %v4567
      %v4849 = vadd.f32 %v4341, %v4570
      %v4850 = vadd.f32 %v4342, %v4573
      %v4851 = vadd.f32 %v4343, %v4576
      %v4852 = vadd.f32 %v4344, %v4579
      %v4853 = vadd.f32 %v4345, %v4582
      %v4854 = vadd.f32 %v4346, %v4585
      %v4855 = vadd.f32 %v4347, %v4588
      %v4856 = vadd.f32 %v4348, %v4591
      %v4857 = vadd.f32 %v4349, %v4594
      %v4858 = vadd.f32 %v4350, %v4597
      %v4859 = vadd.f32 %v4351, %v4600
      %v4860 = vadd.f32 %v4352, %v4603
      %v4861 = vadd.f32 %v4353, %v4606
      %v4862 = vadd.f32 %v4354, %v4609
      %v4863 = vadd.f32 %v4355, %v4612
      %v4864 = vadd.f32 %v4356, %v4615
      %v4865 = vadd.f32 %v4357, %v4618
      %v4866 = vadd.f32 %v4358, %v4621
      %v4867 = vadd.f32 %v4359, %v4624
      %v4868 = vadd.f32 %v4360, %v4627
      %v4869 = vadd.f32 %v4361, %v4630
      %v4870 = vadd.f32 %v4362, %v4633
      %v4871 = vadd.f32 %v4363, %v4636
      %v4872 = vadd.f32 %v4364, %v4639
      %v4873 = vadd.f32 %v4365, %v4642
      %v4874 = vadd.f32 %v4366, %v4645
      %v4875 = vadd.f32 %v4367, %v4648
      %v4876 = vadd.f32 %v4368, %v4651
      %v4877 = vadd.f32 %v4369, %v4654
      %v4878 = vadd.f32 %v4370, %v4657
      %v4879 = vadd.f32 %v4371, %v4660
      %v4880 = vadd.f32 %v4372, %v4663
      %v4881 = vadd.f32 %v4373, %v4666
      %v4882 = vadd.f32 %v4374, %v4669
      %v4883 = vadd.f32 %v4375, %v4672
      %v4884 = vadd.f32 %v4376, %v4675
      %v4885 = vadd.f32 %v4377, %v4678
      %v4886 = vadd.f32 %v4378, %v4681
      %v4887 = vadd.f32 %v4379, %v4684
      %v4888 = vadd.f32 %v4380, %v4687
      %v4889 = vadd.f32 %v4381, %v4690
      %v4890 = vadd.f32 %v4382, %v4693
      %v4891 = vadd.f32 %v4383, %v4696
      %v4892 = vadd.f32 %v4384, %v4699
      %v4893 = vadd.f32 %v4385, %v4702
      %v4894 = vadd.f32 %v4386, %v4705
      %v4895 = vadd.f32 %v4387, %v4708
      %v4896 = vadd.f32 %v4388, %v4711
      %v4897 = vadd.f32 %v4389, %v4714
      %v4898 = vadd.f32 %v4390, %v4717
      %v4899 = vadd.f32 %v4391, %v4720
      %v4900 = vadd.f32 %v4392, %v4723
      %v4901 = vadd.f32 %v4393, %v4726
      %v4902 = vadd.f32 %v4394, %v4729
      %v4903 = vadd.f32 %v4395, %v4732
      %v4904 = vadd.f32 %v4396, %v4735
      %v4905 = vadd.f32 %v4397, %v4738
      %v4906 = vadd.f32 %v4398, %v4741
      %v4907 = vadd.f32 %v4399, %v4744
      %v4908 = vadd.f32 %v4400, %v4747
      %v4909 = vadd.f32 %v4401, %v4750
      %v4910 = vadd.f32 %v4402, %v4753
      %v4911 = vadd.f32 %v4403, %v4756
      %v4912 = vadd.f32 %v4404, %v4759
      %v4913 = vadd.f32 %v4405, %v4762
      %v4914 = vadd.f32 %v4406, %v4765
      %v4915 = vadd.f32 %v4407, %v4768
      %v4916 = vadd.f32 %v4408, %v4771
      %v4917 = vadd.f32 %v4409, %v4774
      %v4918 = vadd.f32 %v4410, %v4777
      %v4919 = vadd.f32 %v4411, %v4780
      %v4920 = vadd.f32 %v4412, %v4783
      %v4921 = vadd.f32 %v4413, %v4786
      %v4922 = vadd.f32 %v4414, %v4789
      %v4923 = vadd.f32 %v4415, %v4792
      %v4924 = vadd.f32 %v4416, %v4795
      %v4925 = vadd.f32 %v4417, %v4798
      %v4926 = vadd.f32 %v4418, %v4801
      %v4927 = vadd.f32 %v4419, %v4804
      %v4928 = vadd.f32 %v4420, %v4807
      %v4930 = vrot.slane %v296, 1
      %v4931 = vsel %vm430, %v3401, %v4930
      %v4932 = vrot.slane %v297, 1
      %v4933 = vsel %vm430, %v4930, %v4932
      %v4934 = vrot.slane %v298, 1
      %v4935 = vsel %vm430, %v4932, %v4934
      %v4936 = vrot.slane %v299, 1
      %v4937 = vsel %vm430, %v4934, %v4936
      %v4938 = vsel %vm672, %v4931, 0
      %v4940 = vsel %vm672, %v4933, 0
      %v4942 = vsel %vm672, %v4935, 0
      %v4944 = vsel %vm672, %v4937, 0
      %4946 = vmatpush.msra.mxu0 0.0
      %4947 = vmatpush.msra.mxu0 0.0
      %4948 = vmatpush.msra.mxu0 0.0
      %4949 = vmatpush.msra.mxu0 0.0
      %4950 = vmatpush.msra.mxu0 0.0
      %4951 = vmatpush.msra.mxu0 0.0
      %4952 = vmatpush.msra.mxu0 0.0
      %4953 = vmatpush.msra.mxu0 0.0
      %4954 = vmatpush.msra.mxu0 0.0
      %4955 = vmatpush.msra.mxu0 0.0
      %4956 = vmatpush.msra.mxu0 0.0
      %4957 = vmatpush.msra.mxu0 0.0
      %4958 = vmatpush.msra.mxu0 0.0
      %4959 = vmatpush.msra.mxu0 0.0
      %4960 = vmatpush.msra.mxu0 0.0
      %4961 = vmatpush.msra.mxu0 %v307
      %4962 = vmatmul.f32.gmra.mxu0 %v689
      %v4963 = vpop.f32.mrf.mxu0
      %v4964 = vadd.f32 0.0, %v4963
      %4965 = vmatmul.f32.gmra.mxu0 %v691
      %v4966 = vpop.f32.mrf.mxu0
      %v4967 = vadd.f32 0.0, %v4966
      %4968 = vmatmul.f32.gmra.mxu0 %v693
      %v4969 = vpop.f32.mrf.mxu0
      %v4970 = vadd.f32 0.0, %v4969
      %4971 = vmatmul.f32.gmra.mxu0 %v695
      %v4972 = vpop.f32.mrf.mxu0
      %v4973 = vadd.f32 0.0, %v4972
      %4974 = vmatmul.f32.gmra.mxu0 %v697
      %v4975 = vpop.f32.mrf.mxu0
      %v4976 = vadd.f32 0.0, %v4975
      %4977 = vmatmul.f32.gmra.mxu0 %v699
      %v4978 = vpop.f32.mrf.mxu0
      %v4979 = vadd.f32 0.0, %v4978
      %4980 = vmatmul.f32.gmra.mxu0 %v701
      %v4981 = vpop.f32.mrf.mxu0
      %v4982 = vadd.f32 0.0, %v4981
      %4983 = vmatmul.f32.gmra.mxu0 %v703
      %v4984 = vpop.f32.mrf.mxu0
      %v4985 = vadd.f32 0.0, %v4984
      %4986 = vmatmul.f32.gmra.mxu0 %v705
      %v4987 = vpop.f32.mrf.mxu0
      %v4988 = vadd.f32 0.0, %v4987
      %4989 = vmatmul.f32.gmra.mxu0 %v707
      %v4990 = vpop.f32.mrf.mxu0
      %v4991 = vadd.f32 0.0, %v4990
      %4992 = vmatmul.f32.gmra.mxu0 %v709
      %v4993 = vpop.f32.mrf.mxu0
      %v4994 = vadd.f32 0.0, %v4993
      %4995 = vmatmul.f32.gmra.mxu0 %v711
      %v4996 = vpop.f32.mrf.mxu0
      %v4997 = vadd.f32 0.0, %v4996
      %4998 = vmatmul.f32.gmra.mxu0 %v713
      %v4999 = vpop.f32.mrf.mxu0
      %v5000 = vadd.f32 0.0, %v4999
      %5001 = vmatmul.f32.gmra.mxu0 %v715
      %v5002 = vpop.f32.mrf.mxu0
      %v5003 = vadd.f32 0.0, %v5002
      %5004 = vmatmul.f32.gmra.mxu0 %v717
      %v5005 = vpop.f32.mrf.mxu0
      %v5006 = vadd.f32 0.0, %v5005
      %5007 = vmatmul.f32.gmra.mxu0 %v719
      %v5008 = vpop.f32.mrf.mxu0
      %v5009 = vadd.f32 0.0, %v5008
      %5010 = vmatmul.f32.gmra.mxu0 %v721
      %v5011 = vpop.f32.mrf.mxu0
      %v5012 = vadd.f32 0.0, %v5011
      %5013 = vmatmul.f32.gmra.mxu0 %v723
      %v5014 = vpop.f32.mrf.mxu0
      %v5015 = vadd.f32 0.0, %v5014
      %5016 = vmatmul.f32.gmra.mxu0 %v725
      %v5017 = vpop.f32.mrf.mxu0
      %v5018 = vadd.f32 0.0, %v5017
      %5019 = vmatmul.f32.gmra.mxu0 %v727
      %v5020 = vpop.f32.mrf.mxu0
      %v5021 = vadd.f32 0.0, %v5020
      %5022 = vmatmul.f32.gmra.mxu0 %v729
      %v5023 = vpop.f32.mrf.mxu0
      %v5024 = vadd.f32 0.0, %v5023
      %5025 = vmatmul.f32.gmra.mxu0 %v731
      %v5026 = vpop.f32.mrf.mxu0
      %v5027 = vadd.f32 0.0, %v5026
      %5028 = vmatmul.f32.gmra.mxu0 %v733
      %v5029 = vpop.f32.mrf.mxu0
      %v5030 = vadd.f32 0.0, %v5029
      %5031 = vmatmul.f32.gmra.mxu0 %v735
      %v5032 = vpop.f32.mrf.mxu0
      %v5033 = vadd.f32 0.0, %v5032
      %5034 = vmatmul.f32.gmra.mxu0 %v737
      %v5035 = vpop.f32.mrf.mxu0
      %v5036 = vadd.f32 0.0, %v5035
      %5037 = vmatmul.f32.gmra.mxu0 %v739
      %v5038 = vpop.f32.mrf.mxu0
      %v5039 = vadd.f32 0.0, %v5038
      %5040 = vmatmul.f32.gmra.mxu0 %v741
      %v5041 = vpop.f32.mrf.mxu0
      %v5042 = vadd.f32 0.0, %v5041
      %5043 = vmatmul.f32.gmra.mxu0 %v743
      %v5044 = vpop.f32.mrf.mxu0
      %v5045 = vadd.f32 0.0, %v5044
      %5046 = vmatmul.f32.gmra.mxu0 %v745
      %v5047 = vpop.f32.mrf.mxu0
      %v5048 = vadd.f32 0.0, %v5047
      %5049 = vmatmul.f32.gmra.mxu0 %v747
      %v5050 = vpop.f32.mrf.mxu0
      %v5051 = vadd.f32 0.0, %v5050
      %5052 = vmatmul.f32.gmra.mxu0 %v749
      %v5053 = vpop.f32.mrf.mxu0
      %v5054 = vadd.f32 0.0, %v5053
      %5055 = vmatmul.f32.gmra.mxu0 %v751
      %v5056 = vpop.f32.mrf.mxu0
      %v5057 = vadd.f32 0.0, %v5056
      %5058 = vmatmul.f32.gmra.mxu0 %v753
      %v5059 = vpop.f32.mrf.mxu0
      %v5060 = vadd.f32 0.0, %v5059
      %5061 = vmatmul.f32.gmra.mxu0 %v755
      %v5062 = vpop.f32.mrf.mxu0
      %v5063 = vadd.f32 0.0, %v5062
      %5064 = vmatmul.f32.gmra.mxu0 %v757
      %v5065 = vpop.f32.mrf.mxu0
      %v5066 = vadd.f32 0.0, %v5065
      %5067 = vmatmul.f32.gmra.mxu0 %v759
      %v5068 = vpop.f32.mrf.mxu0
      %v5069 = vadd.f32 0.0, %v5068
      %5070 = vmatmul.f32.gmra.mxu0 %v761
      %v5071 = vpop.f32.mrf.mxu0
      %v5072 = vadd.f32 0.0, %v5071
      %5073 = vmatmul.f32.gmra.mxu0 %v763
      %v5074 = vpop.f32.mrf.mxu0
      %v5075 = vadd.f32 0.0, %v5074
      %5076 = vmatmul.f32.gmra.mxu0 %v765
      %v5077 = vpop.f32.mrf.mxu0
      %v5078 = vadd.f32 0.0, %v5077
      %5079 = vmatmul.f32.gmra.mxu0 %v767
      %v5080 = vpop.f32.mrf.mxu0
      %v5081 = vadd.f32 0.0, %v5080
      %5082 = vmatmul.f32.gmra.mxu0 %v769
      %v5083 = vpop.f32.mrf.mxu0
      %v5084 = vadd.f32 0.0, %v5083
      %5085 = vmatmul.f32.gmra.mxu0 %v771
      %v5086 = vpop.f32.mrf.mxu0
      %v5087 = vadd.f32 0.0, %v5086
      %5088 = vmatmul.f32.gmra.mxu0 %v773
      %v5089 = vpop.f32.mrf.mxu0
      %v5090 = vadd.f32 0.0, %v5089
      %5091 = vmatmul.f32.gmra.mxu0 %v775
      %v5092 = vpop.f32.mrf.mxu0
      %v5093 = vadd.f32 0.0, %v5092
      %5094 = vmatmul.f32.gmra.mxu0 %v777
      %v5095 = vpop.f32.mrf.mxu0
      %v5096 = vadd.f32 0.0, %v5095
      %5097 = vmatmul.f32.gmra.mxu0 %v779
      %v5098 = vpop.f32.mrf.mxu0
      %v5099 = vadd.f32 0.0, %v5098
      %5100 = vmatmul.f32.gmra.mxu0 %v781
      %v5101 = vpop.f32.mrf.mxu0
      %v5102 = vadd.f32 0.0, %v5101
      %5103 = vmatmul.f32.gmra.mxu0 %v783
      %v5104 = vpop.f32.mrf.mxu0
      %v5105 = vadd.f32 0.0, %v5104
      %5106 = vmatmul.f32.gmra.mxu0 %v785
      %v5107 = vpop.f32.mrf.mxu0
      %v5108 = vadd.f32 0.0, %v5107
      %5109 = vmatmul.f32.gmra.mxu0 %v787
      %v5110 = vpop.f32.mrf.mxu0
      %v5111 = vadd.f32 0.0, %v5110
      %5112 = vmatmul.f32.gmra.mxu0 %v789
      %v5113 = vpop.f32.mrf.mxu0
      %v5114 = vadd.f32 0.0, %v5113
      %5115 = vmatmul.f32.gmra.mxu0 %v791
      %v5116 = vpop.f32.mrf.mxu0
      %v5117 = vadd.f32 0.0, %v5116
      %5118 = vmatmul.f32.gmra.mxu0 %v793
      %v5119 = vpop.f32.mrf.mxu0
      %v5120 = vadd.f32 0.0, %v5119
      %5121 = vmatmul.f32.gmra.mxu0 %v795
      %v5122 = vpop.f32.mrf.mxu0
      %v5123 = vadd.f32 0.0, %v5122
      %5124 = vmatmul.f32.gmra.mxu0 %v797
      %v5125 = vpop.f32.mrf.mxu0
      %v5126 = vadd.f32 0.0, %v5125
      %5127 = vmatmul.f32.gmra.mxu0 %v799
      %v5128 = vpop.f32.mrf.mxu0
      %v5129 = vadd.f32 0.0, %v5128
      %5130 = vmatmul.f32.gmra.mxu0 %v801
      %v5131 = vpop.f32.mrf.mxu0
      %v5132 = vadd.f32 0.0, %v5131
      %5133 = vmatmul.f32.gmra.mxu0 %v803
      %v5134 = vpop.f32.mrf.mxu0
      %v5135 = vadd.f32 0.0, %v5134
      %5136 = vmatmul.f32.gmra.mxu0 %v805
      %v5137 = vpop.f32.mrf.mxu0
      %v5138 = vadd.f32 0.0, %v5137
      %5139 = vmatmul.f32.gmra.mxu0 %v807
      %v5140 = vpop.f32.mrf.mxu0
      %v5141 = vadd.f32 0.0, %v5140
      %5142 = vmatmul.f32.gmra.mxu0 %v809
      %v5143 = vpop.f32.mrf.mxu0
      %v5144 = vadd.f32 0.0, %v5143
      %5145 = vmatmul.f32.gmra.mxu0 %v811
      %v5146 = vpop.f32.mrf.mxu0
      %v5147 = vadd.f32 0.0, %v5146
      %5148 = vmatmul.f32.gmra.mxu0 %v813
      %v5149 = vpop.f32.mrf.mxu0
      %v5150 = vadd.f32 0.0, %v5149
      %5151 = vmatmul.f32.gmra.mxu0 %v815
      %v5152 = vpop.f32.mrf.mxu0
      %v5153 = vadd.f32 0.0, %v5152
      %5154 = vmatmul.f32.gmra.mxu0 %v817
      %v5155 = vpop.f32.mrf.mxu0
      %v5156 = vadd.f32 0.0, %v5155
      %5157 = vmatmul.f32.gmra.mxu0 %v819
      %v5158 = vpop.f32.mrf.mxu0
      %v5159 = vadd.f32 0.0, %v5158
      %5160 = vmatmul.f32.gmra.mxu0 %v821
      %v5161 = vpop.f32.mrf.mxu0
      %v5162 = vadd.f32 0.0, %v5161
      %5163 = vmatmul.f32.gmra.mxu0 %v823
      %v5164 = vpop.f32.mrf.mxu0
      %v5165 = vadd.f32 0.0, %v5164
      %5166 = vmatmul.f32.gmra.mxu0 %v825
      %v5167 = vpop.f32.mrf.mxu0
      %v5168 = vadd.f32 0.0, %v5167
      %5169 = vmatmul.f32.gmra.mxu0 %v827
      %v5170 = vpop.f32.mrf.mxu0
      %v5171 = vadd.f32 0.0, %v5170
      %5172 = vmatmul.f32.gmra.mxu0 %v829
      %v5173 = vpop.f32.mrf.mxu0
      %v5174 = vadd.f32 0.0, %v5173
      %5175 = vmatmul.f32.gmra.mxu0 %v831
      %v5176 = vpop.f32.mrf.mxu0
      %v5177 = vadd.f32 0.0, %v5176
      %5178 = vmatmul.f32.gmra.mxu0 %v833
      %v5179 = vpop.f32.mrf.mxu0
      %v5180 = vadd.f32 0.0, %v5179
      %5181 = vmatmul.f32.gmra.mxu0 %v835
      %v5182 = vpop.f32.mrf.mxu0
      %v5183 = vadd.f32 0.0, %v5182
      %5184 = vmatmul.f32.gmra.mxu0 %v837
      %v5185 = vpop.f32.mrf.mxu0
      %v5186 = vadd.f32 0.0, %v5185
      %5187 = vmatmul.f32.gmra.mxu0 %v839
      %v5188 = vpop.f32.mrf.mxu0
      %v5189 = vadd.f32 0.0, %v5188
      %5190 = vmatmul.f32.gmra.mxu0 %v841
      %v5191 = vpop.f32.mrf.mxu0
      %v5192 = vadd.f32 0.0, %v5191
      %5193 = vmatmul.f32.gmra.mxu0 %v843
      %v5194 = vpop.f32.mrf.mxu0
      %v5195 = vadd.f32 0.0, %v5194
      %5196 = vmatmul.f32.gmra.mxu0 %v845
      %v5197 = vpop.f32.mrf.mxu0
      %v5198 = vadd.f32 0.0, %v5197
      %5199 = vmatmul.f32.gmra.mxu0 %v847
      %v5200 = vpop.f32.mrf.mxu0
      %v5201 = vadd.f32 0.0, %v5200
      %5202 = vmatmul.f32.gmra.mxu0 %v849
      %v5203 = vpop.f32.mrf.mxu0
      %v5204 = vadd.f32 0.0, %v5203
      %5205 = vmatmul.f32.gmra.mxu0 %v851
      %v5206 = vpop.f32.mrf.mxu0
      %v5207 = vadd.f32 0.0, %v5206
      %5208 = vmatmul.f32.gmra.mxu0 %v853
      %v5209 = vpop.f32.mrf.mxu0
      %v5210 = vadd.f32 0.0, %v5209
      %5211 = vmatmul.f32.gmra.mxu0 %v855
      %v5212 = vpop.f32.mrf.mxu0
      %v5213 = vadd.f32 0.0, %v5212
      %5214 = vmatmul.f32.gmra.mxu0 %v857
      %v5215 = vpop.f32.mrf.mxu0
      %v5216 = vadd.f32 0.0, %v5215
      %5217 = vmatmul.f32.gmra.mxu0 %v859
      %v5218 = vpop.f32.mrf.mxu0
      %v5219 = vadd.f32 0.0, %v5218
      %5220 = vmatmul.f32.gmra.mxu0 %v861
      %v5221 = vpop.f32.mrf.mxu0
      %v5222 = vadd.f32 0.0, %v5221
      %5223 = vmatmul.f32.gmra.mxu0 %v863
      %v5224 = vpop.f32.mrf.mxu0
      %v5225 = vadd.f32 0.0, %v5224
      %5226 = vmatmul.f32.gmra.mxu0 %v865
      %v5227 = vpop.f32.mrf.mxu0
      %v5228 = vadd.f32 0.0, %v5227
      %5229 = vmatmul.f32.gmra.mxu0 %v867
      %v5230 = vpop.f32.mrf.mxu0
      %v5231 = vadd.f32 0.0, %v5230
      %5232 = vmatmul.f32.gmra.mxu0 %v869
      %v5233 = vpop.f32.mrf.mxu0
      %v5234 = vadd.f32 0.0, %v5233
      %5235 = vmatmul.f32.gmra.mxu0 %v871
      %v5236 = vpop.f32.mrf.mxu0
      %v5237 = vadd.f32 0.0, %v5236
      %5238 = vmatmul.f32.gmra.mxu0 %v873
      %v5239 = vpop.f32.mrf.mxu0
      %v5240 = vadd.f32 0.0, %v5239
      %5241 = vmatmul.f32.gmra.mxu0 %v875
      %v5242 = vpop.f32.mrf.mxu0
      %v5243 = vadd.f32 0.0, %v5242
      %5244 = vmatmul.f32.gmra.mxu0 %v877
      %v5245 = vpop.f32.mrf.mxu0
      %v5246 = vadd.f32 0.0, %v5245
      %5247 = vmatmul.f32.gmra.mxu0 %v879
      %v5248 = vpop.f32.mrf.mxu0
      %v5249 = vadd.f32 0.0, %v5248
      %5250 = vmatmul.f32.gmra.mxu0 %v881
      %v5251 = vpop.f32.mrf.mxu0
      %v5252 = vadd.f32 0.0, %v5251
      %5253 = vmatmul.f32.gmra.mxu0 %v883
      %v5254 = vpop.f32.mrf.mxu0
      %v5255 = vadd.f32 0.0, %v5254
      %5256 = vmatmul.f32.gmra.mxu0 %v885
      %v5257 = vpop.f32.mrf.mxu0
      %v5258 = vadd.f32 0.0, %v5257
      %5259 = vmatmul.f32.gmra.mxu0 %v887
      %v5260 = vpop.f32.mrf.mxu0
      %v5261 = vadd.f32 0.0, %v5260
      %5262 = vmatmul.f32.gmra.mxu0 %v889
      %v5263 = vpop.f32.mrf.mxu0
      %v5264 = vadd.f32 0.0, %v5263
      %5265 = vmatmul.f32.gmra.mxu0 %v891
      %v5266 = vpop.f32.mrf.mxu0
      %v5267 = vadd.f32 0.0, %v5266
      %5268 = vmatmul.f32.gmra.mxu0 %v893
      %v5269 = vpop.f32.mrf.mxu0
      %v5270 = vadd.f32 0.0, %v5269
      %5271 = vmatmul.f32.gmra.mxu0 %v895
      %v5272 = vpop.f32.mrf.mxu0
      %v5273 = vadd.f32 0.0, %v5272
      %5274 = vmatmul.f32.gmra.mxu0 %v897
      %v5275 = vpop.f32.mrf.mxu0
      %v5276 = vadd.f32 0.0, %v5275
      %5277 = vmatmul.f32.gmra.mxu0 %v899
      %v5278 = vpop.f32.mrf.mxu0
      %v5279 = vadd.f32 0.0, %v5278
      %5280 = vmatmul.f32.gmra.mxu0 %v901
      %v5281 = vpop.f32.mrf.mxu0
      %v5282 = vadd.f32 0.0, %v5281
      %5283 = vmatmul.f32.gmra.mxu0 %v903
      %v5284 = vpop.f32.mrf.mxu0
      %v5285 = vadd.f32 0.0, %v5284
      %5286 = vmatmul.f32.gmra.mxu0 %v905
      %v5287 = vpop.f32.mrf.mxu0
      %v5288 = vadd.f32 0.0, %v5287
      %5289 = vmatmul.f32.gmra.mxu0 %v907
      %v5290 = vpop.f32.mrf.mxu0
      %v5291 = vadd.f32 0.0, %v5290
      %5292 = vmatmul.f32.gmra.mxu0 %v909
      %v5293 = vpop.f32.mrf.mxu0
      %v5294 = vadd.f32 0.0, %v5293
      %5295 = vmatmul.f32.gmra.mxu0 %v911
      %v5296 = vpop.f32.mrf.mxu0
      %v5297 = vadd.f32 0.0, %v5296
      %5298 = vmatmul.f32.gmra.mxu0 %v3403
      %v5299 = vpop.f32.mrf.mxu0
      %v5300 = vadd.f32 0.0, %v5299
      %5301 = vmatmul.f32.gmra.mxu0 %v3405
      %v5302 = vpop.f32.mrf.mxu0
      %v5303 = vadd.f32 0.0, %v5302
      %5304 = vmatmul.f32.gmra.mxu0 %v3407
      %v5305 = vpop.f32.mrf.mxu0
      %v5306 = vadd.f32 0.0, %v5305
      %5307 = vmatmul.f32.gmra.mxu0 %v3409
      %v5308 = vpop.f32.mrf.mxu0
      %v5309 = vadd.f32 0.0, %v5308
      %5310 = vmatmul.f32.gmra.mxu0 %v4938
      %v5311 = vpop.f32.mrf.mxu0
      %v5312 = vadd.f32 0.0, %v5311
      %5313 = vmatmul.f32.gmra.mxu0 %v4940
      %v5314 = vpop.f32.mrf.mxu0
      %v5315 = vadd.f32 0.0, %v5314
      %5316 = vmatmul.f32.gmra.mxu0 %v4942
      %v5317 = vpop.f32.mrf.mxu0
      %v5318 = vadd.f32 0.0, %v5317
      %5319 = vmatmul.f32.gmra.mxu0 %v4944
      %v5320 = vpop.f32.mrf.mxu0
      %v5321 = vadd.f32 0.0, %v5320
      %5322 = vdwg.mxu0
      %v5323 = vadd.f32 %v4809, %v4964
      %v5324 = vadd.f32 %v4810, %v4967
      %v5325 = vadd.f32 %v4811, %v4970
      %v5326 = vadd.f32 %v4812, %v4973
      %v5327 = vadd.f32 %v4813, %v4976
      %v5328 = vadd.f32 %v4814, %v4979
      %v5329 = vadd.f32 %v4815, %v4982
      %v5330 = vadd.f32 %v4816, %v4985
      %v5331 = vadd.f32 %v4817, %v4988
      %v5332 = vadd.f32 %v4818, %v4991
      %v5333 = vadd.f32 %v4819, %v4994
      %v5334 = vadd.f32 %v4820, %v4997
      %v5335 = vadd.f32 %v4821, %v5000
      %v5336 = vadd.f32 %v4822, %v5003
      %v5337 = vadd.f32 %v4823, %v5006
      %v5338 = vadd.f32 %v4824, %v5009
      %v5339 = vadd.f32 %v4825, %v5012
      %v5340 = vadd.f32 %v4826, %v5015
      %v5341 = vadd.f32 %v4827, %v5018
      %v5342 = vadd.f32 %v4828, %v5021
      %v5343 = vadd.f32 %v4829, %v5024
      %v5344 = vadd.f32 %v4830, %v5027
      %v5345 = vadd.f32 %v4831, %v5030
      %v5346 = vadd.f32 %v4832, %v5033
      %v5347 = vadd.f32 %v4833, %v5036
      %v5348 = vadd.f32 %v4834, %v5039
      %v5349 = vadd.f32 %v4835, %v5042
      %v5350 = vadd.f32 %v4836, %v5045
      %v5351 = vadd.f32 %v4837, %v5048
      %v5352 = vadd.f32 %v4838, %v5051
      %v5353 = vadd.f32 %v4839, %v5054
      %v5354 = vadd.f32 %v4840, %v5057
      %v5355 = vadd.f32 %v4841, %v5060
      %v5356 = vadd.f32 %v4842, %v5063
      %v5357 = vadd.f32 %v4843, %v5066
      %v5358 = vadd.f32 %v4844, %v5069
      %v5359 = vadd.f32 %v4845, %v5072
      %v5360 = vadd.f32 %v4846, %v5075
      %v5361 = vadd.f32 %v4847, %v5078
      %v5362 = vadd.f32 %v4848, %v5081
      %v5363 = vadd.f32 %v4849, %v5084
      %v5364 = vadd.f32 %v4850, %v5087
      %v5365 = vadd.f32 %v4851, %v5090
      %v5366 = vadd.f32 %v4852, %v5093
      %v5367 = vadd.f32 %v4853, %v5096
      %v5368 = vadd.f32 %v4854, %v5099
      %v5369 = vadd.f32 %v4855, %v5102
      %v5370 = vadd.f32 %v4856, %v5105
      %v5371 = vadd.f32 %v4857, %v5108
      %v5372 = vadd.f32 %v4858, %v5111
      %v5373 = vadd.f32 %v4859, %v5114
      %v5374 = vadd.f32 %v4860, %v5117
      %v5375 = vadd.f32 %v4861, %v5120
      %v5376 = vadd.f32 %v4862, %v5123
      %v5377 = vadd.f32 %v4863, %v5126
      %v5378 = vadd.f32 %v4864, %v5129
      %v5379 = vadd.f32 %v4865, %v5132
      %v5380 = vadd.f32 %v4866, %v5135
      %v5381 = vadd.f32 %v4867, %v5138
      %v5382 = vadd.f32 %v4868, %v5141
      %v5383 = vadd.f32 %v4869, %v5144
      %v5384 = vadd.f32 %v4870, %v5147
      %v5385 = vadd.f32 %v4871, %v5150
      %v5386 = vadd.f32 %v4872, %v5153
      %v5387 = vadd.f32 %v4873, %v5156
      %v5388 = vadd.f32 %v4874, %v5159
      %v5389 = vadd.f32 %v4875, %v5162
      %v5390 = vadd.f32 %v4876, %v5165
      %v5391 = vadd.f32 %v4877, %v5168
      %v5392 = vadd.f32 %v4878, %v5171
      %v5393 = vadd.f32 %v4879, %v5174
      %v5394 = vadd.f32 %v4880, %v5177
      %v5395 = vadd.f32 %v4881, %v5180
      %v5396 = vadd.f32 %v4882, %v5183
      %v5397 = vadd.f32 %v4883, %v5186
      %v5398 = vadd.f32 %v4884, %v5189
      %v5399 = vadd.f32 %v4885, %v5192
      %v5400 = vadd.f32 %v4886, %v5195
      %v5401 = vadd.f32 %v4887, %v5198
      %v5402 = vadd.f32 %v4888, %v5201
      %v5403 = vadd.f32 %v4889, %v5204
      %v5404 = vadd.f32 %v4890, %v5207
      %v5405 = vadd.f32 %v4891, %v5210
      %v5406 = vadd.f32 %v4892, %v5213
      %v5407 = vadd.f32 %v4893, %v5216
      %v5408 = vadd.f32 %v4894, %v5219
      %v5409 = vadd.f32 %v4895, %v5222
      %v5410 = vadd.f32 %v4896, %v5225
      %v5411 = vadd.f32 %v4897, %v5228
      %v5412 = vadd.f32 %v4898, %v5231
      %v5413 = vadd.f32 %v4899, %v5234
      %v5414 = vadd.f32 %v4900, %v5237
      %v5415 = vadd.f32 %v4901, %v5240
      %v5416 = vadd.f32 %v4902, %v5243
      %v5417 = vadd.f32 %v4903, %v5246
      %v5418 = vadd.f32 %v4904, %v5249
      %v5419 = vadd.f32 %v4905, %v5252
      %v5420 = vadd.f32 %v4906, %v5255
      %v5421 = vadd.f32 %v4907, %v5258
      %v5422 = vadd.f32 %v4908, %v5261
      %v5423 = vadd.f32 %v4909, %v5264
      %v5424 = vadd.f32 %v4910, %v5267
      %v5425 = vadd.f32 %v4911, %v5270
      %v5426 = vadd.f32 %v4912, %v5273
      %v5427 = vadd.f32 %v4913, %v5276
      %v5428 = vadd.f32 %v4914, %v5279
      %v5429 = vadd.f32 %v4915, %v5282
      %v5430 = vadd.f32 %v4916, %v5285
      %v5431 = vadd.f32 %v4917, %v5288
      %v5432 = vadd.f32 %v4918, %v5291
      %v5433 = vadd.f32 %v4919, %v5294
      %v5434 = vadd.f32 %v4920, %v5297
      %v5435 = vadd.f32 %v4921, %v5300
      %v5436 = vadd.f32 %v4922, %v5303
      %v5437 = vadd.f32 %v4923, %v5306
      %v5438 = vadd.f32 %v4924, %v5309
      %v5439 = vadd.f32 %v4925, %v5312
      %v5440 = vadd.f32 %v4926, %v5315
      %v5441 = vadd.f32 %v4927, %v5318
      %v5442 = vadd.f32 %v4928, %v5321
      %v5443 = vrot.slane %v296, 2
      %v5444 = vsel %vm1907, %v3914, %v5443
      %v5445 = vrot.slane %v297, 2
      %v5446 = vsel %vm1907, %v5443, %v5445
      %v5447 = vrot.slane %v298, 2
      %v5448 = vsel %vm1907, %v5445, %v5447
      %v5449 = vrot.slane %v299, 2
      %v5450 = vsel %vm1907, %v5447, %v5449
      %v5451 = vsel %vm672, %v5444, 0
      %v5453 = vsel %vm672, %v5446, 0
      %v5455 = vsel %vm672, %v5448, 0
      %v5457 = vsel %vm672, %v5450, 0
      %5459 = vmatpush.msra.mxu0 0.0
      %5460 = vmatpush.msra.mxu0 0.0
      %5461 = vmatpush.msra.mxu0 0.0
      %5462 = vmatpush.msra.mxu0 0.0
      %5463 = vmatpush.msra.mxu0 0.0
      %5464 = vmatpush.msra.mxu0 0.0
      %5465 = vmatpush.msra.mxu0 0.0
      %5466 = vmatpush.msra.mxu0 0.0
      %5467 = vmatpush.msra.mxu0 0.0
      %5468 = vmatpush.msra.mxu0 0.0
      %5469 = vmatpush.msra.mxu0 0.0
      %5470 = vmatpush.msra.mxu0 0.0
      %5471 = vmatpush.msra.mxu0 0.0
      %5472 = vmatpush.msra.mxu0 0.0
      %5473 = vmatpush.msra.mxu0 0.0
      %5474 = vmatpush.msra.mxu0 %v308
      %5475 = vmatmul.f32.gmra.mxu0 %v2165
      %v5476 = vpop.f32.mrf.mxu0
      %v5477 = vadd.f32 0.0, %v5476
      %5478 = vmatmul.f32.gmra.mxu0 %v2167
      %v5479 = vpop.f32.mrf.mxu0
      %v5480 = vadd.f32 0.0, %v5479
      %5481 = vmatmul.f32.gmra.mxu0 %v2169
      %v5482 = vpop.f32.mrf.mxu0
      %v5483 = vadd.f32 0.0, %v5482
      %5484 = vmatmul.f32.gmra.mxu0 %v2171
      %v5485 = vpop.f32.mrf.mxu0
      %v5486 = vadd.f32 0.0, %v5485
      %5487 = vmatmul.f32.gmra.mxu0 %v2173
      %v5488 = vpop.f32.mrf.mxu0
      %v5489 = vadd.f32 0.0, %v5488
      %5490 = vmatmul.f32.gmra.mxu0 %v2175
      %v5491 = vpop.f32.mrf.mxu0
      %v5492 = vadd.f32 0.0, %v5491
      %5493 = vmatmul.f32.gmra.mxu0 %v2177
      %v5494 = vpop.f32.mrf.mxu0
      %v5495 = vadd.f32 0.0, %v5494
      %5496 = vmatmul.f32.gmra.mxu0 %v2179
      %v5497 = vpop.f32.mrf.mxu0
      %v5498 = vadd.f32 0.0, %v5497
      %5499 = vmatmul.f32.gmra.mxu0 %v2181
      %v5500 = vpop.f32.mrf.mxu0
      %v5501 = vadd.f32 0.0, %v5500
      %5502 = vmatmul.f32.gmra.mxu0 %v2183
      %v5503 = vpop.f32.mrf.mxu0
      %v5504 = vadd.f32 0.0, %v5503
      %5505 = vmatmul.f32.gmra.mxu0 %v2185
      %v5506 = vpop.f32.mrf.mxu0
      %v5507 = vadd.f32 0.0, %v5506
      %5508 = vmatmul.f32.gmra.mxu0 %v2187
      %v5509 = vpop.f32.mrf.mxu0
      %v5510 = vadd.f32 0.0, %v5509
      %5511 = vmatmul.f32.gmra.mxu0 %v2189
      %v5512 = vpop.f32.mrf.mxu0
      %v5513 = vadd.f32 0.0, %v5512
      %5514 = vmatmul.f32.gmra.mxu0 %v2191
      %v5515 = vpop.f32.mrf.mxu0
      %v5516 = vadd.f32 0.0, %v5515
      %5517 = vmatmul.f32.gmra.mxu0 %v2193
      %v5518 = vpop.f32.mrf.mxu0
      %v5519 = vadd.f32 0.0, %v5518
      %5520 = vmatmul.f32.gmra.mxu0 %v2195
      %v5521 = vpop.f32.mrf.mxu0
      %v5522 = vadd.f32 0.0, %v5521
      %5523 = vmatmul.f32.gmra.mxu0 %v2197
      %v5524 = vpop.f32.mrf.mxu0
      %v5525 = vadd.f32 0.0, %v5524
      %5526 = vmatmul.f32.gmra.mxu0 %v2199
      %v5527 = vpop.f32.mrf.mxu0
      %v5528 = vadd.f32 0.0, %v5527
      %5529 = vmatmul.f32.gmra.mxu0 %v2201
      %v5530 = vpop.f32.mrf.mxu0
      %v5531 = vadd.f32 0.0, %v5530
      %5532 = vmatmul.f32.gmra.mxu0 %v2203
      %v5533 = vpop.f32.mrf.mxu0
      %v5534 = vadd.f32 0.0, %v5533
      %5535 = vmatmul.f32.gmra.mxu0 %v2205
      %v5536 = vpop.f32.mrf.mxu0
      %v5537 = vadd.f32 0.0, %v5536
      %5538 = vmatmul.f32.gmra.mxu0 %v2207
      %v5539 = vpop.f32.mrf.mxu0
      %v5540 = vadd.f32 0.0, %v5539
      %5541 = vmatmul.f32.gmra.mxu0 %v2209
      %v5542 = vpop.f32.mrf.mxu0
      %v5543 = vadd.f32 0.0, %v5542
      %5544 = vmatmul.f32.gmra.mxu0 %v2211
      %v5545 = vpop.f32.mrf.mxu0
      %v5546 = vadd.f32 0.0, %v5545
      %5547 = vmatmul.f32.gmra.mxu0 %v2213
      %v5548 = vpop.f32.mrf.mxu0
      %v5549 = vadd.f32 0.0, %v5548
      %5550 = vmatmul.f32.gmra.mxu0 %v2215
      %v5551 = vpop.f32.mrf.mxu0
      %v5552 = vadd.f32 0.0, %v5551
      %5553 = vmatmul.f32.gmra.mxu0 %v2217
      %v5554 = vpop.f32.mrf.mxu0
      %v5555 = vadd.f32 0.0, %v5554
      %5556 = vmatmul.f32.gmra.mxu0 %v2219
      %v5557 = vpop.f32.mrf.mxu0
      %v5558 = vadd.f32 0.0, %v5557
      %5559 = vmatmul.f32.gmra.mxu0 %v2221
      %v5560 = vpop.f32.mrf.mxu0
      %v5561 = vadd.f32 0.0, %v5560
      %5562 = vmatmul.f32.gmra.mxu0 %v2223
      %v5563 = vpop.f32.mrf.mxu0
      %v5564 = vadd.f32 0.0, %v5563
      %5565 = vmatmul.f32.gmra.mxu0 %v2225
      %v5566 = vpop.f32.mrf.mxu0
      %v5567 = vadd.f32 0.0, %v5566
      %5568 = vmatmul.f32.gmra.mxu0 %v2227
      %v5569 = vpop.f32.mrf.mxu0
      %v5570 = vadd.f32 0.0, %v5569
      %5571 = vmatmul.f32.gmra.mxu0 %v2229
      %v5572 = vpop.f32.mrf.mxu0
      %v5573 = vadd.f32 0.0, %v5572
      %5574 = vmatmul.f32.gmra.mxu0 %v2231
      %v5575 = vpop.f32.mrf.mxu0
      %v5576 = vadd.f32 0.0, %v5575
      %5577 = vmatmul.f32.gmra.mxu0 %v2233
      %v5578 = vpop.f32.mrf.mxu0
      %v5579 = vadd.f32 0.0, %v5578
      %5580 = vmatmul.f32.gmra.mxu0 %v2235
      %v5581 = vpop.f32.mrf.mxu0
      %v5582 = vadd.f32 0.0, %v5581
      %5583 = vmatmul.f32.gmra.mxu0 %v2237
      %v5584 = vpop.f32.mrf.mxu0
      %v5585 = vadd.f32 0.0, %v5584
      %5586 = vmatmul.f32.gmra.mxu0 %v2239
      %v5587 = vpop.f32.mrf.mxu0
      %v5588 = vadd.f32 0.0, %v5587
      %5589 = vmatmul.f32.gmra.mxu0 %v2241
      %v5590 = vpop.f32.mrf.mxu0
      %v5591 = vadd.f32 0.0, %v5590
      %5592 = vmatmul.f32.gmra.mxu0 %v2243
      %v5593 = vpop.f32.mrf.mxu0
      %v5594 = vadd.f32 0.0, %v5593
      %5595 = vmatmul.f32.gmra.mxu0 %v2245
      %v5596 = vpop.f32.mrf.mxu0
      %v5597 = vadd.f32 0.0, %v5596
      %5598 = vmatmul.f32.gmra.mxu0 %v2247
      %v5599 = vpop.f32.mrf.mxu0
      %v5600 = vadd.f32 0.0, %v5599
      %5601 = vmatmul.f32.gmra.mxu0 %v2249
      %v5602 = vpop.f32.mrf.mxu0
      %v5603 = vadd.f32 0.0, %v5602
      %5604 = vmatmul.f32.gmra.mxu0 %v2251
      %v5605 = vpop.f32.mrf.mxu0
      %v5606 = vadd.f32 0.0, %v5605
      %5607 = vmatmul.f32.gmra.mxu0 %v2253
      %v5608 = vpop.f32.mrf.mxu0
      %v5609 = vadd.f32 0.0, %v5608
      %5610 = vmatmul.f32.gmra.mxu0 %v2255
      %v5611 = vpop.f32.mrf.mxu0
      %v5612 = vadd.f32 0.0, %v5611
      %5613 = vmatmul.f32.gmra.mxu0 %v2257
      %v5614 = vpop.f32.mrf.mxu0
      %v5615 = vadd.f32 0.0, %v5614
      %5616 = vmatmul.f32.gmra.mxu0 %v2259
      %v5617 = vpop.f32.mrf.mxu0
      %v5618 = vadd.f32 0.0, %v5617
      %5619 = vmatmul.f32.gmra.mxu0 %v2261
      %v5620 = vpop.f32.mrf.mxu0
      %v5621 = vadd.f32 0.0, %v5620
      %5622 = vmatmul.f32.gmra.mxu0 %v2263
      %v5623 = vpop.f32.mrf.mxu0
      %v5624 = vadd.f32 0.0, %v5623
      %5625 = vmatmul.f32.gmra.mxu0 %v2265
      %v5626 = vpop.f32.mrf.mxu0
      %v5627 = vadd.f32 0.0, %v5626
      %5628 = vmatmul.f32.gmra.mxu0 %v2267
      %v5629 = vpop.f32.mrf.mxu0
      %v5630 = vadd.f32 0.0, %v5629
      %5631 = vmatmul.f32.gmra.mxu0 %v2269
      %v5632 = vpop.f32.mrf.mxu0
      %v5633 = vadd.f32 0.0, %v5632
      %5634 = vmatmul.f32.gmra.mxu0 %v2271
      %v5635 = vpop.f32.mrf.mxu0
      %v5636 = vadd.f32 0.0, %v5635
      %5637 = vmatmul.f32.gmra.mxu0 %v2273
      %v5638 = vpop.f32.mrf.mxu0
      %v5639 = vadd.f32 0.0, %v5638
      %5640 = vmatmul.f32.gmra.mxu0 %v2275
      %v5641 = vpop.f32.mrf.mxu0
      %v5642 = vadd.f32 0.0, %v5641
      %5643 = vmatmul.f32.gmra.mxu0 %v2277
      %v5644 = vpop.f32.mrf.mxu0
      %v5645 = vadd.f32 0.0, %v5644
      %5646 = vmatmul.f32.gmra.mxu0 %v2279
      %v5647 = vpop.f32.mrf.mxu0
      %v5648 = vadd.f32 0.0, %v5647
      %5649 = vmatmul.f32.gmra.mxu0 %v2281
      %v5650 = vpop.f32.mrf.mxu0
      %v5651 = vadd.f32 0.0, %v5650
      %5652 = vmatmul.f32.gmra.mxu0 %v2283
      %v5653 = vpop.f32.mrf.mxu0
      %v5654 = vadd.f32 0.0, %v5653
      %5655 = vmatmul.f32.gmra.mxu0 %v2285
      %v5656 = vpop.f32.mrf.mxu0
      %v5657 = vadd.f32 0.0, %v5656
      %5658 = vmatmul.f32.gmra.mxu0 %v2287
      %v5659 = vpop.f32.mrf.mxu0
      %v5660 = vadd.f32 0.0, %v5659
      %5661 = vmatmul.f32.gmra.mxu0 %v2289
      %v5662 = vpop.f32.mrf.mxu0
      %v5663 = vadd.f32 0.0, %v5662
      %5664 = vmatmul.f32.gmra.mxu0 %v2291
      %v5665 = vpop.f32.mrf.mxu0
      %v5666 = vadd.f32 0.0, %v5665
      %5667 = vmatmul.f32.gmra.mxu0 %v2293
      %v5668 = vpop.f32.mrf.mxu0
      %v5669 = vadd.f32 0.0, %v5668
      %5670 = vmatmul.f32.gmra.mxu0 %v2295
      %v5671 = vpop.f32.mrf.mxu0
      %v5672 = vadd.f32 0.0, %v5671
      %5673 = vmatmul.f32.gmra.mxu0 %v2297
      %v5674 = vpop.f32.mrf.mxu0
      %v5675 = vadd.f32 0.0, %v5674
      %5676 = vmatmul.f32.gmra.mxu0 %v2299
      %v5677 = vpop.f32.mrf.mxu0
      %v5678 = vadd.f32 0.0, %v5677
      %5679 = vmatmul.f32.gmra.mxu0 %v2301
      %v5680 = vpop.f32.mrf.mxu0
      %v5681 = vadd.f32 0.0, %v5680
      %5682 = vmatmul.f32.gmra.mxu0 %v2303
      %v5683 = vpop.f32.mrf.mxu0
      %v5684 = vadd.f32 0.0, %v5683
      %5685 = vmatmul.f32.gmra.mxu0 %v2305
      %v5686 = vpop.f32.mrf.mxu0
      %v5687 = vadd.f32 0.0, %v5686
      %5688 = vmatmul.f32.gmra.mxu0 %v2307
      %v5689 = vpop.f32.mrf.mxu0
      %v5690 = vadd.f32 0.0, %v5689
      %5691 = vmatmul.f32.gmra.mxu0 %v2309
      %v5692 = vpop.f32.mrf.mxu0
      %v5693 = vadd.f32 0.0, %v5692
      %5694 = vmatmul.f32.gmra.mxu0 %v2311
      %v5695 = vpop.f32.mrf.mxu0
      %v5696 = vadd.f32 0.0, %v5695
      %5697 = vmatmul.f32.gmra.mxu0 %v2313
      %v5698 = vpop.f32.mrf.mxu0
      %v5699 = vadd.f32 0.0, %v5698
      %5700 = vmatmul.f32.gmra.mxu0 %v2315
      %v5701 = vpop.f32.mrf.mxu0
      %v5702 = vadd.f32 0.0, %v5701
      %5703 = vmatmul.f32.gmra.mxu0 %v2317
      %v5704 = vpop.f32.mrf.mxu0
      %v5705 = vadd.f32 0.0, %v5704
      %5706 = vmatmul.f32.gmra.mxu0 %v2319
      %v5707 = vpop.f32.mrf.mxu0
      %v5708 = vadd.f32 0.0, %v5707
      %5709 = vmatmul.f32.gmra.mxu0 %v2321
      %v5710 = vpop.f32.mrf.mxu0
      %v5711 = vadd.f32 0.0, %v5710
      %5712 = vmatmul.f32.gmra.mxu0 %v2323
      %v5713 = vpop.f32.mrf.mxu0
      %v5714 = vadd.f32 0.0, %v5713
      %5715 = vmatmul.f32.gmra.mxu0 %v2325
      %v5716 = vpop.f32.mrf.mxu0
      %v5717 = vadd.f32 0.0, %v5716
      %5718 = vmatmul.f32.gmra.mxu0 %v2327
      %v5719 = vpop.f32.mrf.mxu0
      %v5720 = vadd.f32 0.0, %v5719
      %5721 = vmatmul.f32.gmra.mxu0 %v2329
      %v5722 = vpop.f32.mrf.mxu0
      %v5723 = vadd.f32 0.0, %v5722
      %5724 = vmatmul.f32.gmra.mxu0 %v2331
      %v5725 = vpop.f32.mrf.mxu0
      %v5726 = vadd.f32 0.0, %v5725
      %5727 = vmatmul.f32.gmra.mxu0 %v2333
      %v5728 = vpop.f32.mrf.mxu0
      %v5729 = vadd.f32 0.0, %v5728
      %5730 = vmatmul.f32.gmra.mxu0 %v2335
      %v5731 = vpop.f32.mrf.mxu0
      %v5732 = vadd.f32 0.0, %v5731
      %5733 = vmatmul.f32.gmra.mxu0 %v2337
      %v5734 = vpop.f32.mrf.mxu0
      %v5735 = vadd.f32 0.0, %v5734
      %5736 = vmatmul.f32.gmra.mxu0 %v2339
      %v5737 = vpop.f32.mrf.mxu0
      %v5738 = vadd.f32 0.0, %v5737
      %5739 = vmatmul.f32.gmra.mxu0 %v2341
      %v5740 = vpop.f32.mrf.mxu0
      %v5741 = vadd.f32 0.0, %v5740
      %5742 = vmatmul.f32.gmra.mxu0 %v2343
      %v5743 = vpop.f32.mrf.mxu0
      %v5744 = vadd.f32 0.0, %v5743
      %5745 = vmatmul.f32.gmra.mxu0 %v2345
      %v5746 = vpop.f32.mrf.mxu0
      %v5747 = vadd.f32 0.0, %v5746
      %5748 = vmatmul.f32.gmra.mxu0 %v2347
      %v5749 = vpop.f32.mrf.mxu0
      %v5750 = vadd.f32 0.0, %v5749
      %5751 = vmatmul.f32.gmra.mxu0 %v2349
      %v5752 = vpop.f32.mrf.mxu0
      %v5753 = vadd.f32 0.0, %v5752
      %5754 = vmatmul.f32.gmra.mxu0 %v2351
      %v5755 = vpop.f32.mrf.mxu0
      %v5756 = vadd.f32 0.0, %v5755
      %5757 = vmatmul.f32.gmra.mxu0 %v2353
      %v5758 = vpop.f32.mrf.mxu0
      %v5759 = vadd.f32 0.0, %v5758
      %5760 = vmatmul.f32.gmra.mxu0 %v2355
      %v5761 = vpop.f32.mrf.mxu0
      %v5762 = vadd.f32 0.0, %v5761
      %5763 = vmatmul.f32.gmra.mxu0 %v2357
      %v5764 = vpop.f32.mrf.mxu0
      %v5765 = vadd.f32 0.0, %v5764
      %5766 = vmatmul.f32.gmra.mxu0 %v2359
      %v5767 = vpop.f32.mrf.mxu0
      %v5768 = vadd.f32 0.0, %v5767
      %5769 = vmatmul.f32.gmra.mxu0 %v2361
      %v5770 = vpop.f32.mrf.mxu0
      %v5771 = vadd.f32 0.0, %v5770
      %5772 = vmatmul.f32.gmra.mxu0 %v2363
      %v5773 = vpop.f32.mrf.mxu0
      %v5774 = vadd.f32 0.0, %v5773
      %5775 = vmatmul.f32.gmra.mxu0 %v2365
      %v5776 = vpop.f32.mrf.mxu0
      %v5777 = vadd.f32 0.0, %v5776
      %5778 = vmatmul.f32.gmra.mxu0 %v2367
      %v5779 = vpop.f32.mrf.mxu0
      %v5780 = vadd.f32 0.0, %v5779
      %5781 = vmatmul.f32.gmra.mxu0 %v2369
      %v5782 = vpop.f32.mrf.mxu0
      %v5783 = vadd.f32 0.0, %v5782
      %5784 = vmatmul.f32.gmra.mxu0 %v2371
      %v5785 = vpop.f32.mrf.mxu0
      %v5786 = vadd.f32 0.0, %v5785
      %5787 = vmatmul.f32.gmra.mxu0 %v2373
      %v5788 = vpop.f32.mrf.mxu0
      %v5789 = vadd.f32 0.0, %v5788
      %5790 = vmatmul.f32.gmra.mxu0 %v2375
      %v5791 = vpop.f32.mrf.mxu0
      %v5792 = vadd.f32 0.0, %v5791
      %5793 = vmatmul.f32.gmra.mxu0 %v2377
      %v5794 = vpop.f32.mrf.mxu0
      %v5795 = vadd.f32 0.0, %v5794
      %5796 = vmatmul.f32.gmra.mxu0 %v2379
      %v5797 = vpop.f32.mrf.mxu0
      %v5798 = vadd.f32 0.0, %v5797
      %5799 = vmatmul.f32.gmra.mxu0 %v2381
      %v5800 = vpop.f32.mrf.mxu0
      %v5801 = vadd.f32 0.0, %v5800
      %5802 = vmatmul.f32.gmra.mxu0 %v2383
      %v5803 = vpop.f32.mrf.mxu0
      %v5804 = vadd.f32 0.0, %v5803
      %5805 = vmatmul.f32.gmra.mxu0 %v2385
      %v5806 = vpop.f32.mrf.mxu0
      %v5807 = vadd.f32 0.0, %v5806
      %5808 = vmatmul.f32.gmra.mxu0 %v2387
      %v5809 = vpop.f32.mrf.mxu0
      %v5810 = vadd.f32 0.0, %v5809
      %5811 = vmatmul.f32.gmra.mxu0 %v3916
      %v5812 = vpop.f32.mrf.mxu0
      %v5813 = vadd.f32 0.0, %v5812
      %5814 = vmatmul.f32.gmra.mxu0 %v3918
      %v5815 = vpop.f32.mrf.mxu0
      %v5816 = vadd.f32 0.0, %v5815
      %5817 = vmatmul.f32.gmra.mxu0 %v3920
      %v5818 = vpop.f32.mrf.mxu0
      %v5819 = vadd.f32 0.0, %v5818
      %5820 = vmatmul.f32.gmra.mxu0 %v3922
      %v5821 = vpop.f32.mrf.mxu0
      %v5822 = vadd.f32 0.0, %v5821
      %5823 = vmatmul.f32.gmra.mxu0 %v5451
      %v5824 = vpop.f32.mrf.mxu0
      %v5825 = vadd.f32 0.0, %v5824
      %5826 = vmatmul.f32.gmra.mxu0 %v5453
      %v5827 = vpop.f32.mrf.mxu0
      %v5828 = vadd.f32 0.0, %v5827
      %5829 = vmatmul.f32.gmra.mxu0 %v5455
      %v5830 = vpop.f32.mrf.mxu0
      %v5831 = vadd.f32 0.0, %v5830
      %5832 = vmatmul.f32.gmra.mxu0 %v5457
      %v5833 = vpop.f32.mrf.mxu0
      %v5834 = vadd.f32 0.0, %v5833
      %5835 = vdwg.mxu0
      %v5836 = vadd.f32 %v5323, %v5477
      %v5837 = vadd.f32 %v5324, %v5480
      %v5838 = vadd.f32 %v5325, %v5483
      %v5839 = vadd.f32 %v5326, %v5486
      %v5840 = vadd.f32 %v5327, %v5489
      %v5841 = vadd.f32 %v5328, %v5492
      %v5842 = vadd.f32 %v5329, %v5495
      %v5843 = vadd.f32 %v5330, %v5498
      %v5844 = vadd.f32 %v5331, %v5501
      %v5845 = vadd.f32 %v5332, %v5504
      %v5846 = vadd.f32 %v5333, %v5507
      %v5847 = vadd.f32 %v5334, %v5510
      %v5848 = vadd.f32 %v5335, %v5513
      %v5849 = vadd.f32 %v5336, %v5516
      %v5850 = vadd.f32 %v5337, %v5519
      %v5851 = vadd.f32 %v5338, %v5522
      %v5852 = vadd.f32 %v5339, %v5525
      %v5853 = vadd.f32 %v5340, %v5528
      %v5854 = vadd.f32 %v5341, %v5531
      %v5855 = vadd.f32 %v5342, %v5534
      %v5856 = vadd.f32 %v5343, %v5537
      %v5857 = vadd.f32 %v5344, %v5540
      %v5858 = vadd.f32 %v5345, %v5543
      %v5859 = vadd.f32 %v5346, %v5546
      %v5860 = vadd.f32 %v5347, %v5549
      %v5861 = vadd.f32 %v5348, %v5552
      %v5862 = vadd.f32 %v5349, %v5555
      %v5863 = vadd.f32 %v5350, %v5558
      %v5864 = vadd.f32 %v5351, %v5561
      %v5865 = vadd.f32 %v5352, %v5564
      %v5866 = vadd.f32 %v5353, %v5567
      %v5867 = vadd.f32 %v5354, %v5570
      %v5868 = vadd.f32 %v5355, %v5573
      %v5869 = vadd.f32 %v5356, %v5576
      %v5870 = vadd.f32 %v5357, %v5579
      %v5871 = vadd.f32 %v5358, %v5582
      %v5872 = vadd.f32 %v5359, %v5585
      %v5873 = vadd.f32 %v5360, %v5588
      %v5874 = vadd.f32 %v5361, %v5591
      %v5875 = vadd.f32 %v5362, %v5594
      %v5876 = vadd.f32 %v5363, %v5597
      %v5877 = vadd.f32 %v5364, %v5600
      %v5878 = vadd.f32 %v5365, %v5603
      %v5879 = vadd.f32 %v5366, %v5606
      %v5880 = vadd.f32 %v5367, %v5609
      %v5881 = vadd.f32 %v5368, %v5612
      %v5882 = vadd.f32 %v5369, %v5615
      %v5883 = vadd.f32 %v5370, %v5618
      %v5884 = vadd.f32 %v5371, %v5621
      %v5885 = vadd.f32 %v5372, %v5624
      %v5886 = vadd.f32 %v5373, %v5627
      %v5887 = vadd.f32 %v5374, %v5630
      %v5888 = vadd.f32 %v5375, %v5633
      %v5889 = vadd.f32 %v5376, %v5636
      %v5890 = vadd.f32 %v5377, %v5639
      %v5891 = vadd.f32 %v5378, %v5642
      %v5892 = vadd.f32 %v5379, %v5645
      %v5893 = vadd.f32 %v5380, %v5648
      %v5894 = vadd.f32 %v5381, %v5651
      %v5895 = vadd.f32 %v5382, %v5654
      %v5896 = vadd.f32 %v5383, %v5657
      %v5897 = vadd.f32 %v5384, %v5660
      %v5898 = vadd.f32 %v5385, %v5663
      %v5899 = vadd.f32 %v5386, %v5666
      %v5900 = vadd.f32 %v5387, %v5669
      %v5901 = vadd.f32 %v5388, %v5672
      %v5902 = vadd.f32 %v5389, %v5675
      %v5903 = vadd.f32 %v5390, %v5678
      %v5904 = vadd.f32 %v5391, %v5681
      %v5905 = vadd.f32 %v5392, %v5684
      %v5906 = vadd.f32 %v5393, %v5687
      %v5907 = vadd.f32 %v5394, %v5690
      %v5908 = vadd.f32 %v5395, %v5693
      %v5909 = vadd.f32 %v5396, %v5696
      %v5910 = vadd.f32 %v5397, %v5699
      %v5911 = vadd.f32 %v5398, %v5702
      %v5912 = vadd.f32 %v5399, %v5705
      %v5913 = vadd.f32 %v5400, %v5708
      %v5914 = vadd.f32 %v5401, %v5711
      %v5915 = vadd.f32 %v5402, %v5714
      %v5916 = vadd.f32 %v5403, %v5717
      %v5917 = vadd.f32 %v5404, %v5720
      %v5918 = vadd.f32 %v5405, %v5723
      %v5919 = vadd.f32 %v5406, %v5726
      %v5920 = vadd.f32 %v5407, %v5729
      %v5921 = vadd.f32 %v5408, %v5732
      %v5922 = vadd.f32 %v5409, %v5735
      %v5923 = vadd.f32 %v5410, %v5738
      %v5924 = vadd.f32 %v5411, %v5741
      %v5925 = vadd.f32 %v5412, %v5744
      %v5926 = vadd.f32 %v5413, %v5747
      %v5927 = vadd.f32 %v5414, %v5750
      %v5928 = vadd.f32 %v5415, %v5753
      %v5929 = vadd.f32 %v5416, %v5756
      %v5930 = vadd.f32 %v5417, %v5759
      %v5931 = vadd.f32 %v5418, %v5762
      %v5932 = vadd.f32 %v5419, %v5765
      %v5933 = vadd.f32 %v5420, %v5768
      %v5934 = vadd.f32 %v5421, %v5771
      %v5935 = vadd.f32 %v5422, %v5774
      %v5936 = vadd.f32 %v5423, %v5777
      %v5937 = vadd.f32 %v5424, %v5780
      %v5938 = vadd.f32 %v5425, %v5783
      %v5939 = vadd.f32 %v5426, %v5786
      %v5940 = vadd.f32 %v5427, %v5789
      %v5941 = vadd.f32 %v5428, %v5792
      %v5942 = vadd.f32 %v5429, %v5795
      %v5943 = vadd.f32 %v5430, %v5798
      %v5944 = vadd.f32 %v5431, %v5801
      %v5945 = vadd.f32 %v5432, %v5804
      %v5946 = vadd.f32 %v5433, %v5807
      %v5947 = vadd.f32 %v5434, %v5810
      %v5948 = vadd.f32 %v5435, %v5813
      %v5949 = vadd.f32 %v5436, %v5816
      %v5950 = vadd.f32 %v5437, %v5819
      %v5951 = vadd.f32 %v5438, %v5822
      %v5952 = vadd.f32 %v5439, %v5825
      %v5953 = vadd.f32 %v5440, %v5828
      %v5954 = vadd.f32 %v5441, %v5831
      %v5955 = vadd.f32 %v5442, %v5834
      %v5956 = vld [vmem:[%s2] sm:$0x1]
      %v5958 = vperm.slane %v5956, 0
      %v5960 = vadd.f32 %v5836, %v5958
      %v5961 = vadd.f32 %v5837, %v5958
      %v5962 = vadd.f32 %v5838, %v5958
      %v5963 = vadd.f32 %v5839, %v5958
      %v5964 = vadd.f32 %v5840, %v5958
      %v5965 = vadd.f32 %v5841, %v5958
      %v5966 = vadd.f32 %v5842, %v5958
      %v5967 = vadd.f32 %v5843, %v5958
      %v5968 = vadd.f32 %v5844, %v5958
      %v5969 = vadd.f32 %v5845, %v5958
      %v5970 = vadd.f32 %v5846, %v5958
      %v5971 = vadd.f32 %v5847, %v5958
      %v5972 = vadd.f32 %v5848, %v5958
      %v5973 = vadd.f32 %v5849, %v5958
      %v5974 = vadd.f32 %v5850, %v5958
      %v5975 = vadd.f32 %v5851, %v5958
      %v5976 = vadd.f32 %v5852, %v5958
      %v5977 = vadd.f32 %v5853, %v5958
      %v5978 = vadd.f32 %v5854, %v5958
      %v5979 = vadd.f32 %v5855, %v5958
      %v5980 = vadd.f32 %v5856, %v5958
      %v5981 = vadd.f32 %v5857, %v5958
      %v5982 = vadd.f32 %v5858, %v5958
      %v5983 = vadd.f32 %v5859, %v5958
      %v5984 = vadd.f32 %v5860, %v5958
      %v5985 = vadd.f32 %v5861, %v5958
      %v5986 = vadd.f32 %v5862, %v5958
      %v5987 = vadd.f32 %v5863, %v5958
      %v5988 = vadd.f32 %v5864, %v5958
      %v5989 = vadd.f32 %v5865, %v5958
      %v5990 = vadd.f32 %v5866, %v5958
      %v5991 = vadd.f32 %v5867, %v5958
      %v5992 = vadd.f32 %v5868, %v5958
      %v5993 = vadd.f32 %v5869, %v5958
      %v5994 = vadd.f32 %v5870, %v5958
      %v5995 = vadd.f32 %v5871, %v5958
      %v5996 = vadd.f32 %v5872, %v5958
      %v5997 = vadd.f32 %v5873, %v5958
      %v5998 = vadd.f32 %v5874, %v5958
      %v5999 = vadd.f32 %v5875, %v5958
      %v6000 = vadd.f32 %v5876, %v5958
      %v6001 = vadd.f32 %v5877, %v5958
      %v6002 = vadd.f32 %v5878, %v5958
      %v6003 = vadd.f32 %v5879, %v5958
      %v6004 = vadd.f32 %v5880, %v5958
      %v6005 = vadd.f32 %v5881, %v5958
      %v6006 = vadd.f32 %v5882, %v5958
      %v6007 = vadd.f32 %v5883, %v5958
      %v6008 = vadd.f32 %v5884, %v5958
      %v6009 = vadd.f32 %v5885, %v5958
      %v6010 = vadd.f32 %v5886, %v5958
      %v6011 = vadd.f32 %v5887, %v5958
      %v6012 = vadd.f32 %v5888, %v5958
      %v6013 = vadd.f32 %v5889, %v5958
      %v6014 = vadd.f32 %v5890, %v5958
      %v6015 = vadd.f32 %v5891, %v5958
      %v6016 = vadd.f32 %v5892, %v5958
      %v6017 = vadd.f32 %v5893, %v5958
      %v6018 = vadd.f32 %v5894, %v5958
      %v6019 = vadd.f32 %v5895, %v5958
      %v6020 = vadd.f32 %v5896, %v5958
      %v6021 = vadd.f32 %v5897, %v5958
      %v6022 = vadd.f32 %v5898, %v5958
      %v6023 = vadd.f32 %v5899, %v5958
      %v6024 = vadd.f32 %v5900, %v5958
      %v6025 = vadd.f32 %v5901, %v5958
      %v6026 = vadd.f32 %v5902, %v5958
      %v6027 = vadd.f32 %v5903, %v5958
      %v6028 = vadd.f32 %v5904, %v5958
      %v6029 = vadd.f32 %v5905, %v5958
      %v6030 = vadd.f32 %v5906, %v5958
      %v6031 = vadd.f32 %v5907, %v5958
      %v6032 = vadd.f32 %v5908, %v5958
      %v6033 = vadd.f32 %v5909, %v5958
      %v6034 = vadd.f32 %v5910, %v5958
      %v6035 = vadd.f32 %v5911, %v5958
      %v6036 = vadd.f32 %v5912, %v5958
      %v6037 = vadd.f32 %v5913, %v5958
      %v6038 = vadd.f32 %v5914, %v5958
      %v6039 = vadd.f32 %v5915, %v5958
      %v6040 = vadd.f32 %v5916, %v5958
      %v6041 = vadd.f32 %v5917, %v5958
      %v6042 = vadd.f32 %v5918, %v5958
      %v6043 = vadd.f32 %v5919, %v5958
      %v6044 = vadd.f32 %v5920, %v5958
      %v6045 = vadd.f32 %v5921, %v5958
      %v6046 = vadd.f32 %v5922, %v5958
      %v6047 = vadd.f32 %v5923, %v5958
      %v6048 = vadd.f32 %v5924, %v5958
      %v6049 = vadd.f32 %v5925, %v5958
      %v6050 = vadd.f32 %v5926, %v5958
      %v6051 = vadd.f32 %v5927, %v5958
      %v6052 = vadd.f32 %v5928, %v5958
      %v6053 = vadd.f32 %v5929, %v5958
      %v6054 = vadd.f32 %v5930, %v5958
      %v6055 = vadd.f32 %v5931, %v5958
      %v6056 = vadd.f32 %v5932, %v5958
      %v6057 = vadd.f32 %v5933, %v5958
      %v6058 = vadd.f32 %v5934, %v5958
      %v6059 = vadd.f32 %v5935, %v5958
      %v6060 = vadd.f32 %v5936, %v5958
      %v6061 = vadd.f32 %v5937, %v5958
      %v6062 = vadd.f32 %v5938, %v5958
      %v6063 = vadd.f32 %v5939, %v5958
      %v6064 = vadd.f32 %v5940, %v5958
      %v6065 = vadd.f32 %v5941, %v5958
      %v6066 = vadd.f32 %v5942, %v5958
      %v6067 = vadd.f32 %v5943, %v5958
      %v6068 = vadd.f32 %v5944, %v5958
      %v6069 = vadd.f32 %v5945, %v5958
      %v6070 = vadd.f32 %v5946, %v5958
      %v6071 = vadd.f32 %v5947, %v5958
      %v6072 = vadd.f32 %v5948, %v5958
      %v6073 = vadd.f32 %v5949, %v5958
      %v6074 = vadd.f32 %v5950, %v5958
      %v6075 = vadd.f32 %v5951, %v5958
      %v6076 = vadd.f32 %v5952, %v5958
      %v6077 = vadd.f32 %v5953, %v5958
      %v6078 = vadd.f32 %v5954, %v5958
      %v6079 = vadd.f32 %v5955, %v5958
      %6080 = vst.msk [vmem:[%s170] sm:$0xff] %vm672, %v5960
      %6081 = vst.msk [vmem:[%s170 + $0x8] sm:$0xff] %vm672, %v5961
      %6082 = vst.msk [vmem:[%s170 + $0x10] sm:$0xff] %vm672, %v5962
      %6083 = vst.msk [vmem:[%s170 + $0x18] sm:$0xff] %vm672, %v5963
      %6084 = vst.msk [vmem:[%s170 + $0x20] sm:$0xff] %vm672, %v5964
      %6085 = vst.msk [vmem:[%s170 + $0x28] sm:$0xff] %vm672, %v5965
      %6086 = vst.msk [vmem:[%s170 + $0x30] sm:$0xff] %vm672, %v5966
      %6087 = vst.msk [vmem:[%s170 + $0x38] sm:$0xff] %vm672, %v5967
      %6088 = vst.msk [vmem:[%s170 + $0x40] sm:$0xff] %vm672, %v5968
      %6089 = vst.msk [vmem:[%s170 + $0x48] sm:$0xff] %vm672, %v5969
      %6090 = vst.msk [vmem:[%s170 + $0x50] sm:$0xff] %vm672, %v5970
      %6091 = vst.msk [vmem:[%s170 + $0x58] sm:$0xff] %vm672, %v5971
      %6092 = vst.msk [vmem:[%s170 + $0x60] sm:$0xff] %vm672, %v5972
      %6093 = vst.msk [vmem:[%s170 + $0x68] sm:$0xff] %vm672, %v5973
      %6094 = vst.msk [vmem:[%s170 + $0x70] sm:$0xff] %vm672, %v5974
      %6095 = vst.msk [vmem:[%s170 + $0x78] sm:$0xff] %vm672, %v5975
      %6096 = vst.msk [vmem:[%s170 + $0x80] sm:$0xff] %vm672, %v5976
      %6097 = vst.msk [vmem:[%s170 + $0x88] sm:$0xff] %vm672, %v5977
      %6098 = vst.msk [vmem:[%s170 + $0x90] sm:$0xff] %vm672, %v5978
      %6099 = vst.msk [vmem:[%s170 + $0x98] sm:$0xff] %vm672, %v5979
      %6100 = vst.msk [vmem:[%s170 + $0xa0] sm:$0xff] %vm672, %v5980
      %6101 = vst.msk [vmem:[%s170 + $0xa8] sm:$0xff] %vm672, %v5981
      %6102 = vst.msk [vmem:[%s170 + $0xb0] sm:$0xff] %vm672, %v5982
      %6103 = vst.msk [vmem:[%s170 + $0xb8] sm:$0xff] %vm672, %v5983
      %6104 = vst.msk [vmem:[%s170 + $0xc0] sm:$0xff] %vm672, %v5984
      %6105 = vst.msk [vmem:[%s170 + $0xc8] sm:$0xff] %vm672, %v5985
      %6106 = vst.msk [vmem:[%s170 + $0xd0] sm:$0xff] %vm672, %v5986
      %6107 = vst.msk [vmem:[%s170 + $0xd8] sm:$0xff] %vm672, %v5987
      %6108 = vst.msk [vmem:[%s170 + $0xe0] sm:$0xff] %vm672, %v5988
      %6109 = vst.msk [vmem:[%s170 + $0xe8] sm:$0xff] %vm672, %v5989
      %6110 = vst.msk [vmem:[%s170 + $0xf0] sm:$0xff] %vm672, %v5990
      %6111 = vst.msk [vmem:[%s170 + $0xf8] sm:$0xff] %vm672, %v5991
      %6112 = vst.msk [vmem:[%s170 + $0x100] sm:$0xff] %vm672, %v5992
      %6113 = vst.msk [vmem:[%s170 + $0x108] sm:$0xff] %vm672, %v5993
      %6114 = vst.msk [vmem:[%s170 + $0x110] sm:$0xff] %vm672, %v5994
      %6115 = vst.msk [vmem:[%s170 + $0x118] sm:$0xff] %vm672, %v5995
      %6116 = vst.msk [vmem:[%s170 + $0x120] sm:$0xff] %vm672, %v5996
      %6117 = vst.msk [vmem:[%s170 + $0x128] sm:$0xff] %vm672, %v5997
      %6118 = vst.msk [vmem:[%s170 + $0x130] sm:$0xff] %vm672, %v5998
      %6119 = vst.msk [vmem:[%s170 + $0x138] sm:$0xff] %vm672, %v5999
      %6120 = vst.msk [vmem:[%s170 + $0x140] sm:$0xff] %vm672, %v6000
      %6121 = vst.msk [vmem:[%s170 + $0x148] sm:$0xff] %vm672, %v6001
      %6122 = vst.msk [vmem:[%s170 + $0x150] sm:$0xff] %vm672, %v6002
      %6123 = vst.msk [vmem:[%s170 + $0x158] sm:$0xff] %vm672, %v6003
      %6124 = vst.msk [vmem:[%s170 + $0x160] sm:$0xff] %vm672, %v6004
      %6125 = vst.msk [vmem:[%s170 + $0x168] sm:$0xff] %vm672, %v6005
      %6126 = vst.msk [vmem:[%s170 + $0x170] sm:$0xff] %vm672, %v6006
      %6127 = vst.msk [vmem:[%s170 + $0x178] sm:$0xff] %vm672, %v6007
      %6128 = vst.msk [vmem:[%s170 + $0x180] sm:$0xff] %vm672, %v6008
      %6129 = vst.msk [vmem:[%s170 + $0x188] sm:$0xff] %vm672, %v6009
      %6130 = vst.msk [vmem:[%s170 + $0x190] sm:$0xff] %vm672, %v6010
      %6131 = vst.msk [vmem:[%s170 + $0x198] sm:$0xff] %vm672, %v6011
      %6132 = vst.msk [vmem:[%s170 + $0x1a0] sm:$0xff] %vm672, %v6012
      %6133 = vst.msk [vmem:[%s170 + $0x1a8] sm:$0xff] %vm672, %v6013
      %6134 = vst.msk [vmem:[%s170 + $0x1b0] sm:$0xff] %vm672, %v6014
      %6135 = vst.msk [vmem:[%s170 + $0x1b8] sm:$0xff] %vm672, %v6015
      %6136 = vst.msk [vmem:[%s170 + $0x1c0] sm:$0xff] %vm672, %v6016
      %6137 = vst.msk [vmem:[%s170 + $0x1c8] sm:$0xff] %vm672, %v6017
      %6138 = vst.msk [vmem:[%s170 + $0x1d0] sm:$0xff] %vm672, %v6018
      %6139 = vst.msk [vmem:[%s170 + $0x1d8] sm:$0xff] %vm672, %v6019
      %6140 = vst.msk [vmem:[%s170 + $0x1e0] sm:$0xff] %vm672, %v6020
      %6141 = vst.msk [vmem:[%s170 + $0x1e8] sm:$0xff] %vm672, %v6021
      %6142 = vst.msk [vmem:[%s170 + $0x1f0] sm:$0xff] %vm672, %v6022
      %6143 = vst.msk [vmem:[%s170 + $0x1f8] sm:$0xff] %vm672, %v6023
      %6144 = vst.msk [vmem:[%s170 + $0x200] sm:$0xff] %vm672, %v6024
      %6145 = vst.msk [vmem:[%s170 + $0x208] sm:$0xff] %vm672, %v6025
      %6146 = vst.msk [vmem:[%s170 + $0x210] sm:$0xff] %vm672, %v6026
      %6147 = vst.msk [vmem:[%s170 + $0x218] sm:$0xff] %vm672, %v6027
      %6148 = vst.msk [vmem:[%s170 + $0x220] sm:$0xff] %vm672, %v6028
      %6149 = vst.msk [vmem:[%s170 + $0x228] sm:$0xff] %vm672, %v6029
      %6150 = vst.msk [vmem:[%s170 + $0x230] sm:$0xff] %vm672, %v6030
      %6151 = vst.msk [vmem:[%s170 + $0x238] sm:$0xff] %vm672, %v6031
      %6152 = vst.msk [vmem:[%s170 + $0x240] sm:$0xff] %vm672, %v6032
      %6153 = vst.msk [vmem:[%s170 + $0x248] sm:$0xff] %vm672, %v6033
      %6154 = vst.msk [vmem:[%s170 + $0x250] sm:$0xff] %vm672, %v6034
      %6155 = vst.msk [vmem:[%s170 + $0x258] sm:$0xff] %vm672, %v6035
      %6156 = vst.msk [vmem:[%s170 + $0x260] sm:$0xff] %vm672, %v6036
      %6157 = vst.msk [vmem:[%s170 + $0x268] sm:$0xff] %vm672, %v6037
      %6158 = vst.msk [vmem:[%s170 + $0x270] sm:$0xff] %vm672, %v6038
      %6159 = vst.msk [vmem:[%s170 + $0x278] sm:$0xff] %vm672, %v6039
      %6160 = vst.msk [vmem:[%s170 + $0x280] sm:$0xff] %vm672, %v6040
      %6161 = vst.msk [vmem:[%s170 + $0x288] sm:$0xff] %vm672, %v6041
      %6162 = vst.msk [vmem:[%s170 + $0x290] sm:$0xff] %vm672, %v6042
      %6163 = vst.msk [vmem:[%s170 + $0x298] sm:$0xff] %vm672, %v6043
      %6164 = vst.msk [vmem:[%s170 + $0x2a0] sm:$0xff] %vm672, %v6044
      %6165 = vst.msk [vmem:[%s170 + $0x2a8] sm:$0xff] %vm672, %v6045
      %6166 = vst.msk [vmem:[%s170 + $0x2b0] sm:$0xff] %vm672, %v6046
      %6167 = vst.msk [vmem:[%s170 + $0x2b8] sm:$0xff] %vm672, %v6047
      %6168 = vst.msk [vmem:[%s170 + $0x2c0] sm:$0xff] %vm672, %v6048
      %6169 = vst.msk [vmem:[%s170 + $0x2c8] sm:$0xff] %vm672, %v6049
      %6170 = vst.msk [vmem:[%s170 + $0x2d0] sm:$0xff] %vm672, %v6050
      %6171 = vst.msk [vmem:[%s170 + $0x2d8] sm:$0xff] %vm672, %v6051
      %6172 = vst.msk [vmem:[%s170 + $0x2e0] sm:$0xff] %vm672, %v6052
      %6173 = vst.msk [vmem:[%s170 + $0x2e8] sm:$0xff] %vm672, %v6053
      %6174 = vst.msk [vmem:[%s170 + $0x2f0] sm:$0xff] %vm672, %v6054
      %6175 = vst.msk [vmem:[%s170 + $0x2f8] sm:$0xff] %vm672, %v6055
      %6176 = vst.msk [vmem:[%s170 + $0x300] sm:$0xff] %vm672, %v6056
      %6177 = vst.msk [vmem:[%s170 + $0x308] sm:$0xff] %vm672, %v6057
      %6178 = vst.msk [vmem:[%s170 + $0x310] sm:$0xff] %vm672, %v6058
      %6179 = vst.msk [vmem:[%s170 + $0x318] sm:$0xff] %vm672, %v6059
      %6180 = vst.msk [vmem:[%s170 + $0x320] sm:$0xff] %vm672, %v6060
      %6181 = vst.msk [vmem:[%s170 + $0x328] sm:$0xff] %vm672, %v6061
      %6182 = vst.msk [vmem:[%s170 + $0x330] sm:$0xff] %vm672, %v6062
      %6183 = vst.msk [vmem:[%s170 + $0x338] sm:$0xff] %vm672, %v6063
      %6184 = vst.msk [vmem:[%s170 + $0x340] sm:$0xff] %vm672, %v6064
      %6185 = vst.msk [vmem:[%s170 + $0x348] sm:$0xff] %vm672, %v6065
      %6186 = vst.msk [vmem:[%s170 + $0x350] sm:$0xff] %vm672, %v6066
      %6187 = vst.msk [vmem:[%s170 + $0x358] sm:$0xff] %vm672, %v6067
      %6188 = vst.msk [vmem:[%s170 + $0x360] sm:$0xff] %vm672, %v6068
      %6189 = vst.msk [vmem:[%s170 + $0x368] sm:$0xff] %vm672, %v6069
      %6190 = vst.msk [vmem:[%s170 + $0x370] sm:$0xff] %vm672, %v6070
      %6191 = vst.msk [vmem:[%s170 + $0x378] sm:$0xff] %vm672, %v6071
      %6192 = vst.msk [vmem:[%s170 + $0x380] sm:$0xff] %vm672, %v6072
      %6193 = vst.msk [vmem:[%s170 + $0x388] sm:$0xff] %vm672, %v6073
      %6194 = vst.msk [vmem:[%s170 + $0x390] sm:$0xff] %vm672, %v6074
      %6195 = vst.msk [vmem:[%s170 + $0x398] sm:$0xff] %vm672, %v6075
      %6196 = vst.msk [vmem:[%s170 + $0x3a0] sm:$0xff] %vm672, %v6076
      %6197 = vst.msk [vmem:[%s170 + $0x3a8] sm:$0xff] %vm672, %v6077
      %6198 = vst.msk [vmem:[%s170 + $0x3b0] sm:$0xff] %vm672, %v6078
      %6199 = vst.msk [vmem:[%s170 + $0x3b8] sm:$0xff] %vm672, %v6079
      %p6200 = scmp.lt.s32.totalorder %s14, 1
      %s6201 = scalar_select %p6200, %s14, 1
      %s6202 = smul.addr %s6201, 120
      %s6203 = smul.addr %s6202, 8
      %s6204 = scalar_lea.vmem %s3, %s6203
      // Predicated region
      $region33: #{esa_pallas.8} parent=31 // pred_check
        %p6205 = pneg %p100
      $region34: #{esa_pallas.8} parent=31 // pred_check_branch
        %6207 = sbr.rel (%p6205) target = $region36
      $region35: #{esa_pallas.8} parent=31 // pred_region
        _
      $region36: #{esa_pallas.8} parent=31 // pred_fallthru
        _
    $region32: #{esa_pallas.8} parent=5 // pred_fallthru
      _
    %p6208 = scmp.le.s32.totalorder 2, %s9
    // Predicated region
    $region37: #{esa_pallas.8} parent=5 // pred_check
      %p6209 = pneg %p6208
    $region38: #{esa_pallas.8} parent=5 // pred_check_branch
      %6211 = sbr.rel (%p6209) target = $region40
    $region39: #{esa_pallas.8} parent=5 // pred_region
      %s6212 = ssub.s32 %s9, 2
      // Predicated region
      $region41: #{esa_pallas.8} parent=39 // pred_check
        %p6213 = pneg %p106
      $region42: #{esa_pallas.8} parent=39 // pred_check_branch
        %6215 = sbr.rel (%p6213) target = $region44
      $region43: #{esa_pallas.8} parent=39 // pred_region
        %p6216 = scmp.lt.s32.totalorder %s15, 1
        %s6217 = scalar_select %p6216, %s15, 1
        %s6218 = smul.addr %s6217, 120
        %s6219 = smul.addr %s6218, 8
        %s6220 = scalar_lea.vmem %s3, %s6219
      $region44: #{esa_pallas.8} parent=39 // pred_fallthru
        _
    $region40: #{esa_pallas.8} parent=5 // pred_fallthru
      _
  $region6: #{esa_pallas.8} parent=0 // loop_footer
    %s13 = sadd.s32 1, %s9
  $region7: #{esa_pallas.8} parent=0 // loop_footer_branch
    %8 = sbr.rel target = $region3
  $region8: #{esa_pallas.8} parent=0 // loop_exit
    _

// kernel: esa_pallas.13
$region0: #{esa_pallas.13}
  #allocation0 [shape = 'u32[]', space=smem, size = 0x4, offset = 0x4, fixed_abs, tag = 'smem constant byte address 0x4 - core index']
  #allocation1 [shape = 'u32[72,128]{1,0:T(1,128)}', space=vmem, size = 0x9000, scoped, tag = 'internal scratch']
  %s0 = inlined_call_operand.vmem [shape: f32[2048,16], index: 0, kind: input, shape index: {}]
  %s1 = inlined_call_operand.vmem [shape: f32[2048,8], index: 1, kind: input, shape index: {}]
  %s2 = inlined_call_operand.vmem [shape: f32[2048,8], index: 2, kind: input, shape index: {}]
  %s3 = inlined_call_operand.vmem [shape: f32[8,16], index: 3, kind: input, shape index: {}]
  %s4 = inlined_call_operand.vmem [shape: f32[1,16], index: 4, kind: input, shape index: {}]
  %s5 = inlined_call_operand.vmem [shape: f32[2048,16], index: 5, kind: output, shape index: {}]
  %s6 = sld [smem:[#allocation0]]
  $region53: #{esa_pallas.13} parent=0
    _
  %s8 = ssub.s32 1, %s6
  %s9 = scalar_select 0, %s8, %s6
  loop: start=0, step=1, limit=6
  $region2: #{esa_pallas.13} parent=0 // loop_pre_header
    _
  $region3: #{esa_pallas.13} parent=0 // loop_header
    %s11 = sphi 0, %s15
    %p12 = scmp.ge.s32.totalorder %s11, 6
    %s21 = sphi 0, %s23
    %s24 = sphi 0, %s21
    %s25 = sphi 0, %s24
    %s41 = sphi 0, %s25
    %s47 = sphi 0, %s49
    %s50 = sphi 0, %s47
    %s51 = sphi 0, %s50
    %s67 = sphi 0, %s51
    %s73 = sphi 0, %s75
    %s76 = sphi 0, %s73
    %s77 = sphi 0, %s76
    %s93 = sphi 0, %s77
    %s97 = sphi 0, %s97
    %s99 = sphi 0, %s97
    %s100 = sphi 0, %s99
    %s114 = sphi 0, %s100
    %s118 = sphi 0, %s118
    %s120 = sphi 0, %s118
    %s121 = sphi 0, %s120
    %s135 = sphi 0, %s121
    %s141 = sphi 0, %s143
    %s144 = sphi 0, %s141
    %s145 = sphi 0, %s144
    %s161 = sphi 0, %s145
  $region4: #{esa_pallas.13} parent=0 // loop_header_branch
    %14 = sbr.rel (%p12) target = $region8
  $region5: #{esa_pallas.13} parent=0 // loop_body
    %s16 = ssub.s32 %s11, 1
    %s17 = ssub.s32 %s11, 2
    %s18 = sadd.s32 %s11, 1
    %s19 = ssub.s32 %s11, %s18
    %p20 = scmp.eq.s32.totalorder %s19, 0
    %s22 = sadd.s32 %s21, 1
    %s23 = scalar_select %p20, %s21, %s22
    %p26 = pneg %p20
    %p27 = scmp.eq.s32.totalorder %s11, 3
    %p28 = por %p26, %p27
    %p29 = scmp.ne.s32.totalorder %s21, %s24
    %p30 = scmp.eq.s32.totalorder %s11, 0
    %p31 = por %p29, %p30
    %p32 = scmp.ne.s32.totalorder %s21, %s24
    %p33 = scmp.eq.s32.totalorder %s16, 3
    %p34 = por %p32, %p33
    %p35 = scmp.ne.s32.totalorder %s24, %s25
    %p36 = scmp.eq.s32.totalorder %s16, 0
    %p37 = por %p35, %p36
    %p38 = scmp.ne.s32.totalorder %s24, %s25
    %p39 = scmp.eq.s32.totalorder %s17, 3
    %p40 = por %p38, %p39
    %p42 = scmp.ne.s32.totalorder %s25, %s41
    %p43 = scmp.eq.s32.totalorder %s17, 0
    %p44 = por %p42, %p43
    %s45 = ssub.s32 %s11, %s18
    %p46 = scmp.eq.s32.totalorder %s45, 0
    %s48 = sadd.s32 %s47, 1
    %s49 = scalar_select %p46, %s47, %s48
    %p52 = pneg %p46
    %p53 = scmp.eq.s32.totalorder %s11, 3
    %p54 = por %p52, %p53
    %p55 = scmp.ne.s32.totalorder %s47, %s50
    %p56 = scmp.eq.s32.totalorder %s11, 0
    %p57 = por %p55, %p56
    %p58 = scmp.ne.s32.totalorder %s47, %s50
    %p59 = scmp.eq.s32.totalorder %s16, 3
    %p60 = por %p58, %p59
    %p61 = scmp.ne.s32.totalorder %s50, %s51
    %p62 = scmp.eq.s32.totalorder %s16, 0
    %p63 = por %p61, %p62
    %p64 = scmp.ne.s32.totalorder %s50, %s51
    %p65 = scmp.eq.s32.totalorder %s17, 3
    %p66 = por %p64, %p65
    %p68 = scmp.ne.s32.totalorder %s51, %s67
    %p69 = scmp.eq.s32.totalorder %s17, 0
    %p70 = por %p68, %p69
    %s71 = ssub.s32 %s11, %s18
    %p72 = scmp.eq.s32.totalorder %s71, 0
    %s74 = sadd.s32 %s73, 1
    %s75 = scalar_select %p72, %s73, %s74
    %p78 = pneg %p72
    %p79 = scmp.eq.s32.totalorder %s11, 3
    %p80 = por %p78, %p79
    %p81 = scmp.ne.s32.totalorder %s73, %s76
    %p82 = scmp.eq.s32.totalorder %s11, 0
    %p83 = por %p81, %p82
    %p84 = scmp.ne.s32.totalorder %s73, %s76
    %p85 = scmp.eq.s32.totalorder %s16, 3
    %p86 = por %p84, %p85
    %p87 = scmp.ne.s32.totalorder %s76, %s77
    %p88 = scmp.eq.s32.totalorder %s16, 0
    %p89 = por %p87, %p88
    %p90 = scmp.ne.s32.totalorder %s76, %s77
    %p91 = scmp.eq.s32.totalorder %s17, 3
    %p92 = por %p90, %p91
    %p94 = scmp.ne.s32.totalorder %s77, %s93
    %p95 = scmp.eq.s32.totalorder %s17, 0
    %p96 = por %p94, %p95
    %s98 = sadd.s32 %s97, 1
    %p101 = scmp.eq.s32.totalorder %s11, 3
    %p102 = scmp.ne.s32.totalorder %s97, %s99
    %p103 = scmp.eq.s32.totalorder %s11, 0
    %p104 = por %p102, %p103
    %p105 = scmp.ne.s32.totalorder %s97, %s99
    %p106 = scmp.eq.s32.totalorder %s16, 3
    %p107 = por %p105, %p106
    %p108 = scmp.ne.s32.totalorder %s99, %s100
    %p109 = scmp.eq.s32.totalorder %s16, 0
    %p110 = por %p108, %p109
    %p111 = scmp.ne.s32.totalorder %s99, %s100
    %p112 = scmp.eq.s32.totalorder %s17, 3
    %p113 = por %p111, %p112
    %p115 = scmp.ne.s32.totalorder %s100, %s114
    %p116 = scmp.eq.s32.totalorder %s17, 0
    %p117 = por %p115, %p116
    %s119 = sadd.s32 %s118, 1
    %p122 = scmp.eq.s32.totalorder %s11, 3
    %p123 = scmp.ne.s32.totalorder %s118, %s120
    %p124 = scmp.eq.s32.totalorder %s11, 0
    %p125 = por %p123, %p124
    %p126 = scmp.ne.s32.totalorder %s118, %s120
    %p127 = scmp.eq.s32.totalorder %s16, 3
    %p128 = por %p126, %p127
    %p129 = scmp.ne.s32.totalorder %s120, %s121
    %p130 = scmp.eq.s32.totalorder %s16, 0
    %p131 = por %p129, %p130
    %p132 = scmp.ne.s32.totalorder %s120, %s121
    %p133 = scmp.eq.s32.totalorder %s17, 3
    %p134 = por %p132, %p133
    %p136 = scmp.ne.s32.totalorder %s121, %s135
    %p137 = scmp.eq.s32.totalorder %s17, 0
    %p138 = por %p136, %p137
    %s139 = ssub.s32 %s11, %s18
    %p140 = scmp.eq.s32.totalorder %s139, 0
    %s142 = sadd.s32 %s141, 1
    %s143 = scalar_select %p140, %s141, %s142
    %p146 = pneg %p140
    %p147 = scmp.eq.s32.totalorder %s11, 3
    %p148 = por %p146, %p147
    %p149 = scmp.ne.s32.totalorder %s141, %s144
    %p150 = scmp.eq.s32.totalorder %s11, 0
    %p151 = por %p149, %p150
    %p152 = scmp.ne.s32.totalorder %s141, %s144
    %p153 = scmp.eq.s32.totalorder %s16, 3
    %p154 = por %p152, %p153
    %p155 = scmp.ne.s32.totalorder %s144, %s145
    %p156 = scmp.eq.s32.totalorder %s16, 0
    %p157 = por %p155, %p156
    %p158 = scmp.ne.s32.totalorder %s144, %s145
    %p159 = scmp.eq.s32.totalorder %s17, 3
    %p160 = por %p158, %p159
    %p162 = scmp.ne.s32.totalorder %s145, %s161
    %p163 = scmp.eq.s32.totalorder %s17, 0
    %p164 = por %p162, %p163
    %p165 = scmp.le.s32.totalorder 1, %s11
    %p166 = scmp.lt.s32.totalorder %s11, 5
    %p167 = pnand %p165, %p166
    %p168 = pneg %p167
    // Predicated region
    $region9: #{esa_pallas.13} parent=5 // pred_check
      _
    $region10: #{esa_pallas.13} parent=5 // pred_check_branch
      %170 = sbr.rel (%p167) target = $region12
    $region11: #{esa_pallas.13} parent=5 // pred_region
      %s171 = ssub.s32 %s11, 1
      // Predicated region
      $region13: #{esa_pallas.13} parent=11 // pred_check
        %p172 = pneg %p110
      $region14: #{esa_pallas.13} parent=11 // pred_check_branch
        %174 = sbr.rel (%p172) target = $region16
      $region15: #{esa_pallas.13} parent=11 // pred_region
        _
      $region16: #{esa_pallas.13} parent=11 // pred_fallthru
        _
      // Predicated region
      $region17: #{esa_pallas.13} parent=11 // pred_check
        %p175 = pneg %p131
      $region18: #{esa_pallas.13} parent=11 // pred_check_branch
        %177 = sbr.rel (%p175) target = $region20
      $region19: #{esa_pallas.13} parent=11 // pred_region
        _
      $region20: #{esa_pallas.13} parent=11 // pred_fallthru
        _
    $region12: #{esa_pallas.13} parent=5 // pred_fallthru
      _
    %p178 = scmp.lt.s32.totalorder %s11, 4
    // Predicated region
    $region21: #{esa_pallas.13} parent=5 // pred_check
      %p179 = pneg %p178
    $region22: #{esa_pallas.13} parent=5 // pred_check_branch
      %181 = sbr.rel (%p179) target = $region24
    $region23: #{esa_pallas.13} parent=5 // pred_region
      // Predicated region
      $region25: #{esa_pallas.13} parent=23 // pred_check
        %p182 = pneg %p31
      $region26: #{esa_pallas.13} parent=23 // pred_check_branch
        %184 = sbr.rel (%p182) target = $region28
      $region27: #{esa_pallas.13} parent=23 // pred_region
        %s185 = smul.u32 64, %s11
        %p186 = scmp.lt.s32.totalorder %s185, 255
        %s187 = scalar_select %p186, %s185, 255
        %s188 = smul.addr %s187, 8
        %s189 = scalar_lea.vmem %s0, %s188
        %s190 = smul.u32 64, %s11
      $region28: #{esa_pallas.13} parent=23 // pred_fallthru
        _
      // Predicated region
      $region29: #{esa_pallas.13} parent=23 // pred_check
        %p191 = pneg %p57
      $region30: #{esa_pallas.13} parent=23 // pred_check_branch
        %193 = sbr.rel (%p191) target = $region32
      $region31: #{esa_pallas.13} parent=23 // pred_region
        %s194 = smul.u32 64, %s11
        %p195 = scmp.lt.s32.totalorder %s194, 255
        %s196 = scalar_select %p195, %s194, 255
        %s197 = smul.addr %s196, 8
        %s198 = scalar_lea.vmem %s1, %s197
        %s199 = smul.u32 64, %s11
      $region32: #{esa_pallas.13} parent=23 // pred_fallthru
        _
      // Predicated region
      $region33: #{esa_pallas.13} parent=23 // pred_check
        %p200 = pneg %p83
      $region34: #{esa_pallas.13} parent=23 // pred_check_branch
        %202 = sbr.rel (%p200) target = $region36
      $region35: #{esa_pallas.13} parent=23 // pred_region
        %s203 = smul.u32 64, %s11
        %p204 = scmp.lt.s32.totalorder %s203, 255
        %s205 = scalar_select %p204, %s203, 255
        %s206 = smul.addr %s205, 8
        %s207 = scalar_lea.vmem %s2, %s206
        %s208 = smul.u32 64, %s11
      $region36: #{esa_pallas.13} parent=23 // pred_fallthru
        _
    $region24: #{esa_pallas.13} parent=5 // pred_fallthru
      _
    %p209 = scmp.le.s32.totalorder 1, %s11
    %p210 = scmp.lt.s32.totalorder %s11, 5
    %p211 = pnand %p209, %p210
    %p212 = pneg %p211
    // Predicated region
    $region37: #{esa_pallas.13} parent=5 // pred_check
      _
    $region38: #{esa_pallas.13} parent=5 // pred_check_branch
      %214 = sbr.rel (%p211) target = $region40
    $region39: #{esa_pallas.13} parent=5 // pred_region
      %s215 = ssub.s32 %s11, 1
      %s216 = smul.u32 64, %s16
      %p217 = scmp.lt.s32.totalorder %s216, 255
      %s218 = scalar_select %p217, %s216, 255
      %s219 = smul.addr %s218, 8
      %s220 = scalar_lea.vmem %s0, %s219
      %p221 = pneg %p37
      %p222 = pneg %p34
      %s223 = smul.u32 64, %s16
      %p224 = scmp.lt.s32.totalorder %s223, 255
      %s225 = scalar_select %p224, %s223, 255
      %s226 = smul.addr %s225, 8
      %s227 = scalar_lea.vmem %s1, %s226
      %p228 = pneg %p63
      %p229 = pneg %p60
      %s230 = smul.u32 64, %s16
      %p231 = scmp.lt.s32.totalorder %s230, 255
      %s232 = scalar_select %p231, %s230, 255
      %s233 = smul.addr %s232, 8
      %s234 = scalar_lea.vmem %s2, %s233
      %p235 = pneg %p89
      %p236 = pneg %p86
      %p237 = pneg %p110
      %p238 = pneg %p107
      %p239 = pneg %p131
      %p240 = pneg %p128
      %p241 = pneg %p157
      %p242 = pneg %p154
      %s243 = smul.u32 64, %s16
      %p244 = scmp.lt.s32.totalorder %s243, 255
      %s245 = scalar_select %p244, %s243, 255
      %s246 = smul.addr %s245, 8
      %s247 = scalar_lea.vmem %s5, %s246
      %s248 = smul.u32 64, %s16
      %p249 = scmp.lt.s32.totalorder %s248, 255
      %s250 = scalar_select %p249, %s248, 255
      %s251 = smul.addr %s250, 8
      %s252 = scalar_lea.vmem %s0, %s251
      %s253 = smul.u32 64, %s16
      %s254 = smul.u32 64, %s16
      %p255 = scmp.lt.s32.totalorder %s254, 255
      %s256 = scalar_select %p255, %s254, 255
      %s257 = smul.addr %s256, 8
      %s258 = scalar_lea.vmem %s1, %s257
      %s259 = smul.u32 64, %s16
      %s260 = smul.u32 64, %s16
      %p261 = scmp.lt.s32.totalorder %s260, 255
      %s262 = scalar_select %p261, %s260, 255
      %s263 = smul.addr %s262, 8
      %s264 = scalar_lea.vmem %s2, %s263
      %s265 = smul.u32 64, %s16
      %s266 = smul.u32 64, %s16
      %p267 = scmp.lt.s32.totalorder %s266, 255
      %s268 = scalar_select %p267, %s266, 255
      %s269 = smul.addr %s268, 8
      %s270 = scalar_lea.vmem %s5, %s269
      %s271 = smul.u32 64, %s16
      %v272 = vld [vmem:[%s264] sm:$0xff]
      %v273 = vld [vmem:[%s264 + $0x8] sm:$0xff]
      %v274 = vld [vmem:[%s264 + $0x10] sm:$0xff]
      %v275 = vld [vmem:[%s264 + $0x18] sm:$0xff]
      %v276 = vld [vmem:[%s264 + $0x20] sm:$0xff]
      %v277 = vld [vmem:[%s264 + $0x28] sm:$0xff]
      %v278 = vld [vmem:[%s264 + $0x30] sm:$0xff]
      %v279 = vld [vmem:[%s264 + $0x38] sm:$0xff]
      %v280 = vld [vmem:[%s264 + $0x40] sm:$0xff]
      %v281 = vld [vmem:[%s264 + $0x48] sm:$0xff]
      %v282 = vld [vmem:[%s264 + $0x50] sm:$0xff]
      %v283 = vld [vmem:[%s264 + $0x58] sm:$0xff]
      %v284 = vld [vmem:[%s264 + $0x60] sm:$0xff]
      %v285 = vld [vmem:[%s264 + $0x68] sm:$0xff]
      %v286 = vld [vmem:[%s264 + $0x70] sm:$0xff]
      %v287 = vld [vmem:[%s264 + $0x78] sm:$0xff]
      %v288 = vld [vmem:[%s264 + $0x80] sm:$0xff]
      %v289 = vld [vmem:[%s264 + $0x88] sm:$0xff]
      %v290 = vld [vmem:[%s264 + $0x90] sm:$0xff]
      %v291 = vld [vmem:[%s264 + $0x98] sm:$0xff]
      %v292 = vld [vmem:[%s264 + $0xa0] sm:$0xff]
      %v293 = vld [vmem:[%s264 + $0xa8] sm:$0xff]
      %v294 = vld [vmem:[%s264 + $0xb0] sm:$0xff]
      %v295 = vld [vmem:[%s264 + $0xb8] sm:$0xff]
      %v296 = vld [vmem:[%s264 + $0xc0] sm:$0xff]
      %v297 = vld [vmem:[%s264 + $0xc8] sm:$0xff]
      %v298 = vld [vmem:[%s264 + $0xd0] sm:$0xff]
      %v299 = vld [vmem:[%s264 + $0xd8] sm:$0xff]
      %v300 = vld [vmem:[%s264 + $0xe0] sm:$0xff]
      %v301 = vld [vmem:[%s264 + $0xe8] sm:$0xff]
      %v302 = vld [vmem:[%s264 + $0xf0] sm:$0xff]
      %v303 = vld [vmem:[%s264 + $0xf8] sm:$0xff]
      %v304 = vld [vmem:[%s264 + $0x100] sm:$0xff]
      %v305 = vld [vmem:[%s264 + $0x108] sm:$0xff]
      %v306 = vld [vmem:[%s264 + $0x110] sm:$0xff]
      %v307 = vld [vmem:[%s264 + $0x118] sm:$0xff]
      %v308 = vld [vmem:[%s264 + $0x120] sm:$0xff]
      %v309 = vld [vmem:[%s264 + $0x128] sm:$0xff]
      %v310 = vld [vmem:[%s264 + $0x130] sm:$0xff]
      %v311 = vld [vmem:[%s264 + $0x138] sm:$0xff]
      %v312 = vld [vmem:[%s264 + $0x140] sm:$0xff]
      %v313 = vld [vmem:[%s264 + $0x148] sm:$0xff]
      %v314 = vld [vmem:[%s264 + $0x150] sm:$0xff]
      %v315 = vld [vmem:[%s264 + $0x158] sm:$0xff]
      %v316 = vld [vmem:[%s264 + $0x160] sm:$0xff]
      %v317 = vld [vmem:[%s264 + $0x168] sm:$0xff]
      %v318 = vld [vmem:[%s264 + $0x170] sm:$0xff]
      %v319 = vld [vmem:[%s264 + $0x178] sm:$0xff]
      %v320 = vld [vmem:[%s264 + $0x180] sm:$0xff]
      %v321 = vld [vmem:[%s264 + $0x188] sm:$0xff]
      %v322 = vld [vmem:[%s264 + $0x190] sm:$0xff]
      %v323 = vld [vmem:[%s264 + $0x198] sm:$0xff]
      %v324 = vld [vmem:[%s264 + $0x1a0] sm:$0xff]
      %v325 = vld [vmem:[%s264 + $0x1a8] sm:$0xff]
      %v326 = vld [vmem:[%s264 + $0x1b0] sm:$0xff]
      %v327 = vld [vmem:[%s264 + $0x1b8] sm:$0xff]
      %v328 = vld [vmem:[%s264 + $0x1c0] sm:$0xff]
      %v329 = vld [vmem:[%s264 + $0x1c8] sm:$0xff]
      %v330 = vld [vmem:[%s264 + $0x1d0] sm:$0xff]
      %v331 = vld [vmem:[%s264 + $0x1d8] sm:$0xff]
      %v332 = vld [vmem:[%s264 + $0x1e0] sm:$0xff]
      %v333 = vld [vmem:[%s264 + $0x1e8] sm:$0xff]
      %v334 = vld [vmem:[%s264 + $0x1f0] sm:$0xff]
      %v335 = vld [vmem:[%s264 + $0x1f8] sm:$0xff]
      %v336 = vld [vmem:[%s258] sm:$0xff]
      %v337 = vld [vmem:[%s258 + $0x8] sm:$0xff]
      %v338 = vld [vmem:[%s258 + $0x10] sm:$0xff]
      %v339 = vld [vmem:[%s258 + $0x18] sm:$0xff]
      %v340 = vld [vmem:[%s258 + $0x20] sm:$0xff]
      %v341 = vld [vmem:[%s258 + $0x28] sm:$0xff]
      %v342 = vld [vmem:[%s258 + $0x30] sm:$0xff]
      %v343 = vld [vmem:[%s258 + $0x38] sm:$0xff]
      %v344 = vld [vmem:[%s258 + $0x40] sm:$0xff]
      %v345 = vld [vmem:[%s258 + $0x48] sm:$0xff]
      %v346 = vld [vmem:[%s258 + $0x50] sm:$0xff]
      %v347 = vld [vmem:[%s258 + $0x58] sm:$0xff]
      %v348 = vld [vmem:[%s258 + $0x60] sm:$0xff]
      %v349 = vld [vmem:[%s258 + $0x68] sm:$0xff]
      %v350 = vld [vmem:[%s258 + $0x70] sm:$0xff]
      %v351 = vld [vmem:[%s258 + $0x78] sm:$0xff]
      %v352 = vld [vmem:[%s258 + $0x80] sm:$0xff]
      %v353 = vld [vmem:[%s258 + $0x88] sm:$0xff]
      %v354 = vld [vmem:[%s258 + $0x90] sm:$0xff]
      %v355 = vld [vmem:[%s258 + $0x98] sm:$0xff]
      %v356 = vld [vmem:[%s258 + $0xa0] sm:$0xff]
      %v357 = vld [vmem:[%s258 + $0xa8] sm:$0xff]
      %v358 = vld [vmem:[%s258 + $0xb0] sm:$0xff]
      %v359 = vld [vmem:[%s258 + $0xb8] sm:$0xff]
      %v360 = vld [vmem:[%s258 + $0xc0] sm:$0xff]
      %v361 = vld [vmem:[%s258 + $0xc8] sm:$0xff]
      %v362 = vld [vmem:[%s258 + $0xd0] sm:$0xff]
      %v363 = vld [vmem:[%s258 + $0xd8] sm:$0xff]
      %v364 = vld [vmem:[%s258 + $0xe0] sm:$0xff]
      %v365 = vld [vmem:[%s258 + $0xe8] sm:$0xff]
      %v366 = vld [vmem:[%s258 + $0xf0] sm:$0xff]
      %v367 = vld [vmem:[%s258 + $0xf8] sm:$0xff]
      %v368 = vld [vmem:[%s258 + $0x100] sm:$0xff]
      %v369 = vld [vmem:[%s258 + $0x108] sm:$0xff]
      %v370 = vld [vmem:[%s258 + $0x110] sm:$0xff]
      %v371 = vld [vmem:[%s258 + $0x118] sm:$0xff]
      %v372 = vld [vmem:[%s258 + $0x120] sm:$0xff]
      %v373 = vld [vmem:[%s258 + $0x128] sm:$0xff]
      %v374 = vld [vmem:[%s258 + $0x130] sm:$0xff]
      %v375 = vld [vmem:[%s258 + $0x138] sm:$0xff]
      %v376 = vld [vmem:[%s258 + $0x140] sm:$0xff]
      %v377 = vld [vmem:[%s258 + $0x148] sm:$0xff]
      %v378 = vld [vmem:[%s258 + $0x150] sm:$0xff]
      %v379 = vld [vmem:[%s258 + $0x158] sm:$0xff]
      %v380 = vld [vmem:[%s258 + $0x160] sm:$0xff]
      %v381 = vld [vmem:[%s258 + $0x168] sm:$0xff]
      %v382 = vld [vmem:[%s258 + $0x170] sm:$0xff]
      %v383 = vld [vmem:[%s258 + $0x178] sm:$0xff]
      %v384 = vld [vmem:[%s258 + $0x180] sm:$0xff]
      %v385 = vld [vmem:[%s258 + $0x188] sm:$0xff]
      %v386 = vld [vmem:[%s258 + $0x190] sm:$0xff]
      %v387 = vld [vmem:[%s258 + $0x198] sm:$0xff]
      %v388 = vld [vmem:[%s258 + $0x1a0] sm:$0xff]
      %v389 = vld [vmem:[%s258 + $0x1a8] sm:$0xff]
      %v390 = vld [vmem:[%s258 + $0x1b0] sm:$0xff]
      %v391 = vld [vmem:[%s258 + $0x1b8] sm:$0xff]
      %v392 = vld [vmem:[%s258 + $0x1c0] sm:$0xff]
      %v393 = vld [vmem:[%s258 + $0x1c8] sm:$0xff]
      %v394 = vld [vmem:[%s258 + $0x1d0] sm:$0xff]
      %v395 = vld [vmem:[%s258 + $0x1d8] sm:$0xff]
      %v396 = vld [vmem:[%s258 + $0x1e0] sm:$0xff]
      %v397 = vld [vmem:[%s258 + $0x1e8] sm:$0xff]
      %v398 = vld [vmem:[%s258 + $0x1f0] sm:$0xff]
      %v399 = vld [vmem:[%s258 + $0x1f8] sm:$0xff]
      %v400 = vadd.f32 %v272, %v336
      %v401 = vadd.f32 %v273, %v337
      %v402 = vadd.f32 %v274, %v338
      %v403 = vadd.f32 %v275, %v339
      %v404 = vadd.f32 %v276, %v340
      %v405 = vadd.f32 %v277, %v341
      %v406 = vadd.f32 %v278, %v342
      %v407 = vadd.f32 %v279, %v343
      %v408 = vadd.f32 %v280, %v344
      %v409 = vadd.f32 %v281, %v345
      %v410 = vadd.f32 %v282, %v346
      %v411 = vadd.f32 %v283, %v347
      %v412 = vadd.f32 %v284, %v348
      %v413 = vadd.f32 %v285, %v349
      %v414 = vadd.f32 %v286, %v350
      %v415 = vadd.f32 %v287, %v351
      %v416 = vadd.f32 %v288, %v352
      %v417 = vadd.f32 %v289, %v353
      %v418 = vadd.f32 %v290, %v354
      %v419 = vadd.f32 %v291, %v355
      %v420 = vadd.f32 %v292, %v356
      %v421 = vadd.f32 %v293, %v357
      %v422 = vadd.f32 %v294, %v358
      %v423 = vadd.f32 %v295, %v359
      %v424 = vadd.f32 %v296, %v360
      %v425 = vadd.f32 %v297, %v361
      %v426 = vadd.f32 %v298, %v362
      %v427 = vadd.f32 %v299, %v363
      %v428 = vadd.f32 %v300, %v364
      %v429 = vadd.f32 %v301, %v365
      %v430 = vadd.f32 %v302, %v366
      %v431 = vadd.f32 %v303, %v367
      %v432 = vadd.f32 %v304, %v368
      %v433 = vadd.f32 %v305, %v369
      %v434 = vadd.f32 %v306, %v370
      %v435 = vadd.f32 %v307, %v371
      %v436 = vadd.f32 %v308, %v372
      %v437 = vadd.f32 %v309, %v373
      %v438 = vadd.f32 %v310, %v374
      %v439 = vadd.f32 %v311, %v375
      %v440 = vadd.f32 %v312, %v376
      %v441 = vadd.f32 %v313, %v377
      %v442 = vadd.f32 %v314, %v378
      %v443 = vadd.f32 %v315, %v379
      %v444 = vadd.f32 %v316, %v380
      %v445 = vadd.f32 %v317, %v381
      %v446 = vadd.f32 %v318, %v382
      %v447 = vadd.f32 %v319, %v383
      %v448 = vadd.f32 %v320, %v384
      %v449 = vadd.f32 %v321, %v385
      %v450 = vadd.f32 %v322, %v386
      %v451 = vadd.f32 %v323, %v387
      %v452 = vadd.f32 %v324, %v388
      %v453 = vadd.f32 %v325, %v389
      %v454 = vadd.f32 %v326, %v390
      %v455 = vadd.f32 %v327, %v391
      %v456 = vadd.f32 %v328, %v392
      %v457 = vadd.f32 %v329, %v393
      %v458 = vadd.f32 %v330, %v394
      %v459 = vadd.f32 %v331, %v395
      %v460 = vadd.f32 %v332, %v396
      %v461 = vadd.f32 %v333, %v397
      %v462 = vadd.f32 %v334, %v398
      %v463 = vadd.f32 %v335, %v399
      %v464 = vld [vmem:[%s3] sm:$0xff]
      %v465 = vld [vmem:[%s4] sm:$0x1]
      %v467 = vperm.slane %v465, 0
      %vm469 = vcmask 64512
      %v471 = vsel %vm469, %v400, 0
      %v474 = vsel %vm469, %v401, 0
      %v477 = vsel %vm469, %v402, 0
      %v480 = vsel %vm469, %v403, 0
      %v483 = vsel %vm469, %v404, 0
      %v486 = vsel %vm469, %v405, 0
      %v489 = vsel %vm469, %v406, 0
      %v492 = vsel %vm469, %v407, 0
      %v495 = vsel %vm469, %v408, 0
      %v498 = vsel %vm469, %v409, 0
      %v501 = vsel %vm469, %v410, 0
      %v504 = vsel %vm469, %v411, 0
      %v507 = vsel %vm469, %v412, 0
      %v510 = vsel %vm469, %v413, 0
      %v513 = vsel %vm469, %v414, 0
      %v516 = vsel %vm469, %v415, 0
      %v519 = vsel %vm469, %v416, 0
      %v522 = vsel %vm469, %v417, 0
      %v525 = vsel %vm469, %v418, 0
      %v528 = vsel %vm469, %v419, 0
      %v531 = vsel %vm469, %v420, 0
      %v534 = vsel %vm469, %v421, 0
      %v537 = vsel %vm469, %v422, 0
      %v540 = vsel %vm469, %v423, 0
      %v543 = vsel %vm469, %v424, 0
      %v546 = vsel %vm469, %v425, 0
      %v549 = vsel %vm469, %v426, 0
      %v552 = vsel %vm469, %v427, 0
      %v555 = vsel %vm469, %v428, 0
      %v558 = vsel %vm469, %v429, 0
      %v561 = vsel %vm469, %v430, 0
      %v564 = vsel %vm469, %v431, 0
      %v567 = vsel %vm469, %v432, 0
      %v570 = vsel %vm469, %v433, 0
      %v573 = vsel %vm469, %v434, 0
      %v576 = vsel %vm469, %v435, 0
      %v579 = vsel %vm469, %v436, 0
      %v582 = vsel %vm469, %v437, 0
      %v585 = vsel %vm469, %v438, 0
      %v588 = vsel %vm469, %v439, 0
      %v591 = vsel %vm469, %v440, 0
      %v594 = vsel %vm469, %v441, 0
      %v597 = vsel %vm469, %v442, 0
      %v600 = vsel %vm469, %v443, 0
      %v603 = vsel %vm469, %v444, 0
      %v606 = vsel %vm469, %v445, 0
      %v609 = vsel %vm469, %v446, 0
      %v612 = vsel %vm469, %v447, 0
      %v615 = vsel %vm469, %v448, 0
      %v618 = vsel %vm469, %v449, 0
      %v621 = vsel %vm469, %v450, 0
      %v624 = vsel %vm469, %v451, 0
      %v627 = vsel %vm469, %v452, 0
      %v630 = vsel %vm469, %v453, 0
      %v633 = vsel %vm469, %v454, 0
      %v636 = vsel %vm469, %v455, 0
      %v639 = vsel %vm469, %v456, 0
      %v642 = vsel %vm469, %v457, 0
      %v645 = vsel %vm469, %v458, 0
      %v648 = vsel %vm469, %v459, 0
      %v651 = vsel %vm469, %v460, 0
      %v654 = vsel %vm469, %v461, 0
      %v657 = vsel %vm469, %v462, 0
      %v660 = vsel %vm469, %v463, 0
      %662 = vmatpush.msra.mxu0 0.0
      %663 = vmatpush.msra.mxu0 0.0
      %664 = vmatpush.msra.mxu0 0.0
      %665 = vmatpush.msra.mxu0 0.0
      %666 = vmatpush.msra.mxu0 0.0
      %667 = vmatpush.msra.mxu0 0.0
      %668 = vmatpush.msra.mxu0 0.0
      %669 = vmatpush.msra.mxu0 0.0
      %670 = vmatpush.msra.mxu0 0.0
      %671 = vmatpush.msra.mxu0 0.0
      %672 = vmatpush.msra.mxu0 0.0
      %673 = vmatpush.msra.mxu0 0.0
      %674 = vmatpush.msra.mxu0 0.0
      %675 = vmatpush.msra.mxu0 0.0
      %676 = vmatpush.msra.mxu0 0.0
      %677 = vmatpush.msra.mxu0 %v464
      %678 = vmatmul.f32.gmra.mxu0 %v471
      %v679 = vpop.f32.mrf.mxu0
      %v680 = vadd.f32 %v467, %v679
      %681 = vmatmul.f32.gmra.mxu0 %v474
      %v682 = vpop.f32.mrf.mxu0
      %v683 = vadd.f32 %v467, %v682
      %684 = vmatmul.f32.gmra.mxu0 %v477
      %v685 = vpop.f32.mrf.mxu0
      %v686 = vadd.f32 %v467, %v685
      %687 = vmatmul.f32.gmra.mxu0 %v480
      %v688 = vpop.f32.mrf.mxu0
      %v689 = vadd.f32 %v467, %v688
      %690 = vmatmul.f32.gmra.mxu0 %v483
      %v691 = vpop.f32.mrf.mxu0
      %v692 = vadd.f32 %v467, %v691
      %693 = vmatmul.f32.gmra.mxu0 %v486
      %v694 = vpop.f32.mrf.mxu0
      %v695 = vadd.f32 %v467, %v694
      %696 = vmatmul.f32.gmra.mxu0 %v489
      %v697 = vpop.f32.mrf.mxu0
      %v698 = vadd.f32 %v467, %v697
      %699 = vmatmul.f32.gmra.mxu0 %v492
      %v700 = vpop.f32.mrf.mxu0
      %v701 = vadd.f32 %v467, %v700
      %702 = vmatmul.f32.gmra.mxu0 %v495
      %v703 = vpop.f32.mrf.mxu0
      %v704 = vadd.f32 %v467, %v703
      %705 = vmatmul.f32.gmra.mxu0 %v498
      %v706 = vpop.f32.mrf.mxu0
      %v707 = vadd.f32 %v467, %v706
      %708 = vmatmul.f32.gmra.mxu0 %v501
      %v709 = vpop.f32.mrf.mxu0
      %v710 = vadd.f32 %v467, %v709
      %711 = vmatmul.f32.gmra.mxu0 %v504
      %v712 = vpop.f32.mrf.mxu0
      %v713 = vadd.f32 %v467, %v712
      %714 = vmatmul.f32.gmra.mxu0 %v507
      %v715 = vpop.f32.mrf.mxu0
      %v716 = vadd.f32 %v467, %v715
      %717 = vmatmul.f32.gmra.mxu0 %v510
      %v718 = vpop.f32.mrf.mxu0
      %v719 = vadd.f32 %v467, %v718
      %720 = vmatmul.f32.gmra.mxu0 %v513
      %v721 = vpop.f32.mrf.mxu0
      %v722 = vadd.f32 %v467, %v721
      %723 = vmatmul.f32.gmra.mxu0 %v516
      %v724 = vpop.f32.mrf.mxu0
      %v725 = vadd.f32 %v467, %v724
      %726 = vmatmul.f32.gmra.mxu0 %v519
      %v727 = vpop.f32.mrf.mxu0
      %v728 = vadd.f32 %v467, %v727
      %729 = vmatmul.f32.gmra.mxu0 %v522
      %v730 = vpop.f32.mrf.mxu0
      %v731 = vadd.f32 %v467, %v730
      %732 = vmatmul.f32.gmra.mxu0 %v525
      %v733 = vpop.f32.mrf.mxu0
      %v734 = vadd.f32 %v467, %v733
      %735 = vmatmul.f32.gmra.mxu0 %v528
      %v736 = vpop.f32.mrf.mxu0
      %v737 = vadd.f32 %v467, %v736
      %738 = vmatmul.f32.gmra.mxu0 %v531
      %v739 = vpop.f32.mrf.mxu0
      %v740 = vadd.f32 %v467, %v739
      %741 = vmatmul.f32.gmra.mxu0 %v534
      %v742 = vpop.f32.mrf.mxu0
      %v743 = vadd.f32 %v467, %v742
      %744 = vmatmul.f32.gmra.mxu0 %v537
      %v745 = vpop.f32.mrf.mxu0
      %v746 = vadd.f32 %v467, %v745
      %747 = vmatmul.f32.gmra.mxu0 %v540
      %v748 = vpop.f32.mrf.mxu0
      %v749 = vadd.f32 %v467, %v748
      %750 = vmatmul.f32.gmra.mxu0 %v543
      %v751 = vpop.f32.mrf.mxu0
      %v752 = vadd.f32 %v467, %v751
      %753 = vmatmul.f32.gmra.mxu0 %v546
      %v754 = vpop.f32.mrf.mxu0
      %v755 = vadd.f32 %v467, %v754
      %756 = vmatmul.f32.gmra.mxu0 %v549
      %v757 = vpop.f32.mrf.mxu0
      %v758 = vadd.f32 %v467, %v757
      %759 = vmatmul.f32.gmra.mxu0 %v552
      %v760 = vpop.f32.mrf.mxu0
      %v761 = vadd.f32 %v467, %v760
      %762 = vmatmul.f32.gmra.mxu0 %v555
      %v763 = vpop.f32.mrf.mxu0
      %v764 = vadd.f32 %v467, %v763
      %765 = vmatmul.f32.gmra.mxu0 %v558
      %v766 = vpop.f32.mrf.mxu0
      %v767 = vadd.f32 %v467, %v766
      %768 = vmatmul.f32.gmra.mxu0 %v561
      %v769 = vpop.f32.mrf.mxu0
      %v770 = vadd.f32 %v467, %v769
      %771 = vmatmul.f32.gmra.mxu0 %v564
      %v772 = vpop.f32.mrf.mxu0
      %v773 = vadd.f32 %v467, %v772
      %774 = vmatmul.f32.gmra.mxu0 %v567
      %v775 = vpop.f32.mrf.mxu0
      %v776 = vadd.f32 %v467, %v775
      %777 = vmatmul.f32.gmra.mxu0 %v570
      %v778 = vpop.f32.mrf.mxu0
      %v779 = vadd.f32 %v467, %v778
      %780 = vmatmul.f32.gmra.mxu0 %v573
      %v781 = vpop.f32.mrf.mxu0
      %v782 = vadd.f32 %v467, %v781
      %783 = vmatmul.f32.gmra.mxu0 %v576
      %v784 = vpop.f32.mrf.mxu0
      %v785 = vadd.f32 %v467, %v784
      %786 = vmatmul.f32.gmra.mxu0 %v579
      %v787 = vpop.f32.mrf.mxu0
      %v788 = vadd.f32 %v467, %v787
      %789 = vmatmul.f32.gmra.mxu0 %v582
      %v790 = vpop.f32.mrf.mxu0
      %v791 = vadd.f32 %v467, %v790
      %792 = vmatmul.f32.gmra.mxu0 %v585
      %v793 = vpop.f32.mrf.mxu0
      %v794 = vadd.f32 %v467, %v793
      %795 = vmatmul.f32.gmra.mxu0 %v588
      %v796 = vpop.f32.mrf.mxu0
      %v797 = vadd.f32 %v467, %v796
      %798 = vmatmul.f32.gmra.mxu0 %v591
      %v799 = vpop.f32.mrf.mxu0
      %v800 = vadd.f32 %v467, %v799
      %801 = vmatmul.f32.gmra.mxu0 %v594
      %v802 = vpop.f32.mrf.mxu0
      %v803 = vadd.f32 %v467, %v802
      %804 = vmatmul.f32.gmra.mxu0 %v597
      %v805 = vpop.f32.mrf.mxu0
      %v806 = vadd.f32 %v467, %v805
      %807 = vmatmul.f32.gmra.mxu0 %v600
      %v808 = vpop.f32.mrf.mxu0
      %v809 = vadd.f32 %v467, %v808
      %810 = vmatmul.f32.gmra.mxu0 %v603
      %v811 = vpop.f32.mrf.mxu0
      %v812 = vadd.f32 %v467, %v811
      %813 = vmatmul.f32.gmra.mxu0 %v606
      %v814 = vpop.f32.mrf.mxu0
      %v815 = vadd.f32 %v467, %v814
      %816 = vmatmul.f32.gmra.mxu0 %v609
      %v817 = vpop.f32.mrf.mxu0
      %v818 = vadd.f32 %v467, %v817
      %819 = vmatmul.f32.gmra.mxu0 %v612
      %v820 = vpop.f32.mrf.mxu0
      %v821 = vadd.f32 %v467, %v820
      %822 = vmatmul.f32.gmra.mxu0 %v615
      %v823 = vpop.f32.mrf.mxu0
      %v824 = vadd.f32 %v467, %v823
      %825 = vmatmul.f32.gmra.mxu0 %v618
      %v826 = vpop.f32.mrf.mxu0
      %v827 = vadd.f32 %v467, %v826
      %828 = vmatmul.f32.gmra.mxu0 %v621
      %v829 = vpop.f32.mrf.mxu0
      %v830 = vadd.f32 %v467, %v829
      %831 = vmatmul.f32.gmra.mxu0 %v624
      %v832 = vpop.f32.mrf.mxu0
      %v833 = vadd.f32 %v467, %v832
      %834 = vmatmul.f32.gmra.mxu0 %v627
      %v835 = vpop.f32.mrf.mxu0
      %v836 = vadd.f32 %v467, %v835
      %837 = vmatmul.f32.gmra.mxu0 %v630
      %v838 = vpop.f32.mrf.mxu0
      %v839 = vadd.f32 %v467, %v838
      %840 = vmatmul.f32.gmra.mxu0 %v633
      %v841 = vpop.f32.mrf.mxu0
      %v842 = vadd.f32 %v467, %v841
      %843 = vmatmul.f32.gmra.mxu0 %v636
      %v844 = vpop.f32.mrf.mxu0
      %v845 = vadd.f32 %v467, %v844
      %846 = vmatmul.f32.gmra.mxu0 %v639
      %v847 = vpop.f32.mrf.mxu0
      %v848 = vadd.f32 %v467, %v847
      %849 = vmatmul.f32.gmra.mxu0 %v642
      %v850 = vpop.f32.mrf.mxu0
      %v851 = vadd.f32 %v467, %v850
      %852 = vmatmul.f32.gmra.mxu0 %v645
      %v853 = vpop.f32.mrf.mxu0
      %v854 = vadd.f32 %v467, %v853
      %855 = vmatmul.f32.gmra.mxu0 %v648
      %v856 = vpop.f32.mrf.mxu0
      %v857 = vadd.f32 %v467, %v856
      %858 = vmatmul.f32.gmra.mxu0 %v651
      %v859 = vpop.f32.mrf.mxu0
      %v860 = vadd.f32 %v467, %v859
      %861 = vmatmul.f32.gmra.mxu0 %v654
      %v862 = vpop.f32.mrf.mxu0
      %v863 = vadd.f32 %v467, %v862
      %864 = vmatmul.f32.gmra.mxu0 %v657
      %v865 = vpop.f32.mrf.mxu0
      %v866 = vadd.f32 %v467, %v865
      %867 = vmatmul.f32.gmra.mxu0 %v660
      %v868 = vpop.f32.mrf.mxu0
      %v869 = vadd.f32 %v467, %v868
      %870 = vdwg.mxu0
      %v871 = vld [vmem:[%s252] sm:$0xff]
      %v872 = vld [vmem:[%s252 + $0x8] sm:$0xff]
      %v873 = vld [vmem:[%s252 + $0x10] sm:$0xff]
      %v874 = vld [vmem:[%s252 + $0x18] sm:$0xff]
      %v875 = vld [vmem:[%s252 + $0x20] sm:$0xff]
      %v876 = vld [vmem:[%s252 + $0x28] sm:$0xff]
      %v877 = vld [vmem:[%s252 + $0x30] sm:$0xff]
      %v878 = vld [vmem:[%s252 + $0x38] sm:$0xff]
      %v879 = vld [vmem:[%s252 + $0x40] sm:$0xff]
      %v880 = vld [vmem:[%s252 + $0x48] sm:$0xff]
      %v881 = vld [vmem:[%s252 + $0x50] sm:$0xff]
      %v882 = vld [vmem:[%s252 + $0x58] sm:$0xff]
      %v883 = vld [vmem:[%s252 + $0x60] sm:$0xff]
      %v884 = vld [vmem:[%s252 + $0x68] sm:$0xff]
      %v885 = vld [vmem:[%s252 + $0x70] sm:$0xff]
      %v886 = vld [vmem:[%s252 + $0x78] sm:$0xff]
      %v887 = vld [vmem:[%s252 + $0x80] sm:$0xff]
      %v888 = vld [vmem:[%s252 + $0x88] sm:$0xff]
      %v889 = vld [vmem:[%s252 + $0x90] sm:$0xff]
      %v890 = vld [vmem:[%s252 + $0x98] sm:$0xff]
      %v891 = vld [vmem:[%s252 + $0xa0] sm:$0xff]
      %v892 = vld [vmem:[%s252 + $0xa8] sm:$0xff]
      %v893 = vld [vmem:[%s252 + $0xb0] sm:$0xff]
      %v894 = vld [vmem:[%s252 + $0xb8] sm:$0xff]
      %v895 = vld [vmem:[%s252 + $0xc0] sm:$0xff]
      %v896 = vld [vmem:[%s252 + $0xc8] sm:$0xff]
      %v897 = vld [vmem:[%s252 + $0xd0] sm:$0xff]
      %v898 = vld [vmem:[%s252 + $0xd8] sm:$0xff]
      %v899 = vld [vmem:[%s252 + $0xe0] sm:$0xff]
      %v900 = vld [vmem:[%s252 + $0xe8] sm:$0xff]
      %v901 = vld [vmem:[%s252 + $0xf0] sm:$0xff]
      %v902 = vld [vmem:[%s252 + $0xf8] sm:$0xff]
      %v903 = vld [vmem:[%s252 + $0x100] sm:$0xff]
      %v904 = vld [vmem:[%s252 + $0x108] sm:$0xff]
      %v905 = vld [vmem:[%s252 + $0x110] sm:$0xff]
      %v906 = vld [vmem:[%s252 + $0x118] sm:$0xff]
      %v907 = vld [vmem:[%s252 + $0x120] sm:$0xff]
      %v908 = vld [vmem:[%s252 + $0x128] sm:$0xff]
      %v909 = vld [vmem:[%s252 + $0x130] sm:$0xff]
      %v910 = vld [vmem:[%s252 + $0x138] sm:$0xff]
      %v911 = vld [vmem:[%s252 + $0x140] sm:$0xff]
      %v912 = vld [vmem:[%s252 + $0x148] sm:$0xff]
      %v913 = vld [vmem:[%s252 + $0x150] sm:$0xff]
      %v914 = vld [vmem:[%s252 + $0x158] sm:$0xff]
      %v915 = vld [vmem:[%s252 + $0x160] sm:$0xff]
      %v916 = vld [vmem:[%s252 + $0x168] sm:$0xff]
      %v917 = vld [vmem:[%s252 + $0x170] sm:$0xff]
      %v918 = vld [vmem:[%s252 + $0x178] sm:$0xff]
      %v919 = vld [vmem:[%s252 + $0x180] sm:$0xff]
      %v920 = vld [vmem:[%s252 + $0x188] sm:$0xff]
      %v921 = vld [vmem:[%s252 + $0x190] sm:$0xff]
      %v922 = vld [vmem:[%s252 + $0x198] sm:$0xff]
      %v923 = vld [vmem:[%s252 + $0x1a0] sm:$0xff]
      %v924 = vld [vmem:[%s252 + $0x1a8] sm:$0xff]
      %v925 = vld [vmem:[%s252 + $0x1b0] sm:$0xff]
      %v926 = vld [vmem:[%s252 + $0x1b8] sm:$0xff]
      %v927 = vld [vmem:[%s252 + $0x1c0] sm:$0xff]
      %v928 = vld [vmem:[%s252 + $0x1c8] sm:$0xff]
      %v929 = vld [vmem:[%s252 + $0x1d0] sm:$0xff]
      %v930 = vld [vmem:[%s252 + $0x1d8] sm:$0xff]
      %v931 = vld [vmem:[%s252 + $0x1e0] sm:$0xff]
      %v932 = vld [vmem:[%s252 + $0x1e8] sm:$0xff]
      %v933 = vld [vmem:[%s252 + $0x1f0] sm:$0xff]
      %v934 = vld [vmem:[%s252 + $0x1f8] sm:$0xff]
      %v935 = vxor.u32 %v680, 2147483648
      %v936 = vxor.u32 %v683, 2147483648
      %v937 = vxor.u32 %v686, 2147483648
      %v938 = vxor.u32 %v689, 2147483648
      %v939 = vxor.u32 %v692, 2147483648
      %v940 = vxor.u32 %v695, 2147483648
      %v941 = vxor.u32 %v698, 2147483648
      %v942 = vxor.u32 %v701, 2147483648
      %v943 = vxor.u32 %v704, 2147483648
      %v944 = vxor.u32 %v707, 2147483648
      %v945 = vxor.u32 %v710, 2147483648
      %v946 = vxor.u32 %v713, 2147483648
      %v947 = vxor.u32 %v716, 2147483648
      %v948 = vxor.u32 %v719, 2147483648
      %v949 = vxor.u32 %v722, 2147483648
      %v950 = vxor.u32 %v725, 2147483648
      %v951 = vxor.u32 %v728, 2147483648
      %v952 = vxor.u32 %v731, 2147483648
      %v953 = vxor.u32 %v734, 2147483648
      %v954 = vxor.u32 %v737, 2147483648
      %v955 = vxor.u32 %v740, 2147483648
      %v956 = vxor.u32 %v743, 2147483648
      %v957 = vxor.u32 %v746, 2147483648
      %v958 = vxor.u32 %v749, 2147483648
      %v959 = vxor.u32 %v752, 2147483648
      %v960 = vxor.u32 %v755, 2147483648
      %v961 = vxor.u32 %v758, 2147483648
      %v962 = vxor.u32 %v761, 2147483648
      %v963 = vxor.u32 %v764, 2147483648
      %v964 = vxor.u32 %v767, 2147483648
      %v965 = vxor.u32 %v770, 2147483648
      %v966 = vxor.u32 %v773, 2147483648
      %v967 = vxor.u32 %v776, 2147483648
      %v968 = vxor.u32 %v779, 2147483648
      %v969 = vxor.u32 %v782, 2147483648
      %v970 = vxor.u32 %v785, 2147483648
      %v971 = vxor.u32 %v788, 2147483648
      %v972 = vxor.u32 %v791, 2147483648
      %v973 = vxor.u32 %v794, 2147483648
      %v974 = vxor.u32 %v797, 2147483648
      %v975 = vxor.u32 %v800, 2147483648
      %v976 = vxor.u32 %v803, 2147483648
      %v977 = vxor.u32 %v806, 2147483648
      %v978 = vxor.u32 %v809, 2147483648
      %v979 = vxor.u32 %v812, 2147483648
      %v980 = vxor.u32 %v815, 2147483648
      %v981 = vxor.u32 %v818, 2147483648
      %v982 = vxor.u32 %v821, 2147483648
      %v983 = vxor.u32 %v824, 2147483648
      %v984 = vxor.u32 %v827, 2147483648
      %v985 = vxor.u32 %v830, 2147483648
      %v986 = vxor.u32 %v833, 2147483648
      %v987 = vxor.u32 %v836, 2147483648
      %v988 = vxor.u32 %v839, 2147483648
      %v989 = vxor.u32 %v842, 2147483648
      %v990 = vxor.u32 %v845, 2147483648
      %v991 = vxor.u32 %v848, 2147483648
      %v992 = vxor.u32 %v851, 2147483648
      %v993 = vxor.u32 %v854, 2147483648
      %v994 = vxor.u32 %v857, 2147483648
      %v995 = vxor.u32 %v860, 2147483648
      %v996 = vxor.u32 %v863, 2147483648
      %v997 = vxor.u32 %v866, 2147483648
      %v998 = vxor.u32 %v869, 2147483648
      %v999 = vmul.f32 %v935, 1.442695
      %v1000 = vpow.pop %v999
      %v1001 = vmul.f32 %v936, 1.442695
      %v1002 = vpow.pop %v1001
      %v1003 = vmul.f32 %v937, 1.442695
      %v1004 = vpow.pop %v1003
      %v1005 = vmul.f32 %v938, 1.442695
      %v1006 = vpow.pop %v1005
      %v1007 = vmul.f32 %v939, 1.442695
      %v1008 = vpow.pop %v1007
      %v1009 = vmul.f32 %v940, 1.442695
      %v1010 = vpow.pop %v1009
      %v1011 = vmul.f32 %v941, 1.442695
      %v1012 = vpow.pop %v1011
      %v1013 = vmul.f32 %v942, 1.442695
      %v1014 = vpow.pop %v1013
      %v1015 = vmul.f32 %v943, 1.442695
      %v1016 = vpow.pop %v1015
      %v1017 = vmul.f32 %v944, 1.442695
      %v1018 = vpow.pop %v1017
      %v1019 = vmul.f32 %v945, 1.442695
      %v1020 = vpow.pop %v1019
      %v1021 = vmul.f32 %v946, 1.442695
      %v1022 = vpow.pop %v1021
      %v1023 = vmul.f32 %v947, 1.442695
      %v1024 = vpow.pop %v1023
      %v1025 = vmul.f32 %v948, 1.442695
      %v1026 = vpow.pop %v1025
      %v1027 = vmul.f32 %v949, 1.442695
      %v1028 = vpow.pop %v1027
      %v1029 = vmul.f32 %v950, 1.442695
      %v1030 = vpow.pop %v1029
      %v1031 = vmul.f32 %v951, 1.442695
      %v1032 = vpow.pop %v1031
      %v1033 = vmul.f32 %v952, 1.442695
      %v1034 = vpow.pop %v1033
      %v1035 = vmul.f32 %v953, 1.442695
      %v1036 = vpow.pop %v1035
      %v1037 = vmul.f32 %v954, 1.442695
      %v1038 = vpow.pop %v1037
      %v1039 = vmul.f32 %v955, 1.442695
      %v1040 = vpow.pop %v1039
      %v1041 = vmul.f32 %v956, 1.442695
      %v1042 = vpow.pop %v1041
      %v1043 = vmul.f32 %v957, 1.442695
      %v1044 = vpow.pop %v1043
      %v1045 = vmul.f32 %v958, 1.442695
      %v1046 = vpow.pop %v1045
      %v1047 = vmul.f32 %v959, 1.442695
      %v1048 = vpow.pop %v1047
      %v1049 = vmul.f32 %v960, 1.442695
      %v1050 = vpow.pop %v1049
      %v1051 = vmul.f32 %v961, 1.442695
      %v1052 = vpow.pop %v1051
      %v1053 = vmul.f32 %v962, 1.442695
      %v1054 = vpow.pop %v1053
      %v1055 = vmul.f32 %v963, 1.442695
      %v1056 = vpow.pop %v1055
      %v1057 = vmul.f32 %v964, 1.442695
      %v1058 = vpow.pop %v1057
      %v1059 = vmul.f32 %v965, 1.442695
      %v1060 = vpow.pop %v1059
      %v1061 = vmul.f32 %v966, 1.442695
      %v1062 = vpow.pop %v1061
      %v1063 = vmul.f32 %v967, 1.442695
      %v1064 = vpow.pop %v1063
      %v1065 = vmul.f32 %v968, 1.442695
      %v1066 = vpow.pop %v1065
      %v1067 = vmul.f32 %v969, 1.442695
      %v1068 = vpow.pop %v1067
      %v1069 = vmul.f32 %v970, 1.442695
      %v1070 = vpow.pop %v1069
      %v1071 = vmul.f32 %v971, 1.442695
      %v1072 = vpow.pop %v1071
      %v1073 = vmul.f32 %v972, 1.442695
      %v1074 = vpow.pop %v1073
      %v1075 = vmul.f32 %v973, 1.442695
      %v1076 = vpow.pop %v1075
      %v1077 = vmul.f32 %v974, 1.442695
      %v1078 = vpow.pop %v1077
      %v1079 = vmul.f32 %v975, 1.442695
      %v1080 = vpow.pop %v1079
      %v1081 = vmul.f32 %v976, 1.442695
      %v1082 = vpow.pop %v1081
      %v1083 = vmul.f32 %v977, 1.442695
      %v1084 = vpow.pop %v1083
      %v1085 = vmul.f32 %v978, 1.442695
      %v1086 = vpow.pop %v1085
      %v1087 = vmul.f32 %v979, 1.442695
      %v1088 = vpow.pop %v1087
      %v1089 = vmul.f32 %v980, 1.442695
      %v1090 = vpow.pop %v1089
      %v1091 = vmul.f32 %v981, 1.442695
      %v1092 = vpow.pop %v1091
      %v1093 = vmul.f32 %v982, 1.442695
      %v1094 = vpow.pop %v1093
      %v1095 = vmul.f32 %v983, 1.442695
      %v1096 = vpow.pop %v1095
      %v1097 = vmul.f32 %v984, 1.442695
      %v1098 = vpow.pop %v1097
      %v1099 = vmul.f32 %v985, 1.442695
      %v1100 = vpow.pop %v1099
      %v1101 = vmul.f32 %v986, 1.442695
      %v1102 = vpow.pop %v1101
      %v1103 = vmul.f32 %v987, 1.442695
      %v1104 = vpow.pop %v1103
      %v1105 = vmul.f32 %v988, 1.442695
      %v1106 = vpow.pop %v1105
      %v1107 = vmul.f32 %v989, 1.442695
      %v1108 = vpow.pop %v1107
      %v1109 = vmul.f32 %v990, 1.442695
      %v1110 = vpow.pop %v1109
      %v1111 = vmul.f32 %v991, 1.442695
      %v1112 = vpow.pop %v1111
      %v1113 = vmul.f32 %v992, 1.442695
      %v1114 = vpow.pop %v1113
      %v1115 = vmul.f32 %v993, 1.442695
      %v1116 = vpow.pop %v1115
      %v1117 = vmul.f32 %v994, 1.442695
      %v1118 = vpow.pop %v1117
      %v1119 = vmul.f32 %v995, 1.442695
      %v1120 = vpow.pop %v1119
      %v1121 = vmul.f32 %v996, 1.442695
      %v1122 = vpow.pop %v1121
      %v1123 = vmul.f32 %v997, 1.442695
      %v1124 = vpow.pop %v1123
      %v1125 = vmul.f32 %v998, 1.442695
      %v1126 = vpow.pop %v1125
      %v1127 = vadd.f32 %v1000, 1.0
      %v1128 = vadd.f32 %v1002, 1.0
      %v1129 = vadd.f32 %v1004, 1.0
      %v1130 = vadd.f32 %v1006, 1.0
      %v1131 = vadd.f32 %v1008, 1.0
      %v1132 = vadd.f32 %v1010, 1.0
      %v1133 = vadd.f32 %v1012, 1.0
      %v1134 = vadd.f32 %v1014, 1.0
      %v1135 = vadd.f32 %v1016, 1.0
      %v1136 = vadd.f32 %v1018, 1.0
      %v1137 = vadd.f32 %v1020, 1.0
      %v1138 = vadd.f32 %v1022, 1.0
      %v1139 = vadd.f32 %v1024, 1.0
      %v1140 = vadd.f32 %v1026, 1.0
      %v1141 = vadd.f32 %v1028, 1.0
      %v1142 = vadd.f32 %v1030, 1.0
      %v1143 = vadd.f32 %v1032, 1.0
      %v1144 = vadd.f32 %v1034, 1.0
      %v1145 = vadd.f32 %v1036, 1.0
      %v1146 = vadd.f32 %v1038, 1.0
      %v1147 = vadd.f32 %v1040, 1.0
      %v1148 = vadd.f32 %v1042, 1.0
      %v1149 = vadd.f32 %v1044, 1.0
      %v1150 = vadd.f32 %v1046, 1.0
      %v1151 = vadd.f32 %v1048, 1.0
      %v1152 = vadd.f32 %v1050, 1.0
      %v1153 = vadd.f32 %v1052, 1.0
      %v1154 = vadd.f32 %v1054, 1.0
      %v1155 = vadd.f32 %v1056, 1.0
      %v1156 = vadd.f32 %v1058, 1.0
      %v1157 = vadd.f32 %v1060, 1.0
      %v1158 = vadd.f32 %v1062, 1.0
      %v1159 = vadd.f32 %v1064, 1.0
      %v1160 = vadd.f32 %v1066, 1.0
      %v1161 = vadd.f32 %v1068, 1.0
      %v1162 = vadd.f32 %v1070, 1.0
      %v1163 = vadd.f32 %v1072, 1.0
      %v1164 = vadd.f32 %v1074, 1.0
      %v1165 = vadd.f32 %v1076, 1.0
      %v1166 = vadd.f32 %v1078, 1.0
      %v1167 = vadd.f32 %v1080, 1.0
      %v1168 = vadd.f32 %v1082, 1.0
      %v1169 = vadd.f32 %v1084, 1.0
      %v1170 = vadd.f32 %v1086, 1.0
      %v1171 = vadd.f32 %v1088, 1.0
      %v1172 = vadd.f32 %v1090, 1.0
      %v1173 = vadd.f32 %v1092, 1.0
      %v1174 = vadd.f32 %v1094, 1.0
      %v1175 = vadd.f32 %v1096, 1.0
      %v1176 = vadd.f32 %v1098, 1.0
      %v1177 = vadd.f32 %v1100, 1.0
      %v1178 = vadd.f32 %v1102, 1.0
      %v1179 = vadd.f32 %v1104, 1.0
      %v1180 = vadd.f32 %v1106, 1.0
      %v1181 = vadd.f32 %v1108, 1.0
      %v1182 = vadd.f32 %v1110, 1.0
      %v1183 = vadd.f32 %v1112, 1.0
      %v1184 = vadd.f32 %v1114, 1.0
      %v1185 = vadd.f32 %v1116, 1.0
      %v1186 = vadd.f32 %v1118, 1.0
      %v1187 = vadd.f32 %v1120, 1.0
      %v1188 = vadd.f32 %v1122, 1.0
      %v1189 = vadd.f32 %v1124, 1.0
      %v1190 = vadd.f32 %v1126, 1.0
      %v1191 = vrcp.pop %v1127
      %v1192 = vmul.f32 %v1127, %v1191
      %v1193 = vsub.f32 1.0, %v1192
      %v1194 = vmul.f32 %v1191, %v1193
      %v1195 = vadd.f32 %v1191, %v1194
      %vm1196 = vweird.f32 %v1127
      %vm1197 = vweird.f32 %v1191
      %vm1198 = vmor %vm1196, %vm1197
      %v1199 = vsel %vm1198, %v1191, %v1195
      %v1200 = vand.u32 2147483647, %v1127
      %vm1201 = vcmp.eq.f32.partialorder %v1200, 8.507059e+37
      %v1202 = vand.u32 %v1127, 2147483648
      %v1203 = vor.u32 1.1754944e-38, %v1202
      %v1204 = vsel %vm1201, %v1203, %v1199
      %v1205 = vmul.f32 1.0, %v1204
      %v1206 = vrcp.pop %v1128
      %v1207 = vmul.f32 %v1128, %v1206
      %v1208 = vsub.f32 1.0, %v1207
      %v1209 = vmul.f32 %v1206, %v1208
      %v1210 = vadd.f32 %v1206, %v1209
      %vm1211 = vweird.f32 %v1128
      %vm1212 = vweird.f32 %v1206
      %vm1213 = vmor %vm1211, %vm1212
      %v1214 = vsel %vm1213, %v1206, %v1210
      %v1215 = vand.u32 2147483647, %v1128
      %vm1216 = vcmp.eq.f32.partialorder %v1215, 8.507059e+37
      %v1217 = vand.u32 %v1128, 2147483648
      %v1218 = vor.u32 1.1754944e-38, %v1217
      %v1219 = vsel %vm1216, %v1218, %v1214
      %v1220 = vmul.f32 1.0, %v1219
      %v1221 = vrcp.pop %v1129
      %v1222 = vmul.f32 %v1129, %v1221
      %v1223 = vsub.f32 1.0, %v1222
      %v1224 = vmul.f32 %v1221, %v1223
      %v1225 = vadd.f32 %v1221, %v1224
      %vm1226 = vweird.f32 %v1129
      %vm1227 = vweird.f32 %v1221
      %vm1228 = vmor %vm1226, %vm1227
      %v1229 = vsel %vm1228, %v1221, %v1225
      %v1230 = vand.u32 2147483647, %v1129
      %vm1231 = vcmp.eq.f32.partialorder %v1230, 8.507059e+37
      %v1232 = vand.u32 %v1129, 2147483648
      %v1233 = vor.u32 1.1754944e-38, %v1232
      %v1234 = vsel %vm1231, %v1233, %v1229
      %v1235 = vmul.f32 1.0, %v1234
      %v1236 = vrcp.pop %v1130
      %v1237 = vmul.f32 %v1130, %v1236
      %v1238 = vsub.f32 1.0, %v1237
      %v1239 = vmul.f32 %v1236, %v1238
      %v1240 = vadd.f32 %v1236, %v1239
      %vm1241 = vweird.f32 %v1130
      %vm1242 = vweird.f32 %v1236
      %vm1243 = vmor %vm1241, %vm1242
      %v1244 = vsel %vm1243, %v1236, %v1240
      %v1245 = vand.u32 2147483647, %v1130
      %vm1246 = vcmp.eq.f32.partialorder %v1245, 8.507059e+37
      %v1247 = vand.u32 %v1130, 2147483648
      %v1248 = vor.u32 1.1754944e-38, %v1247
      %v1249 = vsel %vm1246, %v1248, %v1244
      %v1250 = vmul.f32 1.0, %v1249
      %v1251 = vrcp.pop %v1131
      %v1252 = vmul.f32 %v1131, %v1251
      %v1253 = vsub.f32 1.0, %v1252
      %v1254 = vmul.f32 %v1251, %v1253
      %v1255 = vadd.f32 %v1251, %v1254
      %vm1256 = vweird.f32 %v1131
      %vm1257 = vweird.f32 %v1251
      %vm1258 = vmor %vm1256, %vm1257
      %v1259 = vsel %vm1258, %v1251, %v1255
      %v1260 = vand.u32 2147483647, %v1131
      %vm1261 = vcmp.eq.f32.partialorder %v1260, 8.507059e+37
      %v1262 = vand.u32 %v1131, 2147483648
      %v1263 = vor.u32 1.1754944e-38, %v1262
      %v1264 = vsel %vm1261, %v1263, %v1259
      %v1265 = vmul.f32 1.0, %v1264
      %v1266 = vrcp.pop %v1132
      %v1267 = vmul.f32 %v1132, %v1266
      %v1268 = vsub.f32 1.0, %v1267
      %v1269 = vmul.f32 %v1266, %v1268
      %v1270 = vadd.f32 %v1266, %v1269
      %vm1271 = vweird.f32 %v1132
      %vm1272 = vweird.f32 %v1266
      %vm1273 = vmor %vm1271, %vm1272
      %v1274 = vsel %vm1273, %v1266, %v1270
      %v1275 = vand.u32 2147483647, %v1132
      %vm1276 = vcmp.eq.f32.partialorder %v1275, 8.507059e+37
      %v1277 = vand.u32 %v1132, 2147483648
      %v1278 = vor.u32 1.1754944e-38, %v1277
      %v1279 = vsel %vm1276, %v1278, %v1274
      %v1280 = vmul.f32 1.0, %v1279
      %v1281 = vrcp.pop %v1133
      %v1282 = vmul.f32 %v1133, %v1281
      %v1283 = vsub.f32 1.0, %v1282
      %v1284 = vmul.f32 %v1281, %v1283
      %v1285 = vadd.f32 %v1281, %v1284
      %vm1286 = vweird.f32 %v1133
      %vm1287 = vweird.f32 %v1281
      %vm1288 = vmor %vm1286, %vm1287
      %v1289 = vsel %vm1288, %v1281, %v1285
      %v1290 = vand.u32 2147483647, %v1133
      %vm1291 = vcmp.eq.f32.partialorder %v1290, 8.507059e+37
      %v1292 = vand.u32 %v1133, 2147483648
      %v1293 = vor.u32 1.1754944e-38, %v1292
      %v1294 = vsel %vm1291, %v1293, %v1289
      %v1295 = vmul.f32 1.0, %v1294
      %v1296 = vrcp.pop %v1134
      %v1297 = vmul.f32 %v1134, %v1296
      %v1298 = vsub.f32 1.0, %v1297
      %v1299 = vmul.f32 %v1296, %v1298
      %v1300 = vadd.f32 %v1296, %v1299
      %vm1301 = vweird.f32 %v1134
      %vm1302 = vweird.f32 %v1296
      %vm1303 = vmor %vm1301, %vm1302
      %v1304 = vsel %vm1303, %v1296, %v1300
      %v1305 = vand.u32 2147483647, %v1134
      %vm1306 = vcmp.eq.f32.partialorder %v1305, 8.507059e+37
      %v1307 = vand.u32 %v1134, 2147483648
      %v1308 = vor.u32 1.1754944e-38, %v1307
      %v1309 = vsel %vm1306, %v1308, %v1304
      %v1310 = vmul.f32 1.0, %v1309
      %v1311 = vrcp.pop %v1135
      %v1312 = vmul.f32 %v1135, %v1311
      %v1313 = vsub.f32 1.0, %v1312
      %v1314 = vmul.f32 %v1311, %v1313
      %v1315 = vadd.f32 %v1311, %v1314
      %vm1316 = vweird.f32 %v1135
      %vm1317 = vweird.f32 %v1311
      %vm1318 = vmor %vm1316, %vm1317
      %v1319 = vsel %vm1318, %v1311, %v1315
      %v1320 = vand.u32 2147483647, %v1135
      %vm1321 = vcmp.eq.f32.partialorder %v1320, 8.507059e+37
      %v1322 = vand.u32 %v1135, 2147483648
      %v1323 = vor.u32 1.1754944e-38, %v1322
      %v1324 = vsel %vm1321, %v1323, %v1319
      %v1325 = vmul.f32 1.0, %v1324
      %v1326 = vrcp.pop %v1136
      %v1327 = vmul.f32 %v1136, %v1326
      %v1328 = vsub.f32 1.0, %v1327
      %v1329 = vmul.f32 %v1326, %v1328
      %v1330 = vadd.f32 %v1326, %v1329
      %vm1331 = vweird.f32 %v1136
      %vm1332 = vweird.f32 %v1326
      %vm1333 = vmor %vm1331, %vm1332
      %v1334 = vsel %vm1333, %v1326, %v1330
      %v1335 = vand.u32 2147483647, %v1136
      %vm1336 = vcmp.eq.f32.partialorder %v1335, 8.507059e+37
      %v1337 = vand.u32 %v1136, 2147483648
      %v1338 = vor.u32 1.1754944e-38, %v1337
      %v1339 = vsel %vm1336, %v1338, %v1334
      %v1340 = vmul.f32 1.0, %v1339
      %v1341 = vrcp.pop %v1137
      %v1342 = vmul.f32 %v1137, %v1341
      %v1343 = vsub.f32 1.0, %v1342
      %v1344 = vmul.f32 %v1341, %v1343
      %v1345 = vadd.f32 %v1341, %v1344
      %vm1346 = vweird.f32 %v1137
      %vm1347 = vweird.f32 %v1341
      %vm1348 = vmor %vm1346, %vm1347
      %v1349 = vsel %vm1348, %v1341, %v1345
      %v1350 = vand.u32 2147483647, %v1137
      %vm1351 = vcmp.eq.f32.partialorder %v1350, 8.507059e+37
      %v1352 = vand.u32 %v1137, 2147483648
      %v1353 = vor.u32 1.1754944e-38, %v1352
      %v1354 = vsel %vm1351, %v1353, %v1349
      %v1355 = vmul.f32 1.0, %v1354
      %v1356 = vrcp.pop %v1138
      %v1357 = vmul.f32 %v1138, %v1356
      %v1358 = vsub.f32 1.0, %v1357
      %v1359 = vmul.f32 %v1356, %v1358
      %v1360 = vadd.f32 %v1356, %v1359
      %vm1361 = vweird.f32 %v1138
      %vm1362 = vweird.f32 %v1356
      %vm1363 = vmor %vm1361, %vm1362
      %v1364 = vsel %vm1363, %v1356, %v1360
      %v1365 = vand.u32 2147483647, %v1138
      %vm1366 = vcmp.eq.f32.partialorder %v1365, 8.507059e+37
      %v1367 = vand.u32 %v1138, 2147483648
      %v1368 = vor.u32 1.1754944e-38, %v1367
      %v1369 = vsel %vm1366, %v1368, %v1364
      %v1370 = vmul.f32 1.0, %v1369
      %v1371 = vrcp.pop %v1139
      %v1372 = vmul.f32 %v1139, %v1371
      %v1373 = vsub.f32 1.0, %v1372
      %v1374 = vmul.f32 %v1371, %v1373
      %v1375 = vadd.f32 %v1371, %v1374
      %vm1376 = vweird.f32 %v1139
      %vm1377 = vweird.f32 %v1371
      %vm1378 = vmor %vm1376, %vm1377
      %v1379 = vsel %vm1378, %v1371, %v1375
      %v1380 = vand.u32 2147483647, %v1139
      %vm1381 = vcmp.eq.f32.partialorder %v1380, 8.507059e+37
      %v1382 = vand.u32 %v1139, 2147483648
      %v1383 = vor.u32 1.1754944e-38, %v1382
      %v1384 = vsel %vm1381, %v1383, %v1379
      %v1385 = vmul.f32 1.0, %v1384
      %v1386 = vrcp.pop %v1140
      %v1387 = vmul.f32 %v1140, %v1386
      %v1388 = vsub.f32 1.0, %v1387
      %v1389 = vmul.f32 %v1386, %v1388
      %v1390 = vadd.f32 %v1386, %v1389
      %vm1391 = vweird.f32 %v1140
      %vm1392 = vweird.f32 %v1386
      %vm1393 = vmor %vm1391, %vm1392
      %v1394 = vsel %vm1393, %v1386, %v1390
      %v1395 = vand.u32 2147483647, %v1140
      %vm1396 = vcmp.eq.f32.partialorder %v1395, 8.507059e+37
      %v1397 = vand.u32 %v1140, 2147483648
      %v1398 = vor.u32 1.1754944e-38, %v1397
      %v1399 = vsel %vm1396, %v1398, %v1394
      %v1400 = vmul.f32 1.0, %v1399
      %v1401 = vrcp.pop %v1141
      %v1402 = vmul.f32 %v1141, %v1401
      %v1403 = vsub.f32 1.0, %v1402
      %v1404 = vmul.f32 %v1401, %v1403
      %v1405 = vadd.f32 %v1401, %v1404
      %vm1406 = vweird.f32 %v1141
      %vm1407 = vweird.f32 %v1401
      %vm1408 = vmor %vm1406, %vm1407
      %v1409 = vsel %vm1408, %v1401, %v1405
      %v1410 = vand.u32 2147483647, %v1141
      %vm1411 = vcmp.eq.f32.partialorder %v1410, 8.507059e+37
      %v1412 = vand.u32 %v1141, 2147483648
      %v1413 = vor.u32 1.1754944e-38, %v1412
      %v1414 = vsel %vm1411, %v1413, %v1409
      %v1415 = vmul.f32 1.0, %v1414
      %v1416 = vrcp.pop %v1142
      %v1417 = vmul.f32 %v1142, %v1416
      %v1418 = vsub.f32 1.0, %v1417
      %v1419 = vmul.f32 %v1416, %v1418
      %v1420 = vadd.f32 %v1416, %v1419
      %vm1421 = vweird.f32 %v1142
      %vm1422 = vweird.f32 %v1416
      %vm1423 = vmor %vm1421, %vm1422
      %v1424 = vsel %vm1423, %v1416, %v1420
      %v1425 = vand.u32 2147483647, %v1142
      %vm1426 = vcmp.eq.f32.partialorder %v1425, 8.507059e+37
      %v1427 = vand.u32 %v1142, 2147483648
      %v1428 = vor.u32 1.1754944e-38, %v1427
      %v1429 = vsel %vm1426, %v1428, %v1424
      %v1430 = vmul.f32 1.0, %v1429
      %v1431 = vrcp.pop %v1143
      %v1432 = vmul.f32 %v1143, %v1431
      %v1433 = vsub.f32 1.0, %v1432
      %v1434 = vmul.f32 %v1431, %v1433
      %v1435 = vadd.f32 %v1431, %v1434
      %vm1436 = vweird.f32 %v1143
      %vm1437 = vweird.f32 %v1431
      %vm1438 = vmor %vm1436, %vm1437
      %v1439 = vsel %vm1438, %v1431, %v1435
      %v1440 = vand.u32 2147483647, %v1143
      %vm1441 = vcmp.eq.f32.partialorder %v1440, 8.507059e+37
      %v1442 = vand.u32 %v1143, 2147483648
      %v1443 = vor.u32 1.1754944e-38, %v1442
      %v1444 = vsel %vm1441, %v1443, %v1439
      %v1445 = vmul.f32 1.0, %v1444
      %v1446 = vrcp.pop %v1144
      %v1447 = vmul.f32 %v1144, %v1446
      %v1448 = vsub.f32 1.0, %v1447
      %v1449 = vmul.f32 %v1446, %v1448
      %v1450 = vadd.f32 %v1446, %v1449
      %vm1451 = vweird.f32 %v1144
      %vm1452 = vweird.f32 %v1446
      %vm1453 = vmor %vm1451, %vm1452
      %v1454 = vsel %vm1453, %v1446, %v1450
      %v1455 = vand.u32 2147483647, %v1144
      %vm1456 = vcmp.eq.f32.partialorder %v1455, 8.507059e+37
      %v1457 = vand.u32 %v1144, 2147483648
      %v1458 = vor.u32 1.1754944e-38, %v1457
      %v1459 = vsel %vm1456, %v1458, %v1454
      %v1460 = vmul.f32 1.0, %v1459
      %v1461 = vrcp.pop %v1145
      %v1462 = vmul.f32 %v1145, %v1461
      %v1463 = vsub.f32 1.0, %v1462
      %v1464 = vmul.f32 %v1461, %v1463
      %v1465 = vadd.f32 %v1461, %v1464
      %vm1466 = vweird.f32 %v1145
      %vm1467 = vweird.f32 %v1461
      %vm1468 = vmor %vm1466, %vm1467
      %v1469 = vsel %vm1468, %v1461, %v1465
      %v1470 = vand.u32 2147483647, %v1145
      %vm1471 = vcmp.eq.f32.partialorder %v1470, 8.507059e+37
      %v1472 = vand.u32 %v1145, 2147483648
      %v1473 = vor.u32 1.1754944e-38, %v1472
      %v1474 = vsel %vm1471, %v1473, %v1469
      %v1475 = vmul.f32 1.0, %v1474
      %v1476 = vrcp.pop %v1146
      %v1477 = vmul.f32 %v1146, %v1476
      %v1478 = vsub.f32 1.0, %v1477
      %v1479 = vmul.f32 %v1476, %v1478
      %v1480 = vadd.f32 %v1476, %v1479
      %vm1481 = vweird.f32 %v1146
      %vm1482 = vweird.f32 %v1476
      %vm1483 = vmor %vm1481, %vm1482
      %v1484 = vsel %vm1483, %v1476, %v1480
      %v1485 = vand.u32 2147483647, %v1146
      %vm1486 = vcmp.eq.f32.partialorder %v1485, 8.507059e+37
      %v1487 = vand.u32 %v1146, 2147483648
      %v1488 = vor.u32 1.1754944e-38, %v1487
      %v1489 = vsel %vm1486, %v1488, %v1484
      %v1490 = vmul.f32 1.0, %v1489
      %v1491 = vrcp.pop %v1147
      %v1492 = vmul.f32 %v1147, %v1491
      %v1493 = vsub.f32 1.0, %v1492
      %v1494 = vmul.f32 %v1491, %v1493
      %v1495 = vadd.f32 %v1491, %v1494
      %vm1496 = vweird.f32 %v1147
      %vm1497 = vweird.f32 %v1491
      %vm1498 = vmor %vm1496, %vm1497
      %v1499 = vsel %vm1498, %v1491, %v1495
      %v1500 = vand.u32 2147483647, %v1147
      %vm1501 = vcmp.eq.f32.partialorder %v1500, 8.507059e+37
      %v1502 = vand.u32 %v1147, 2147483648
      %v1503 = vor.u32 1.1754944e-38, %v1502
      %v1504 = vsel %vm1501, %v1503, %v1499
      %v1505 = vmul.f32 1.0, %v1504
      %v1506 = vrcp.pop %v1148
      %v1507 = vmul.f32 %v1148, %v1506
      %v1508 = vsub.f32 1.0, %v1507
      %v1509 = vmul.f32 %v1506, %v1508
      %v1510 = vadd.f32 %v1506, %v1509
      %vm1511 = vweird.f32 %v1148
      %vm1512 = vweird.f32 %v1506
      %vm1513 = vmor %vm1511, %vm1512
      %v1514 = vsel %vm1513, %v1506, %v1510
      %v1515 = vand.u32 2147483647, %v1148
      %vm1516 = vcmp.eq.f32.partialorder %v1515, 8.507059e+37
      %v1517 = vand.u32 %v1148, 2147483648
      %v1518 = vor.u32 1.1754944e-38, %v1517
      %v1519 = vsel %vm1516, %v1518, %v1514
      %v1520 = vmul.f32 1.0, %v1519
      %v1521 = vrcp.pop %v1149
      %v1522 = vmul.f32 %v1149, %v1521
      %v1523 = vsub.f32 1.0, %v1522
      %v1524 = vmul.f32 %v1521, %v1523
      %v1525 = vadd.f32 %v1521, %v1524
      %vm1526 = vweird.f32 %v1149
      %vm1527 = vweird.f32 %v1521
      %vm1528 = vmor %vm1526, %vm1527
      %v1529 = vsel %vm1528, %v1521, %v1525
      %v1530 = vand.u32 2147483647, %v1149
      %vm1531 = vcmp.eq.f32.partialorder %v1530, 8.507059e+37
      %v1532 = vand.u32 %v1149, 2147483648
      %v1533 = vor.u32 1.1754944e-38, %v1532
      %v1534 = vsel %vm1531, %v1533, %v1529
      %v1535 = vmul.f32 1.0, %v1534
      %v1536 = vrcp.pop %v1150
      %v1537 = vmul.f32 %v1150, %v1536
      %v1538 = vsub.f32 1.0, %v1537
      %v1539 = vmul.f32 %v1536, %v1538
      %v1540 = vadd.f32 %v1536, %v1539
      %vm1541 = vweird.f32 %v1150
      %vm1542 = vweird.f32 %v1536
      %vm1543 = vmor %vm1541, %vm1542
      %v1544 = vsel %vm1543, %v1536, %v1540
      %v1545 = vand.u32 2147483647, %v1150
      %vm1546 = vcmp.eq.f32.partialorder %v1545, 8.507059e+37
      %v1547 = vand.u32 %v1150, 2147483648
      %v1548 = vor.u32 1.1754944e-38, %v1547
      %v1549 = vsel %vm1546, %v1548, %v1544
      %v1550 = vmul.f32 1.0, %v1549
      %v1551 = vrcp.pop %v1151
      %v1552 = vmul.f32 %v1151, %v1551
      %v1553 = vsub.f32 1.0, %v1552
      %v1554 = vmul.f32 %v1551, %v1553
      %v1555 = vadd.f32 %v1551, %v1554
      %vm1556 = vweird.f32 %v1151
      %vm1557 = vweird.f32 %v1551
      %vm1558 = vmor %vm1556, %vm1557
      %v1559 = vsel %vm1558, %v1551, %v1555
      %v1560 = vand.u32 2147483647, %v1151
      %vm1561 = vcmp.eq.f32.partialorder %v1560, 8.507059e+37
      %v1562 = vand.u32 %v1151, 2147483648
      %v1563 = vor.u32 1.1754944e-38, %v1562
      %v1564 = vsel %vm1561, %v1563, %v1559
      %v1565 = vmul.f32 1.0, %v1564
      %v1566 = vrcp.pop %v1152
      %v1567 = vmul.f32 %v1152, %v1566
      %v1568 = vsub.f32 1.0, %v1567
      %v1569 = vmul.f32 %v1566, %v1568
      %v1570 = vadd.f32 %v1566, %v1569
      %vm1571 = vweird.f32 %v1152
      %vm1572 = vweird.f32 %v1566
      %vm1573 = vmor %vm1571, %vm1572
      %v1574 = vsel %vm1573, %v1566, %v1570
      %v1575 = vand.u32 2147483647, %v1152
      %vm1576 = vcmp.eq.f32.partialorder %v1575, 8.507059e+37
      %v1577 = vand.u32 %v1152, 2147483648
      %v1578 = vor.u32 1.1754944e-38, %v1577
      %v1579 = vsel %vm1576, %v1578, %v1574
      %v1580 = vmul.f32 1.0, %v1579
      %v1581 = vrcp.pop %v1153
      %v1582 = vmul.f32 %v1153, %v1581
      %v1583 = vsub.f32 1.0, %v1582
      %v1584 = vmul.f32 %v1581, %v1583
      %v1585 = vadd.f32 %v1581, %v1584
      %vm1586 = vweird.f32 %v1153
      %vm1587 = vweird.f32 %v1581
      %vm1588 = vmor %vm1586, %vm1587
      %v1589 = vsel %vm1588, %v1581, %v1585
      %v1590 = vand.u32 2147483647, %v1153
      %vm1591 = vcmp.eq.f32.partialorder %v1590, 8.507059e+37
      %v1592 = vand.u32 %v1153, 2147483648
      %v1593 = vor.u32 1.1754944e-38, %v1592
      %v1594 = vsel %vm1591, %v1593, %v1589
      %v1595 = vmul.f32 1.0, %v1594
      %v1596 = vrcp.pop %v1154
      %v1597 = vmul.f32 %v1154, %v1596
      %v1598 = vsub.f32 1.0, %v1597
      %v1599 = vmul.f32 %v1596, %v1598
      %v1600 = vadd.f32 %v1596, %v1599
      %vm1601 = vweird.f32 %v1154
      %vm1602 = vweird.f32 %v1596
      %vm1603 = vmor %vm1601, %vm1602
      %v1604 = vsel %vm1603, %v1596, %v1600
      %v1605 = vand.u32 2147483647, %v1154
      %vm1606 = vcmp.eq.f32.partialorder %v1605, 8.507059e+37
      %v1607 = vand.u32 %v1154, 2147483648
      %v1608 = vor.u32 1.1754944e-38, %v1607
      %v1609 = vsel %vm1606, %v1608, %v1604
      %v1610 = vmul.f32 1.0, %v1609
      %v1611 = vrcp.pop %v1155
      %v1612 = vmul.f32 %v1155, %v1611
      %v1613 = vsub.f32 1.0, %v1612
      %v1614 = vmul.f32 %v1611, %v1613
      %v1615 = vadd.f32 %v1611, %v1614
      %vm1616 = vweird.f32 %v1155
      %vm1617 = vweird.f32 %v1611
      %vm1618 = vmor %vm1616, %vm1617
      %v1619 = vsel %vm1618, %v1611, %v1615
      %v1620 = vand.u32 2147483647, %v1155
      %vm1621 = vcmp.eq.f32.partialorder %v1620, 8.507059e+37
      %v1622 = vand.u32 %v1155, 2147483648
      %v1623 = vor.u32 1.1754944e-38, %v1622
      %v1624 = vsel %vm1621, %v1623, %v1619
      %v1625 = vmul.f32 1.0, %v1624
      %v1626 = vrcp.pop %v1156
      %v1627 = vmul.f32 %v1156, %v1626
      %v1628 = vsub.f32 1.0, %v1627
      %v1629 = vmul.f32 %v1626, %v1628
      %v1630 = vadd.f32 %v1626, %v1629
      %vm1631 = vweird.f32 %v1156
      %vm1632 = vweird.f32 %v1626
      %vm1633 = vmor %vm1631, %vm1632
      %v1634 = vsel %vm1633, %v1626, %v1630
      %v1635 = vand.u32 2147483647, %v1156
      %vm1636 = vcmp.eq.f32.partialorder %v1635, 8.507059e+37
      %v1637 = vand.u32 %v1156, 2147483648
      %v1638 = vor.u32 1.1754944e-38, %v1637
      %v1639 = vsel %vm1636, %v1638, %v1634
      %v1640 = vmul.f32 1.0, %v1639
      %v1641 = vrcp.pop %v1157
      %v1642 = vmul.f32 %v1157, %v1641
      %v1643 = vsub.f32 1.0, %v1642
      %v1644 = vmul.f32 %v1641, %v1643
      %v1645 = vadd.f32 %v1641, %v1644
      %vm1646 = vweird.f32 %v1157
      %vm1647 = vweird.f32 %v1641
      %vm1648 = vmor %vm1646, %vm1647
      %v1649 = vsel %vm1648, %v1641, %v1645
      %v1650 = vand.u32 2147483647, %v1157
      %vm1651 = vcmp.eq.f32.partialorder %v1650, 8.507059e+37
      %v1652 = vand.u32 %v1157, 2147483648
      %v1653 = vor.u32 1.1754944e-38, %v1652
      %v1654 = vsel %vm1651, %v1653, %v1649
      %v1655 = vmul.f32 1.0, %v1654
      %v1656 = vrcp.pop %v1158
      %v1657 = vmul.f32 %v1158, %v1656
      %v1658 = vsub.f32 1.0, %v1657
      %v1659 = vmul.f32 %v1656, %v1658
      %v1660 = vadd.f32 %v1656, %v1659
      %vm1661 = vweird.f32 %v1158
      %vm1662 = vweird.f32 %v1656
      %vm1663 = vmor %vm1661, %vm1662
      %v1664 = vsel %vm1663, %v1656, %v1660
      %v1665 = vand.u32 2147483647, %v1158
      %vm1666 = vcmp.eq.f32.partialorder %v1665, 8.507059e+37
      %v1667 = vand.u32 %v1158, 2147483648
      %v1668 = vor.u32 1.1754944e-38, %v1667
      %v1669 = vsel %vm1666, %v1668, %v1664
      %v1670 = vmul.f32 1.0, %v1669
      %v1671 = vrcp.pop %v1159
      %v1672 = vmul.f32 %v1159, %v1671
      %v1673 = vsub.f32 1.0, %v1672
      %v1674 = vmul.f32 %v1671, %v1673
      %v1675 = vadd.f32 %v1671, %v1674
      %vm1676 = vweird.f32 %v1159
      %vm1677 = vweird.f32 %v1671
      %vm1678 = vmor %vm1676, %vm1677
      %v1679 = vsel %vm1678, %v1671, %v1675
      %v1680 = vand.u32 2147483647, %v1159
      %vm1681 = vcmp.eq.f32.partialorder %v1680, 8.507059e+37
      %v1682 = vand.u32 %v1159, 2147483648
      %v1683 = vor.u32 1.1754944e-38, %v1682
      %v1684 = vsel %vm1681, %v1683, %v1679
      %v1685 = vmul.f32 1.0, %v1684
      %v1686 = vrcp.pop %v1160
      %v1687 = vmul.f32 %v1160, %v1686
      %v1688 = vsub.f32 1.0, %v1687
      %v1689 = vmul.f32 %v1686, %v1688
      %v1690 = vadd.f32 %v1686, %v1689
      %vm1691 = vweird.f32 %v1160
      %vm1692 = vweird.f32 %v1686
      %vm1693 = vmor %vm1691, %vm1692
      %v1694 = vsel %vm1693, %v1686, %v1690
      %v1695 = vand.u32 2147483647, %v1160
      %vm1696 = vcmp.eq.f32.partialorder %v1695, 8.507059e+37
      %v1697 = vand.u32 %v1160, 2147483648
      %v1698 = vor.u32 1.1754944e-38, %v1697
      %v1699 = vsel %vm1696, %v1698, %v1694
      %v1700 = vmul.f32 1.0, %v1699
      %v1701 = vrcp.pop %v1161
      %v1702 = vmul.f32 %v1161, %v1701
      %v1703 = vsub.f32 1.0, %v1702
      %v1704 = vmul.f32 %v1701, %v1703
      %v1705 = vadd.f32 %v1701, %v1704
      %vm1706 = vweird.f32 %v1161
      %vm1707 = vweird.f32 %v1701
      %vm1708 = vmor %vm1706, %vm1707
      %v1709 = vsel %vm1708, %v1701, %v1705
      %v1710 = vand.u32 2147483647, %v1161
      %vm1711 = vcmp.eq.f32.partialorder %v1710, 8.507059e+37
      %v1712 = vand.u32 %v1161, 2147483648
      %v1713 = vor.u32 1.1754944e-38, %v1712
      %v1714 = vsel %vm1711, %v1713, %v1709
      %v1715 = vmul.f32 1.0, %v1714
      %v1716 = vrcp.pop %v1162
      %v1717 = vmul.f32 %v1162, %v1716
      %v1718 = vsub.f32 1.0, %v1717
      %v1719 = vmul.f32 %v1716, %v1718
      %v1720 = vadd.f32 %v1716, %v1719
      %vm1721 = vweird.f32 %v1162
      %vm1722 = vweird.f32 %v1716
      %vm1723 = vmor %vm1721, %vm1722
      %v1724 = vsel %vm1723, %v1716, %v1720
      %v1725 = vand.u32 2147483647, %v1162
      %vm1726 = vcmp.eq.f32.partialorder %v1725, 8.507059e+37
      %v1727 = vand.u32 %v1162, 2147483648
      %v1728 = vor.u32 1.1754944e-38, %v1727
      %v1729 = vsel %vm1726, %v1728, %v1724
      %v1730 = vmul.f32 1.0, %v1729
      %v1731 = vrcp.pop %v1163
      %v1732 = vmul.f32 %v1163, %v1731
      %v1733 = vsub.f32 1.0, %v1732
      %v1734 = vmul.f32 %v1731, %v1733
      %v1735 = vadd.f32 %v1731, %v1734
      %vm1736 = vweird.f32 %v1163
      %vm1737 = vweird.f32 %v1731
      %vm1738 = vmor %vm1736, %vm1737
      %v1739 = vsel %vm1738, %v1731, %v1735
      %v1740 = vand.u32 2147483647, %v1163
      %vm1741 = vcmp.eq.f32.partialorder %v1740, 8.507059e+37
      %v1742 = vand.u32 %v1163, 2147483648
      %v1743 = vor.u32 1.1754944e-38, %v1742
      %v1744 = vsel %vm1741, %v1743, %v1739
      %v1745 = vmul.f32 1.0, %v1744
      %v1746 = vrcp.pop %v1164
      %v1747 = vmul.f32 %v1164, %v1746
      %v1748 = vsub.f32 1.0, %v1747
      %v1749 = vmul.f32 %v1746, %v1748
      %v1750 = vadd.f32 %v1746, %v1749
      %vm1751 = vweird.f32 %v1164
      %vm1752 = vweird.f32 %v1746
      %vm1753 = vmor %vm1751, %vm1752
      %v1754 = vsel %vm1753, %v1746, %v1750
      %v1755 = vand.u32 2147483647, %v1164
      %vm1756 = vcmp.eq.f32.partialorder %v1755, 8.507059e+37
      %v1757 = vand.u32 %v1164, 2147483648
      %v1758 = vor.u32 1.1754944e-38, %v1757
      %v1759 = vsel %vm1756, %v1758, %v1754
      %v1760 = vmul.f32 1.0, %v1759
      %v1761 = vrcp.pop %v1165
      %v1762 = vmul.f32 %v1165, %v1761
      %v1763 = vsub.f32 1.0, %v1762
      %v1764 = vmul.f32 %v1761, %v1763
      %v1765 = vadd.f32 %v1761, %v1764
      %vm1766 = vweird.f32 %v1165
      %vm1767 = vweird.f32 %v1761
      %vm1768 = vmor %vm1766, %vm1767
      %v1769 = vsel %vm1768, %v1761, %v1765
      %v1770 = vand.u32 2147483647, %v1165
      %vm1771 = vcmp.eq.f32.partialorder %v1770, 8.507059e+37
      %v1772 = vand.u32 %v1165, 2147483648
      %v1773 = vor.u32 1.1754944e-38, %v1772
      %v1774 = vsel %vm1771, %v1773, %v1769
      %v1775 = vmul.f32 1.0, %v1774
      %v1776 = vrcp.pop %v1166
      %v1777 = vmul.f32 %v1166, %v1776
      %v1778 = vsub.f32 1.0, %v1777
      %v1779 = vmul.f32 %v1776, %v1778
      %v1780 = vadd.f32 %v1776, %v1779
      %vm1781 = vweird.f32 %v1166
      %vm1782 = vweird.f32 %v1776
      %vm1783 = vmor %vm1781, %vm1782
      %v1784 = vsel %vm1783, %v1776, %v1780
      %v1785 = vand.u32 2147483647, %v1166
      %vm1786 = vcmp.eq.f32.partialorder %v1785, 8.507059e+37
      %v1787 = vand.u32 %v1166, 2147483648
      %v1788 = vor.u32 1.1754944e-38, %v1787
      %v1789 = vsel %vm1786, %v1788, %v1784
      %v1790 = vmul.f32 1.0, %v1789
      %v1791 = vrcp.pop %v1167
      %v1792 = vmul.f32 %v1167, %v1791
      %v1793 = vsub.f32 1.0, %v1792
      %v1794 = vmul.f32 %v1791, %v1793
      %v1795 = vadd.f32 %v1791, %v1794
      %vm1796 = vweird.f32 %v1167
      %vm1797 = vweird.f32 %v1791
      %vm1798 = vmor %vm1796, %vm1797
      %v1799 = vsel %vm1798, %v1791, %v1795
      %v1800 = vand.u32 2147483647, %v1167
      %vm1801 = vcmp.eq.f32.partialorder %v1800, 8.507059e+37
      %v1802 = vand.u32 %v1167, 2147483648
      %v1803 = vor.u32 1.1754944e-38, %v1802
      %v1804 = vsel %vm1801, %v1803, %v1799
      %v1805 = vmul.f32 1.0, %v1804
      %v1806 = vrcp.pop %v1168
      %v1807 = vmul.f32 %v1168, %v1806
      %v1808 = vsub.f32 1.0, %v1807
      %v1809 = vmul.f32 %v1806, %v1808
      %v1810 = vadd.f32 %v1806, %v1809
      %vm1811 = vweird.f32 %v1168
      %vm1812 = vweird.f32 %v1806
      %vm1813 = vmor %vm1811, %vm1812
      %v1814 = vsel %vm1813, %v1806, %v1810
      %v1815 = vand.u32 2147483647, %v1168
      %vm1816 = vcmp.eq.f32.partialorder %v1815, 8.507059e+37
      %v1817 = vand.u32 %v1168, 2147483648
      %v1818 = vor.u32 1.1754944e-38, %v1817
      %v1819 = vsel %vm1816, %v1818, %v1814
      %v1820 = vmul.f32 1.0, %v1819
      %v1821 = vrcp.pop %v1169
      %v1822 = vmul.f32 %v1169, %v1821
      %v1823 = vsub.f32 1.0, %v1822
      %v1824 = vmul.f32 %v1821, %v1823
      %v1825 = vadd.f32 %v1821, %v1824
      %vm1826 = vweird.f32 %v1169
      %vm1827 = vweird.f32 %v1821
      %vm1828 = vmor %vm1826, %vm1827
      %v1829 = vsel %vm1828, %v1821, %v1825
      %v1830 = vand.u32 2147483647, %v1169
      %vm1831 = vcmp.eq.f32.partialorder %v1830, 8.507059e+37
      %v1832 = vand.u32 %v1169, 2147483648
      %v1833 = vor.u32 1.1754944e-38, %v1832
      %v1834 = vsel %vm1831, %v1833, %v1829
      %v1835 = vmul.f32 1.0, %v1834
      %v1836 = vrcp.pop %v1170
      %v1837 = vmul.f32 %v1170, %v1836
      %v1838 = vsub.f32 1.0, %v1837
      %v1839 = vmul.f32 %v1836, %v1838
      %v1840 = vadd.f32 %v1836, %v1839
      %vm1841 = vweird.f32 %v1170
      %vm1842 = vweird.f32 %v1836
      %vm1843 = vmor %vm1841, %vm1842
      %v1844 = vsel %vm1843, %v1836, %v1840
      %v1845 = vand.u32 2147483647, %v1170
      %vm1846 = vcmp.eq.f32.partialorder %v1845, 8.507059e+37
      %v1847 = vand.u32 %v1170, 2147483648
      %v1848 = vor.u32 1.1754944e-38, %v1847
      %v1849 = vsel %vm1846, %v1848, %v1844
      %v1850 = vmul.f32 1.0, %v1849
      %v1851 = vrcp.pop %v1171
      %v1852 = vmul.f32 %v1171, %v1851
      %v1853 = vsub.f32 1.0, %v1852
      %v1854 = vmul.f32 %v1851, %v1853
      %v1855 = vadd.f32 %v1851, %v1854
      %vm1856 = vweird.f32 %v1171
      %vm1857 = vweird.f32 %v1851
      %vm1858 = vmor %vm1856, %vm1857
      %v1859 = vsel %vm1858, %v1851, %v1855
      %v1860 = vand.u32 2147483647, %v1171
      %vm1861 = vcmp.eq.f32.partialorder %v1860, 8.507059e+37
      %v1862 = vand.u32 %v1171, 2147483648
      %v1863 = vor.u32 1.1754944e-38, %v1862
      %v1864 = vsel %vm1861, %v1863, %v1859
      %v1865 = vmul.f32 1.0, %v1864
      %v1866 = vrcp.pop %v1172
      %v1867 = vmul.f32 %v1172, %v1866
      %v1868 = vsub.f32 1.0, %v1867
      %v1869 = vmul.f32 %v1866, %v1868
      %v1870 = vadd.f32 %v1866, %v1869
      %vm1871 = vweird.f32 %v1172
      %vm1872 = vweird.f32 %v1866
      %vm1873 = vmor %vm1871, %vm1872
      %v1874 = vsel %vm1873, %v1866, %v1870
      %v1875 = vand.u32 2147483647, %v1172
      %vm1876 = vcmp.eq.f32.partialorder %v1875, 8.507059e+37
      %v1877 = vand.u32 %v1172, 2147483648
      %v1878 = vor.u32 1.1754944e-38, %v1877
      %v1879 = vsel %vm1876, %v1878, %v1874
      %v1880 = vmul.f32 1.0, %v1879
      %v1881 = vrcp.pop %v1173
      %v1882 = vmul.f32 %v1173, %v1881
      %v1883 = vsub.f32 1.0, %v1882
      %v1884 = vmul.f32 %v1881, %v1883
      %v1885 = vadd.f32 %v1881, %v1884
      %vm1886 = vweird.f32 %v1173
      %vm1887 = vweird.f32 %v1881
      %vm1888 = vmor %vm1886, %vm1887
      %v1889 = vsel %vm1888, %v1881, %v1885
      %v1890 = vand.u32 2147483647, %v1173
      %vm1891 = vcmp.eq.f32.partialorder %v1890, 8.507059e+37
      %v1892 = vand.u32 %v1173, 2147483648
      %v1893 = vor.u32 1.1754944e-38, %v1892
      %v1894 = vsel %vm1891, %v1893, %v1889
      %v1895 = vmul.f32 1.0, %v1894
      %v1896 = vrcp.pop %v1174
      %v1897 = vmul.f32 %v1174, %v1896
      %v1898 = vsub.f32 1.0, %v1897
      %v1899 = vmul.f32 %v1896, %v1898
      %v1900 = vadd.f32 %v1896, %v1899
      %vm1901 = vweird.f32 %v1174
      %vm1902 = vweird.f32 %v1896
      %vm1903 = vmor %vm1901, %vm1902
      %v1904 = vsel %vm1903, %v1896, %v1900
      %v1905 = vand.u32 2147483647, %v1174
      %vm1906 = vcmp.eq.f32.partialorder %v1905, 8.507059e+37
      %v1907 = vand.u32 %v1174, 2147483648
      %v1908 = vor.u32 1.1754944e-38, %v1907
      %v1909 = vsel %vm1906, %v1908, %v1904
      %v1910 = vmul.f32 1.0, %v1909
      %v1911 = vrcp.pop %v1175
      %v1912 = vmul.f32 %v1175, %v1911
      %v1913 = vsub.f32 1.0, %v1912
      %v1914 = vmul.f32 %v1911, %v1913
      %v1915 = vadd.f32 %v1911, %v1914
      %vm1916 = vweird.f32 %v1175
      %vm1917 = vweird.f32 %v1911
      %vm1918 = vmor %vm1916, %vm1917
      %v1919 = vsel %vm1918, %v1911, %v1915
      %v1920 = vand.u32 2147483647, %v1175
      %vm1921 = vcmp.eq.f32.partialorder %v1920, 8.507059e+37
      %v1922 = vand.u32 %v1175, 2147483648
      %v1923 = vor.u32 1.1754944e-38, %v1922
      %v1924 = vsel %vm1921, %v1923, %v1919
      %v1925 = vmul.f32 1.0, %v1924
      %v1926 = vrcp.pop %v1176
      %v1927 = vmul.f32 %v1176, %v1926
      %v1928 = vsub.f32 1.0, %v1927
      %v1929 = vmul.f32 %v1926, %v1928
      %v1930 = vadd.f32 %v1926, %v1929
      %vm1931 = vweird.f32 %v1176
      %vm1932 = vweird.f32 %v1926
      %vm1933 = vmor %vm1931, %vm1932
      %v1934 = vsel %vm1933, %v1926, %v1930
      %v1935 = vand.u32 2147483647, %v1176
      %vm1936 = vcmp.eq.f32.partialorder %v1935, 8.507059e+37
      %v1937 = vand.u32 %v1176, 2147483648
      %v1938 = vor.u32 1.1754944e-38, %v1937
      %v1939 = vsel %vm1936, %v1938, %v1934
      %v1940 = vmul.f32 1.0, %v1939
      %v1941 = vrcp.pop %v1177
      %v1942 = vmul.f32 %v1177, %v1941
      %v1943 = vsub.f32 1.0, %v1942
      %v1944 = vmul.f32 %v1941, %v1943
      %v1945 = vadd.f32 %v1941, %v1944
      %vm1946 = vweird.f32 %v1177
      %vm1947 = vweird.f32 %v1941
      %vm1948 = vmor %vm1946, %vm1947
      %v1949 = vsel %vm1948, %v1941, %v1945
      %v1950 = vand.u32 2147483647, %v1177
      %vm1951 = vcmp.eq.f32.partialorder %v1950, 8.507059e+37
      %v1952 = vand.u32 %v1177, 2147483648
      %v1953 = vor.u32 1.1754944e-38, %v1952
      %v1954 = vsel %vm1951, %v1953, %v1949
      %v1955 = vmul.f32 1.0, %v1954
      %v1956 = vrcp.pop %v1178
      %v1957 = vmul.f32 %v1178, %v1956
      %v1958 = vsub.f32 1.0, %v1957
      %v1959 = vmul.f32 %v1956, %v1958
      %v1960 = vadd.f32 %v1956, %v1959
      %vm1961 = vweird.f32 %v1178
      %vm1962 = vweird.f32 %v1956
      %vm1963 = vmor %vm1961, %vm1962
      %v1964 = vsel %vm1963, %v1956, %v1960
      %v1965 = vand.u32 2147483647, %v1178
      %vm1966 = vcmp.eq.f32.partialorder %v1965, 8.507059e+37
      %v1967 = vand.u32 %v1178, 2147483648
      %v1968 = vor.u32 1.1754944e-38, %v1967
      %v1969 = vsel %vm1966, %v1968, %v1964
      %v1970 = vmul.f32 1.0, %v1969
      %v1971 = vrcp.pop %v1179
      %v1972 = vmul.f32 %v1179, %v1971
      %v1973 = vsub.f32 1.0, %v1972
      %v1974 = vmul.f32 %v1971, %v1973
      %v1975 = vadd.f32 %v1971, %v1974
      %vm1976 = vweird.f32 %v1179
      %vm1977 = vweird.f32 %v1971
      %vm1978 = vmor %vm1976, %vm1977
      %v1979 = vsel %vm1978, %v1971, %v1975
      %v1980 = vand.u32 2147483647, %v1179
      %vm1981 = vcmp.eq.f32.partialorder %v1980, 8.507059e+37
      %v1982 = vand.u32 %v1179, 2147483648
      %v1983 = vor.u32 1.1754944e-38, %v1982
      %v1984 = vsel %vm1981, %v1983, %v1979
      %v1985 = vmul.f32 1.0, %v1984
      %v1986 = vrcp.pop %v1180
      %v1987 = vmul.f32 %v1180, %v1986
      %v1988 = vsub.f32 1.0, %v1987
      %v1989 = vmul.f32 %v1986, %v1988
      %v1990 = vadd.f32 %v1986, %v1989
      %vm1991 = vweird.f32 %v1180
      %vm1992 = vweird.f32 %v1986
      %vm1993 = vmor %vm1991, %vm1992
      %v1994 = vsel %vm1993, %v1986, %v1990
      %v1995 = vand.u32 2147483647, %v1180
      %vm1996 = vcmp.eq.f32.partialorder %v1995, 8.507059e+37
      %v1997 = vand.u32 %v1180, 2147483648
      %v1998 = vor.u32 1.1754944e-38, %v1997
      %v1999 = vsel %vm1996, %v1998, %v1994
      %v2000 = vmul.f32 1.0, %v1999
      %v2001 = vrcp.pop %v1181
      %v2002 = vmul.f32 %v1181, %v2001
      %v2003 = vsub.f32 1.0, %v2002
      %v2004 = vmul.f32 %v2001, %v2003
      %v2005 = vadd.f32 %v2001, %v2004
      %vm2006 = vweird.f32 %v1181
      %vm2007 = vweird.f32 %v2001
      %vm2008 = vmor %vm2006, %vm2007
      %v2009 = vsel %vm2008, %v2001, %v2005
      %v2010 = vand.u32 2147483647, %v1181
      %vm2011 = vcmp.eq.f32.partialorder %v2010, 8.507059e+37
      %v2012 = vand.u32 %v1181, 2147483648
      %v2013 = vor.u32 1.1754944e-38, %v2012
      %v2014 = vsel %vm2011, %v2013, %v2009
      %v2015 = vmul.f32 1.0, %v2014
      %v2016 = vrcp.pop %v1182
      %v2017 = vmul.f32 %v1182, %v2016
      %v2018 = vsub.f32 1.0, %v2017
      %v2019 = vmul.f32 %v2016, %v2018
      %v2020 = vadd.f32 %v2016, %v2019
      %vm2021 = vweird.f32 %v1182
      %vm2022 = vweird.f32 %v2016
      %vm2023 = vmor %vm2021, %vm2022
      %v2024 = vsel %vm2023, %v2016, %v2020
      %v2025 = vand.u32 2147483647, %v1182
      %vm2026 = vcmp.eq.f32.partialorder %v2025, 8.507059e+37
      %v2027 = vand.u32 %v1182, 2147483648
      %v2028 = vor.u32 1.1754944e-38, %v2027
      %v2029 = vsel %vm2026, %v2028, %v2024
      %v2030 = vmul.f32 1.0, %v2029
      %v2031 = vrcp.pop %v1183
      %v2032 = vmul.f32 %v1183, %v2031
      %v2033 = vsub.f32 1.0, %v2032
      %v2034 = vmul.f32 %v2031, %v2033
      %v2035 = vadd.f32 %v2031, %v2034
      %vm2036 = vweird.f32 %v1183
      %vm2037 = vweird.f32 %v2031
      %vm2038 = vmor %vm2036, %vm2037
      %v2039 = vsel %vm2038, %v2031, %v2035
      %v2040 = vand.u32 2147483647, %v1183
      %vm2041 = vcmp.eq.f32.partialorder %v2040, 8.507059e+37
      %v2042 = vand.u32 %v1183, 2147483648
      %v2043 = vor.u32 1.1754944e-38, %v2042
      %v2044 = vsel %vm2041, %v2043, %v2039
      %v2045 = vmul.f32 1.0, %v2044
      %v2046 = vrcp.pop %v1184
      %v2047 = vmul.f32 %v1184, %v2046
      %v2048 = vsub.f32 1.0, %v2047
      %v2049 = vmul.f32 %v2046, %v2048
      %v2050 = vadd.f32 %v2046, %v2049
      %vm2051 = vweird.f32 %v1184
      %vm2052 = vweird.f32 %v2046
      %vm2053 = vmor %vm2051, %vm2052
      %v2054 = vsel %vm2053, %v2046, %v2050
      %v2055 = vand.u32 2147483647, %v1184
      %vm2056 = vcmp.eq.f32.partialorder %v2055, 8.507059e+37
      %v2057 = vand.u32 %v1184, 2147483648
      %v2058 = vor.u32 1.1754944e-38, %v2057
      %v2059 = vsel %vm2056, %v2058, %v2054
      %v2060 = vmul.f32 1.0, %v2059
      %v2061 = vrcp.pop %v1185
      %v2062 = vmul.f32 %v1185, %v2061
      %v2063 = vsub.f32 1.0, %v2062
      %v2064 = vmul.f32 %v2061, %v2063
      %v2065 = vadd.f32 %v2061, %v2064
      %vm2066 = vweird.f32 %v1185
      %vm2067 = vweird.f32 %v2061
      %vm2068 = vmor %vm2066, %vm2067
      %v2069 = vsel %vm2068, %v2061, %v2065
      %v2070 = vand.u32 2147483647, %v1185
      %vm2071 = vcmp.eq.f32.partialorder %v2070, 8.507059e+37
      %v2072 = vand.u32 %v1185, 2147483648
      %v2073 = vor.u32 1.1754944e-38, %v2072
      %v2074 = vsel %vm2071, %v2073, %v2069
      %v2075 = vmul.f32 1.0, %v2074
      %v2076 = vrcp.pop %v1186
      %v2077 = vmul.f32 %v1186, %v2076
      %v2078 = vsub.f32 1.0, %v2077
      %v2079 = vmul.f32 %v2076, %v2078
      %v2080 = vadd.f32 %v2076, %v2079
      %vm2081 = vweird.f32 %v1186
      %vm2082 = vweird.f32 %v2076
      %vm2083 = vmor %vm2081, %vm2082
      %v2084 = vsel %vm2083, %v2076, %v2080
      %v2085 = vand.u32 2147483647, %v1186
      %vm2086 = vcmp.eq.f32.partialorder %v2085, 8.507059e+37
      %v2087 = vand.u32 %v1186, 2147483648
      %v2088 = vor.u32 1.1754944e-38, %v2087
      %v2089 = vsel %vm2086, %v2088, %v2084
      %v2090 = vmul.f32 1.0, %v2089
      %v2091 = vrcp.pop %v1187
      %v2092 = vmul.f32 %v1187, %v2091
      %v2093 = vsub.f32 1.0, %v2092
      %v2094 = vmul.f32 %v2091, %v2093
      %v2095 = vadd.f32 %v2091, %v2094
      %vm2096 = vweird.f32 %v1187
      %vm2097 = vweird.f32 %v2091
      %vm2098 = vmor %vm2096, %vm2097
      %v2099 = vsel %vm2098, %v2091, %v2095
      %v2100 = vand.u32 2147483647, %v1187
      %vm2101 = vcmp.eq.f32.partialorder %v2100, 8.507059e+37
      %v2102 = vand.u32 %v1187, 2147483648
      %v2103 = vor.u32 1.1754944e-38, %v2102
      %v2104 = vsel %vm2101, %v2103, %v2099
      %v2105 = vmul.f32 1.0, %v2104
      %v2106 = vrcp.pop %v1188
      %v2107 = vmul.f32 %v1188, %v2106
      %v2108 = vsub.f32 1.0, %v2107
      %v2109 = vmul.f32 %v2106, %v2108
      %v2110 = vadd.f32 %v2106, %v2109
      %vm2111 = vweird.f32 %v1188
      %vm2112 = vweird.f32 %v2106
      %vm2113 = vmor %vm2111, %vm2112
      %v2114 = vsel %vm2113, %v2106, %v2110
      %v2115 = vand.u32 2147483647, %v1188
      %vm2116 = vcmp.eq.f32.partialorder %v2115, 8.507059e+37
      %v2117 = vand.u32 %v1188, 2147483648
      %v2118 = vor.u32 1.1754944e-38, %v2117
      %v2119 = vsel %vm2116, %v2118, %v2114
      %v2120 = vmul.f32 1.0, %v2119
      %v2121 = vrcp.pop %v1189
      %v2122 = vmul.f32 %v1189, %v2121
      %v2123 = vsub.f32 1.0, %v2122
      %v2124 = vmul.f32 %v2121, %v2123
      %v2125 = vadd.f32 %v2121, %v2124
      %vm2126 = vweird.f32 %v1189
      %vm2127 = vweird.f32 %v2121
      %vm2128 = vmor %vm2126, %vm2127
      %v2129 = vsel %vm2128, %v2121, %v2125
      %v2130 = vand.u32 2147483647, %v1189
      %vm2131 = vcmp.eq.f32.partialorder %v2130, 8.507059e+37
      %v2132 = vand.u32 %v1189, 2147483648
      %v2133 = vor.u32 1.1754944e-38, %v2132
      %v2134 = vsel %vm2131, %v2133, %v2129
      %v2135 = vmul.f32 1.0, %v2134
      %v2136 = vrcp.pop %v1190
      %v2137 = vmul.f32 %v1190, %v2136
      %v2138 = vsub.f32 1.0, %v2137
      %v2139 = vmul.f32 %v2136, %v2138
      %v2140 = vadd.f32 %v2136, %v2139
      %vm2141 = vweird.f32 %v1190
      %vm2142 = vweird.f32 %v2136
      %vm2143 = vmor %vm2141, %vm2142
      %v2144 = vsel %vm2143, %v2136, %v2140
      %v2145 = vand.u32 2147483647, %v1190
      %vm2146 = vcmp.eq.f32.partialorder %v2145, 8.507059e+37
      %v2147 = vand.u32 %v1190, 2147483648
      %v2148 = vor.u32 1.1754944e-38, %v2147
      %v2149 = vsel %vm2146, %v2148, %v2144
      %v2150 = vmul.f32 1.0, %v2149
      %v2151 = vmul.f32 %v871, %v1205
      %v2152 = vmul.f32 %v872, %v1220
      %v2153 = vmul.f32 %v873, %v1235
      %v2154 = vmul.f32 %v874, %v1250
      %v2155 = vmul.f32 %v875, %v1265
      %v2156 = vmul.f32 %v876, %v1280
      %v2157 = vmul.f32 %v877, %v1295
      %v2158 = vmul.f32 %v878, %v1310
      %v2159 = vmul.f32 %v879, %v1325
      %v2160 = vmul.f32 %v880, %v1340
      %v2161 = vmul.f32 %v881, %v1355
      %v2162 = vmul.f32 %v882, %v1370
      %v2163 = vmul.f32 %v883, %v1385
      %v2164 = vmul.f32 %v884, %v1400
      %v2165 = vmul.f32 %v885, %v1415
      %v2166 = vmul.f32 %v886, %v1430
      %v2167 = vmul.f32 %v887, %v1445
      %v2168 = vmul.f32 %v888, %v1460
      %v2169 = vmul.f32 %v889, %v1475
      %v2170 = vmul.f32 %v890, %v1490
      %v2171 = vmul.f32 %v891, %v1505
      %v2172 = vmul.f32 %v892, %v1520
      %v2173 = vmul.f32 %v893, %v1535
      %v2174 = vmul.f32 %v894, %v1550
      %v2175 = vmul.f32 %v895, %v1565
      %v2176 = vmul.f32 %v896, %v1580
      %v2177 = vmul.f32 %v897, %v1595
      %v2178 = vmul.f32 %v898, %v1610
      %v2179 = vmul.f32 %v899, %v1625
      %v2180 = vmul.f32 %v900, %v1640
      %v2181 = vmul.f32 %v901, %v1655
      %v2182 = vmul.f32 %v902, %v1670
      %v2183 = vmul.f32 %v903, %v1685
      %v2184 = vmul.f32 %v904, %v1700
      %v2185 = vmul.f32 %v905, %v1715
      %v2186 = vmul.f32 %v906, %v1730
      %v2187 = vmul.f32 %v907, %v1745
      %v2188 = vmul.f32 %v908, %v1760
      %v2189 = vmul.f32 %v909, %v1775
      %v2190 = vmul.f32 %v910, %v1790
      %v2191 = vmul.f32 %v911, %v1805
      %v2192 = vmul.f32 %v912, %v1820
      %v2193 = vmul.f32 %v913, %v1835
      %v2194 = vmul.f32 %v914, %v1850
      %v2195 = vmul.f32 %v915, %v1865
      %v2196 = vmul.f32 %v916, %v1880
      %v2197 = vmul.f32 %v917, %v1895
      %v2198 = vmul.f32 %v918, %v1910
      %v2199 = vmul.f32 %v919, %v1925
      %v2200 = vmul.f32 %v920, %v1940
      %v2201 = vmul.f32 %v921, %v1955
      %v2202 = vmul.f32 %v922, %v1970
      %v2203 = vmul.f32 %v923, %v1985
      %v2204 = vmul.f32 %v924, %v2000
      %v2205 = vmul.f32 %v925, %v2015
      %v2206 = vmul.f32 %v926, %v2030
      %v2207 = vmul.f32 %v927, %v2045
      %v2208 = vmul.f32 %v928, %v2060
      %v2209 = vmul.f32 %v929, %v2075
      %v2210 = vmul.f32 %v930, %v2090
      %v2211 = vmul.f32 %v931, %v2105
      %v2212 = vmul.f32 %v932, %v2120
      %v2213 = vmul.f32 %v933, %v2135
      %v2214 = vmul.f32 %v934, %v2150
      %vm2215 = vcmask 130048
      %2216 = vst.msk [vmem:[%s270] sm:$0xff] %vm2215, %v2151
      %2217 = vst.msk [vmem:[%s270 + $0x8] sm:$0xff] %vm2215, %v2152
      %2218 = vst.msk [vmem:[%s270 + $0x10] sm:$0xff] %vm2215, %v2153
      %2219 = vst.msk [vmem:[%s270 + $0x18] sm:$0xff] %vm2215, %v2154
      %2220 = vst.msk [vmem:[%s270 + $0x20] sm:$0xff] %vm2215, %v2155
      %2221 = vst.msk [vmem:[%s270 + $0x28] sm:$0xff] %vm2215, %v2156
      %2222 = vst.msk [vmem:[%s270 + $0x30] sm:$0xff] %vm2215, %v2157
      %2223 = vst.msk [vmem:[%s270 + $0x38] sm:$0xff] %vm2215, %v2158
      %2224 = vst.msk [vmem:[%s270 + $0x40] sm:$0xff] %vm2215, %v2159
      %2225 = vst.msk [vmem:[%s270 + $0x48] sm:$0xff] %vm2215, %v2160
      %2226 = vst.msk [vmem:[%s270 + $0x50] sm:$0xff] %vm2215, %v2161
      %2227 = vst.msk [vmem:[%s270 + $0x58] sm:$0xff] %vm2215, %v2162
      %2228 = vst.msk [vmem:[%s270 + $0x60] sm:$0xff] %vm2215, %v2163
      %2229 = vst.msk [vmem:[%s270 + $0x68] sm:$0xff] %vm2215, %v2164
      %2230 = vst.msk [vmem:[%s270 + $0x70] sm:$0xff] %vm2215, %v2165
      %2231 = vst.msk [vmem:[%s270 + $0x78] sm:$0xff] %vm2215, %v2166
      %2232 = vst.msk [vmem:[%s270 + $0x80] sm:$0xff] %vm2215, %v2167
      %2233 = vst.msk [vmem:[%s270 + $0x88] sm:$0xff] %vm2215, %v2168
      %2234 = vst.msk [vmem:[%s270 + $0x90] sm:$0xff] %vm2215, %v2169
      %2235 = vst.msk [vmem:[%s270 + $0x98] sm:$0xff] %vm2215, %v2170
      %2236 = vst.msk [vmem:[%s270 + $0xa0] sm:$0xff] %vm2215, %v2171
      %2237 = vst.msk [vmem:[%s270 + $0xa8] sm:$0xff] %vm2215, %v2172
      %2238 = vst.msk [vmem:[%s270 + $0xb0] sm:$0xff] %vm2215, %v2173
      %2239 = vst.msk [vmem:[%s270 + $0xb8] sm:$0xff] %vm2215, %v2174
      %2240 = vst.msk [vmem:[%s270 + $0xc0] sm:$0xff] %vm2215, %v2175
      %2241 = vst.msk [vmem:[%s270 + $0xc8] sm:$0xff] %vm2215, %v2176
      %2242 = vst.msk [vmem:[%s270 + $0xd0] sm:$0xff] %vm2215, %v2177
      %2243 = vst.msk [vmem:[%s270 + $0xd8] sm:$0xff] %vm2215, %v2178
      %2244 = vst.msk [vmem:[%s270 + $0xe0] sm:$0xff] %vm2215, %v2179
      %2245 = vst.msk [vmem:[%s270 + $0xe8] sm:$0xff] %vm2215, %v2180
      %2246 = vst.msk [vmem:[%s270 + $0xf0] sm:$0xff] %vm2215, %v2181
      %2247 = vst.msk [vmem:[%s270 + $0xf8] sm:$0xff] %vm2215, %v2182
      %2248 = vst.msk [vmem:[%s270 + $0x100] sm:$0xff] %vm2215, %v2183
      %2249 = vst.msk [vmem:[%s270 + $0x108] sm:$0xff] %vm2215, %v2184
      %2250 = vst.msk [vmem:[%s270 + $0x110] sm:$0xff] %vm2215, %v2185
      %2251 = vst.msk [vmem:[%s270 + $0x118] sm:$0xff] %vm2215, %v2186
      %2252 = vst.msk [vmem:[%s270 + $0x120] sm:$0xff] %vm2215, %v2187
      %2253 = vst.msk [vmem:[%s270 + $0x128] sm:$0xff] %vm2215, %v2188
      %2254 = vst.msk [vmem:[%s270 + $0x130] sm:$0xff] %vm2215, %v2189
      %2255 = vst.msk [vmem:[%s270 + $0x138] sm:$0xff] %vm2215, %v2190
      %2256 = vst.msk [vmem:[%s270 + $0x140] sm:$0xff] %vm2215, %v2191
      %2257 = vst.msk [vmem:[%s270 + $0x148] sm:$0xff] %vm2215, %v2192
      %2258 = vst.msk [vmem:[%s270 + $0x150] sm:$0xff] %vm2215, %v2193
      %2259 = vst.msk [vmem:[%s270 + $0x158] sm:$0xff] %vm2215, %v2194
      %2260 = vst.msk [vmem:[%s270 + $0x160] sm:$0xff] %vm2215, %v2195
      %2261 = vst.msk [vmem:[%s270 + $0x168] sm:$0xff] %vm2215, %v2196
      %2262 = vst.msk [vmem:[%s270 + $0x170] sm:$0xff] %vm2215, %v2197
      %2263 = vst.msk [vmem:[%s270 + $0x178] sm:$0xff] %vm2215, %v2198
      %2264 = vst.msk [vmem:[%s270 + $0x180] sm:$0xff] %vm2215, %v2199
      %2265 = vst.msk [vmem:[%s270 + $0x188] sm:$0xff] %vm2215, %v2200
      %2266 = vst.msk [vmem:[%s270 + $0x190] sm:$0xff] %vm2215, %v2201
      %2267 = vst.msk [vmem:[%s270 + $0x198] sm:$0xff] %vm2215, %v2202
      %2268 = vst.msk [vmem:[%s270 + $0x1a0] sm:$0xff] %vm2215, %v2203
      %2269 = vst.msk [vmem:[%s270 + $0x1a8] sm:$0xff] %vm2215, %v2204
      %2270 = vst.msk [vmem:[%s270 + $0x1b0] sm:$0xff] %vm2215, %v2205
      %2271 = vst.msk [vmem:[%s270 + $0x1b8] sm:$0xff] %vm2215, %v2206
      %2272 = vst.msk [vmem:[%s270 + $0x1c0] sm:$0xff] %vm2215, %v2207
      %2273 = vst.msk [vmem:[%s270 + $0x1c8] sm:$0xff] %vm2215, %v2208
      %2274 = vst.msk [vmem:[%s270 + $0x1d0] sm:$0xff] %vm2215, %v2209
      %2275 = vst.msk [vmem:[%s270 + $0x1d8] sm:$0xff] %vm2215, %v2210
      %2276 = vst.msk [vmem:[%s270 + $0x1e0] sm:$0xff] %vm2215, %v2211
      %2277 = vst.msk [vmem:[%s270 + $0x1e8] sm:$0xff] %vm2215, %v2212
      %2278 = vst.msk [vmem:[%s270 + $0x1f0] sm:$0xff] %vm2215, %v2213
      %2279 = vst.msk [vmem:[%s270 + $0x1f8] sm:$0xff] %vm2215, %v2214
      %s2280 = smul.u32 64, %s16
      %p2281 = scmp.lt.s32.totalorder %s2280, 255
      %s2282 = scalar_select %p2281, %s2280, 255
      %s2283 = smul.addr %s2282, 8
      %s2284 = scalar_lea.vmem %s5, %s2283
      // Predicated region
      $region41: #{esa_pallas.13} parent=39 // pred_check
        %p2285 = pneg %p154
      $region42: #{esa_pallas.13} parent=39 // pred_check_branch
        %2287 = sbr.rel (%p2285) target = $region44
      $region43: #{esa_pallas.13} parent=39 // pred_region
        %s2288 = smul.u32 64, %s16
      $region44: #{esa_pallas.13} parent=39 // pred_fallthru
        _
    $region40: #{esa_pallas.13} parent=5 // pred_fallthru
      _
    %p2289 = scmp.le.s32.totalorder 2, %s11
    // Predicated region
    $region45: #{esa_pallas.13} parent=5 // pred_check
      %p2290 = pneg %p2289
    $region46: #{esa_pallas.13} parent=5 // pred_check_branch
      %2292 = sbr.rel (%p2290) target = $region48
    $region47: #{esa_pallas.13} parent=5 // pred_region
      %s2293 = ssub.s32 %s11, 2
      // Predicated region
      $region49: #{esa_pallas.13} parent=47 // pred_check
        %p2294 = pneg %p160
      $region50: #{esa_pallas.13} parent=47 // pred_check_branch
        %2296 = sbr.rel (%p2294) target = $region52
      $region51: #{esa_pallas.13} parent=47 // pred_region
        %s2297 = smul.u32 64, %s17
        %p2298 = scmp.lt.s32.totalorder %s2297, 255
        %s2299 = scalar_select %p2298, %s2297, 255
        %s2300 = smul.addr %s2299, 8
        %s2301 = scalar_lea.vmem %s5, %s2300
      $region52: #{esa_pallas.13} parent=47 // pred_fallthru
        _
    $region48: #{esa_pallas.13} parent=5 // pred_fallthru
      _
  $region6: #{esa_pallas.13} parent=0 // loop_footer
    %s15 = sadd.s32 1, %s11
  $region7: #{esa_pallas.13} parent=0 // loop_footer_branch
    %10 = sbr.rel target = $region3
  $region8: #{esa_pallas.13} parent=0 // loop_exit
    _

</llo_original>
